<compile_context>
chip_gen: v7x
topology: tpu7x:2x2x1
jax: 0.10.0
libtpu: 0.0.40
codegen_flags: <defaults>
</compile_context>

<pallas_src>
import functools

import numpy as np

import jax
import jax.numpy as jnp
from jax import lax
from jax.experimental import pallas as pl
from jax.experimental.pallas import tpu as pltpu


# ----------------------------------------------------------------------------
# Per-generation budgets
# ----------------------------------------------------------------------------
def _tpu_vmem_capacity():
    cap = 64 * 1024 * 1024  # v7x per-TC capacity: safe lower bound
    try:
        info = pltpu.get_tpu_info()
        cap = int(getattr(info, "vmem_capacity_bytes", cap))
    except Exception:
        pass
    return cap


_VMEM_CAP = _tpu_vmem_capacity()
_VMEM_LIMIT = min(int(_VMEM_CAP * 0.65), 96 * 1024 * 1024)
_BLOCK_BUDGET = max(2 * 1024 * 1024, _VMEM_CAP // 16)   # bytes per pipelined block set


def _pick_div(n, cap):
    """Largest divisor of n that is <= cap."""
    d = max(1, min(n, cap))
    while n % d:
        d -= 1
    return d


def _rows_for_budget(h, bytes_per_row):
    return _pick_div(h, max(1, _BLOCK_BUDGET // max(1, bytes_per_row)))


def _pick_cout_tile(c):
    """Lane-dense Cout tile: 256 (MXU-aligned) when it divides, else full."""
    if c > 256 and c % 256 == 0:
        return 256
    return c


def _halo_rows(x, tr):
    """Per-row-block 1-px reflect halo rows: (N, H, W, C) -> (N, H//tr, 2, W, C).

    halo[:, r, 0] = input row r*tr-1 (reflected to row 1 at the top edge),
    halo[:, r, 1] = input row r*tr+tr (reflected to row H-2 at the bottom edge).
    Only 2*(H/tr) rows are gathered -> replaces a full reflect-pad HBM pass.
    """
    N, H, W, C = x.shape
    nrb = H // tr
    idx = []
    for r in range(nrb):
        top = r * tr - 1
        bot = r * tr + tr
        idx.append(1 if top < 0 else top)
        idx.append(H - 2 if bot > H - 1 else bot)
    idx = np.asarray(idx, dtype=np.int32)
    return x[:, idx, :, :].reshape(N, nrb, 2, W, C)


def _conv_weight(w, tc):
    """(Cout, Cin, 3, 3) torch layout -> (3, Cin, ncout*3*tc).

    Last-dim layout is [cout-tile j][dj][co-within-tile] so a (3, Cin, 3*tc)
    block at Cout-tile j carries all three column taps for that tile and the
    kernel slices dj on the lane axis (128-aligned at tc=256).
    """
    Cout, Cin = w.shape[0], w.shape[1]
    ncout = Cout // tc
    w = jnp.transpose(w, (2, 1, 3, 0))          # (di, Cin, dj, Cout)
    w = w.reshape(3, Cin, 3, ncout, tc)
    w = jnp.transpose(w, (0, 1, 3, 2, 4))       # (di, Cin, ncout, dj, tc)
    return w.reshape(3, Cin, ncout * 3 * tc)


def _col_taps(acc, tc, Wo):
    """Combine the per-dj lane slabs of a full-width (tr, Wo, 3*tc) f32 accumulator
    into the conv output with reflect column padding: two shifted slices total."""
    a0 = acc[:, :, 0:tc]              # dj=0: input column j-1
    a1 = acc[:, :, tc:2 * tc]         # dj=1: input column j
    a2 = acc[:, :, 2 * tc:3 * tc]     # dj=2: input column j+1
    left = jnp.concatenate([a0[:, 1:2], a0[:, :Wo - 1]], axis=1)          # col -1 -> 1
    right = jnp.concatenate([a2[:, 1:Wo], a2[:, Wo - 2:Wo - 1]], axis=1)  # col W -> W-2
    return a1 + left + right


# ----------------------------------------------------------------------------
# Kernel 1: ConvTranspose2d(k=2, s=2); the 2x2 scatter is fused into the output
# layout (N, H, 2, W, 2*Cout) whose row-major collapse is (N, 2H, 2W, Cout).
# One fused (th*W, Cin) x (Cin, 4*Cout) MXU matmul, per-kh direct stores.
# ----------------------------------------------------------------------------
def upconv_kernel(x_ref, w_ref, b_ref, o_ref):
    _, th, W, Cin = x_ref.shape
    Cout2 = o_ref.shape[4]                              # == 2*Cout
    x2 = x_ref[0].reshape(th * W, Cin)                  # view when W % 8 == 0
    y = jnp.dot(x2, w_ref[...], preferred_element_type=jnp.float32) + b_ref[...]
    y = y.astype(o_ref.dtype)
    o_ref[0, :, 0, :, :] = y[:, :Cout2].reshape(th, W, Cout2)
    o_ref[0, :, 1, :, :] = y[:, Cout2:].reshape(th, W, Cout2)


def upconv2x2(x, w4, b4):
    N, H, W, Cin = x.shape
    Cout4 = w4.shape[1]
    Cout2 = Cout4 // 2
    # byte-capped row tile: bf16 in + bf16 out + f32 matmul intermediate
    bytes_per_row = W * (Cin * 2 + Cout4 * 2 + Cout4 * 4)
    th = _rows_for_budget(H, bytes_per_row)
    return pl.pallas_call(
        upconv_kernel,
        out_shape=jax.ShapeDtypeStruct((N, H, 2, W, Cout2), jnp.bfloat16),
        grid=(N, H // th),
        in_specs=[
            pl.BlockSpec((1, th, W, Cin), lambda n, r: (n, r, 0, 0)),
            pl.BlockSpec((Cin, Cout4), lambda n, r: (0, 0)),
            pl.BlockSpec((1, Cout4), lambda n, r: (0, 0)),
        ],
        out_specs=pl.BlockSpec((1, th, 2, W, Cout2), lambda n, r: (n, r, 0, 0, 0)),
        compiler_params=pltpu.CompilerParams(
            dimension_semantics=("parallel", "parallel"),
            vmem_limit_bytes=_VMEM_LIMIT),
    )(x, w4, b4)


# ----------------------------------------------------------------------------
# Kernel 2: conv1 = 3x3 reflect conv over two UNPADDED inputs (fused concat),
# row-block tiled with a 1-row halo, bf16 MXU matmuls with f32 accumulation,
# emits BN1 per-block partial sums / sum-of-squares.
# ----------------------------------------------------------------------------
def conv1_kernel(xe_ref, xeh_ref, xu_ref, xuh_ref, we_ref, wu_ref, b_ref,
                 y_ref, s_ref, ss_ref):
    _, tr, Wo, Ce = xe_ref.shape
    Cu = xu_ref.shape[3]
    tc = y_ref.shape[3]
    # assemble the 1-row halo in VMEM (no HBM reflect-pad pass)
    he = xeh_ref[0, 0]
    hu = xuh_ref[0, 0]
    xe = jnp.concatenate([he[0:1], xe_ref[0], he[1:2]], axis=0)   # (tr+2, Wo, Ce)
    xu = jnp.concatenate([hu[0:1], xu_ref[0], hu[1:2]], axis=0)   # (tr+2, Wo, Cu)
    acc = jnp.zeros((tr * Wo, 3 * tc), jnp.float32)
    for di in range(3):   # 3 row taps; the 3 column taps live on the 3*tc lane axis
        acc += jnp.dot(xe[di:di + tr].reshape(tr * Wo, Ce), we_ref[di],
                       preferred_element_type=jnp.float32)
        acc += jnp.dot(xu[di:di + tr].reshape(tr * Wo, Cu), wu_ref[di],
                       preferred_element_type=jnp.float32)
    out = _col_taps(acc.reshape(tr, Wo, 3 * tc), tc, Wo) + b_ref[...].reshape(1, 1, tc)
    s_ref[...] = jnp.sum(out, axis=(0, 1), keepdims=True).reshape(1, 1, 1, tc)
    ss_ref[...] = jnp.sum(out * out, axis=(0, 1), keepdims=True).reshape(1, 1, 1, tc)
    y_ref[...] = out.astype(y_ref.dtype).reshape(1, tr, Wo, tc)


def conv3x3_concat(xe, xu, w_e, w_u, b, tc, tr):
    N, Ho, Wo, Ce = xe.shape
    Cu = xu.shape[3]
    Cout = b.shape[1]
    nrb = Ho // tr
    xeh = _halo_rows(xe, tr)
    xuh = _halo_rows(xu, tr)
    # Grid order: Cout-tile axis in the middle so the big weight blocks are only
    # re-fetched when the tile changes; activations stream along the inner row axis.
    return pl.pallas_call(
        conv1_kernel,
        out_shape=(
            jax.ShapeDtypeStruct((N, Ho, Wo, Cout), jnp.bfloat16),
            jax.ShapeDtypeStruct((N, nrb, 1, Cout), jnp.float32),
            jax.ShapeDtypeStruct((N, nrb, 1, Cout), jnp.float32),
        ),
        grid=(N, Cout // tc, nrb),
        in_specs=[
            pl.BlockSpec((1, tr, Wo, Ce), lambda n, j, r: (n, r, 0, 0)),
            pl.BlockSpec((1, 1, 2, Wo, Ce), lambda n, j, r: (n, r, 0, 0, 0)),
            pl.BlockSpec((1, tr, Wo, Cu), lambda n, j, r: (n, r, 0, 0)),
            pl.BlockSpec((1, 1, 2, Wo, Cu), lambda n, j, r: (n, r, 0, 0, 0)),
            pl.BlockSpec((3, Ce, 3 * tc), lambda n, j, r: (0, 0, j)),
            pl.BlockSpec((3, Cu, 3 * tc), lambda n, j, r: (0, 0, j)),
            pl.BlockSpec((1, tc), lambda n, j, r: (0, j)),
        ],
        out_specs=(
            pl.BlockSpec((1, tr, Wo, tc), lambda n, j, r: (n, r, 0, j)),
            pl.BlockSpec((1, 1, 1, tc), lambda n, j, r: (n, r, 0, j)),
            pl.BlockSpec((1, 1, 1, tc), lambda n, j, r: (n, r, 0, j)),
        ),
        compiler_params=pltpu.CompilerParams(
            dimension_semantics=("parallel", "parallel", "parallel"),
            vmem_limit_bytes=_VMEM_LIMIT),
    )(xe, xeh, xu, xuh, w_e, w_u, b)


# ----------------------------------------------------------------------------
# Kernel 3: conv2 = BN1-normalize + ReLU prologue (on the row-block slab) then
# 3x3 reflect conv, row-block tiled with halo; emits BN2 partial sums / sumsq.
# ----------------------------------------------------------------------------
def conv2_kernel(x_ref, xh_ref, sc_ref, sh_ref, w_ref, b_ref, y_ref, s_ref, ss_ref):
    _, tr, Wo, Cin = x_ref.shape
    tc = y_ref.shape[3]
    h = xh_ref[0, 0]
    x = jnp.concatenate([h[0:1], x_ref[0], h[1:2]], axis=0)       # (tr+2, Wo, Cin)
    # fused BN1 + ReLU (elementwise -> commutes with the reflect halo)
    x = (x.astype(jnp.float32) * sc_ref[...].reshape(1, 1, Cin)
         + sh_ref[...].reshape(1, 1, Cin))
    x = jnp.maximum(x, 0.0).astype(jnp.bfloat16)
    acc = jnp.zeros((tr * Wo, 3 * tc), jnp.float32)
    for di in range(3):
        acc += jnp.dot(x[di:di + tr].reshape(tr * Wo, Cin), w_ref[di],
                       preferred_element_type=jnp.float32)
    out = _col_taps(acc.reshape(tr, Wo, 3 * tc), tc, Wo) + b_ref[...].reshape(1, 1, tc)
    s_ref[...] = jnp.sum(out, axis=(0, 1), keepdims=True).reshape(1, 1, 1, tc)
    ss_ref[...] = jnp.sum(out * out, axis=(0, 1), keepdims=True).reshape(1, 1, 1, tc)
    y_ref[...] = out.astype(y_ref.dtype).reshape(1, tr, Wo, tc)


def conv3x3_bn_in(x, scale_in, shift_in, w, b, tc, tr):
    N, Ho, Wo, Cin = x.shape
    Cout = b.shape[1]
    nrb = Ho // tr
    xh = _halo_rows(x, tr)
    return pl.pallas_call(
        conv2_kernel,
        out_shape=(
            jax.ShapeDtypeStruct((N, Ho, Wo, Cout), jnp.bfloat16),
            jax.ShapeDtypeStruct((N, nrb, 1, Cout), jnp.float32),
            jax.ShapeDtypeStruct((N, nrb, 1, Cout), jnp.float32),
        ),
        grid=(N, Cout // tc, nrb),
        in_specs=[
            pl.BlockSpec((1, tr, Wo, Cin), lambda n, j, r: (n, r, 0, 0)),
            pl.BlockSpec((1, 1, 2, Wo, Cin), lambda n, j, r: (n, r, 0, 0, 0)),
            pl.BlockSpec((1, Cin), lambda n, j, r: (0, 0)),
            pl.BlockSpec((1, Cin), lambda n, j, r: (0, 0)),
            pl.BlockSpec((3, Cin, 3 * tc), lambda n, j, r: (0, 0, j)),
            pl.BlockSpec((1, tc), lambda n, j, r: (0, j)),
        ],
        out_specs=(
            pl.BlockSpec((1, tr, Wo, tc), lambda n, j, r: (n, r, 0, j)),
            pl.BlockSpec((1, 1, 1, tc), lambda n, j, r: (n, r, 0, j)),
            pl.BlockSpec((1, 1, 1, tc), lambda n, j, r: (n, r, 0, j)),
        ),
        compiler_params=pltpu.CompilerParams(
            dimension_semantics=("parallel", "parallel", "parallel"),
            vmem_limit_bytes=_VMEM_LIMIT),
    )(x, xh, scale_in, shift_in, w, b)


# ----------------------------------------------------------------------------
# Kernel 4: BN2 normalize (+ optional ReLU), byte-capped row tiles, bf16 in / f32 out.
# ----------------------------------------------------------------------------
def bn_apply_kernel(x_ref, sc_ref, sh_ref, o_ref, *, apply_relu):
    C = x_ref.shape[3]
    y = (x_ref[...].astype(jnp.float32) * sc_ref[...].reshape(1, 1, 1, C)
         + sh_ref[...].reshape(1, 1, 1, C))
    if apply_relu:
        y = jnp.maximum(y, 0.0)
    o_ref[...] = y


def bn_apply(x, scale, shift, apply_relu):
    N, H, W, C = x.shape
    tr = _rows_for_budget(H, W * C * (2 + 4))   # bf16 in + f32 out per row
    kern = functools.partial(bn_apply_kernel, apply_relu=apply_relu)
    return pl.pallas_call(
        kern,
        out_shape=jax.ShapeDtypeStruct((N, H, W, C), jnp.float32),
        grid=(N, H // tr),
        in_specs=[
            pl.BlockSpec((1, tr, W, C), lambda n, r: (n, r, 0, 0)),
            pl.BlockSpec((1, C), lambda n, r: (0, 0)),
            pl.BlockSpec((1, C), lambda n, r: (0, 0)),
        ],
        out_specs=pl.BlockSpec((1, tr, W, C), lambda n, r: (n, r, 0, 0)),
        compiler_params=pltpu.CompilerParams(
            dimension_semantics=("parallel", "parallel"),
            vmem_limit_bytes=_VMEM_LIMIT),
    )(x, scale, shift)


# ----------------------------------------------------------------------------
# Glue: reduce per-block BN partials -> (scale, shift) in f32 (training-mode BN).
# ----------------------------------------------------------------------------
def _bn_scale_shift(psum, psumsq, count, gamma, beta, eps):
    s = jnp.sum(psum, axis=(0, 1, 2))
    ss = jnp.sum(psumsq, axis=(0, 1, 2))
    mean = s / count
    var = jnp.maximum(ss / count - mean * mean, 0.0)   # biased variance
    inv = lax.rsqrt(var + eps)
    scale = gamma.astype(jnp.float32) * inv
    shift = beta.astype(jnp.float32) - mean * scale
    return scale, shift


# ----------------------------------------------------------------------------
# Decoder_block forward
# ----------------------------------------------------------------------------
def decoder_block_forward(x_curr_nchw, x_enc_nchw, params, last_relu=True, eps=1e-5):
    bf16, f32 = jnp.bfloat16, jnp.float32
    xc = jnp.transpose(x_curr_nchw, (0, 2, 3, 1)).astype(bf16)   # (N, H, W, feat)
    xe = jnp.transpose(x_enc_nchw, (0, 2, 3, 1)).astype(bf16)    # (N, 2H, 2W, feat/2)
    N, H, W, Cin = xc.shape

    # --- upconv: ConvTranspose2d(feat, feat, kernel=2, stride=2) -------------
    wt = params["upconv_w"]                       # (Cin, Cout, 2, 2) torch layout
    Cout_up = wt.shape[1]
    # (Cin, Cout, kh, kw) -> (Cin, kh, kw, Cout) -> (Cin, 4*Cout); col = kh*2C+kw*C+co
    w4 = jnp.transpose(wt, (0, 2, 3, 1)).reshape(Cin, 4 * Cout_up).astype(bf16)
    b4 = jnp.tile(params["upconv_b"], (4,)).reshape(1, 4 * Cout_up).astype(f32)
    y6 = upconv2x2(xc, w4, b4)                    # (N, H, 2, W, 2*Cout)
    up = y6.reshape(N, 2 * H, 2 * W, Cout_up)     # pure row-major collapse (free)
    Ho, Wo = 2 * H, 2 * W
    Ce = xe.shape[3]

    # --- conv1 with fused concat(x_enc, up) + BN1 stats -----------------------
    w1 = params["conv1_w"]                        # (C1, Ce + Cout_up, 3, 3)
    C1 = w1.shape[0]
    tc1 = _pick_cout_tile(C1)
    w1e = _conv_weight(w1[:, :Ce], tc1).astype(bf16)    # encoder half (cat: enc first)
    w1u = _conv_weight(w1[:, Ce:], tc1).astype(bf16)    # upsampled half
    b1 = params["conv1_b"].reshape(1, C1).astype(f32)
    row_bytes1 = Wo * ((Ce + Cout_up) * 2 + tc1 * 2 + 3 * tc1 * 4)
    tr1 = _rows_for_budget(Ho, row_bytes1)
    y1, s1, ss1 = conv3x3_concat(xe, up, w1e, w1u, b1, tc1, tr1)
    scale1, shift1 = _bn_scale_shift(s1, ss1, N * Ho * Wo,
                                     params["bn1_g"], params["bn1_b"], eps)

    # --- conv2 with fused BN1-normalize+ReLU prologue + BN2 stats -------------
    tc2 = _pick_cout_tile(C1)
    w2 = _conv_weight(params["conv2_w"], tc2).astype(bf16)
    b2 = params["conv2_b"].reshape(1, C1).astype(f32)
    row_bytes2 = Wo * (C1 * 2 + tc2 * 2 + 3 * tc2 * 4)
    tr2 = _rows_for_budget(Ho, row_bytes2)
    y2, s2, ss2 = conv3x3_bn_in(y1, scale1.reshape(1, C1), shift1.reshape(1, C1),
                                w2, b2, tc2, tr2)
    scale2, shift2 = _bn_scale_shift(s2, ss2, N * Ho * Wo,
                                     params["bn2_g"], params["bn2_b"], eps)

    # --- BN2 normalize (+ optional ReLU) --------------------------------------
    out = bn_apply(y2, scale2.reshape(1, C1), shift2.reshape(1, C1), last_relu)

    # back to NCHW to match the PyTorch output convention
    return jnp.transpose(out, (0, 3, 1, 2))


# ----------------------------------------------------------------------------
# Deterministic parameter init + demo run
# ----------------------------------------------------------------------------
def init_params(key, feat):
    half = feat // 2
    ks = jax.random.split(key, 10)
    return {
        "upconv_w": 0.1 * jax.random.normal(ks[0], (feat, feat, 2, 2), jnp.float32),
        "upconv_b": 0.1 * jax.random.normal(ks[1], (feat,), jnp.float32),
        "conv1_w": 0.1 * jax.random.normal(ks[2], (half, feat + half, 3, 3), jnp.float32),
        "conv1_b": 0.1 * jax.random.normal(ks[3], (half,), jnp.float32),
        "bn1_g": 1.0 + 0.1 * jax.random.normal(ks[4], (half,), jnp.float32),
        "bn1_b": 0.1 * jax.random.normal(ks[5], (half,), jnp.float32),
        "conv2_w": 0.1 * jax.random.normal(ks[6], (half, half, 3, 3), jnp.float32),
        "conv2_b": 0.1 * jax.random.normal(ks[7], (half,), jnp.float32),
        "bn2_g": 1.0 + 0.1 * jax.random.normal(ks[8], (half,), jnp.float32),
        "bn2_b": 0.1 * jax.random.normal(ks[9], (half,), jnp.float32),
    }


if __name__ == "__main__":
    feat = 8            # scaled-down stand-in for the module's feat=1024
    N, H, W = 2, 8, 8   # x_curr spatial; x_enc is (N, feat//2, 2H, 2W)

    key = jax.random.PRNGKey(0)
    k_p, k_x, k_e = jax.random.split(key, 3)
    params = init_params(k_p, feat)

    x_curr = jax.random.normal(k_x, (N, feat, H, W), jnp.float32)               # NCHW
    x_enc = jax.random.normal(k_e, (N, feat // 2, 2 * H, 2 * W), jnp.float32)   # NCHW

    fwd = jax.jit(functools.partial(decoder_block_forward, last_relu=True))
    out = jax.block_until_ready(fwd(x_curr, x_enc, params))

    assert out.shape == (N, feat // 2, 2 * H, 2 * W), out.shape
    assert bool(jnp.all(jnp.isfinite(out)))
    print("KERNEL_OK")
</pallas_src>

<mosaic_0001>
module attributes {stable_mosaic.version = 11 : i64} {
  func.func @upconv_kernel(%arg0: i32, %arg1: i32, %arg2: memref<1x8x8x8xbf16, #tpu.memory_space<vmem>>, %arg3: memref<8x32xbf16, #tpu.memory_space<vmem>>, %arg4: memref<1x32xf32, #tpu.memory_space<vmem>>, %arg5: memref<1x8x2x8x16xbf16, #tpu.memory_space<vmem>>) attributes {dimension_semantics = [#tpu.dimension_semantics<parallel>, #tpu.dimension_semantics<parallel>], iteration_bounds = array<i64: 2, 1>, scalar_prefetch = 0 : i64, scratch_operands = 0 : i64, tpu.core_type = #tpu.core_type<tc>, window_params = [{transform_indices = @transform_0, window_bounds = array<i64: 1, 8, 8, 8>}, {pipeline_mode = #tpu.pipeline_mode<synchronous>, transform_indices = @transform_1, window_bounds = array<i64: 8, 32>}, {pipeline_mode = #tpu.pipeline_mode<synchronous>, transform_indices = @transform_2, window_bounds = array<i64: 1, 32>}, {transform_indices = @transform_3, window_bounds = array<i64: 1, 8, 2, 8, 16>}]} {
    %c0 = arith.constant 0 : index
    %c0_0 = arith.constant 0 : index
    %c0_1 = arith.constant 0 : index
    %c0_2 = arith.constant 0 : index
    %0 = vector.load %arg2[%c0, %c0_0, %c0_1, %c0_2] : memref<1x8x8x8xbf16, #tpu.memory_space<vmem>>, vector<1x8x8x8xbf16>
    %1 = vector.shape_cast %0 : vector<1x8x8x8xbf16> to vector<8x8x8xbf16>
    %2 = vector.shape_cast %1 : vector<8x8x8xbf16> to vector<64x8xbf16>
    %c0_3 = arith.constant 0 : index
    %c0_4 = arith.constant 0 : index
    %3 = vector.load %arg3[%c0_3, %c0_4] : memref<8x32xbf16, #tpu.memory_space<vmem>>, vector<8x32xbf16>
    %cst = arith.constant dense<0.000000e+00> : vector<64x32xf32>
    %4 = tpu.matmul %2, %3, %cst {dimension_numbers = #tpu.dot_dimension_numbers<[1], [0], [0], [1], [0, 0, 1, 1], [], []>} : vector<64x8xbf16>, vector<8x32xbf16>, vector<64x32xf32> -> vector<64x32xf32>
    %c0_5 = arith.constant 0 : index
    %c0_6 = arith.constant 0 : index
    %5 = vector.load %arg4[%c0_5, %c0_6] : memref<1x32xf32, #tpu.memory_space<vmem>>, vector<1x32xf32>
    %6 = vector.broadcast %5 : vector<1x32xf32> to vector<64x32xf32>
    %7 = arith.addf %4, %6 : vector<64x32xf32>
    %8 = arith.truncf %7 : vector<64x32xf32> to vector<64x32xbf16>
    %9 = vector.extract_strided_slice %8 {offsets = [0, 0], sizes = [64, 16], strides = [1, 1]} : vector<64x32xbf16> to vector<64x16xbf16>
    %10 = vector.shape_cast %9 : vector<64x16xbf16> to vector<8x8x16xbf16>
    %c0_7 = arith.constant 0 : index
    %c0_8 = arith.constant 0 : index
    %c0_9 = arith.constant 0 : index
    %c0_10 = arith.constant 0 : index
    %c0_11 = arith.constant 0 : index
    %11 = vector.load %arg5[%c0_7, %c0_8, %c0_9, %c0_10, %c0_11] : memref<1x8x2x8x16xbf16, #tpu.memory_space<vmem>>, vector<1x8x1x8x16xbf16>
    %12 = vector.shape_cast %11 : vector<1x8x1x8x16xbf16> to vector<8x8x16xbf16>
    %13 = vector.shape_cast %10 : vector<8x8x16xbf16> to vector<1x8x1x8x16xbf16>
    tpu.vector_store %arg5[%c0_7, %c0_8, %c0_9, %c0_10, %c0_11], %13 {strides = array<i32>} : memref<1x8x2x8x16xbf16, #tpu.memory_space<vmem>>, vector<1x8x1x8x16xbf16>,
    %14 = vector.extract_strided_slice %8 {offsets = [0, 16], sizes = [64, 16], strides = [1, 1]} : vector<64x32xbf16> to vector<64x16xbf16>
    %15 = vector.shape_cast %14 : vector<64x16xbf16> to vector<8x8x16xbf16>
    %c0_12 = arith.constant 0 : index
    %c0_13 = arith.constant 0 : index
    %c1 = arith.constant 1 : index
    %c0_14 = arith.constant 0 : index
    %c0_15 = arith.constant 0 : index
    %16 = vector.load %arg5[%c0_12, %c0_13, %c1, %c0_14, %c0_15] : memref<1x8x2x8x16xbf16, #tpu.memory_space<vmem>>, vector<1x8x1x8x16xbf16>
    %17 = vector.shape_cast %16 : vector<1x8x1x8x16xbf16> to vector<8x8x16xbf16>
    %18 = vector.shape_cast %15 : vector<8x8x16xbf16> to vector<1x8x1x8x16xbf16>
    tpu.vector_store %arg5[%c0_12, %c0_13, %c1, %c0_14, %c0_15], %18 {strides = array<i32>} : memref<1x8x2x8x16xbf16, #tpu.memory_space<vmem>>, vector<1x8x1x8x16xbf16>,
    return
  }
  func.func @transform_0(%arg0: i32, %arg1: i32) -> (i32, i32, i32, i32) {
    %c0_i32 = arith.constant 0 : i32
    %c0_i32_0 = arith.constant 0 : i32
    %c0_i32_1 = arith.constant 0 : i32
    return %arg0, %arg1, %c0_i32, %c0_i32_0 : i32, i32, i32, i32
  }
  func.func @transform_1(%arg0: i32, %arg1: i32) -> (i32, i32) {
    %c0_i32 = arith.constant 0 : i32
    %c0_i32_0 = arith.constant 0 : i32
    %c0_i32_1 = arith.constant 0 : i32
    return %c0_i32, %c0_i32_0 : i32, i32
  }
  func.func @transform_2(%arg0: i32, %arg1: i32) -> (i32, i32) {
    %c0_i32 = arith.constant 0 : i32
    %c0_i32_0 = arith.constant 0 : i32
    %c0_i32_1 = arith.constant 0 : i32
    return %c0_i32, %c0_i32_0 : i32, i32
  }
  func.func @transform_3(%arg0: i32, %arg1: i32) -> (i32, i32, i32, i32, i32) {
    %c0_i32 = arith.constant 0 : i32
    %c0_i32_0 = arith.constant 0 : i32
    %c0_i32_1 = arith.constant 0 : i32
    %c0_i32_2 = arith.constant 0 : i32
    return %arg0, %arg1, %c0_i32, %c0_i32_0, %c0_i32_1 : i32, i32, i32, i32, i32
  }
}

module attributes {stable_mosaic.version = 11 : i64} {
  func.func @conv1_kernel(%arg0: i32, %arg1: i32, %arg2: i32, %arg3: memref<1x16x16x4xbf16, #tpu.memory_space<vmem>>, %arg4: memref<1x1x2x16x4xbf16, #tpu.memory_space<vmem>>, %arg5: memref<1x16x16x8xbf16, #tpu.memory_space<vmem>>, %arg6: memref<1x1x2x16x8xbf16, #tpu.memory_space<vmem>>, %arg7: memref<3x4x12xbf16, #tpu.memory_space<vmem>>, %arg8: memref<3x8x12xbf16, #tpu.memory_space<vmem>>, %arg9: memref<1x4xf32, #tpu.memory_space<vmem>>, %arg10: memref<1x16x16x4xbf16, #tpu.memory_space<vmem>>, %arg11: memref<1x1x1x4xf32, #tpu.memory_space<vmem>>, %arg12: memref<1x1x1x4xf32, #tpu.memory_space<vmem>>) attributes {dimension_semantics = [#tpu.dimension_semantics<parallel>, #tpu.dimension_semantics<parallel>, #tpu.dimension_semantics<parallel>], iteration_bounds = array<i64: 2, 1, 1>, scalar_prefetch = 0 : i64, scratch_operands = 0 : i64, tpu.core_type = #tpu.core_type<tc>, window_params = [{transform_indices = @transform_0, window_bounds = array<i64: 1, 16, 16, 4>}, {transform_indices = @transform_1, window_bounds = array<i64: 1, 1, 2, 16, 4>}, {transform_indices = @transform_2, window_bounds = array<i64: 1, 16, 16, 8>}, {transform_indices = @transform_3, window_bounds = array<i64: 1, 1, 2, 16, 8>}, {transform_indices = @transform_4, window_bounds = array<i64: 3, 4, 12>}, {transform_indices = @transform_5, window_bounds = array<i64: 3, 8, 12>}, {transform_indices = @transform_6, window_bounds = array<i64: 1, 4>}, {transform_indices = @transform_7, window_bounds = array<i64: 1, 16, 16, 4>}, {transform_indices = @transform_8, window_bounds = array<i64: 1, 1, 1, 4>}, {transform_indices = @transform_9, window_bounds = array<i64: 1, 1, 1, 4>}]} {
    %c0 = arith.constant 0 : index
    %c0_0 = arith.constant 0 : index
    %c0_1 = arith.constant 0 : index
    %c0_2 = arith.constant 0 : index
    %c0_3 = arith.constant 0 : index
    %0 = vector.load %arg4[%c0, %c0_0, %c0_1, %c0_2, %c0_3] : memref<1x1x2x16x4xbf16, #tpu.memory_space<vmem>>, vector<1x1x2x16x4xbf16>
    %1 = vector.shape_cast %0 : vector<1x1x2x16x4xbf16> to vector<2x16x4xbf16>
    %c0_4 = arith.constant 0 : index
    %c0_5 = arith.constant 0 : index
    %c0_6 = arith.constant 0 : index
    %c0_7 = arith.constant 0 : index
    %c0_8 = arith.constant 0 : index
    %2 = vector.load %arg6[%c0_4, %c0_5, %c0_6, %c0_7, %c0_8] : memref<1x1x2x16x8xbf16, #tpu.memory_space<vmem>>, vector<1x1x2x16x8xbf16>
    %3 = vector.shape_cast %2 : vector<1x1x2x16x8xbf16> to vector<2x16x8xbf16>
    %4 = vector.extract_strided_slice %1 {offsets = [0, 0, 0], sizes = [1, 16, 4], strides = [1, 1, 1]} : vector<2x16x4xbf16> to vector<1x16x4xbf16>
    %c0_9 = arith.constant 0 : index
    %c0_10 = arith.constant 0 : index
    %c0_11 = arith.constant 0 : index
    %c0_12 = arith.constant 0 : index
    %5 = vector.load %arg3[%c0_9, %c0_10, %c0_11, %c0_12] : memref<1x16x16x4xbf16, #tpu.memory_space<vmem>>, vector<1x16x16x4xbf16>
    %6 = vector.shape_cast %5 : vector<1x16x16x4xbf16> to vector<16x16x4xbf16>
    %7 = vector.extract_strided_slice %1 {offsets = [1, 0, 0], sizes = [1, 16, 4], strides = [1, 1, 1]} : vector<2x16x4xbf16> to vector<1x16x4xbf16>
    %8 = tpu.concatenate %4, %6, %7 in 0 : vector<1x16x4xbf16>, vector<16x16x4xbf16>, vector<1x16x4xbf16> -> vector<18x16x4xbf16>
    %9 = vector.extract_strided_slice %3 {offsets = [0, 0, 0], sizes = [1, 16, 8], strides = [1, 1, 1]} : vector<2x16x8xbf16> to vector<1x16x8xbf16>
    %c0_13 = arith.constant 0 : index
    %c0_14 = arith.constant 0 : index
    %c0_15 = arith.constant 0 : index
    %c0_16 = arith.constant 0 : index
    %10 = vector.load %arg5[%c0_13, %c0_14, %c0_15, %c0_16] : memref<1x16x16x8xbf16, #tpu.memory_space<vmem>>, vector<1x16x16x8xbf16>
    %11 = vector.shape_cast %10 : vector<1x16x16x8xbf16> to vector<16x16x8xbf16>
    %12 = vector.extract_strided_slice %3 {offsets = [1, 0, 0], sizes = [1, 16, 8], strides = [1, 1, 1]} : vector<2x16x8xbf16> to vector<1x16x8xbf16>
    %13 = tpu.concatenate %9, %11, %12 in 0 : vector<1x16x8xbf16>, vector<16x16x8xbf16>, vector<1x16x8xbf16> -> vector<18x16x8xbf16>
    %cst = arith.constant 0.000000e+00 : f32
    %14 = vector.broadcast %cst : f32 to vector<256x12xf32>
    %15 = vector.extract_strided_slice %8 {offsets = [0, 0, 0], sizes = [16, 16, 4], strides = [1, 1, 1]} : vector<18x16x4xbf16> to vector<16x16x4xbf16>
    %16 = vector.shape_cast %15 : vector<16x16x4xbf16> to vector<256x4xbf16>
    %c0_17 = arith.constant 0 : index
    %c0_18 = arith.constant 0 : index
    %c0_19 = arith.constant 0 : index
    %17 = vector.load %arg7[%c0_17, %c0_18, %c0_19] : memref<3x4x12xbf16, #tpu.memory_space<vmem>>, vector<1x4x12xbf16>
    %18 = vector.shape_cast %17 : vector<1x4x12xbf16> to vector<4x12xbf16>
    %cst_20 = arith.constant dense<0.000000e+00> : vector<256x12xf32>
    %19 = tpu.matmul %16, %18, %cst_20 {dimension_numbers = #tpu.dot_dimension_numbers<[1], [0], [0], [1], [0, 0, 1, 1], [], []>} : vector<256x4xbf16>, vector<4x12xbf16>, vector<256x12xf32> -> vector<256x12xf32>
    %20 = arith.addf %14, %19 : vector<256x12xf32>
    %21 = vector.extract_strided_slice %13 {offsets = [0, 0, 0], sizes = [16, 16, 8], strides = [1, 1, 1]} : vector<18x16x8xbf16> to vector<16x16x8xbf16>
    %22 = vector.shape_cast %21 : vector<16x16x8xbf16> to vector<256x8xbf16>
    %c0_21 = arith.constant 0 : index
    %c0_22 = arith.constant 0 : index
    %c0_23 = arith.constant 0 : index
    %23 = vector.load %arg8[%c0_21, %c0_22, %c0_23] : memref<3x8x12xbf16, #tpu.memory_space<vmem>>, vector<1x8x12xbf16>
    %24 = vector.shape_cast %23 : vector<1x8x12xbf16> to vector<8x12xbf16>
    %cst_24 = arith.constant dense<0.000000e+00> : vector<256x12xf32>
    %25 = tpu.matmul %22, %24, %cst_24 {dimension_numbers = #tpu.dot_dimension_numbers<[1], [0], [0], [1], [0, 0, 1, 1], [], []>} : vector<256x8xbf16>, vector<8x12xbf16>, vector<256x12xf32> -> vector<256x12xf32>
    %26 = arith.addf %20, %25 : vector<256x12xf32>
    %27 = vector.extract_strided_slice %8 {offsets = [1, 0, 0], sizes = [16, 16, 4], strides = [1, 1, 1]} : vector<18x16x4xbf16> to vector<16x16x4xbf16>
    %28 = vector.shape_cast %27 : vector<16x16x4xbf16> to vector<256x4xbf16>
    %c1 = arith.constant 1 : index
    %c0_25 = arith.constant 0 : index
    %c0_26 = arith.constant 0 : index
    %29 = vector.load %arg7[%c1, %c0_25, %c0_26] : memref<3x4x12xbf16, #tpu.memory_space<vmem>>, vector<1x4x12xbf16>
    %30 = vector.shape_cast %29 : vector<1x4x12xbf16> to vector<4x12xbf16>
    %cst_27 = arith.constant dense<0.000000e+00> : vector<256x12xf32>
    %31 = tpu.matmul %28, %30, %cst_27 {dimension_numbers = #tpu.dot_dimension_numbers<[1], [0], [0], [1], [0, 0, 1, 1], [], []>} : vector<256x4xbf16>, vector<4x12xbf16>, vector<256x12xf32> -> vector<256x12xf32>
    %32 = arith.addf %26, %31 : vector<256x12xf32>
    %33 = vector.extract_strided_slice %13 {offsets = [1, 0, 0], sizes = [16, 16, 8], strides = [1, 1, 1]} : vector<18x16x8xbf16> to vector<16x16x8xbf16>
    %34 = vector.shape_cast %33 : vector<16x16x8xbf16> to vector<256x8xbf16>
    %c1_28 = arith.constant 1 : index
    %c0_29 = arith.constant 0 : index
    %c0_30 = arith.constant 0 : index
    %35 = vector.load %arg8[%c1_28, %c0_29, %c0_30] : memref<3x8x12xbf16, #tpu.memory_space<vmem>>, vector<1x8x12xbf16>
    %36 = vector.shape_cast %35 : vector<1x8x12xbf16> to vector<8x12xbf16>
    %cst_31 = arith.constant dense<0.000000e+00> : vector<256x12xf32>
    %37 = tpu.matmul %34, %36, %cst_31 {dimension_numbers = #tpu.dot_dimension_numbers<[1], [0], [0], [1], [0, 0, 1, 1], [], []>} : vector<256x8xbf16>, vector<8x12xbf16>, vector<256x12xf32> -> vector<256x12xf32>
    %38 = arith.addf %32, %37 : vector<256x12xf32>
    %39 = vector.extract_strided_slice %8 {offsets = [2, 0, 0], sizes = [16, 16, 4], strides = [1, 1, 1]} : vector<18x16x4xbf16> to vector<16x16x4xbf16>
    %40 = vector.shape_cast %39 : vector<16x16x4xbf16> to vector<256x4xbf16>
    %c2 = arith.constant 2 : index
    %c0_32 = arith.constant 0 : index
    %c0_33 = arith.constant 0 : index
    %41 = vector.load %arg7[%c2, %c0_32, %c0_33] : memref<3x4x12xbf16, #tpu.memory_space<vmem>>, vector<1x4x12xbf16>
    %42 = vector.shape_cast %41 : vector<1x4x12xbf16> to vector<4x12xbf16>
    %cst_34 = arith.constant dense<0.000000e+00> : vector<256x12xf32>
    %43 = tpu.matmul %40, %42, %cst_34 {dimension_numbers = #tpu.dot_dimension_numbers<[1], [0], [0], [1], [0, 0, 1, 1], [], []>} : vector<256x4xbf16>, vector<4x12xbf16>, vector<256x12xf32> -> vector<256x12xf32>
    %44 = arith.addf %38, %43 : vector<256x12xf32>
    %45 = vector.extract_strided_slice %13 {offsets = [2, 0, 0], sizes = [16, 16, 8], strides = [1, 1, 1]} : vector<18x16x8xbf16> to vector<16x16x8xbf16>
    %46 = vector.shape_cast %45 : vector<16x16x8xbf16> to vector<256x8xbf16>
    %c2_35 = arith.constant 2 : index
    %c0_36 = arith.constant 0 : index
    %c0_37 = arith.constant 0 : index
    %47 = vector.load %arg8[%c2_35, %c0_36, %c0_37] : memref<3x8x12xbf16, #tpu.memory_space<vmem>>, vector<1x8x12xbf16>
    %48 = vector.shape_cast %47 : vector<1x8x12xbf16> to vector<8x12xbf16>
    %cst_38 = arith.constant dense<0.000000e+00> : vector<256x12xf32>
    %49 = tpu.matmul %46, %48, %cst_38 {dimension_numbers = #tpu.dot_dimension_numbers<[1], [0], [0], [1], [0, 0, 1, 1], [], []>} : vector<256x8xbf16>, vector<8x12xbf16>, vector<256x12xf32> -> vector<256x12xf32>
    %50 = arith.addf %44, %49 : vector<256x12xf32>
    %51 = vector.shape_cast %50 : vector<256x12xf32> to vector<16x16x12xf32>
    %52 = vector.extract_strided_slice %51 {offsets = [0, 0, 0], sizes = [16, 16, 4], strides = [1, 1, 1]} : vector<16x16x12xf32> to vector<16x16x4xf32>
    %53 = vector.extract_strided_slice %51 {offsets = [0, 0, 4], sizes = [16, 16, 4], strides = [1, 1, 1]} : vector<16x16x12xf32> to vector<16x16x4xf32>
    %54 = vector.extract_strided_slice %51 {offsets = [0, 0, 8], sizes = [16, 16, 4], strides = [1, 1, 1]} : vector<16x16x12xf32> to vector<16x16x4xf32>
    %55 = vector.extract_strided_slice %52 {offsets = [0, 1, 0], sizes = [16, 1, 4], strides = [1, 1, 1]} : vector<16x16x4xf32> to vector<16x1x4xf32>
    %56 = vector.extract_strided_slice %52 {offsets = [0, 0, 0], sizes = [16, 15, 4], strides = [1, 1, 1]} : vector<16x16x4xf32> to vector<16x15x4xf32>
    %57 = tpu.concatenate %55, %56 in 1 : vector<16x1x4xf32>, vector<16x15x4xf32> -> vector<16x16x4xf32>
    %58 = vector.extract_strided_slice %54 {offsets = [0, 1, 0], sizes = [16, 15, 4], strides = [1, 1, 1]} : vector<16x16x4xf32> to vector<16x15x4xf32>
    %59 = vector.extract_strided_slice %54 {offsets = [0, 14, 0], sizes = [16, 1, 4], strides = [1, 1, 1]} : vector<16x16x4xf32> to vector<16x1x4xf32>
    %60 = tpu.concatenate %58, %59 in 1 : vector<16x15x4xf32>, vector<16x1x4xf32> -> vector<16x16x4xf32>
    %61 = arith.addf %53, %57 : vector<16x16x4xf32>
    %62 = arith.addf %61, %60 : vector<16x16x4xf32>
    %c0_39 = arith.constant 0 : index
    %c0_40 = arith.constant 0 : index
    %63 = vector.load %arg9[%c0_39, %c0_40] : memref<1x4xf32, #tpu.memory_space<vmem>>, vector<1x4xf32>
    %64 = vector.shape_cast %63 : vector<1x4xf32> to vector<1x1x4xf32>
    %65 = vector.broadcast %64 : vector<1x1x4xf32> to vector<16x16x4xf32>
    %66 = arith.addf %62, %65 : vector<16x16x4xf32>
    %cst_41 = arith.constant dense<0.000000e+00> : vector<4xf32>
    %67 = vector.multi_reduction <add>, %66, %cst_41 [0, 1] : vector<16x16x4xf32> to vector<4xf32>
    %68 = vector.shape_cast %67 : vector<4xf32> to vector<1x1x4xf32>
    %69 = vector.shape_cast %68 : vector<1x1x4xf32> to vector<1x1x1x4xf32>
    %c0_42 = arith.constant 0 : index
    %c0_43 = arith.constant 0 : index
    %c0_44 = arith.constant 0 : index
    %c0_45 = arith.constant 0 : index
    %70 = vector.load %arg11[%c0_42, %c0_43, %c0_44, %c0_45] : memref<1x1x1x4xf32, #tpu.memory_space<vmem>>, vector<1x1x1x4xf32>
    tpu.vector_store %arg11[%c0_42, %c0_43, %c0_44, %c0_45], %69 {strides = array<i32>} : memref<1x1x1x4xf32, #tpu.memory_space<vmem>>, vector<1x1x1x4xf32>,
    %71 = arith.mulf %66, %66 : vector<16x16x4xf32>
    %cst_46 = arith.constant dense<0.000000e+00> : vector<4xf32>
    %72 = vector.multi_reduction <add>, %71, %cst_46 [0, 1] : vector<16x16x4xf32> to vector<4xf32>
    %73 = vector.shape_cast %72 : vector<4xf32> to vector<1x1x4xf32>
    %74 = vector.shape_cast %73 : vector<1x1x4xf32> to vector<1x1x1x4xf32>
    %c0_47 = arith.constant 0 : index
    %c0_48 = arith.constant 0 : index
    %c0_49 = arith.constant 0 : index
    %c0_50 = arith.constant 0 : index
    %75 = vector.load %arg12[%c0_47, %c0_48, %c0_49, %c0_50] : memref<1x1x1x4xf32, #tpu.memory_space<vmem>>, vector<1x1x1x4xf32>
    tpu.vector_store %arg12[%c0_47, %c0_48, %c0_49, %c0_50], %74 {strides = array<i32>} : memref<1x1x1x4xf32, #tpu.memory_space<vmem>>, vector<1x1x1x4xf32>,
    %76 = arith.truncf %66 : vector<16x16x4xf32> to vector<16x16x4xbf16>
    %77 = vector.shape_cast %76 : vector<16x16x4xbf16> to vector<1x16x16x4xbf16>
    %c0_51 = arith.constant 0 : index
    %c0_52 = arith.constant 0 : index
    %c0_53 = arith.constant 0 : index
    %c0_54 = arith.constant 0 : index
    %78 = vector.load %arg10[%c0_51, %c0_52, %c0_53, %c0_54] : memref<1x16x16x4xbf16, #tpu.memory_space<vmem>>, vector<1x16x16x4xbf16>
    tpu.vector_store %arg10[%c0_51, %c0_52, %c0_53, %c0_54], %77 {strides = array<i32>} : memref<1x16x16x4xbf16, #tpu.memory_space<vmem>>, vector<1x16x16x4xbf16>,
    return
  }
  func.func @transform_0(%arg0: i32, %arg1: i32, %arg2: i32) -> (i32, i32, i32, i32) {
    %c0_i32 = arith.constant 0 : i32
    %c0_i32_0 = arith.constant 0 : i32
    %c0_i32_1 = arith.constant 0 : i32
    return %arg0, %arg2, %c0_i32, %c0_i32_0 : i32, i32, i32, i32
  }
  func.func @transform_1(%arg0: i32, %arg1: i32, %arg2: i32) -> (i32, i32, i32, i32, i32) {
    %c0_i32 = arith.constant 0 : i32
    %c0_i32_0 = arith.constant 0 : i32
    %c0_i32_1 = arith.constant 0 : i32
    %c0_i32_2 = arith.constant 0 : i32
    return %arg0, %arg2, %c0_i32, %c0_i32_0, %c0_i32_1 : i32, i32, i32, i32, i32
  }
  func.func @transform_2(%arg0: i32, %arg1: i32, %arg2: i32) -> (i32, i32, i32, i32) {
    %c0_i32 = arith.constant 0 : i32
    %c0_i32_0 = arith.constant 0 : i32
    %c0_i32_1 = arith.constant 0 : i32
    return %arg0, %arg2, %c0_i32, %c0_i32_0 : i32, i32, i32, i32
  }
  func.func @transform_3(%arg0: i32, %arg1: i32, %arg2: i32) -> (i32, i32, i32, i32, i32) {
    %c0_i32 = arith.constant 0 : i32
    %c0_i32_0 = arith.constant 0 : i32
    %c0_i32_1 = arith.constant 0 : i32
    %c0_i32_2 = arith.constant 0 : i32
    return %arg0, %arg2, %c0_i32, %c0_i32_0, %c0_i32_1 : i32, i32, i32, i32, i32
  }
  func.func @transform_4(%arg0: i32, %arg1: i32, %arg2: i32) -> (i32, i32, i32) {
    %c0_i32 = arith.constant 0 : i32
    %c0_i32_0 = arith.constant 0 : i32
    %c0_i32_1 = arith.constant 0 : i32
    return %c0_i32, %c0_i32_0, %arg1 : i32, i32, i32
  }
  func.func @transform_5(%arg0: i32, %arg1: i32, %arg2: i32) -> (i32, i32, i32) {
    %c0_i32 = arith.constant 0 : i32
    %c0_i32_0 = arith.constant 0 : i32
    %c0_i32_1 = arith.constant 0 : i32
    return %c0_i32, %c0_i32_0, %arg1 : i32, i32, i32
  }
  func.func @transform_6(%arg0: i32, %arg1: i32, %arg2: i32) -> (i32, i32) {
    %c0_i32 = arith.constant 0 : i32
    %c0_i32_0 = arith.constant 0 : i32
    return %c0_i32, %arg1 : i32, i32
  }
  func.func @transform_7(%arg0: i32, %arg1: i32, %arg2: i32) -> (i32, i32, i32, i32) {
    %c0_i32 = arith.constant 0 : i32
    %c0_i32_0 = arith.constant 0 : i32
    return %arg0, %arg2, %c0_i32, %arg1 : i32, i32, i32, i32
  }
  func.func @transform_8(%arg0: i32, %arg1: i32, %arg2: i32) -> (i32, i32, i32, i32) {
    %c0_i32 = arith.constant 0 : i32
    %c0_i32_0 = arith.constant 0 : i32
    return %arg0, %arg2, %c0_i32, %arg1 : i32, i32, i32, i32
  }
  func.func @transform_9(%arg0: i32, %arg1: i32, %arg2: i32) -> (i32, i32, i32, i32) {
    %c0_i32 = arith.constant 0 : i32
    %c0_i32_0 = arith.constant 0 : i32
    return %arg0, %arg2, %c0_i32, %arg1 : i32, i32, i32, i32
  }
}

module attributes {stable_mosaic.version = 11 : i64} {
  func.func @conv2_kernel(%arg0: i32, %arg1: i32, %arg2: i32, %arg3: memref<1x16x16x4xbf16, #tpu.memory_space<vmem>>, %arg4: memref<1x1x2x16x4xbf16, #tpu.memory_space<vmem>>, %arg5: memref<1x4xf32, #tpu.memory_space<vmem>>, %arg6: memref<1x4xf32, #tpu.memory_space<vmem>>, %arg7: memref<3x4x12xbf16, #tpu.memory_space<vmem>>, %arg8: memref<1x4xf32, #tpu.memory_space<vmem>>, %arg9: memref<1x16x16x4xbf16, #tpu.memory_space<vmem>>, %arg10: memref<1x1x1x4xf32, #tpu.memory_space<vmem>>, %arg11: memref<1x1x1x4xf32, #tpu.memory_space<vmem>>) attributes {dimension_semantics = [#tpu.dimension_semantics<parallel>, #tpu.dimension_semantics<parallel>, #tpu.dimension_semantics<parallel>], iteration_bounds = array<i64: 2, 1, 1>, scalar_prefetch = 0 : i64, scratch_operands = 0 : i64, tpu.core_type = #tpu.core_type<tc>, window_params = [{transform_indices = @transform_0, window_bounds = array<i64: 1, 16, 16, 4>}, {transform_indices = @transform_1, window_bounds = array<i64: 1, 1, 2, 16, 4>}, {pipeline_mode = #tpu.pipeline_mode<synchronous>, transform_indices = @transform_2, window_bounds = array<i64: 1, 4>}, {pipeline_mode = #tpu.pipeline_mode<synchronous>, transform_indices = @transform_3, window_bounds = array<i64: 1, 4>}, {transform_indices = @transform_4, window_bounds = array<i64: 3, 4, 12>}, {transform_indices = @transform_5, window_bounds = array<i64: 1, 4>}, {transform_indices = @transform_6, window_bounds = array<i64: 1, 16, 16, 4>}, {transform_indices = @transform_7, window_bounds = array<i64: 1, 1, 1, 4>}, {transform_indices = @transform_8, window_bounds = array<i64: 1, 1, 1, 4>}]} {
    %c0 = arith.constant 0 : index
    %c0_0 = arith.constant 0 : index
    %c0_1 = arith.constant 0 : index
    %c0_2 = arith.constant 0 : index
    %c0_3 = arith.constant 0 : index
    %0 = vector.load %arg4[%c0, %c0_0, %c0_1, %c0_2, %c0_3] : memref<1x1x2x16x4xbf16, #tpu.memory_space<vmem>>, vector<1x1x2x16x4xbf16>
    %1 = vector.shape_cast %0 : vector<1x1x2x16x4xbf16> to vector<2x16x4xbf16>
    %2 = vector.extract_strided_slice %1 {offsets = [0, 0, 0], sizes = [1, 16, 4], strides = [1, 1, 1]} : vector<2x16x4xbf16> to vector<1x16x4xbf16>
    %c0_4 = arith.constant 0 : index
    %c0_5 = arith.constant 0 : index
    %c0_6 = arith.constant 0 : index
    %c0_7 = arith.constant 0 : index
    %3 = vector.load %arg3[%c0_4, %c0_5, %c0_6, %c0_7] : memref<1x16x16x4xbf16, #tpu.memory_space<vmem>>, vector<1x16x16x4xbf16>
    %4 = vector.shape_cast %3 : vector<1x16x16x4xbf16> to vector<16x16x4xbf16>
    %5 = vector.extract_strided_slice %1 {offsets = [1, 0, 0], sizes = [1, 16, 4], strides = [1, 1, 1]} : vector<2x16x4xbf16> to vector<1x16x4xbf16>
    %6 = tpu.concatenate %2, %4, %5 in 0 : vector<1x16x4xbf16>, vector<16x16x4xbf16>, vector<1x16x4xbf16> -> vector<18x16x4xbf16>
    %7 = arith.extf %6 : vector<18x16x4xbf16> to vector<18x16x4xf32>
    %c0_8 = arith.constant 0 : index
    %c0_9 = arith.constant 0 : index
    %8 = vector.load %arg5[%c0_8, %c0_9] : memref<1x4xf32, #tpu.memory_space<vmem>>, vector<1x4xf32>
    %9 = vector.shape_cast %8 : vector<1x4xf32> to vector<1x1x4xf32>
    %10 = vector.broadcast %9 : vector<1x1x4xf32> to vector<18x16x4xf32>
    %11 = arith.mulf %7, %10 : vector<18x16x4xf32>
    %c0_10 = arith.constant 0 : index
    %c0_11 = arith.constant 0 : index
    %12 = vector.load %arg6[%c0_10, %c0_11] : memref<1x4xf32, #tpu.memory_space<vmem>>, vector<1x4xf32>
    %13 = vector.shape_cast %12 : vector<1x4xf32> to vector<1x1x4xf32>
    %14 = vector.broadcast %13 : vector<1x1x4xf32> to vector<18x16x4xf32>
    %15 = arith.addf %11, %14 : vector<18x16x4xf32>
    %cst = arith.constant 0.000000e+00 : f32
    %16 = vector.broadcast %cst : f32 to vector<18x16x4xf32>
    %17 = arith.maximumf %15, %16 : vector<18x16x4xf32>
    %18 = arith.truncf %17 : vector<18x16x4xf32> to vector<18x16x4xbf16>
    %cst_12 = arith.constant 0.000000e+00 : f32
    %19 = vector.broadcast %cst_12 : f32 to vector<256x12xf32>
    %20 = vector.extract_strided_slice %18 {offsets = [0, 0, 0], sizes = [16, 16, 4], strides = [1, 1, 1]} : vector<18x16x4xbf16> to vector<16x16x4xbf16>
    %21 = vector.shape_cast %20 : vector<16x16x4xbf16> to vector<256x4xbf16>
    %c0_13 = arith.constant 0 : index
    %c0_14 = arith.constant 0 : index
    %c0_15 = arith.constant 0 : index
    %22 = vector.load %arg7[%c0_13, %c0_14, %c0_15] : memref<3x4x12xbf16, #tpu.memory_space<vmem>>, vector<1x4x12xbf16>
    %23 = vector.shape_cast %22 : vector<1x4x12xbf16> to vector<4x12xbf16>
    %cst_16 = arith.constant dense<0.000000e+00> : vector<256x12xf32>
    %24 = tpu.matmul %21, %23, %cst_16 {dimension_numbers = #tpu.dot_dimension_numbers<[1], [0], [0], [1], [0, 0, 1, 1], [], []>} : vector<256x4xbf16>, vector<4x12xbf16>, vector<256x12xf32> -> vector<256x12xf32>
    %25 = arith.addf %19, %24 : vector<256x12xf32>
    %26 = vector.extract_strided_slice %18 {offsets = [1, 0, 0], sizes = [16, 16, 4], strides = [1, 1, 1]} : vector<18x16x4xbf16> to vector<16x16x4xbf16>
    %27 = vector.shape_cast %26 : vector<16x16x4xbf16> to vector<256x4xbf16>
    %c1 = arith.constant 1 : index
    %c0_17 = arith.constant 0 : index
    %c0_18 = arith.constant 0 : index
    %28 = vector.load %arg7[%c1, %c0_17, %c0_18] : memref<3x4x12xbf16, #tpu.memory_space<vmem>>, vector<1x4x12xbf16>
    %29 = vector.shape_cast %28 : vector<1x4x12xbf16> to vector<4x12xbf16>
    %cst_19 = arith.constant dense<0.000000e+00> : vector<256x12xf32>
    %30 = tpu.matmul %27, %29, %cst_19 {dimension_numbers = #tpu.dot_dimension_numbers<[1], [0], [0], [1], [0, 0, 1, 1], [], []>} : vector<256x4xbf16>, vector<4x12xbf16>, vector<256x12xf32> -> vector<256x12xf32>
    %31 = arith.addf %25, %30 : vector<256x12xf32>
    %32 = vector.extract_strided_slice %18 {offsets = [2, 0, 0], sizes = [16, 16, 4], strides = [1, 1, 1]} : vector<18x16x4xbf16> to vector<16x16x4xbf16>
    %33 = vector.shape_cast %32 : vector<16x16x4xbf16> to vector<256x4xbf16>
    %c2 = arith.constant 2 : index
    %c0_20 = arith.constant 0 : index
    %c0_21 = arith.constant 0 : index
    %34 = vector.load %arg7[%c2, %c0_20, %c0_21] : memref<3x4x12xbf16, #tpu.memory_space<vmem>>, vector<1x4x12xbf16>
    %35 = vector.shape_cast %34 : vector<1x4x12xbf16> to vector<4x12xbf16>
    %cst_22 = arith.constant dense<0.000000e+00> : vector<256x12xf32>
    %36 = tpu.matmul %33, %35, %cst_22 {dimension_numbers = #tpu.dot_dimension_numbers<[1], [0], [0], [1], [0, 0, 1, 1], [], []>} : vector<256x4xbf16>, vector<4x12xbf16>, vector<256x12xf32> -> vector<256x12xf32>
    %37 = arith.addf %31, %36 : vector<256x12xf32>
    %38 = vector.shape_cast %37 : vector<256x12xf32> to vector<16x16x12xf32>
    %39 = vector.extract_strided_slice %38 {offsets = [0, 0, 0], sizes = [16, 16, 4], strides = [1, 1, 1]} : vector<16x16x12xf32> to vector<16x16x4xf32>
    %40 = vector.extract_strided_slice %38 {offsets = [0, 0, 4], sizes = [16, 16, 4], strides = [1, 1, 1]} : vector<16x16x12xf32> to vector<16x16x4xf32>
    %41 = vector.extract_strided_slice %38 {offsets = [0, 0, 8], sizes = [16, 16, 4], strides = [1, 1, 1]} : vector<16x16x12xf32> to vector<16x16x4xf32>
    %42 = vector.extract_strided_slice %39 {offsets = [0, 1, 0], sizes = [16, 1, 4], strides = [1, 1, 1]} : vector<16x16x4xf32> to vector<16x1x4xf32>
    %43 = vector.extract_strided_slice %39 {offsets = [0, 0, 0], sizes = [16, 15, 4], strides = [1, 1, 1]} : vector<16x16x4xf32> to vector<16x15x4xf32>
    %44 = tpu.concatenate %42, %43 in 1 : vector<16x1x4xf32>, vector<16x15x4xf32> -> vector<16x16x4xf32>
    %45 = vector.extract_strided_slice %41 {offsets = [0, 1, 0], sizes = [16, 15, 4], strides = [1, 1, 1]} : vector<16x16x4xf32> to vector<16x15x4xf32>
    %46 = vector.extract_strided_slice %41 {offsets = [0, 14, 0], sizes = [16, 1, 4], strides = [1, 1, 1]} : vector<16x16x4xf32> to vector<16x1x4xf32>
    %47 = tpu.concatenate %45, %46 in 1 : vector<16x15x4xf32>, vector<16x1x4xf32> -> vector<16x16x4xf32>
    %48 = arith.addf %40, %44 : vector<16x16x4xf32>
    %49 = arith.addf %48, %47 : vector<16x16x4xf32>
    %c0_23 = arith.constant 0 : index
    %c0_24 = arith.constant 0 : index
    %50 = vector.load %arg8[%c0_23, %c0_24] : memref<1x4xf32, #tpu.memory_space<vmem>>, vector<1x4xf32>
    %51 = vector.shape_cast %50 : vector<1x4xf32> to vector<1x1x4xf32>
    %52 = vector.broadcast %51 : vector<1x1x4xf32> to vector<16x16x4xf32>
    %53 = arith.addf %49, %52 : vector<16x16x4xf32>
    %cst_25 = arith.constant dense<0.000000e+00> : vector<4xf32>
    %54 = vector.multi_reduction <add>, %53, %cst_25 [0, 1] : vector<16x16x4xf32> to vector<4xf32>
    %55 = vector.shape_cast %54 : vector<4xf32> to vector<1x1x4xf32>
    %56 = vector.shape_cast %55 : vector<1x1x4xf32> to vector<1x1x1x4xf32>
    %c0_26 = arith.constant 0 : index
    %c0_27 = arith.constant 0 : index
    %c0_28 = arith.constant 0 : index
    %c0_29 = arith.constant 0 : index
    %57 = vector.load %arg10[%c0_26, %c0_27, %c0_28, %c0_29] : memref<1x1x1x4xf32, #tpu.memory_space<vmem>>, vector<1x1x1x4xf32>
    tpu.vector_store %arg10[%c0_26, %c0_27, %c0_28, %c0_29], %56 {strides = array<i32>} : memref<1x1x1x4xf32, #tpu.memory_space<vmem>>, vector<1x1x1x4xf32>,
    %58 = arith.mulf %53, %53 : vector<16x16x4xf32>
    %cst_30 = arith.constant dense<0.000000e+00> : vector<4xf32>
    %59 = vector.multi_reduction <add>, %58, %cst_30 [0, 1] : vector<16x16x4xf32> to vector<4xf32>
    %60 = vector.shape_cast %59 : vector<4xf32> to vector<1x1x4xf32>
    %61 = vector.shape_cast %60 : vector<1x1x4xf32> to vector<1x1x1x4xf32>
    %c0_31 = arith.constant 0 : index
    %c0_32 = arith.constant 0 : index
    %c0_33 = arith.constant 0 : index
    %c0_34 = arith.constant 0 : index
    %62 = vector.load %arg11[%c0_31, %c0_32, %c0_33, %c0_34] : memref<1x1x1x4xf32, #tpu.memory_space<vmem>>, vector<1x1x1x4xf32>
    tpu.vector_store %arg11[%c0_31, %c0_32, %c0_33, %c0_34], %61 {strides = array<i32>} : memref<1x1x1x4xf32, #tpu.memory_space<vmem>>, vector<1x1x1x4xf32>,
    %63 = arith.truncf %53 : vector<16x16x4xf32> to vector<16x16x4xbf16>
    %64 = vector.shape_cast %63 : vector<16x16x4xbf16> to vector<1x16x16x4xbf16>
    %c0_35 = arith.constant 0 : index
    %c0_36 = arith.constant 0 : index
    %c0_37 = arith.constant 0 : index
    %c0_38 = arith.constant 0 : index
    %65 = vector.load %arg9[%c0_35, %c0_36, %c0_37, %c0_38] : memref<1x16x16x4xbf16, #tpu.memory_space<vmem>>, vector<1x16x16x4xbf16>
    tpu.vector_store %arg9[%c0_35, %c0_36, %c0_37, %c0_38], %64 {strides = array<i32>} : memref<1x16x16x4xbf16, #tpu.memory_space<vmem>>, vector<1x16x16x4xbf16>,
    return
  }
  func.func @transform_0(%arg0: i32, %arg1: i32, %arg2: i32) -> (i32, i32, i32, i32) {
    %c0_i32 = arith.constant 0 : i32
    %c0_i32_0 = arith.constant 0 : i32
    %c0_i32_1 = arith.constant 0 : i32
    return %arg0, %arg2, %c0_i32, %c0_i32_0 : i32, i32, i32, i32
  }
  func.func @transform_1(%arg0: i32, %arg1: i32, %arg2: i32) -> (i32, i32, i32, i32, i32) {
    %c0_i32 = arith.constant 0 : i32
    %c0_i32_0 = arith.constant 0 : i32
    %c0_i32_1 = arith.constant 0 : i32
    %c0_i32_2 = arith.constant 0 : i32
    return %arg0, %arg2, %c0_i32, %c0_i32_0, %c0_i32_1 : i32, i32, i32, i32, i32
  }
  func.func @transform_2(%arg0: i32, %arg1: i32, %arg2: i32) -> (i32, i32) {
    %c0_i32 = arith.constant 0 : i32
    %c0_i32_0 = arith.constant 0 : i32
    %c0_i32_1 = arith.constant 0 : i32
    return %c0_i32, %c0_i32_0 : i32, i32
  }
  func.func @transform_3(%arg0: i32, %arg1: i32, %arg2: i32) -> (i32, i32) {
    %c0_i32 = arith.constant 0 : i32
    %c0_i32_0 = arith.constant 0 : i32
    %c0_i32_1 = arith.constant 0 : i32
    return %c0_i32, %c0_i32_0 : i32, i32
  }
  func.func @transform_4(%arg0: i32, %arg1: i32, %arg2: i32) -> (i32, i32, i32) {
    %c0_i32 = arith.constant 0 : i32
    %c0_i32_0 = arith.constant 0 : i32
    %c0_i32_1 = arith.constant 0 : i32
    return %c0_i32, %c0_i32_0, %arg1 : i32, i32, i32
  }
  func.func @transform_5(%arg0: i32, %arg1: i32, %arg2: i32) -> (i32, i32) {
    %c0_i32 = arith.constant 0 : i32
    %c0_i32_0 = arith.constant 0 : i32
    return %c0_i32, %arg1 : i32, i32
  }
  func.func @transform_6(%arg0: i32, %arg1: i32, %arg2: i32) -> (i32, i32, i32, i32) {
    %c0_i32 = arith.constant 0 : i32
    %c0_i32_0 = arith.constant 0 : i32
    return %arg0, %arg2, %c0_i32, %arg1 : i32, i32, i32, i32
  }
  func.func @transform_7(%arg0: i32, %arg1: i32, %arg2: i32) -> (i32, i32, i32, i32) {
    %c0_i32 = arith.constant 0 : i32
    %c0_i32_0 = arith.constant 0 : i32
    return %arg0, %arg2, %c0_i32, %arg1 : i32, i32, i32, i32
  }
  func.func @transform_8(%arg0: i32, %arg1: i32, %arg2: i32) -> (i32, i32, i32, i32) {
    %c0_i32 = arith.constant 0 : i32
    %c0_i32_0 = arith.constant 0 : i32
    return %arg0, %arg2, %c0_i32, %arg1 : i32, i32, i32, i32
  }
}

module attributes {stable_mosaic.version = 11 : i64} {
  func.func @bn_apply_kernel(%arg0: i32, %arg1: i32, %arg2: memref<1x16x16x4xbf16, #tpu.memory_space<vmem>>, %arg3: memref<1x4xf32, #tpu.memory_space<vmem>>, %arg4: memref<1x4xf32, #tpu.memory_space<vmem>>, %arg5: memref<1x16x16x4xf32, #tpu.memory_space<vmem>>) attributes {dimension_semantics = [#tpu.dimension_semantics<parallel>, #tpu.dimension_semantics<parallel>], iteration_bounds = array<i64: 2, 1>, scalar_prefetch = 0 : i64, scratch_operands = 0 : i64, tpu.core_type = #tpu.core_type<tc>, window_params = [{transform_indices = @transform_0, window_bounds = array<i64: 1, 16, 16, 4>}, {pipeline_mode = #tpu.pipeline_mode<synchronous>, transform_indices = @transform_1, window_bounds = array<i64: 1, 4>}, {pipeline_mode = #tpu.pipeline_mode<synchronous>, transform_indices = @transform_2, window_bounds = array<i64: 1, 4>}, {transform_indices = @transform_3, window_bounds = array<i64: 1, 16, 16, 4>}]} {
    %c0 = arith.constant 0 : index
    %c0_0 = arith.constant 0 : index
    %c0_1 = arith.constant 0 : index
    %c0_2 = arith.constant 0 : index
    %0 = vector.load %arg2[%c0, %c0_0, %c0_1, %c0_2] : memref<1x16x16x4xbf16, #tpu.memory_space<vmem>>, vector<1x16x16x4xbf16>
    %1 = arith.extf %0 : vector<1x16x16x4xbf16> to vector<1x16x16x4xf32>
    %c0_3 = arith.constant 0 : index
    %c0_4 = arith.constant 0 : index
    %2 = vector.load %arg3[%c0_3, %c0_4] : memref<1x4xf32, #tpu.memory_space<vmem>>, vector<1x4xf32>
    %3 = vector.shape_cast %2 : vector<1x4xf32> to vector<1x1x1x4xf32>
    %4 = vector.broadcast %3 : vector<1x1x1x4xf32> to vector<1x16x16x4xf32>
    %5 = arith.mulf %1, %4 : vector<1x16x16x4xf32>
    %c0_5 = arith.constant 0 : index
    %c0_6 = arith.constant 0 : index
    %6 = vector.load %arg4[%c0_5, %c0_6] : memref<1x4xf32, #tpu.memory_space<vmem>>, vector<1x4xf32>
    %7 = vector.shape_cast %6 : vector<1x4xf32> to vector<1x1x1x4xf32>
    %8 = vector.broadcast %7 : vector<1x1x1x4xf32> to vector<1x16x16x4xf32>
    %9 = arith.addf %5, %8 : vector<1x16x16x4xf32>
    %cst = arith.constant 0.000000e+00 : f32
    %10 = vector.broadcast %cst : f32 to vector<1x16x16x4xf32>
    %11 = arith.maximumf %9, %10 : vector<1x16x16x4xf32>
    %c0_7 = arith.constant 0 : index
    %c0_8 = arith.constant 0 : index
    %c0_9 = arith.constant 0 : index
    %c0_10 = arith.constant 0 : index
    %12 = vector.load %arg5[%c0_7, %c0_8, %c0_9, %c0_10] : memref<1x16x16x4xf32, #tpu.memory_space<vmem>>, vector<1x16x16x4xf32>
    tpu.vector_store %arg5[%c0_7, %c0_8, %c0_9, %c0_10], %11 {strides = array<i32>} : memref<1x16x16x4xf32, #tpu.memory_space<vmem>>, vector<1x16x16x4xf32>,
    return
  }
  func.func @transform_0(%arg0: i32, %arg1: i32) -> (i32, i32, i32, i32) {
    %c0_i32 = arith.constant 0 : i32
    %c0_i32_0 = arith.constant 0 : i32
    %c0_i32_1 = arith.constant 0 : i32
    return %arg0, %arg1, %c0_i32, %c0_i32_0 : i32, i32, i32, i32
  }
  func.func @transform_1(%arg0: i32, %arg1: i32) -> (i32, i32) {
    %c0_i32 = arith.constant 0 : i32
    %c0_i32_0 = arith.constant 0 : i32
    %c0_i32_1 = arith.constant 0 : i32
    return %c0_i32, %c0_i32_0 : i32, i32
  }
  func.func @transform_2(%arg0: i32, %arg1: i32) -> (i32, i32) {
    %c0_i32 = arith.constant 0 : i32
    %c0_i32_0 = arith.constant 0 : i32
    %c0_i32_1 = arith.constant 0 : i32
    return %c0_i32, %c0_i32_0 : i32, i32
  }
  func.func @transform_3(%arg0: i32, %arg1: i32) -> (i32, i32, i32, i32) {
    %c0_i32 = arith.constant 0 : i32
    %c0_i32_0 = arith.constant 0 : i32
    %c0_i32_1 = arith.constant 0 : i32
    return %arg0, %arg1, %c0_i32, %c0_i32_0 : i32, i32, i32, i32
  }
}

</mosaic_0001>

<llo_original>
// kernel: tile.8
$region0: #{tile.8}
  #allocation0 [shape = 's32[1]{0}', space=sflag, size = 0x4, scoped, tag = 'scoped memory for tile.8']
  %s0 = inlined_call_operand.vmem [shape: f32[8], index: 0, kind: input, shape index: {}]
  %s1 = inlined_call_operand.vmem [shape: f32[4,8], index: 1, kind: output, shape index: {}]
  // Predicated region
  $region2: #{tile.8} parent=0 // pred_check
    _
  $region3: #{tile.8} parent=0 // pred_check_branch
    %3 = sbr.rel (0) target = $region5
  $region4: #{tile.8} parent=0 // pred_region
    _
  $region5: #{tile.8} parent=0 // pred_fallthru
    _
  %v4 = vld [vmem:[%s0] ss:$0 sm:$0xff]
  %5 = vst [vmem:[%s1] sm:$0xf] %v4

// kernel: tile.9
$region0: #{tile.9}
  %s0 = inlined_call_operand.vmem [shape: f32[4,8], index: 0, kind: input, shape index: {}]
  %s1 = inlined_call_operand.vmem [shape: f32[1,32], index: 1, kind: output, shape index: {}]
  $region1: #{tile.9} parent=0
    #allocation0 [shape = 'u8[4096]{0}', space=vmem, size = 0x1000, scoped, tag = 'scoped mem for output reshape']
    #allocation1 [shape = 'u8[4096]{0}', space=vmem, size = 0x1000, scoped, tag = 'scoped mem for input reshape']
    %s3 = sshllo.u32 0, 4
    %v4 = vld [vmem:[%s0] sm:%s3]
    %5 = vst [vmem:[#allocation1] sm:%s3] %v4
    %v6 = vld [vmem:[#allocation1] sm:$0x1]
    %vm7 = vcmask 64512
    %8 = vst.msk [vmem:[#allocation0] sm:$0x1] %vm7, %v6
    %s9 = scalar_lea.vmem [#allocation1], 3
    %v10 = vld [vmem:[%s9] sm:$0x1]
    %11 = vrot.lane.b32.xlu0 %v10, 24
    %v12 = vpop.permute.xlu0 %11
    %vm13 = vcmask 261312
    %14 = vst.msk [vmem:[#allocation0] sm:$0x1] %vm13, %v12
    %s15 = scalar_lea.vmem [#allocation1], 2
    %v16 = vld [vmem:[%s15] sm:$0x1]
    %17 = vrot.lane.b32.xlu0 %v16, 16
    %v18 = vpop.permute.xlu0 %17
    %vm19 = vcmask 195712
    %20 = vst.msk [vmem:[#allocation0] sm:$0x1] %vm19, %v18
    %s21 = scalar_lea.vmem [#allocation1], 1
    %v22 = vld [vmem:[%s21] sm:$0x1]
    %23 = vrot.lane.b32.xlu0 %v22, 8
    %v24 = vpop.permute.xlu0 %23
    %vm25 = vcmask 130112
    %26 = vst.msk [vmem:[#allocation0] sm:$0x1] %vm25, %v24
    %s28 = sshllo.u32 0, 1
    %v30 = vld [vmem:[#allocation0] sm:%s28]
    %s31 = sshllo.u32 0, 1
    %32 = vst [vmem:[%s1] sm:%s31] %v30

// kernel: decoder_block_forward.4
$region0: #{decoder_block_forward.4}
  #allocation0 [shape = 'u32[]', space=smem, size = 0x4, offset = 0x4, fixed_abs, tag = 'smem constant byte address 0x4 - core index']
  #allocation1 [shape = 'u32[144,128]{1,0:T(1,128)}', space=vmem, size = 0x12000, scoped, tag = 'internal scratch']
  %s0 = inlined_call_operand.vmem [shape: bf16[2,8,8,8], index: 0, kind: input, shape index: {}]
  %s1 = inlined_call_operand.vmem [shape: bf16[8,32], index: 1, kind: input, shape index: {}]
  %s2 = inlined_call_operand.vmem [shape: f32[1,32], index: 2, kind: input, shape index: {}]
  %s3 = inlined_call_operand.vmem [shape: bf16[2,8,2,8,16], index: 3, kind: output, shape index: {}]
  %s4 = sld [smem:[#allocation0]]
  $region45: #{decoder_block_forward.4} parent=0
    _
  %s6 = ssub.s32 1, %s4
  %s7 = scalar_select 0, %s6, %s4
  loop: start=0, step=1, limit=4
  $region2: #{decoder_block_forward.4} parent=0 // loop_pre_header
    _
  $region3: #{decoder_block_forward.4} parent=0 // loop_header
    %s9 = sphi 0, %s13
    %p10 = scmp.ge.s32.totalorder %s9, 4
    %s16 = sphi 0, %s28
    %s17 = sphi 0, %s24
    %s18 = sphi 0, %s16
    %s19 = sphi 0, %s17
    %s20 = sphi 0, %s18
    %s21 = sphi 0, %s19
    %s33 = sphi 0, %s35
    %s36 = sphi 0, %s33
    %s37 = sphi 0, %s36
    %s53 = sphi 0, %s37
    %s57 = sphi 0, %s57
    %s59 = sphi 0, %s57
    %s60 = sphi 0, %s59
    %s74 = sphi 0, %s60
    %s78 = sphi 0, %s78
    %s80 = sphi 0, %s78
    %s81 = sphi 0, %s80
    %s95 = sphi 0, %s81
    %s103 = sphi 0, %s105
    %s106 = sphi 0, %s103
    %s107 = sphi 0, %s106
    %s123 = sphi 0, %s107
  $region4: #{decoder_block_forward.4} parent=0 // loop_header_branch
    %12 = sbr.rel (%p10) target = $region8
  $region5: #{decoder_block_forward.4} parent=0 // loop_body
    %s14 = ssub.s32 %s9, 1
    %s15 = ssub.s32 %s9, 2
    %s22 = sadd.s32 1, %s17
    %p23 = scmp.ge.s32.totalorder %s22, 1
    %s24 = scalar_select %p23, 0, %s22
    %s25 = sadd.s32 1, %s16
    %s26 = scalar_select %p23, %s25, %s16
    %p27 = scmp.ge.s32.totalorder %s26, 2
    %s28 = scalar_select %p27, 0, %s26
    %s29 = ssub.s32 %s16, %s28
    %s30 = ssub.s32 %s17, %s24
    %s31 = sor.u32 %s29, %s30
    %p32 = scmp.eq.s32.totalorder %s31, 0
    %s34 = sadd.s32 %s33, 1
    %s35 = scalar_select %p32, %s33, %s34
    %p38 = pneg %p32
    %p39 = scmp.eq.s32.totalorder %s9, 1
    %p40 = por %p38, %p39
    %p41 = scmp.ne.s32.totalorder %s33, %s36
    %p42 = scmp.eq.s32.totalorder %s9, 0
    %p43 = por %p41, %p42
    %p44 = scmp.ne.s32.totalorder %s33, %s36
    %p45 = scmp.eq.s32.totalorder %s14, 1
    %p46 = por %p44, %p45
    %p47 = scmp.ne.s32.totalorder %s36, %s37
    %p48 = scmp.eq.s32.totalorder %s14, 0
    %p49 = por %p47, %p48
    %p50 = scmp.ne.s32.totalorder %s36, %s37
    %p51 = scmp.eq.s32.totalorder %s15, 1
    %p52 = por %p50, %p51
    %p54 = scmp.ne.s32.totalorder %s37, %s53
    %p55 = scmp.eq.s32.totalorder %s15, 0
    %p56 = por %p54, %p55
    %s58 = sadd.s32 %s57, 1
    %p61 = scmp.eq.s32.totalorder %s9, 1
    %p62 = scmp.ne.s32.totalorder %s57, %s59
    %p63 = scmp.eq.s32.totalorder %s9, 0
    %p64 = por %p62, %p63
    %p65 = scmp.ne.s32.totalorder %s57, %s59
    %p66 = scmp.eq.s32.totalorder %s14, 1
    %p67 = por %p65, %p66
    %p68 = scmp.ne.s32.totalorder %s59, %s60
    %p69 = scmp.eq.s32.totalorder %s14, 0
    %p70 = por %p68, %p69
    %p71 = scmp.ne.s32.totalorder %s59, %s60
    %p72 = scmp.eq.s32.totalorder %s15, 1
    %p73 = por %p71, %p72
    %p75 = scmp.ne.s32.totalorder %s60, %s74
    %p76 = scmp.eq.s32.totalorder %s15, 0
    %p77 = por %p75, %p76
    %s79 = sadd.s32 %s78, 1
    %p82 = scmp.eq.s32.totalorder %s9, 1
    %p83 = scmp.ne.s32.totalorder %s78, %s80
    %p84 = scmp.eq.s32.totalorder %s9, 0
    %p85 = por %p83, %p84
    %p86 = scmp.ne.s32.totalorder %s78, %s80
    %p87 = scmp.eq.s32.totalorder %s14, 1
    %p88 = por %p86, %p87
    %p89 = scmp.ne.s32.totalorder %s80, %s81
    %p90 = scmp.eq.s32.totalorder %s14, 0
    %p91 = por %p89, %p90
    %p92 = scmp.ne.s32.totalorder %s80, %s81
    %p93 = scmp.eq.s32.totalorder %s15, 1
    %p94 = por %p92, %p93
    %p96 = scmp.ne.s32.totalorder %s81, %s95
    %p97 = scmp.eq.s32.totalorder %s15, 0
    %p98 = por %p96, %p97
    %s99 = ssub.s32 %s16, %s28
    %s100 = ssub.s32 %s17, %s24
    %s101 = sor.u32 %s99, %s100
    %p102 = scmp.eq.s32.totalorder %s101, 0
    %s104 = sadd.s32 %s103, 1
    %s105 = scalar_select %p102, %s103, %s104
    %p108 = pneg %p102
    %p109 = scmp.eq.s32.totalorder %s9, 1
    %p110 = por %p108, %p109
    %p111 = scmp.ne.s32.totalorder %s103, %s106
    %p112 = scmp.eq.s32.totalorder %s9, 0
    %p113 = por %p111, %p112
    %p114 = scmp.ne.s32.totalorder %s103, %s106
    %p115 = scmp.eq.s32.totalorder %s14, 1
    %p116 = por %p114, %p115
    %p117 = scmp.ne.s32.totalorder %s106, %s107
    %p118 = scmp.eq.s32.totalorder %s14, 0
    %p119 = por %p117, %p118
    %p120 = scmp.ne.s32.totalorder %s106, %s107
    %p121 = scmp.eq.s32.totalorder %s15, 1
    %p122 = por %p120, %p121
    %p124 = scmp.ne.s32.totalorder %s107, %s123
    %p125 = scmp.eq.s32.totalorder %s15, 0
    %p126 = por %p124, %p125
    %p127 = scmp.le.s32.totalorder 1, %s9
    %p128 = scmp.lt.s32.totalorder %s9, 3
    %p129 = pnand %p127, %p128
    %p130 = pneg %p129
    // Predicated region
    $region9: #{decoder_block_forward.4} parent=5 // pred_check
      _
    $region10: #{decoder_block_forward.4} parent=5 // pred_check_branch
      %132 = sbr.rel (%p129) target = $region12
    $region11: #{decoder_block_forward.4} parent=5 // pred_region
      %s133 = ssub.s32 %s9, 1
      // Predicated region
      $region13: #{decoder_block_forward.4} parent=11 // pred_check
        %p134 = pneg %p70
      $region14: #{decoder_block_forward.4} parent=11 // pred_check_branch
        %136 = sbr.rel (%p134) target = $region16
      $region15: #{decoder_block_forward.4} parent=11 // pred_region
        _
      $region16: #{decoder_block_forward.4} parent=11 // pred_fallthru
        _
      // Predicated region
      $region17: #{decoder_block_forward.4} parent=11 // pred_check
        %p137 = pneg %p91
      $region18: #{decoder_block_forward.4} parent=11 // pred_check_branch
        %139 = sbr.rel (%p137) target = $region20
      $region19: #{decoder_block_forward.4} parent=11 // pred_region
        _
      $region20: #{decoder_block_forward.4} parent=11 // pred_fallthru
        _
    $region12: #{decoder_block_forward.4} parent=5 // pred_fallthru
      _
    %p140 = scmp.lt.s32.totalorder %s9, 2
    // Predicated region
    $region21: #{decoder_block_forward.4} parent=5 // pred_check
      %p141 = pneg %p140
    $region22: #{decoder_block_forward.4} parent=5 // pred_check_branch
      %143 = sbr.rel (%p141) target = $region24
    $region23: #{decoder_block_forward.4} parent=5 // pred_region
      // Predicated region
      $region25: #{decoder_block_forward.4} parent=23 // pred_check
        %p144 = pneg %p43
      $region26: #{decoder_block_forward.4} parent=23 // pred_check_branch
        %146 = sbr.rel (%p144) target = $region28
      $region27: #{decoder_block_forward.4} parent=23 // pred_region
        %s147 = smul.u32 8, %s17
        %p148 = scmp.lt.s32.totalorder %s16, 1
        %s149 = scalar_select %p148, %s16, 1
        %p150 = scmp.lt.s32.totalorder %s147, 7
        %s151 = scalar_select %p150, %s147, 7
        %s152 = smul.addr %s149, 8
        %s153 = sadd.s32 %s151, %s152
        %s154 = smul.addr %s153, 4
        %s155 = scalar_lea.vmem %s0, %s154
        %s156 = smul.u32 8, %s17
      $region28: #{decoder_block_forward.4} parent=23 // pred_fallthru
        _
    $region24: #{decoder_block_forward.4} parent=5 // pred_fallthru
      _
    %p157 = scmp.le.s32.totalorder 1, %s9
    %p158 = scmp.lt.s32.totalorder %s9, 3
    %p159 = pnand %p157, %p158
    %p160 = pneg %p159
    // Predicated region
    $region29: #{decoder_block_forward.4} parent=5 // pred_check
      _
    $region30: #{decoder_block_forward.4} parent=5 // pred_check_branch
      %162 = sbr.rel (%p159) target = $region32
    $region31: #{decoder_block_forward.4} parent=5 // pred_region
      %s163 = ssub.s32 %s9, 1
      %s164 = smul.u32 8, %s19
      %p165 = scmp.lt.s32.totalorder %s18, 1
      %s166 = scalar_select %p165, %s18, 1
      %p167 = scmp.lt.s32.totalorder %s164, 7
      %s168 = scalar_select %p167, %s164, 7
      %s169 = smul.addr %s166, 8
      %s170 = sadd.s32 %s168, %s169
      %s171 = smul.addr %s170, 4
      %s172 = scalar_lea.vmem %s0, %s171
      %p173 = pneg %p49
      %p174 = pneg %p46
      %p175 = pneg %p70
      %p176 = pneg %p67
      %p177 = pneg %p91
      %p178 = pneg %p88
      %p179 = pneg %p119
      %p180 = pneg %p116
      %s181 = smul.u32 8, %s19
      %p182 = scmp.lt.s32.totalorder %s18, 1
      %s183 = scalar_select %p182, %s18, 1
      %p184 = scmp.lt.s32.totalorder %s181, 7
      %s185 = scalar_select %p184, %s181, 7
      %s186 = smul.addr %s185, 2
      %s187 = smul.addr %s183, 16
      %s188 = sadd.s32 %s186, %s187
      %s189 = smul.addr %s188, 4
      %s190 = scalar_lea.vmem %s3, %s189
      %s191 = smul.u32 8, %s19
      %p192 = scmp.lt.s32.totalorder %s18, 1
      %s193 = scalar_select %p192, %s18, 1
      %p194 = scmp.lt.s32.totalorder %s191, 7
      %s195 = scalar_select %p194, %s191, 7
      %s196 = smul.addr %s193, 8
      %s197 = sadd.s32 %s195, %s196
      %s198 = smul.addr %s197, 4
      %s199 = scalar_lea.vmem %s0, %s198
      %s200 = smul.u32 8, %s19
      %s201 = smul.u32 8, %s19
      %p202 = scmp.lt.s32.totalorder %s18, 1
      %s203 = scalar_select %p202, %s18, 1
      %p204 = scmp.lt.s32.totalorder %s201, 7
      %s205 = scalar_select %p204, %s201, 7
      %s206 = smul.addr %s205, 2
      %s207 = smul.addr %s203, 16
      %s208 = sadd.s32 %s206, %s207
      %s209 = smul.addr %s208, 4
      %s210 = scalar_lea.vmem %s3, %s209
      %s211 = smul.u32 8, %s19
      %v213 = vld [vmem:[%s199] sm:$0xf]
      %v214 = vld [vmem:[%s199 + $0x4] sm:$0xf]
      %v215 = vld [vmem:[%s199 + $0x8] sm:$0xf]
      %v216 = vld [vmem:[%s199 + $0xc] sm:$0xf]
      %v217 = vld [vmem:[%s199 + $0x10] sm:$0xf]
      %v218 = vld [vmem:[%s199 + $0x14] sm:$0xf]
      %v219 = vld [vmem:[%s199 + $0x18] sm:$0xf]
      %v220 = vld [vmem:[%s199 + $0x1c] sm:$0xf]
      %v221 = vld [vmem:[%s1] sm:$0xf]
      %v222 = vld [vmem:[%s2] sm:$0x1]
      %v224 = vlaneseq
      %v225 = vshrl.u32 %v224, 7
      %v226 = vsub.s32 0, %v225
      %v227 = vrot.slane %v222, %v226
      %v237 = vunpack.c.l.b16 %v213
      %v238 = vunpack.c.l.b16 %v214
      %v239 = vunpack.c.l.b16 %v215
      %v240 = vunpack.c.l.b16 %v216
      %v241 = vunpack.c.l.b16 %v217
      %v242 = vunpack.c.l.b16 %v218
      %v243 = vunpack.c.l.b16 %v219
      %v244 = vunpack.c.l.b16 %v220
      %v245 = vpack.c.b16 %v238, %v237
      %v246 = vpack.c.b16 %v240, %v239
      %v247 = vpack.c.b16 %v242, %v241
      %v248 = vpack.c.b16 %v244, %v243
      %vm249 = vcmask 64512
      %v251 = vsel %vm249, %v245, 0
      %v254 = vsel %vm249, %v246, 0
      %v257 = vsel %vm249, %v247, 0
      %v260 = vsel %vm249, %v248, 0
      %vm262 = vcmask 1043456
      %v264 = vsel %vm262, %v221, 0
      %266 = vmatprep.subr.bf16.mxu0 0
      %267 = vmatpush1.bf16.msra.mxu0 %v264
      %268 = vmatprep.subr.bf16.mxu0 0
      %269 = vmatpush1.bf16.msra.mxu0 0
      %270 = vmatprep.subr.bf16.mxu0 0
      %271 = vmatpush1.bf16.msra.mxu0 0
      %272 = vmatprep.subr.bf16.mxu0 0
      %273 = vmatpush1.bf16.msra.mxu0 0
      %274 = vmatprep.subr.bf16.mxu0 0
      %275 = vmatpush1.bf16.msra.mxu0 0
      %276 = vmatprep.subr.bf16.mxu0 0
      %277 = vmatpush1.bf16.msra.mxu0 0
      %278 = vmatprep.subr.bf16.mxu0 0
      %279 = vmatpush1.bf16.msra.mxu0 0
      %280 = vmatprep.subr.bf16.mxu0 0
      %281 = vmatpush1.bf16.msra.mxu0 0
      %282 = vmatprep.subr.bf16.mxu0 0
      %283 = vmatpush1.bf16.msra.mxu0 0
      %284 = vmatprep.subr.bf16.mxu0 0
      %285 = vmatpush1.bf16.msra.mxu0 0
      %286 = vmatprep.subr.bf16.mxu0 0
      %287 = vmatpush1.bf16.msra.mxu0 0
      %288 = vmatprep.subr.bf16.mxu0 0
      %289 = vmatpush1.bf16.msra.mxu0 0
      %290 = vmatprep.subr.bf16.mxu0 0
      %291 = vmatpush1.bf16.msra.mxu0 0
      %292 = vmatprep.subr.bf16.mxu0 0
      %293 = vmatpush1.bf16.msra.mxu0 0
      %294 = vmatprep.subr.bf16.mxu0 0
      %295 = vmatpush1.bf16.msra.mxu0 0
      %296 = vmatprep.subr.bf16.mxu0 0
      %297 = vmatpush1.bf16.msra.mxu0 0
      %298 = vmatprep.mubr.bf16.mxu0 0
      %299 = vmatmul.mubr.bf16.gmra.mrb[0].mxu0 %v251
      %v300 = vpop.f32.mrb[0].mxu0
      %v301 = vadd.f32 %v227, %v300
      %v302 = vpop.f32.mrb[0].mxu0
      %v303 = vpop.f32.mrb[0].mxu0
      %v304 = vadd.f32 %v227, %v303
      %v305 = vpop.f32.mrb[0].mxu0
      %306 = vmatprep.mubr.bf16.mxu0 0
      %307 = vmatmul.mubr.bf16.gmra.mrb[0].mxu0 %v254
      %v308 = vpop.f32.mrb[0].mxu0
      %v309 = vadd.f32 %v227, %v308
      %v310 = vpop.f32.mrb[0].mxu0
      %v311 = vpop.f32.mrb[0].mxu0
      %v312 = vadd.f32 %v227, %v311
      %v313 = vpop.f32.mrb[0].mxu0
      %314 = vmatprep.mubr.bf16.mxu0 0
      %315 = vmatmul.mubr.bf16.gmra.mrb[0].mxu0 %v257
      %v316 = vpop.f32.mrb[0].mxu0
      %v317 = vadd.f32 %v227, %v316
      %v318 = vpop.f32.mrb[0].mxu0
      %v319 = vpop.f32.mrb[0].mxu0
      %v320 = vadd.f32 %v227, %v319
      %v321 = vpop.f32.mrb[0].mxu0
      %322 = vmatprep.mubr.bf16.mxu0 0
      %323 = vmatmul.mubr.bf16.gmra.mrb[0].mxu0 %v260
      %v324 = vpop.f32.mrb[0].mxu0
      %v325 = vadd.f32 %v227, %v324
      %v326 = vpop.f32.mrb[0].mxu0
      %v327 = vpop.f32.mrb[0].mxu0
      %v328 = vadd.f32 %v227, %v327
      %v329 = vpop.f32.mrb[0].mxu0
      %330 = vdwg.mxu0
      %v331 = vpack.c.bf16 %v304, %v301
      %v332 = vpack.c.bf16 %v312, %v309
      %v333 = vpack.c.bf16 %v320, %v317
      %v334 = vpack.c.bf16 %v328, %v325
      %v339 = vunpack.c.l.b16 %v331
      %v340 = vunpack.c.h.b16 %v331
      %v341 = vunpack.c.l.b16 %v332
      %v342 = vunpack.c.h.b16 %v332
      %v343 = vunpack.c.l.b16 %v333
      %v344 = vunpack.c.h.b16 %v333
      %v345 = vunpack.c.l.b16 %v334
      %v346 = vunpack.c.h.b16 %v334
      %v347 = vpack.c.b16 %v339, %v339
      %v348 = vpack.c.b16 %v340, %v340
      %v349 = vpack.c.b16 %v341, %v341
      %v350 = vpack.c.b16 %v342, %v342
      %v351 = vpack.c.b16 %v343, %v343
      %v352 = vpack.c.b16 %v344, %v344
      %v353 = vpack.c.b16 %v345, %v345
      %v354 = vpack.c.b16 %v346, %v346
      %vm363 = vcmask 125952
      %364 = vst.msk [vmem:[%s210] sm:$0xf] %vm363, %v347
      %365 = vst.msk [vmem:[%s210 + $0x8] sm:$0xf] %vm363, %v348
      %366 = vst.msk [vmem:[%s210 + $0x10] sm:$0xf] %vm363, %v349
      %367 = vst.msk [vmem:[%s210 + $0x18] sm:$0xf] %vm363, %v350
      %368 = vst.msk [vmem:[%s210 + $0x20] sm:$0xf] %vm363, %v351
      %369 = vst.msk [vmem:[%s210 + $0x28] sm:$0xf] %vm363, %v352
      %370 = vst.msk [vmem:[%s210 + $0x30] sm:$0xf] %vm363, %v353
      %371 = vst.msk [vmem:[%s210 + $0x38] sm:$0xf] %vm363, %v354
      %372 = vrot.lane.b32.xlu0 %v347, 112
      %v373 = vpop.permute.xlu0 %372
      %374 = vrot.lane.b32.xlu0 %v348, 112
      %v375 = vpop.permute.xlu0 %374
      %376 = vrot.lane.b32.xlu0 %v349, 112
      %v377 = vpop.permute.xlu0 %376
      %378 = vrot.lane.b32.xlu0 %v350, 112
      %v379 = vpop.permute.xlu0 %378
      %380 = vrot.lane.b32.xlu0 %v351, 112
      %v381 = vpop.permute.xlu0 %380
      %382 = vrot.lane.b32.xlu0 %v352, 112
      %v383 = vpop.permute.xlu0 %382
      %384 = vrot.lane.b32.xlu0 %v353, 112
      %v385 = vpop.permute.xlu0 %384
      %386 = vrot.lane.b32.xlu0 %v354, 112
      %v387 = vpop.permute.xlu0 %386
      %s396 = scalar_lea.vmem %s210, 4
      %397 = vst.msk [vmem:[%s396] sm:$0xf] %vm363, %v373
      %398 = vst.msk [vmem:[%s396 + $0x8] sm:$0xf] %vm363, %v375
      %399 = vst.msk [vmem:[%s396 + $0x10] sm:$0xf] %vm363, %v377
      %400 = vst.msk [vmem:[%s396 + $0x18] sm:$0xf] %vm363, %v379
      %401 = vst.msk [vmem:[%s396 + $0x20] sm:$0xf] %vm363, %v381
      %402 = vst.msk [vmem:[%s396 + $0x28] sm:$0xf] %vm363, %v383
      %403 = vst.msk [vmem:[%s396 + $0x30] sm:$0xf] %vm363, %v385
      %404 = vst.msk [vmem:[%s396 + $0x38] sm:$0xf] %vm363, %v387
      %s405 = smul.u32 8, %s19
      %p406 = scmp.lt.s32.totalorder %s18, 1
      %s407 = scalar_select %p406, %s18, 1
      %p408 = scmp.lt.s32.totalorder %s405, 7
      %s409 = scalar_select %p408, %s405, 7
      %s410 = smul.addr %s409, 2
      %s411 = smul.addr %s407, 16
      %s412 = sadd.s32 %s410, %s411
      %s413 = smul.addr %s412, 4
      %s414 = scalar_lea.vmem %s3, %s413
      // Predicated region
      $region33: #{decoder_block_forward.4} parent=31 // pred_check
        %p415 = pneg %p116
      $region34: #{decoder_block_forward.4} parent=31 // pred_check_branch
        %417 = sbr.rel (%p415) target = $region36
      $region35: #{decoder_block_forward.4} parent=31 // pred_region
        %s418 = smul.u32 8, %s19
      $region36: #{decoder_block_forward.4} parent=31 // pred_fallthru
        _
    $region32: #{decoder_block_forward.4} parent=5 // pred_fallthru
      _
    %p419 = scmp.le.s32.totalorder 2, %s9
    // Predicated region
    $region37: #{decoder_block_forward.4} parent=5 // pred_check
      %p420 = pneg %p419
    $region38: #{decoder_block_forward.4} parent=5 // pred_check_branch
      %422 = sbr.rel (%p420) target = $region40
    $region39: #{decoder_block_forward.4} parent=5 // pred_region
      %s423 = ssub.s32 %s9, 2
      // Predicated region
      $region41: #{decoder_block_forward.4} parent=39 // pred_check
        %p424 = pneg %p122
      $region42: #{decoder_block_forward.4} parent=39 // pred_check_branch
        %426 = sbr.rel (%p424) target = $region44
      $region43: #{decoder_block_forward.4} parent=39 // pred_region
        %s427 = smul.u32 8, %s21
        %p428 = scmp.lt.s32.totalorder %s20, 1
        %s429 = scalar_select %p428, %s20, 1
        %p430 = scmp.lt.s32.totalorder %s427, 7
        %s431 = scalar_select %p430, %s427, 7
        %s432 = smul.addr %s431, 2
        %s433 = smul.addr %s429, 16
        %s434 = sadd.s32 %s432, %s433
        %s435 = smul.addr %s434, 4
        %s436 = scalar_lea.vmem %s3, %s435
      $region44: #{decoder_block_forward.4} parent=39 // pred_fallthru
        _
    $region40: #{decoder_block_forward.4} parent=5 // pred_fallthru
      _
  $region6: #{decoder_block_forward.4} parent=0 // loop_footer
    %s13 = sadd.s32 1, %s9
  $region7: #{decoder_block_forward.4} parent=0 // loop_footer_branch
    %8 = sbr.rel target = $region3
  $region8: #{decoder_block_forward.4} parent=0 // loop_exit
    _

// kernel: decoder_block_forward.7
$region0: #{decoder_block_forward.7}
  #allocation0 [shape = 'u32[]', space=smem, size = 0x4, offset = 0x4, fixed_abs, tag = 'smem constant byte address 0x4 - core index']
  #allocation1 [shape = 'u32[144,128]{1,0:T(1,128)}', space=vmem, size = 0x12000, scoped, tag = 'internal scratch']
  %s0 = inlined_call_operand.vmem [shape: bf16[2,16,16,4], index: 0, kind: input, shape index: {}]
  %s1 = inlined_call_operand.vmem [shape: f32[1,4], index: 1, kind: input, shape index: {}]
  %s2 = inlined_call_operand.vmem [shape: f32[1,4], index: 2, kind: input, shape index: {}]
  %s3 = inlined_call_operand.vmem [shape: f32[2,16,16,4], index: 3, kind: output, shape index: {}]
  %s4 = sld [smem:[#allocation0]]
  $region45: #{decoder_block_forward.7} parent=0
    _
  %s6 = ssub.s32 1, %s4
  %s7 = scalar_select 0, %s6, %s4
  loop: start=0, step=1, limit=4
  $region2: #{decoder_block_forward.7} parent=0 // loop_pre_header
    _
  $region3: #{decoder_block_forward.7} parent=0 // loop_header
    %s9 = sphi 0, %s13
    %p10 = scmp.ge.s32.totalorder %s9, 4
    %s16 = sphi 0, %s28
    %s17 = sphi 0, %s24
    %s18 = sphi 0, %s16
    %s19 = sphi 0, %s17
    %s20 = sphi 0, %s18
    %s21 = sphi 0, %s19
    %s33 = sphi 0, %s35
    %s36 = sphi 0, %s33
    %s37 = sphi 0, %s36
    %s53 = sphi 0, %s37
    %s57 = sphi 0, %s57
    %s59 = sphi 0, %s57
    %s60 = sphi 0, %s59
    %s74 = sphi 0, %s60
    %s78 = sphi 0, %s78
    %s80 = sphi 0, %s78
    %s81 = sphi 0, %s80
    %s95 = sphi 0, %s81
    %s103 = sphi 0, %s105
    %s106 = sphi 0, %s103
    %s107 = sphi 0, %s106
    %s123 = sphi 0, %s107
  $region4: #{decoder_block_forward.7} parent=0 // loop_header_branch
    %12 = sbr.rel (%p10) target = $region8
  $region5: #{decoder_block_forward.7} parent=0 // loop_body
    %s14 = ssub.s32 %s9, 1
    %s15 = ssub.s32 %s9, 2
    %s22 = sadd.s32 1, %s17
    %p23 = scmp.ge.s32.totalorder %s22, 1
    %s24 = scalar_select %p23, 0, %s22
    %s25 = sadd.s32 1, %s16
    %s26 = scalar_select %p23, %s25, %s16
    %p27 = scmp.ge.s32.totalorder %s26, 2
    %s28 = scalar_select %p27, 0, %s26
    %s29 = ssub.s32 %s16, %s28
    %s30 = ssub.s32 %s17, %s24
    %s31 = sor.u32 %s29, %s30
    %p32 = scmp.eq.s32.totalorder %s31, 0
    %s34 = sadd.s32 %s33, 1
    %s35 = scalar_select %p32, %s33, %s34
    %p38 = pneg %p32
    %p39 = scmp.eq.s32.totalorder %s9, 1
    %p40 = por %p38, %p39
    %p41 = scmp.ne.s32.totalorder %s33, %s36
    %p42 = scmp.eq.s32.totalorder %s9, 0
    %p43 = por %p41, %p42
    %p44 = scmp.ne.s32.totalorder %s33, %s36
    %p45 = scmp.eq.s32.totalorder %s14, 1
    %p46 = por %p44, %p45
    %p47 = scmp.ne.s32.totalorder %s36, %s37
    %p48 = scmp.eq.s32.totalorder %s14, 0
    %p49 = por %p47, %p48
    %p50 = scmp.ne.s32.totalorder %s36, %s37
    %p51 = scmp.eq.s32.totalorder %s15, 1
    %p52 = por %p50, %p51
    %p54 = scmp.ne.s32.totalorder %s37, %s53
    %p55 = scmp.eq.s32.totalorder %s15, 0
    %p56 = por %p54, %p55
    %s58 = sadd.s32 %s57, 1
    %p61 = scmp.eq.s32.totalorder %s9, 1
    %p62 = scmp.ne.s32.totalorder %s57, %s59
    %p63 = scmp.eq.s32.totalorder %s9, 0
    %p64 = por %p62, %p63
    %p65 = scmp.ne.s32.totalorder %s57, %s59
    %p66 = scmp.eq.s32.totalorder %s14, 1
    %p67 = por %p65, %p66
    %p68 = scmp.ne.s32.totalorder %s59, %s60
    %p69 = scmp.eq.s32.totalorder %s14, 0
    %p70 = por %p68, %p69
    %p71 = scmp.ne.s32.totalorder %s59, %s60
    %p72 = scmp.eq.s32.totalorder %s15, 1
    %p73 = por %p71, %p72
    %p75 = scmp.ne.s32.totalorder %s60, %s74
    %p76 = scmp.eq.s32.totalorder %s15, 0
    %p77 = por %p75, %p76
    %s79 = sadd.s32 %s78, 1
    %p82 = scmp.eq.s32.totalorder %s9, 1
    %p83 = scmp.ne.s32.totalorder %s78, %s80
    %p84 = scmp.eq.s32.totalorder %s9, 0
    %p85 = por %p83, %p84
    %p86 = scmp.ne.s32.totalorder %s78, %s80
    %p87 = scmp.eq.s32.totalorder %s14, 1
    %p88 = por %p86, %p87
    %p89 = scmp.ne.s32.totalorder %s80, %s81
    %p90 = scmp.eq.s32.totalorder %s14, 0
    %p91 = por %p89, %p90
    %p92 = scmp.ne.s32.totalorder %s80, %s81
    %p93 = scmp.eq.s32.totalorder %s15, 1
    %p94 = por %p92, %p93
    %p96 = scmp.ne.s32.totalorder %s81, %s95
    %p97 = scmp.eq.s32.totalorder %s15, 0
    %p98 = por %p96, %p97
    %s99 = ssub.s32 %s16, %s28
    %s100 = ssub.s32 %s17, %s24
    %s101 = sor.u32 %s99, %s100
    %p102 = scmp.eq.s32.totalorder %s101, 0
    %s104 = sadd.s32 %s103, 1
    %s105 = scalar_select %p102, %s103, %s104
    %p108 = pneg %p102
    %p109 = scmp.eq.s32.totalorder %s9, 1
    %p110 = por %p108, %p109
    %p111 = scmp.ne.s32.totalorder %s103, %s106
    %p112 = scmp.eq.s32.totalorder %s9, 0
    %p113 = por %p111, %p112
    %p114 = scmp.ne.s32.totalorder %s103, %s106
    %p115 = scmp.eq.s32.totalorder %s14, 1
    %p116 = por %p114, %p115
    %p117 = scmp.ne.s32.totalorder %s106, %s107
    %p118 = scmp.eq.s32.totalorder %s14, 0
    %p119 = por %p117, %p118
    %p120 = scmp.ne.s32.totalorder %s106, %s107
    %p121 = scmp.eq.s32.totalorder %s15, 1
    %p122 = por %p120, %p121
    %p124 = scmp.ne.s32.totalorder %s107, %s123
    %p125 = scmp.eq.s32.totalorder %s15, 0
    %p126 = por %p124, %p125
    %p127 = scmp.le.s32.totalorder 1, %s9
    %p128 = scmp.lt.s32.totalorder %s9, 3
    %p129 = pnand %p127, %p128
    %p130 = pneg %p129
    // Predicated region
    $region9: #{decoder_block_forward.7} parent=5 // pred_check
      _
    $region10: #{decoder_block_forward.7} parent=5 // pred_check_branch
      %132 = sbr.rel (%p129) target = $region12
    $region11: #{decoder_block_forward.7} parent=5 // pred_region
      %s133 = ssub.s32 %s9, 1
      // Predicated region
      $region13: #{decoder_block_forward.7} parent=11 // pred_check
        %p134 = pneg %p70
      $region14: #{decoder_block_forward.7} parent=11 // pred_check_branch
        %136 = sbr.rel (%p134) target = $region16
      $region15: #{decoder_block_forward.7} parent=11 // pred_region
        _
      $region16: #{decoder_block_forward.7} parent=11 // pred_fallthru
        _
      // Predicated region
      $region17: #{decoder_block_forward.7} parent=11 // pred_check
        %p137 = pneg %p91
      $region18: #{decoder_block_forward.7} parent=11 // pred_check_branch
        %139 = sbr.rel (%p137) target = $region20
      $region19: #{decoder_block_forward.7} parent=11 // pred_region
        _
      $region20: #{decoder_block_forward.7} parent=11 // pred_fallthru
        _
    $region12: #{decoder_block_forward.7} parent=5 // pred_fallthru
      _
    %p140 = scmp.lt.s32.totalorder %s9, 2
    // Predicated region
    $region21: #{decoder_block_forward.7} parent=5 // pred_check
      %p141 = pneg %p140
    $region22: #{decoder_block_forward.7} parent=5 // pred_check_branch
      %143 = sbr.rel (%p141) target = $region24
    $region23: #{decoder_block_forward.7} parent=5 // pred_region
      // Predicated region
      $region25: #{decoder_block_forward.7} parent=23 // pred_check
        %p144 = pneg %p43
      $region26: #{decoder_block_forward.7} parent=23 // pred_check_branch
        %146 = sbr.rel (%p144) target = $region28
      $region27: #{decoder_block_forward.7} parent=23 // pred_region
        %s147 = smul.u32 16, %s17
        %p148 = scmp.lt.s32.totalorder %s16, 1
        %s149 = scalar_select %p148, %s16, 1
        %p150 = scmp.lt.s32.totalorder %s147, 15
        %s151 = scalar_select %p150, %s147, 15
        %s152 = smul.addr %s151, 2
        %s153 = smul.addr %s149, 32
        %s154 = sadd.s32 %s152, %s153
        %s155 = smul.addr %s154, 4
        %s156 = scalar_lea.vmem %s0, %s155
        %s157 = smul.u32 16, %s17
      $region28: #{decoder_block_forward.7} parent=23 // pred_fallthru
        _
    $region24: #{decoder_block_forward.7} parent=5 // pred_fallthru
      _
    %p158 = scmp.le.s32.totalorder 1, %s9
    %p159 = scmp.lt.s32.totalorder %s9, 3
    %p160 = pnand %p158, %p159
    %p161 = pneg %p160
    // Predicated region
    $region29: #{decoder_block_forward.7} parent=5 // pred_check
      _
    $region30: #{decoder_block_forward.7} parent=5 // pred_check_branch
      %163 = sbr.rel (%p160) target = $region32
    $region31: #{decoder_block_forward.7} parent=5 // pred_region
      %s164 = ssub.s32 %s9, 1
      %s165 = smul.u32 16, %s19
      %p166 = scmp.lt.s32.totalorder %s18, 1
      %s167 = scalar_select %p166, %s18, 1
      %p168 = scmp.lt.s32.totalorder %s165, 15
      %s169 = scalar_select %p168, %s165, 15
      %s170 = smul.addr %s169, 2
      %s171 = smul.addr %s167, 32
      %s172 = sadd.s32 %s170, %s171
      %s173 = smul.addr %s172, 4
      %s174 = scalar_lea.vmem %s0, %s173
      %p175 = pneg %p49
      %p176 = pneg %p46
      %p177 = pneg %p70
      %p178 = pneg %p67
      %p179 = pneg %p91
      %p180 = pneg %p88
      %p181 = pneg %p119
      %p182 = pneg %p116
      %s183 = smul.u32 16, %s19
      %p184 = scmp.lt.s32.totalorder %s18, 1
      %s185 = scalar_select %p184, %s18, 1
      %p186 = scmp.lt.s32.totalorder %s183, 15
      %s187 = scalar_select %p186, %s183, 15
      %s188 = smul.addr %s187, 2
      %s189 = smul.addr %s185, 32
      %s190 = sadd.s32 %s188, %s189
      %s191 = smul.addr %s190, 8
      %s192 = scalar_lea.vmem %s3, %s191
      %s193 = smul.u32 16, %s19
      %p194 = scmp.lt.s32.totalorder %s18, 1
      %s195 = scalar_select %p194, %s18, 1
      %p196 = scmp.lt.s32.totalorder %s193, 15
      %s197 = scalar_select %p196, %s193, 15
      %s198 = smul.addr %s197, 2
      %s199 = smul.addr %s195, 32
      %s200 = sadd.s32 %s198, %s199
      %s201 = smul.addr %s200, 4
      %s202 = scalar_lea.vmem %s0, %s201
      %s203 = smul.u32 16, %s19
      %s204 = smul.u32 16, %s19
      %p205 = scmp.lt.s32.totalorder %s18, 1
      %s206 = scalar_select %p205, %s18, 1
      %p207 = scmp.lt.s32.totalorder %s204, 15
      %s208 = scalar_select %p207, %s204, 15
      %s209 = smul.addr %s208, 2
      %s210 = smul.addr %s206, 32
      %s211 = sadd.s32 %s209, %s210
      %s212 = smul.addr %s211, 8
      %s213 = scalar_lea.vmem %s3, %s212
      %s214 = smul.u32 16, %s19
      %v215 = vld [vmem:[%s202] sm:$0xf]
      %v216 = vld [vmem:[%s202 + $0x4] sm:$0xf]
      %v217 = vld [vmem:[%s202 + $0x8] sm:$0xf]
      %v218 = vld [vmem:[%s202 + $0xc] sm:$0xf]
      %v219 = vld [vmem:[%s202 + $0x10] sm:$0xf]
      %v220 = vld [vmem:[%s202 + $0x14] sm:$0xf]
      %v221 = vld [vmem:[%s202 + $0x18] sm:$0xf]
      %v222 = vld [vmem:[%s202 + $0x1c] sm:$0xf]
      %v223 = vld [vmem:[%s202 + $0x20] sm:$0xf]
      %v224 = vld [vmem:[%s202 + $0x24] sm:$0xf]
      %v225 = vld [vmem:[%s202 + $0x28] sm:$0xf]
      %v226 = vld [vmem:[%s202 + $0x2c] sm:$0xf]
      %v227 = vld [vmem:[%s202 + $0x30] sm:$0xf]
      %v228 = vld [vmem:[%s202 + $0x34] sm:$0xf]
      %v229 = vld [vmem:[%s202 + $0x38] sm:$0xf]
      %v230 = vld [vmem:[%s202 + $0x3c] sm:$0xf]
      %v231 = vld [vmem:[%s202 + $0x40] sm:$0xf]
      %v232 = vld [vmem:[%s202 + $0x44] sm:$0xf]
      %v233 = vld [vmem:[%s202 + $0x48] sm:$0xf]
      %v234 = vld [vmem:[%s202 + $0x4c] sm:$0xf]
      %v235 = vld [vmem:[%s202 + $0x50] sm:$0xf]
      %v236 = vld [vmem:[%s202 + $0x54] sm:$0xf]
      %v237 = vld [vmem:[%s202 + $0x58] sm:$0xf]
      %v238 = vld [vmem:[%s202 + $0x5c] sm:$0xf]
      %v239 = vld [vmem:[%s202 + $0x60] sm:$0xf]
      %v240 = vld [vmem:[%s202 + $0x64] sm:$0xf]
      %v241 = vld [vmem:[%s202 + $0x68] sm:$0xf]
      %v242 = vld [vmem:[%s202 + $0x6c] sm:$0xf]
      %v243 = vld [vmem:[%s202 + $0x70] sm:$0xf]
      %v244 = vld [vmem:[%s202 + $0x74] sm:$0xf]
      %v245 = vld [vmem:[%s202 + $0x78] sm:$0xf]
      %v246 = vld [vmem:[%s202 + $0x7c] sm:$0xf]
      %v247 = vunpack.c.l.bf16 %v215
      %v248 = vunpack.c.l.bf16 %v216
      %v249 = vunpack.c.l.bf16 %v217
      %v250 = vunpack.c.l.bf16 %v218
      %v251 = vunpack.c.l.bf16 %v219
      %v252 = vunpack.c.l.bf16 %v220
      %v253 = vunpack.c.l.bf16 %v221
      %v254 = vunpack.c.l.bf16 %v222
      %v255 = vunpack.c.l.bf16 %v223
      %v256 = vunpack.c.l.bf16 %v224
      %v257 = vunpack.c.l.bf16 %v225
      %v258 = vunpack.c.l.bf16 %v226
      %v259 = vunpack.c.l.bf16 %v227
      %v260 = vunpack.c.l.bf16 %v228
      %v261 = vunpack.c.l.bf16 %v229
      %v262 = vunpack.c.l.bf16 %v230
      %v263 = vunpack.c.l.bf16 %v231
      %v264 = vunpack.c.l.bf16 %v232
      %v265 = vunpack.c.l.bf16 %v233
      %v266 = vunpack.c.l.bf16 %v234
      %v267 = vunpack.c.l.bf16 %v235
      %v268 = vunpack.c.l.bf16 %v236
      %v269 = vunpack.c.l.bf16 %v237
      %v270 = vunpack.c.l.bf16 %v238
      %v271 = vunpack.c.l.bf16 %v239
      %v272 = vunpack.c.l.bf16 %v240
      %v273 = vunpack.c.l.bf16 %v241
      %v274 = vunpack.c.l.bf16 %v242
      %v275 = vunpack.c.l.bf16 %v243
      %v276 = vunpack.c.l.bf16 %v244
      %v277 = vunpack.c.l.bf16 %v245
      %v278 = vunpack.c.l.bf16 %v246
      %v279 = vld [vmem:[%s1] sm:$0x1]
      %v281 = vlaneseq
      %v282 = vshrl.u32 %v281, 7
      %v283 = vsub.s32 0, %v282
      %v284 = vrot.slane %v279, %v283
      %v286 = vmul.f32 %v247, %v284
      %v287 = vmul.f32 %v248, %v284
      %v288 = vmul.f32 %v249, %v284
      %v289 = vmul.f32 %v250, %v284
      %v290 = vmul.f32 %v251, %v284
      %v291 = vmul.f32 %v252, %v284
      %v292 = vmul.f32 %v253, %v284
      %v293 = vmul.f32 %v254, %v284
      %v294 = vmul.f32 %v255, %v284
      %v295 = vmul.f32 %v256, %v284
      %v296 = vmul.f32 %v257, %v284
      %v297 = vmul.f32 %v258, %v284
      %v298 = vmul.f32 %v259, %v284
      %v299 = vmul.f32 %v260, %v284
      %v300 = vmul.f32 %v261, %v284
      %v301 = vmul.f32 %v262, %v284
      %v302 = vmul.f32 %v263, %v284
      %v303 = vmul.f32 %v264, %v284
      %v304 = vmul.f32 %v265, %v284
      %v305 = vmul.f32 %v266, %v284
      %v306 = vmul.f32 %v267, %v284
      %v307 = vmul.f32 %v268, %v284
      %v308 = vmul.f32 %v269, %v284
      %v309 = vmul.f32 %v270, %v284
      %v310 = vmul.f32 %v271, %v284
      %v311 = vmul.f32 %v272, %v284
      %v312 = vmul.f32 %v273, %v284
      %v313 = vmul.f32 %v274, %v284
      %v314 = vmul.f32 %v275, %v284
      %v315 = vmul.f32 %v276, %v284
      %v316 = vmul.f32 %v277, %v284
      %v317 = vmul.f32 %v278, %v284
      %v318 = vld [vmem:[%s2] sm:$0x1]
      %v320 = vlaneseq
      %v321 = vshrl.u32 %v320, 7
      %v322 = vsub.s32 0, %v321
      %v323 = vrot.slane %v318, %v322
      %v325 = vadd.f32 %v286, %v323
      %v326 = vadd.f32 %v287, %v323
      %v327 = vadd.f32 %v288, %v323
      %v328 = vadd.f32 %v289, %v323
      %v329 = vadd.f32 %v290, %v323
      %v330 = vadd.f32 %v291, %v323
      %v331 = vadd.f32 %v292, %v323
      %v332 = vadd.f32 %v293, %v323
      %v333 = vadd.f32 %v294, %v323
      %v334 = vadd.f32 %v295, %v323
      %v335 = vadd.f32 %v296, %v323
      %v336 = vadd.f32 %v297, %v323
      %v337 = vadd.f32 %v298, %v323
      %v338 = vadd.f32 %v299, %v323
      %v339 = vadd.f32 %v300, %v323
      %v340 = vadd.f32 %v301, %v323
      %v341 = vadd.f32 %v302, %v323
      %v342 = vadd.f32 %v303, %v323
      %v343 = vadd.f32 %v304, %v323
      %v344 = vadd.f32 %v305, %v323
      %v345 = vadd.f32 %v306, %v323
      %v346 = vadd.f32 %v307, %v323
      %v347 = vadd.f32 %v308, %v323
      %v348 = vadd.f32 %v309, %v323
      %v349 = vadd.f32 %v310, %v323
      %v350 = vadd.f32 %v311, %v323
      %v351 = vadd.f32 %v312, %v323
      %v352 = vadd.f32 %v313, %v323
      %v353 = vadd.f32 %v314, %v323
      %v354 = vadd.f32 %v315, %v323
      %v355 = vadd.f32 %v316, %v323
      %v356 = vadd.f32 %v317, %v323
      %v357 = vmax.f32 %v325, 0.0
      %v358 = vmax.f32 %v326, 0.0
      %v359 = vmax.f32 %v327, 0.0
      %v360 = vmax.f32 %v328, 0.0
      %v361 = vmax.f32 %v329, 0.0
      %v362 = vmax.f32 %v330, 0.0
      %v363 = vmax.f32 %v331, 0.0
      %v364 = vmax.f32 %v332, 0.0
      %v365 = vmax.f32 %v333, 0.0
      %v366 = vmax.f32 %v334, 0.0
      %v367 = vmax.f32 %v335, 0.0
      %v368 = vmax.f32 %v336, 0.0
      %v369 = vmax.f32 %v337, 0.0
      %v370 = vmax.f32 %v338, 0.0
      %v371 = vmax.f32 %v339, 0.0
      %v372 = vmax.f32 %v340, 0.0
      %v373 = vmax.f32 %v341, 0.0
      %v374 = vmax.f32 %v342, 0.0
      %v375 = vmax.f32 %v343, 0.0
      %v376 = vmax.f32 %v344, 0.0
      %v377 = vmax.f32 %v345, 0.0
      %v378 = vmax.f32 %v346, 0.0
      %v379 = vmax.f32 %v347, 0.0
      %v380 = vmax.f32 %v348, 0.0
      %v381 = vmax.f32 %v349, 0.0
      %v382 = vmax.f32 %v350, 0.0
      %v383 = vmax.f32 %v351, 0.0
      %v384 = vmax.f32 %v352, 0.0
      %v385 = vmax.f32 %v353, 0.0
      %v386 = vmax.f32 %v354, 0.0
      %v387 = vmax.f32 %v355, 0.0
      %v388 = vmax.f32 %v356, 0.0
      %vm389 = vcmask 31744
      %390 = vst.msk [vmem:[%s213] sm:$0xff] %vm389, %v357
      %391 = vst.msk [vmem:[%s213 + $0x8] sm:$0xff] %vm389, %v358
      %392 = vst.msk [vmem:[%s213 + $0x10] sm:$0xff] %vm389, %v359
      %393 = vst.msk [vmem:[%s213 + $0x18] sm:$0xff] %vm389, %v360
      %394 = vst.msk [vmem:[%s213 + $0x20] sm:$0xff] %vm389, %v361
      %395 = vst.msk [vmem:[%s213 + $0x28] sm:$0xff] %vm389, %v362
      %396 = vst.msk [vmem:[%s213 + $0x30] sm:$0xff] %vm389, %v363
      %397 = vst.msk [vmem:[%s213 + $0x38] sm:$0xff] %vm389, %v364
      %398 = vst.msk [vmem:[%s213 + $0x40] sm:$0xff] %vm389, %v365
      %399 = vst.msk [vmem:[%s213 + $0x48] sm:$0xff] %vm389, %v366
      %400 = vst.msk [vmem:[%s213 + $0x50] sm:$0xff] %vm389, %v367
      %401 = vst.msk [vmem:[%s213 + $0x58] sm:$0xff] %vm389, %v368
      %402 = vst.msk [vmem:[%s213 + $0x60] sm:$0xff] %vm389, %v369
      %403 = vst.msk [vmem:[%s213 + $0x68] sm:$0xff] %vm389, %v370
      %404 = vst.msk [vmem:[%s213 + $0x70] sm:$0xff] %vm389, %v371
      %405 = vst.msk [vmem:[%s213 + $0x78] sm:$0xff] %vm389, %v372
      %406 = vst.msk [vmem:[%s213 + $0x80] sm:$0xff] %vm389, %v373
      %407 = vst.msk [vmem:[%s213 + $0x88] sm:$0xff] %vm389, %v374
      %408 = vst.msk [vmem:[%s213 + $0x90] sm:$0xff] %vm389, %v375
      %409 = vst.msk [vmem:[%s213 + $0x98] sm:$0xff] %vm389, %v376
      %410 = vst.msk [vmem:[%s213 + $0xa0] sm:$0xff] %vm389, %v377
      %411 = vst.msk [vmem:[%s213 + $0xa8] sm:$0xff] %vm389, %v378
      %412 = vst.msk [vmem:[%s213 + $0xb0] sm:$0xff] %vm389, %v379
      %413 = vst.msk [vmem:[%s213 + $0xb8] sm:$0xff] %vm389, %v380
      %414 = vst.msk [vmem:[%s213 + $0xc0] sm:$0xff] %vm389, %v381
      %415 = vst.msk [vmem:[%s213 + $0xc8] sm:$0xff] %vm389, %v382
      %416 = vst.msk [vmem:[%s213 + $0xd0] sm:$0xff] %vm389, %v383
      %417 = vst.msk [vmem:[%s213 + $0xd8] sm:$0xff] %vm389, %v384
      %418 = vst.msk [vmem:[%s213 + $0xe0] sm:$0xff] %vm389, %v385
      %419 = vst.msk [vmem:[%s213 + $0xe8] sm:$0xff] %vm389, %v386
      %420 = vst.msk [vmem:[%s213 + $0xf0] sm:$0xff] %vm389, %v387
      %421 = vst.msk [vmem:[%s213 + $0xf8] sm:$0xff] %vm389, %v388
      %s422 = smul.u32 16, %s19
      %p423 = scmp.lt.s32.totalorder %s18, 1
      %s424 = scalar_select %p423, %s18, 1
      %p425 = scmp.lt.s32.totalorder %s422, 15
      %s426 = scalar_select %p425, %s422, 15
      %s427 = smul.addr %s426, 2
      %s428 = smul.addr %s424, 32
      %s429 = sadd.s32 %s427, %s428
      %s430 = smul.addr %s429, 8
      %s431 = scalar_lea.vmem %s3, %s430
      // Predicated region
      $region33: #{decoder_block_forward.7} parent=31 // pred_check
        %p432 = pneg %p116
      $region34: #{decoder_block_forward.7} parent=31 // pred_check_branch
        %434 = sbr.rel (%p432) target = $region36
      $region35: #{decoder_block_forward.7} parent=31 // pred_region
        %s435 = smul.u32 16, %s19
      $region36: #{decoder_block_forward.7} parent=31 // pred_fallthru
        _
    $region32: #{decoder_block_forward.7} parent=5 // pred_fallthru
      _
    %p436 = scmp.le.s32.totalorder 2, %s9
    // Predicated region
    $region37: #{decoder_block_forward.7} parent=5 // pred_check
      %p437 = pneg %p436
    $region38: #{decoder_block_forward.7} parent=5 // pred_check_branch
      %439 = sbr.rel (%p437) target = $region40
    $region39: #{decoder_block_forward.7} parent=5 // pred_region
      %s440 = ssub.s32 %s9, 2
      // Predicated region
      $region41: #{decoder_block_forward.7} parent=39 // pred_check
        %p441 = pneg %p122
      $region42: #{decoder_block_forward.7} parent=39 // pred_check_branch
        %443 = sbr.rel (%p441) target = $region44
      $region43: #{decoder_block_forward.7} parent=39 // pred_region
        %s444 = smul.u32 16, %s21
        %p445 = scmp.lt.s32.totalorder %s20, 1
        %s446 = scalar_select %p445, %s20, 1
        %p447 = scmp.lt.s32.totalorder %s444, 15
        %s448 = scalar_select %p447, %s444, 15
        %s449 = smul.addr %s448, 2
        %s450 = smul.addr %s446, 32
        %s451 = sadd.s32 %s449, %s450
        %s452 = smul.addr %s451, 8
        %s453 = scalar_lea.vmem %s3, %s452
      $region44: #{decoder_block_forward.7} parent=39 // pred_fallthru
        _
    $region40: #{decoder_block_forward.7} parent=5 // pred_fallthru
      _
  $region6: #{decoder_block_forward.7} parent=0 // loop_footer
    %s13 = sadd.s32 1, %s9
  $region7: #{decoder_block_forward.7} parent=0 // loop_footer_branch
    %8 = sbr.rel target = $region3
  $region8: #{decoder_block_forward.7} parent=0 // loop_exit
    _

// kernel: decoder_block_forward.6
$region0: #{decoder_block_forward.6}
  #allocation0 [shape = 'u32[]', space=smem, size = 0x4, offset = 0x4, fixed_abs, tag = 'smem constant byte address 0x4 - core index']
  #allocation1 [shape = 'u32[144,128]{1,0:T(1,128)}', space=vmem, size = 0x12000, scoped, tag = 'internal scratch']
  %s0 = inlined_call_operand.vmem [shape: bf16[2,16,16,4], index: 0, kind: input, shape index: {}]
  %s1 = inlined_call_operand.vmem [shape: bf16[2,1,2,16,4], index: 1, kind: input, shape index: {}]
  %s2 = inlined_call_operand.vmem [shape: f32[1,4], index: 2, kind: input, shape index: {}]
  %s3 = inlined_call_operand.vmem [shape: f32[1,4], index: 3, kind: input, shape index: {}]
  %s4 = inlined_call_operand.vmem [shape: bf16[3,4,12], index: 4, kind: input, shape index: {}]
  %s5 = inlined_call_operand.vmem [shape: f32[1,4], index: 5, kind: input, shape index: {}]
  %s6 = inlined_call_operand.vmem [shape: bf16[2,16,16,4], index: 6, kind: output, shape index: {0}]
  %s7 = inlined_call_operand.vmem [shape: f32[2,1,1,4], index: 7, kind: output, shape index: {1}]
  %s8 = inlined_call_operand.vmem [shape: f32[2,1,1,4], index: 8, kind: output, shape index: {2}]
  %9 = xla_tuple %s6, %s7, %s8
  %s10 = sld [smem:[#allocation0]]
  $region73: #{decoder_block_forward.6} parent=0
    _
  %s12 = ssub.s32 1, %s10
  %s13 = scalar_select 0, %s12, %s10
  loop: start=0, step=1, limit=4
  $region2: #{decoder_block_forward.6} parent=0 // loop_pre_header
    _
  $region3: #{decoder_block_forward.6} parent=0 // loop_header
    %s15 = sphi 0, %s19
    %p16 = scmp.ge.s32.totalorder %s15, 4
    %s22 = sphi 0, %s41
    %s23 = sphi 0, %s37
    %s24 = sphi 0, %s33
    %s25 = sphi 0, %s22
    %s26 = sphi 0, %s23
    %s27 = sphi 0, %s24
    %s28 = sphi 0, %s25
    %s29 = sphi 0, %s26
    %s30 = sphi 0, %s27
    %s46 = sphi 0, %s48
    %s49 = sphi 0, %s46
    %s50 = sphi 0, %s49
    %s66 = sphi 0, %s50
    %s74 = sphi 0, %s76
    %s77 = sphi 0, %s74
    %s78 = sphi 0, %s77
    %s94 = sphi 0, %s78
    %s98 = sphi 0, %s98
    %s100 = sphi 0, %s98
    %s101 = sphi 0, %s100
    %s115 = sphi 0, %s101
    %s119 = sphi 0, %s119
    %s121 = sphi 0, %s119
    %s122 = sphi 0, %s121
    %s136 = sphi 0, %s122
    %s142 = sphi 0, %s144
    %s145 = sphi 0, %s142
    %s146 = sphi 0, %s145
    %s162 = sphi 0, %s146
    %s168 = sphi 0, %s170
    %s171 = sphi 0, %s168
    %s172 = sphi 0, %s171
    %s188 = sphi 0, %s172
    %s198 = sphi 0, %s200
    %s201 = sphi 0, %s198
    %s202 = sphi 0, %s201
    %s218 = sphi 0, %s202
    %s228 = sphi 0, %s230
    %s231 = sphi 0, %s228
    %s232 = sphi 0, %s231
    %s248 = sphi 0, %s232
    %s258 = sphi 0, %s260
    %s261 = sphi 0, %s258
    %s262 = sphi 0, %s261
    %s278 = sphi 0, %s262
  $region4: #{decoder_block_forward.6} parent=0 // loop_header_branch
    %18 = sbr.rel (%p16) target = $region8
  $region5: #{decoder_block_forward.6} parent=0 // loop_body
    %s20 = ssub.s32 %s15, 1
    %s21 = ssub.s32 %s15, 2
    %s31 = sadd.s32 1, %s24
    %p32 = scmp.ge.s32.totalorder %s31, 1
    %s33 = scalar_select %p32, 0, %s31
    %s34 = sadd.s32 1, %s23
    %s35 = scalar_select %p32, %s34, %s23
    %p36 = scmp.ge.s32.totalorder %s35, 1
    %s37 = scalar_select %p36, 0, %s35
    %s38 = sadd.s32 1, %s22
    %s39 = scalar_select %p36, %s38, %s22
    %p40 = scmp.ge.s32.totalorder %s39, 2
    %s41 = scalar_select %p40, 0, %s39
    %s42 = ssub.s32 %s22, %s41
    %s43 = ssub.s32 %s24, %s33
    %s44 = sor.u32 %s42, %s43
    %p45 = scmp.eq.s32.totalorder %s44, 0
    %s47 = sadd.s32 %s46, 1
    %s48 = scalar_select %p45, %s46, %s47
    %p51 = pneg %p45
    %p52 = scmp.eq.s32.totalorder %s15, 1
    %p53 = por %p51, %p52
    %p54 = scmp.ne.s32.totalorder %s46, %s49
    %p55 = scmp.eq.s32.totalorder %s15, 0
    %p56 = por %p54, %p55
    %p57 = scmp.ne.s32.totalorder %s46, %s49
    %p58 = scmp.eq.s32.totalorder %s20, 1
    %p59 = por %p57, %p58
    %p60 = scmp.ne.s32.totalorder %s49, %s50
    %p61 = scmp.eq.s32.totalorder %s20, 0
    %p62 = por %p60, %p61
    %p63 = scmp.ne.s32.totalorder %s49, %s50
    %p64 = scmp.eq.s32.totalorder %s21, 1
    %p65 = por %p63, %p64
    %p67 = scmp.ne.s32.totalorder %s50, %s66
    %p68 = scmp.eq.s32.totalorder %s21, 0
    %p69 = por %p67, %p68
    %s70 = ssub.s32 %s22, %s41
    %s71 = ssub.s32 %s24, %s33
    %s72 = sor.u32 %s70, %s71
    %p73 = scmp.eq.s32.totalorder %s72, 0
    %s75 = sadd.s32 %s74, 1
    %s76 = scalar_select %p73, %s74, %s75
    %p79 = pneg %p73
    %p80 = scmp.eq.s32.totalorder %s15, 1
    %p81 = por %p79, %p80
    %p82 = scmp.ne.s32.totalorder %s74, %s77
    %p83 = scmp.eq.s32.totalorder %s15, 0
    %p84 = por %p82, %p83
    %p85 = scmp.ne.s32.totalorder %s74, %s77
    %p86 = scmp.eq.s32.totalorder %s20, 1
    %p87 = por %p85, %p86
    %p88 = scmp.ne.s32.totalorder %s77, %s78
    %p89 = scmp.eq.s32.totalorder %s20, 0
    %p90 = por %p88, %p89
    %p91 = scmp.ne.s32.totalorder %s77, %s78
    %p92 = scmp.eq.s32.totalorder %s21, 1
    %p93 = por %p91, %p92
    %p95 = scmp.ne.s32.totalorder %s78, %s94
    %p96 = scmp.eq.s32.totalorder %s21, 0
    %p97 = por %p95, %p96
    %s99 = sadd.s32 %s98, 1
    %p102 = scmp.eq.s32.totalorder %s15, 1
    %p103 = scmp.ne.s32.totalorder %s98, %s100
    %p104 = scmp.eq.s32.totalorder %s15, 0
    %p105 = por %p103, %p104
    %p106 = scmp.ne.s32.totalorder %s98, %s100
    %p107 = scmp.eq.s32.totalorder %s20, 1
    %p108 = por %p106, %p107
    %p109 = scmp.ne.s32.totalorder %s100, %s101
    %p110 = scmp.eq.s32.totalorder %s20, 0
    %p111 = por %p109, %p110
    %p112 = scmp.ne.s32.totalorder %s100, %s101
    %p113 = scmp.eq.s32.totalorder %s21, 1
    %p114 = por %p112, %p113
    %p116 = scmp.ne.s32.totalorder %s101, %s115
    %p117 = scmp.eq.s32.totalorder %s21, 0
    %p118 = por %p116, %p117
    %s120 = sadd.s32 %s119, 1
    %p123 = scmp.eq.s32.totalorder %s15, 1
    %p124 = scmp.ne.s32.totalorder %s119, %s121
    %p125 = scmp.eq.s32.totalorder %s15, 0
    %p126 = por %p124, %p125
    %p127 = scmp.ne.s32.totalorder %s119, %s121
    %p128 = scmp.eq.s32.totalorder %s20, 1
    %p129 = por %p127, %p128
    %p130 = scmp.ne.s32.totalorder %s121, %s122
    %p131 = scmp.eq.s32.totalorder %s20, 0
    %p132 = por %p130, %p131
    %p133 = scmp.ne.s32.totalorder %s121, %s122
    %p134 = scmp.eq.s32.totalorder %s21, 1
    %p135 = por %p133, %p134
    %p137 = scmp.ne.s32.totalorder %s122, %s136
    %p138 = scmp.eq.s32.totalorder %s21, 0
    %p139 = por %p137, %p138
    %s140 = ssub.s32 %s23, %s37
    %p141 = scmp.eq.s32.totalorder %s140, 0
    %s143 = sadd.s32 %s142, 1
    %s144 = scalar_select %p141, %s142, %s143
    %p147 = pneg %p141
    %p148 = scmp.eq.s32.totalorder %s15, 1
    %p149 = por %p147, %p148
    %p150 = scmp.ne.s32.totalorder %s142, %s145
    %p151 = scmp.eq.s32.totalorder %s15, 0
    %p152 = por %p150, %p151
    %p153 = scmp.ne.s32.totalorder %s142, %s145
    %p154 = scmp.eq.s32.totalorder %s20, 1
    %p155 = por %p153, %p154
    %p156 = scmp.ne.s32.totalorder %s145, %s146
    %p157 = scmp.eq.s32.totalorder %s20, 0
    %p158 = por %p156, %p157
    %p159 = scmp.ne.s32.totalorder %s145, %s146
    %p160 = scmp.eq.s32.totalorder %s21, 1
    %p161 = por %p159, %p160
    %p163 = scmp.ne.s32.totalorder %s146, %s162
    %p164 = scmp.eq.s32.totalorder %s21, 0
    %p165 = por %p163, %p164
    %s166 = ssub.s32 %s23, %s37
    %p167 = scmp.eq.s32.totalorder %s166, 0
    %s169 = sadd.s32 %s168, 1
    %s170 = scalar_select %p167, %s168, %s169
    %p173 = pneg %p167
    %p174 = scmp.eq.s32.totalorder %s15, 1
    %p175 = por %p173, %p174
    %p176 = scmp.ne.s32.totalorder %s168, %s171
    %p177 = scmp.eq.s32.totalorder %s15, 0
    %p178 = por %p176, %p177
    %p179 = scmp.ne.s32.totalorder %s168, %s171
    %p180 = scmp.eq.s32.totalorder %s20, 1
    %p181 = por %p179, %p180
    %p182 = scmp.ne.s32.totalorder %s171, %s172
    %p183 = scmp.eq.s32.totalorder %s20, 0
    %p184 = por %p182, %p183
    %p185 = scmp.ne.s32.totalorder %s171, %s172
    %p186 = scmp.eq.s32.totalorder %s21, 1
    %p187 = por %p185, %p186
    %p189 = scmp.ne.s32.totalorder %s172, %s188
    %p190 = scmp.eq.s32.totalorder %s21, 0
    %p191 = por %p189, %p190
    %s192 = ssub.s32 %s22, %s41
    %s193 = ssub.s32 %s24, %s33
    %s194 = sor.u32 %s192, %s193
    %s195 = ssub.s32 %s23, %s37
    %s196 = sor.u32 %s194, %s195
    %p197 = scmp.eq.s32.totalorder %s196, 0
    %s199 = sadd.s32 %s198, 1
    %s200 = scalar_select %p197, %s198, %s199
    %p203 = pneg %p197
    %p204 = scmp.eq.s32.totalorder %s15, 1
    %p205 = por %p203, %p204
    %p206 = scmp.ne.s32.totalorder %s198, %s201
    %p207 = scmp.eq.s32.totalorder %s15, 0
    %p208 = por %p206, %p207
    %p209 = scmp.ne.s32.totalorder %s198, %s201
    %p210 = scmp.eq.s32.totalorder %s20, 1
    %p211 = por %p209, %p210
    %p212 = scmp.ne.s32.totalorder %s201, %s202
    %p213 = scmp.eq.s32.totalorder %s20, 0
    %p214 = por %p212, %p213
    %p215 = scmp.ne.s32.totalorder %s201, %s202
    %p216 = scmp.eq.s32.totalorder %s21, 1
    %p217 = por %p215, %p216
    %p219 = scmp.ne.s32.totalorder %s202, %s218
    %p220 = scmp.eq.s32.totalorder %s21, 0
    %p221 = por %p219, %p220
    %s222 = ssub.s32 %s22, %s41
    %s223 = ssub.s32 %s24, %s33
    %s224 = sor.u32 %s222, %s223
    %s225 = ssub.s32 %s23, %s37
    %s226 = sor.u32 %s224, %s225
    %p227 = scmp.eq.s32.totalorder %s226, 0
    %s229 = sadd.s32 %s228, 1
    %s230 = scalar_select %p227, %s228, %s229
    %p233 = pneg %p227
    %p234 = scmp.eq.s32.totalorder %s15, 1
    %p235 = por %p233, %p234
    %p236 = scmp.ne.s32.totalorder %s228, %s231
    %p237 = scmp.eq.s32.totalorder %s15, 0
    %p238 = por %p236, %p237
    %p239 = scmp.ne.s32.totalorder %s228, %s231
    %p240 = scmp.eq.s32.totalorder %s20, 1
    %p241 = por %p239, %p240
    %p242 = scmp.ne.s32.totalorder %s231, %s232
    %p243 = scmp.eq.s32.totalorder %s20, 0
    %p244 = por %p242, %p243
    %p245 = scmp.ne.s32.totalorder %s231, %s232
    %p246 = scmp.eq.s32.totalorder %s21, 1
    %p247 = por %p245, %p246
    %p249 = scmp.ne.s32.totalorder %s232, %s248
    %p250 = scmp.eq.s32.totalorder %s21, 0
    %p251 = por %p249, %p250
    %s252 = ssub.s32 %s22, %s41
    %s253 = ssub.s32 %s24, %s33
    %s254 = sor.u32 %s252, %s253
    %s255 = ssub.s32 %s23, %s37
    %s256 = sor.u32 %s254, %s255
    %p257 = scmp.eq.s32.totalorder %s256, 0
    %s259 = sadd.s32 %s258, 1
    %s260 = scalar_select %p257, %s258, %s259
    %p263 = pneg %p257
    %p264 = scmp.eq.s32.totalorder %s15, 1
    %p265 = por %p263, %p264
    %p266 = scmp.ne.s32.totalorder %s258, %s261
    %p267 = scmp.eq.s32.totalorder %s15, 0
    %p268 = por %p266, %p267
    %p269 = scmp.ne.s32.totalorder %s258, %s261
    %p270 = scmp.eq.s32.totalorder %s20, 1
    %p271 = por %p269, %p270
    %p272 = scmp.ne.s32.totalorder %s261, %s262
    %p273 = scmp.eq.s32.totalorder %s20, 0
    %p274 = por %p272, %p273
    %p275 = scmp.ne.s32.totalorder %s261, %s262
    %p276 = scmp.eq.s32.totalorder %s21, 1
    %p277 = por %p275, %p276
    %p279 = scmp.ne.s32.totalorder %s262, %s278
    %p280 = scmp.eq.s32.totalorder %s21, 0
    %p281 = por %p279, %p280
    %p282 = scmp.le.s32.totalorder 1, %s15
    %p283 = scmp.lt.s32.totalorder %s15, 3
    %p284 = pnand %p282, %p283
    %p285 = pneg %p284
    // Predicated region
    $region9: #{decoder_block_forward.6} parent=5 // pred_check
      _
    $region10: #{decoder_block_forward.6} parent=5 // pred_check_branch
      %287 = sbr.rel (%p284) target = $region12
    $region11: #{decoder_block_forward.6} parent=5 // pred_region
      %s288 = ssub.s32 %s15, 1
      // Predicated region
      $region13: #{decoder_block_forward.6} parent=11 // pred_check
        %p289 = pneg %p111
      $region14: #{decoder_block_forward.6} parent=11 // pred_check_branch
        %291 = sbr.rel (%p289) target = $region16
      $region15: #{decoder_block_forward.6} parent=11 // pred_region
        _
      $region16: #{decoder_block_forward.6} parent=11 // pred_fallthru
        _
      // Predicated region
      $region17: #{decoder_block_forward.6} parent=11 // pred_check
        %p292 = pneg %p132
      $region18: #{decoder_block_forward.6} parent=11 // pred_check_branch
        %294 = sbr.rel (%p292) target = $region20
      $region19: #{decoder_block_forward.6} parent=11 // pred_region
        _
      $region20: #{decoder_block_forward.6} parent=11 // pred_fallthru
        _
      // Predicated region
      $region21: #{decoder_block_forward.6} parent=11 // pred_check
        %p295 = pneg %p158
      $region22: #{decoder_block_forward.6} parent=11 // pred_check_branch
        %297 = sbr.rel (%p295) target = $region24
      $region23: #{decoder_block_forward.6} parent=11 // pred_region
        %p298 = scmp.lt.s32.totalorder %s26, 0
        %s299 = scalar_select %p298, %s26, 0
        %s300 = smul.addr %s299, 2
        %s301 = scalar_lea.vmem %s4, %s300
      $region24: #{decoder_block_forward.6} parent=11 // pred_fallthru
        _
      // Predicated region
      $region25: #{decoder_block_forward.6} parent=11 // pred_check
        %p302 = pneg %p184
      $region26: #{decoder_block_forward.6} parent=11 // pred_check_branch
        %304 = sbr.rel (%p302) target = $region28
      $region27: #{decoder_block_forward.6} parent=11 // pred_region
        %p305 = scmp.lt.s32.totalorder %s26, 0
        %s306 = scalar_select %p305, %s26, 0
        %s307 = scalar_lea.vmem %s5, %s306
      $region28: #{decoder_block_forward.6} parent=11 // pred_fallthru
        _
    $region12: #{decoder_block_forward.6} parent=5 // pred_fallthru
      _
    %p308 = scmp.lt.s32.totalorder %s15, 2
    // Predicated region
    $region29: #{decoder_block_forward.6} parent=5 // pred_check
      %p309 = pneg %p308
    $region30: #{decoder_block_forward.6} parent=5 // pred_check_branch
      %311 = sbr.rel (%p309) target = $region32
    $region31: #{decoder_block_forward.6} parent=5 // pred_region
      // Predicated region
      $region33: #{decoder_block_forward.6} parent=31 // pred_check
        %p312 = pneg %p56
      $region34: #{decoder_block_forward.6} parent=31 // pred_check_branch
        %314 = sbr.rel (%p312) target = $region36
      $region35: #{decoder_block_forward.6} parent=31 // pred_region
        %s315 = smul.u32 16, %s24
        %p316 = scmp.lt.s32.totalorder %s22, 1
        %s317 = scalar_select %p316, %s22, 1
        %p318 = scmp.lt.s32.totalorder %s315, 15
        %s319 = scalar_select %p318, %s315, 15
        %s320 = smul.addr %s319, 2
        %s321 = smul.addr %s317, 32
        %s322 = sadd.s32 %s320, %s321
        %s323 = smul.addr %s322, 4
        %s324 = scalar_lea.vmem %s0, %s323
        %s325 = smul.u32 16, %s24
      $region36: #{decoder_block_forward.6} parent=31 // pred_fallthru
        _
      // Predicated region
      $region37: #{decoder_block_forward.6} parent=31 // pred_check
        %p326 = pneg %p84
      $region38: #{decoder_block_forward.6} parent=31 // pred_check_branch
        %328 = sbr.rel (%p326) target = $region40
      $region39: #{decoder_block_forward.6} parent=31 // pred_region
        %p329 = scmp.lt.s32.totalorder %s22, 1
        %s330 = scalar_select %p329, %s22, 1
        %p331 = scmp.lt.s32.totalorder %s24, 0
        %s332 = scalar_select %p331, %s24, 0
        %s333 = smul.addr %s332, 4
        %s334 = smul.addr %s330, 4
        %s335 = sadd.s32 %s333, %s334
        %s336 = smul.addr %s335, 4
        %s337 = scalar_lea.vmem %s1, %s336
      $region40: #{decoder_block_forward.6} parent=31 // pred_fallthru
        _
    $region32: #{decoder_block_forward.6} parent=5 // pred_fallthru
      _
    %p338 = scmp.le.s32.totalorder 1, %s15
    %p339 = scmp.lt.s32.totalorder %s15, 3
    %p340 = pnand %p338, %p339
    %p341 = pneg %p340
    // Predicated region
    $region41: #{decoder_block_forward.6} parent=5 // pred_check
      _
    $region42: #{decoder_block_forward.6} parent=5 // pred_check_branch
      %343 = sbr.rel (%p340) target = $region44
    $region43: #{decoder_block_forward.6} parent=5 // pred_region
      %s344 = ssub.s32 %s15, 1
      %s345 = smul.u32 16, %s27
      %p346 = scmp.lt.s32.totalorder %s25, 1
      %s347 = scalar_select %p346, %s25, 1
      %p348 = scmp.lt.s32.totalorder %s345, 15
      %s349 = scalar_select %p348, %s345, 15
      %s350 = smul.addr %s349, 2
      %s351 = smul.addr %s347, 32
      %s352 = sadd.s32 %s350, %s351
      %s353 = smul.addr %s352, 4
      %s354 = scalar_lea.vmem %s0, %s353
      %p355 = pneg %p62
      %p356 = pneg %p59
      %p357 = scmp.lt.s32.totalorder %s25, 1
      %s358 = scalar_select %p357, %s25, 1
      %p359 = scmp.lt.s32.totalorder %s27, 0
      %s360 = scalar_select %p359, %s27, 0
      %s361 = smul.addr %s360, 4
      %s362 = smul.addr %s358, 4
      %s363 = sadd.s32 %s361, %s362
      %s364 = smul.addr %s363, 4
      %s365 = scalar_lea.vmem %s1, %s364
      %p366 = pneg %p90
      %p367 = pneg %p87
      %p368 = pneg %p111
      %p369 = pneg %p108
      %p370 = pneg %p132
      %p371 = pneg %p129
      %p372 = scmp.lt.s32.totalorder %s26, 0
      %s373 = scalar_select %p372, %s26, 0
      %s374 = smul.addr %s373, 2
      %s375 = scalar_lea.vmem %s4, %s374
      %p376 = pneg %p158
      %p377 = pneg %p155
      %p378 = scmp.lt.s32.totalorder %s26, 0
      %s379 = scalar_select %p378, %s26, 0
      %s380 = scalar_lea.vmem %s5, %s379
      %p381 = pneg %p184
      %p382 = pneg %p181
      %p383 = pneg %p214
      %p384 = pneg %p211
      %s385 = smul.u32 16, %s27
      %p386 = scmp.lt.s32.totalorder %s25, 1
      %s387 = scalar_select %p386, %s25, 1
      %p388 = scmp.lt.s32.totalorder %s385, 15
      %s389 = scalar_select %p388, %s385, 15
      %p390 = scmp.lt.s32.totalorder %s26, 0
      %s391 = scalar_select %p390, %s26, 0
      %s392 = smul.addr %s389, 2
      %s393 = sadd.s32 %s391, %s392
      %s394 = smul.addr %s387, 32
      %s395 = sadd.s32 %s393, %s394
      %s396 = smul.addr %s395, 4
      %s397 = scalar_lea.vmem %s6, %s396
      %p398 = pneg %p244
      %p399 = pneg %p241
      %p400 = scmp.lt.s32.totalorder %s25, 1
      %s401 = scalar_select %p400, %s25, 1
      %p402 = scmp.lt.s32.totalorder %s27, 0
      %s403 = scalar_select %p402, %s27, 0
      %p404 = scmp.lt.s32.totalorder %s26, 0
      %s405 = scalar_select %p404, %s26, 0
      %s406 = sadd.s32 %s405, %s403
      %s407 = sadd.s32 %s406, %s401
      %s408 = scalar_lea.vmem %s7, %s407
      %p409 = pneg %p274
      %p410 = pneg %p271
      %p411 = scmp.lt.s32.totalorder %s25, 1
      %s412 = scalar_select %p411, %s25, 1
      %p413 = scmp.lt.s32.totalorder %s27, 0
      %s414 = scalar_select %p413, %s27, 0
      %p415 = scmp.lt.s32.totalorder %s26, 0
      %s416 = scalar_select %p415, %s26, 0
      %s417 = sadd.s32 %s416, %s414
      %s418 = sadd.s32 %s417, %s412
      %s419 = scalar_lea.vmem %s8, %s418
      %s420 = smul.u32 16, %s27
      %p421 = scmp.lt.s32.totalorder %s25, 1
      %s422 = scalar_select %p421, %s25, 1
      %p423 = scmp.lt.s32.totalorder %s420, 15
      %s424 = scalar_select %p423, %s420, 15
      %s425 = smul.addr %s424, 2
      %s426 = smul.addr %s422, 32
      %s427 = sadd.s32 %s425, %s426
      %s428 = smul.addr %s427, 4
      %s429 = scalar_lea.vmem %s0, %s428
      %s430 = smul.u32 16, %s27
      %p431 = scmp.lt.s32.totalorder %s25, 1
      %s432 = scalar_select %p431, %s25, 1
      %p433 = scmp.lt.s32.totalorder %s27, 0
      %s434 = scalar_select %p433, %s27, 0
      %s435 = smul.addr %s434, 4
      %s436 = smul.addr %s432, 4
      %s437 = sadd.s32 %s435, %s436
      %s438 = smul.addr %s437, 4
      %s439 = scalar_lea.vmem %s1, %s438
      %p440 = scmp.lt.s32.totalorder %s26, 0
      %s441 = scalar_select %p440, %s26, 0
      %s442 = smul.addr %s441, 2
      %s443 = scalar_lea.vmem %s4, %s442
      %p444 = scmp.lt.s32.totalorder %s26, 0
      %s445 = scalar_select %p444, %s26, 0
      %s446 = scalar_lea.vmem %s5, %s445
      %s447 = smul.u32 16, %s27
      %p448 = scmp.lt.s32.totalorder %s25, 1
      %s449 = scalar_select %p448, %s25, 1
      %p450 = scmp.lt.s32.totalorder %s447, 15
      %s451 = scalar_select %p450, %s447, 15
      %p452 = scmp.lt.s32.totalorder %s26, 0
      %s453 = scalar_select %p452, %s26, 0
      %s454 = smul.addr %s451, 2
      %s455 = sadd.s32 %s453, %s454
      %s456 = smul.addr %s449, 32
      %s457 = sadd.s32 %s455, %s456
      %s458 = smul.addr %s457, 4
      %s459 = scalar_lea.vmem %s6, %s458
      %s460 = smul.u32 16, %s27
      %p461 = scmp.lt.s32.totalorder %s25, 1
      %s462 = scalar_select %p461, %s25, 1
      %p463 = scmp.lt.s32.totalorder %s27, 0
      %s464 = scalar_select %p463, %s27, 0
      %p465 = scmp.lt.s32.totalorder %s26, 0
      %s466 = scalar_select %p465, %s26, 0
      %s467 = sadd.s32 %s466, %s464
      %s468 = sadd.s32 %s467, %s462
      %s469 = scalar_lea.vmem %s7, %s468
      %p470 = scmp.lt.s32.totalorder %s25, 1
      %s471 = scalar_select %p470, %s25, 1
      %p472 = scmp.lt.s32.totalorder %s27, 0
      %s473 = scalar_select %p472, %s27, 0
      %p474 = scmp.lt.s32.totalorder %s26, 0
      %s475 = scalar_select %p474, %s26, 0
      %s476 = sadd.s32 %s475, %s473
      %s477 = sadd.s32 %s476, %s471
      %s478 = scalar_lea.vmem %s8, %s477
      %v480 = vld [vmem:[%s439] sm:$0xf]
      %v481 = vld [vmem:[%s439 + $0x4] sm:$0xf]
      %v482 = vld [vmem:[%s439 + $0x8] sm:$0xf]
      %v483 = vld [vmem:[%s439 + $0xc] sm:$0xf]
      %v484 = vld [vmem:[%s429] sm:$0xf]
      %v485 = vld [vmem:[%s429 + $0x4] sm:$0xf]
      %v486 = vld [vmem:[%s429 + $0x8] sm:$0xf]
      %v487 = vld [vmem:[%s429 + $0xc] sm:$0xf]
      %v488 = vld [vmem:[%s429 + $0x10] sm:$0xf]
      %v489 = vld [vmem:[%s429 + $0x14] sm:$0xf]
      %v490 = vld [vmem:[%s429 + $0x18] sm:$0xf]
      %v491 = vld [vmem:[%s429 + $0x1c] sm:$0xf]
      %v492 = vld [vmem:[%s429 + $0x20] sm:$0xf]
      %v493 = vld [vmem:[%s429 + $0x24] sm:$0xf]
      %v494 = vld [vmem:[%s429 + $0x28] sm:$0xf]
      %v495 = vld [vmem:[%s429 + $0x2c] sm:$0xf]
      %v496 = vld [vmem:[%s429 + $0x30] sm:$0xf]
      %v497 = vld [vmem:[%s429 + $0x34] sm:$0xf]
      %v498 = vld [vmem:[%s429 + $0x38] sm:$0xf]
      %v499 = vld [vmem:[%s429 + $0x3c] sm:$0xf]
      %v500 = vld [vmem:[%s429 + $0x40] sm:$0xf]
      %v501 = vld [vmem:[%s429 + $0x44] sm:$0xf]
      %v502 = vld [vmem:[%s429 + $0x48] sm:$0xf]
      %v503 = vld [vmem:[%s429 + $0x4c] sm:$0xf]
      %v504 = vld [vmem:[%s429 + $0x50] sm:$0xf]
      %v505 = vld [vmem:[%s429 + $0x54] sm:$0xf]
      %v506 = vld [vmem:[%s429 + $0x58] sm:$0xf]
      %v507 = vld [vmem:[%s429 + $0x5c] sm:$0xf]
      %v508 = vld [vmem:[%s429 + $0x60] sm:$0xf]
      %v509 = vld [vmem:[%s429 + $0x64] sm:$0xf]
      %v510 = vld [vmem:[%s429 + $0x68] sm:$0xf]
      %v511 = vld [vmem:[%s429 + $0x6c] sm:$0xf]
      %v512 = vld [vmem:[%s429 + $0x70] sm:$0xf]
      %v513 = vld [vmem:[%s429 + $0x74] sm:$0xf]
      %v514 = vld [vmem:[%s429 + $0x78] sm:$0xf]
      %v515 = vld [vmem:[%s429 + $0x7c] sm:$0xf]
      %v516 = vunpack.c.l.bf16 %v480
      %v517 = vunpack.c.l.bf16 %v481
      %v518 = vunpack.c.l.bf16 %v484
      %v519 = vunpack.c.l.bf16 %v485
      %v520 = vunpack.c.l.bf16 %v486
      %v521 = vunpack.c.l.bf16 %v487
      %v522 = vunpack.c.l.bf16 %v488
      %v523 = vunpack.c.l.bf16 %v489
      %v524 = vunpack.c.l.bf16 %v490
      %v525 = vunpack.c.l.bf16 %v491
      %v526 = vunpack.c.l.bf16 %v492
      %v527 = vunpack.c.l.bf16 %v493
      %v528 = vunpack.c.l.bf16 %v494
      %v529 = vunpack.c.l.bf16 %v495
      %v530 = vunpack.c.l.bf16 %v496
      %v531 = vunpack.c.l.bf16 %v497
      %v532 = vunpack.c.l.bf16 %v498
      %v533 = vunpack.c.l.bf16 %v499
      %v534 = vunpack.c.l.bf16 %v500
      %v535 = vunpack.c.l.bf16 %v501
      %v536 = vunpack.c.l.bf16 %v502
      %v537 = vunpack.c.l.bf16 %v503
      %v538 = vunpack.c.l.bf16 %v504
      %v539 = vunpack.c.l.bf16 %v505
      %v540 = vunpack.c.l.bf16 %v506
      %v541 = vunpack.c.l.bf16 %v507
      %v542 = vunpack.c.l.bf16 %v508
      %v543 = vunpack.c.l.bf16 %v509
      %v544 = vunpack.c.l.bf16 %v510
      %v545 = vunpack.c.l.bf16 %v511
      %v546 = vunpack.c.l.bf16 %v512
      %v547 = vunpack.c.l.bf16 %v513
      %v548 = vunpack.c.l.bf16 %v514
      %v549 = vunpack.c.l.bf16 %v515
      %v550 = vunpack.c.l.bf16 %v482
      %v551 = vunpack.c.l.bf16 %v483
      %v552 = vld [vmem:[%s2] sm:$0x1]
      %v554 = vlaneseq
      %v555 = vshrl.u32 %v554, 7
      %v556 = vsub.s32 0, %v555
      %v557 = vrot.slane %v552, %v556
      %v559 = vmul.f32 %v516, %v557
      %v560 = vmul.f32 %v517, %v557
      %v561 = vmul.f32 %v518, %v557
      %v562 = vmul.f32 %v519, %v557
      %v563 = vmul.f32 %v520, %v557
      %v564 = vmul.f32 %v521, %v557
      %v565 = vmul.f32 %v522, %v557
      %v566 = vmul.f32 %v523, %v557
      %v567 = vmul.f32 %v524, %v557
      %v568 = vmul.f32 %v525, %v557
      %v569 = vmul.f32 %v526, %v557
      %v570 = vmul.f32 %v527, %v557
      %v571 = vmul.f32 %v528, %v557
      %v572 = vmul.f32 %v529, %v557
      %v573 = vmul.f32 %v530, %v557
      %v574 = vmul.f32 %v531, %v557
      %v575 = vmul.f32 %v532, %v557
      %v576 = vmul.f32 %v533, %v557
      %v577 = vmul.f32 %v534, %v557
      %v578 = vmul.f32 %v535, %v557
      %v579 = vmul.f32 %v536, %v557
      %v580 = vmul.f32 %v537, %v557
      %v581 = vmul.f32 %v538, %v557
      %v582 = vmul.f32 %v539, %v557
      %v583 = vmul.f32 %v540, %v557
      %v584 = vmul.f32 %v541, %v557
      %v585 = vmul.f32 %v542, %v557
      %v586 = vmul.f32 %v543, %v557
      %v587 = vmul.f32 %v544, %v557
      %v588 = vmul.f32 %v545, %v557
      %v589 = vmul.f32 %v546, %v557
      %v590 = vmul.f32 %v547, %v557
      %v591 = vmul.f32 %v548, %v557
      %v592 = vmul.f32 %v549, %v557
      %v593 = vmul.f32 %v550, %v557
      %v594 = vmul.f32 %v551, %v557
      %v595 = vld [vmem:[%s3] sm:$0x1]
      %v597 = vlaneseq
      %v598 = vshrl.u32 %v597, 7
      %v599 = vsub.s32 0, %v598
      %v600 = vrot.slane %v595, %v599
      %v602 = vadd.f32 %v559, %v600
      %v603 = vadd.f32 %v560, %v600
      %v604 = vadd.f32 %v561, %v600
      %v605 = vadd.f32 %v562, %v600
      %v606 = vadd.f32 %v563, %v600
      %v607 = vadd.f32 %v564, %v600
      %v608 = vadd.f32 %v565, %v600
      %v609 = vadd.f32 %v566, %v600
      %v610 = vadd.f32 %v567, %v600
      %v611 = vadd.f32 %v568, %v600
      %v612 = vadd.f32 %v569, %v600
      %v613 = vadd.f32 %v570, %v600
      %v614 = vadd.f32 %v571, %v600
      %v615 = vadd.f32 %v572, %v600
      %v616 = vadd.f32 %v573, %v600
      %v617 = vadd.f32 %v574, %v600
      %v618 = vadd.f32 %v575, %v600
      %v619 = vadd.f32 %v576, %v600
      %v620 = vadd.f32 %v577, %v600
      %v621 = vadd.f32 %v578, %v600
      %v622 = vadd.f32 %v579, %v600
      %v623 = vadd.f32 %v580, %v600
      %v624 = vadd.f32 %v581, %v600
      %v625 = vadd.f32 %v582, %v600
      %v626 = vadd.f32 %v583, %v600
      %v627 = vadd.f32 %v584, %v600
      %v628 = vadd.f32 %v585, %v600
      %v629 = vadd.f32 %v586, %v600
      %v630 = vadd.f32 %v587, %v600
      %v631 = vadd.f32 %v588, %v600
      %v632 = vadd.f32 %v589, %v600
      %v633 = vadd.f32 %v590, %v600
      %v634 = vadd.f32 %v591, %v600
      %v635 = vadd.f32 %v592, %v600
      %v636 = vadd.f32 %v593, %v600
      %v637 = vadd.f32 %v594, %v600
      %v638 = vmax.f32 %v602, 0.0
      %v639 = vmax.f32 %v603, 0.0
      %v640 = vmax.f32 %v604, 0.0
      %v641 = vmax.f32 %v605, 0.0
      %v642 = vmax.f32 %v606, 0.0
      %v643 = vmax.f32 %v607, 0.0
      %v644 = vmax.f32 %v608, 0.0
      %v645 = vmax.f32 %v609, 0.0
      %v646 = vmax.f32 %v610, 0.0
      %v647 = vmax.f32 %v611, 0.0
      %v648 = vmax.f32 %v612, 0.0
      %v649 = vmax.f32 %v613, 0.0
      %v650 = vmax.f32 %v614, 0.0
      %v651 = vmax.f32 %v615, 0.0
      %v652 = vmax.f32 %v616, 0.0
      %v653 = vmax.f32 %v617, 0.0
      %v654 = vmax.f32 %v618, 0.0
      %v655 = vmax.f32 %v619, 0.0
      %v656 = vmax.f32 %v620, 0.0
      %v657 = vmax.f32 %v621, 0.0
      %v658 = vmax.f32 %v622, 0.0
      %v659 = vmax.f32 %v623, 0.0
      %v660 = vmax.f32 %v624, 0.0
      %v661 = vmax.f32 %v625, 0.0
      %v662 = vmax.f32 %v626, 0.0
      %v663 = vmax.f32 %v627, 0.0
      %v664 = vmax.f32 %v628, 0.0
      %v665 = vmax.f32 %v629, 0.0
      %v666 = vmax.f32 %v630, 0.0
      %v667 = vmax.f32 %v631, 0.0
      %v668 = vmax.f32 %v632, 0.0
      %v669 = vmax.f32 %v633, 0.0
      %v670 = vmax.f32 %v634, 0.0
      %v671 = vmax.f32 %v635, 0.0
      %v672 = vmax.f32 %v636, 0.0
      %v673 = vmax.f32 %v637, 0.0
      %v674 = vpack.c.bf16 %v639, %v638
      %v675 = vpack.c.bf16 %v641, %v640
      %v676 = vpack.c.bf16 %v643, %v642
      %v677 = vpack.c.bf16 %v645, %v644
      %v678 = vpack.c.bf16 %v647, %v646
      %v679 = vpack.c.bf16 %v649, %v648
      %v680 = vpack.c.bf16 %v651, %v650
      %v681 = vpack.c.bf16 %v653, %v652
      %v682 = vpack.c.bf16 %v655, %v654
      %v683 = vpack.c.bf16 %v657, %v656
      %v684 = vpack.c.bf16 %v659, %v658
      %v685 = vpack.c.bf16 %v661, %v660
      %v686 = vpack.c.bf16 %v663, %v662
      %v687 = vpack.c.bf16 %v665, %v664
      %v688 = vpack.c.bf16 %v667, %v666
      %v689 = vpack.c.bf16 %v669, %v668
      %v690 = vpack.c.bf16 %v671, %v670
      %v691 = vpack.c.bf16 %v673, %v672
      %v692 = vld [vmem:[%s443] sm:$0x3]
      %s693 = scalar_lea.vmem %s443, 2
      %v694 = vld [vmem:[%s693] sm:$0x3]
      %vm695 = vcmask 31744
      %v697 = vsel %vm695, %v675, 0
      %v700 = vsel %vm695, %v676, 0
      %v703 = vsel %vm695, %v677, 0
      %v706 = vsel %vm695, %v678, 0
      %v709 = vsel %vm695, %v679, 0
      %v712 = vsel %vm695, %v680, 0
      %v715 = vsel %vm695, %v681, 0
      %v718 = vsel %vm695, %v682, 0
      %v721 = vsel %vm695, %v683, 0
      %v724 = vsel %vm695, %v684, 0
      %v727 = vsel %vm695, %v685, 0
      %v730 = vsel %vm695, %v686, 0
      %v733 = vsel %vm695, %v687, 0
      %v736 = vsel %vm695, %v688, 0
      %v739 = vsel %vm695, %v689, 0
      %v742 = vsel %vm695, %v690, 0
      %vm744 = vcmask 1041408
      %v746 = vsel %vm744, %v694, 0
      %748 = vmatprep.subr.bf16.mxu0 0
      %749 = vmatpush1.bf16.msra.mxu0 %v746
      %750 = vmatprep.subr.bf16.mxu0 0
      %751 = vmatpush1.bf16.msra.mxu0 0
      %752 = vmatprep.subr.bf16.mxu0 0
      %753 = vmatpush1.bf16.msra.mxu0 0
      %754 = vmatprep.subr.bf16.mxu0 0
      %755 = vmatpush1.bf16.msra.mxu0 0
      %756 = vmatprep.subr.bf16.mxu0 0
      %757 = vmatpush1.bf16.msra.mxu0 0
      %758 = vmatprep.subr.bf16.mxu0 0
      %759 = vmatpush1.bf16.msra.mxu0 0
      %760 = vmatprep.subr.bf16.mxu0 0
      %761 = vmatpush1.bf16.msra.mxu0 0
      %762 = vmatprep.subr.bf16.mxu0 0
      %763 = vmatpush1.bf16.msra.mxu0 0
      %764 = vmatprep.subr.bf16.mxu0 0
      %765 = vmatpush1.bf16.msra.mxu0 0
      %766 = vmatprep.subr.bf16.mxu0 0
      %767 = vmatpush1.bf16.msra.mxu0 0
      %768 = vmatprep.subr.bf16.mxu0 0
      %769 = vmatpush1.bf16.msra.mxu0 0
      %770 = vmatprep.subr.bf16.mxu0 0
      %771 = vmatpush1.bf16.msra.mxu0 0
      %772 = vmatprep.subr.bf16.mxu0 0
      %773 = vmatpush1.bf16.msra.mxu0 0
      %774 = vmatprep.subr.bf16.mxu0 0
      %775 = vmatpush1.bf16.msra.mxu0 0
      %776 = vmatprep.subr.bf16.mxu0 0
      %777 = vmatpush1.bf16.msra.mxu0 0
      %778 = vmatprep.subr.bf16.mxu0 0
      %779 = vmatpush1.bf16.msra.mxu0 0
      %780 = vmatprep.mubr.bf16.mxu0 0
      %781 = vmatmul.mubr.bf16.gmra.mrb[0].mxu0 %v697
      %v782 = vpop.f32.mrb[0].mxu0
      %v783 = vadd.f32 0.0, %v782
      %v784 = vpop.f32.mrb[0].mxu0
      %v785 = vpop.f32.mrb[0].mxu0
      %v786 = vadd.f32 0.0, %v785
      %v787 = vpop.f32.mrb[0].mxu0
      %788 = vmatprep.mubr.bf16.mxu0 0
      %789 = vmatmul.mubr.bf16.gmra.mrb[0].mxu0 %v700
      %v790 = vpop.f32.mrb[0].mxu0
      %v791 = vadd.f32 0.0, %v790
      %v792 = vpop.f32.mrb[0].mxu0
      %v793 = vpop.f32.mrb[0].mxu0
      %v794 = vadd.f32 0.0, %v793
      %v795 = vpop.f32.mrb[0].mxu0
      %796 = vmatprep.mubr.bf16.mxu0 0
      %797 = vmatmul.mubr.bf16.gmra.mrb[0].mxu0 %v703
      %v798 = vpop.f32.mrb[0].mxu0
      %v799 = vadd.f32 0.0, %v798
      %v800 = vpop.f32.mrb[0].mxu0
      %v801 = vpop.f32.mrb[0].mxu0
      %v802 = vadd.f32 0.0, %v801
      %v803 = vpop.f32.mrb[0].mxu0
      %804 = vmatprep.mubr.bf16.mxu0 0
      %805 = vmatmul.mubr.bf16.gmra.mrb[0].mxu0 %v706
      %v806 = vpop.f32.mrb[0].mxu0
      %v807 = vadd.f32 0.0, %v806
      %v808 = vpop.f32.mrb[0].mxu0
      %v809 = vpop.f32.mrb[0].mxu0
      %v810 = vadd.f32 0.0, %v809
      %v811 = vpop.f32.mrb[0].mxu0
      %812 = vmatprep.mubr.bf16.mxu0 0
      %813 = vmatmul.mubr.bf16.gmra.mrb[0].mxu0 %v709
      %v814 = vpop.f32.mrb[0].mxu0
      %v815 = vadd.f32 0.0, %v814
      %v816 = vpop.f32.mrb[0].mxu0
      %v817 = vpop.f32.mrb[0].mxu0
      %v818 = vadd.f32 0.0, %v817
      %v819 = vpop.f32.mrb[0].mxu0
      %820 = vmatprep.mubr.bf16.mxu0 0
      %821 = vmatmul.mubr.bf16.gmra.mrb[0].mxu0 %v712
      %v822 = vpop.f32.mrb[0].mxu0
      %v823 = vadd.f32 0.0, %v822
      %v824 = vpop.f32.mrb[0].mxu0
      %v825 = vpop.f32.mrb[0].mxu0
      %v826 = vadd.f32 0.0, %v825
      %v827 = vpop.f32.mrb[0].mxu0
      %828 = vmatprep.mubr.bf16.mxu0 0
      %829 = vmatmul.mubr.bf16.gmra.mrb[0].mxu0 %v715
      %v830 = vpop.f32.mrb[0].mxu0
      %v831 = vadd.f32 0.0, %v830
      %v832 = vpop.f32.mrb[0].mxu0
      %v833 = vpop.f32.mrb[0].mxu0
      %v834 = vadd.f32 0.0, %v833
      %v835 = vpop.f32.mrb[0].mxu0
      %836 = vmatprep.mubr.bf16.mxu0 0
      %837 = vmatmul.mubr.bf16.gmra.mrb[0].mxu0 %v718
      %v838 = vpop.f32.mrb[0].mxu0
      %v839 = vadd.f32 0.0, %v838
      %v840 = vpop.f32.mrb[0].mxu0
      %v841 = vpop.f32.mrb[0].mxu0
      %v842 = vadd.f32 0.0, %v841
      %v843 = vpop.f32.mrb[0].mxu0
      %844 = vmatprep.mubr.bf16.mxu0 0
      %845 = vmatmul.mubr.bf16.gmra.mrb[0].mxu0 %v721
      %v846 = vpop.f32.mrb[0].mxu0
      %v847 = vadd.f32 0.0, %v846
      %v848 = vpop.f32.mrb[0].mxu0
      %v849 = vpop.f32.mrb[0].mxu0
      %v850 = vadd.f32 0.0, %v849
      %v851 = vpop.f32.mrb[0].mxu0
      %852 = vmatprep.mubr.bf16.mxu0 0
      %853 = vmatmul.mubr.bf16.gmra.mrb[0].mxu0 %v724
      %v854 = vpop.f32.mrb[0].mxu0
      %v855 = vadd.f32 0.0, %v854
      %v856 = vpop.f32.mrb[0].mxu0
      %v857 = vpop.f32.mrb[0].mxu0
      %v858 = vadd.f32 0.0, %v857
      %v859 = vpop.f32.mrb[0].mxu0
      %860 = vmatprep.mubr.bf16.mxu0 0
      %861 = vmatmul.mubr.bf16.gmra.mrb[0].mxu0 %v727
      %v862 = vpop.f32.mrb[0].mxu0
      %v863 = vadd.f32 0.0, %v862
      %v864 = vpop.f32.mrb[0].mxu0
      %v865 = vpop.f32.mrb[0].mxu0
      %v866 = vadd.f32 0.0, %v865
      %v867 = vpop.f32.mrb[0].mxu0
      %868 = vmatprep.mubr.bf16.mxu0 0
      %869 = vmatmul.mubr.bf16.gmra.mrb[0].mxu0 %v730
      %v870 = vpop.f32.mrb[0].mxu0
      %v871 = vadd.f32 0.0, %v870
      %v872 = vpop.f32.mrb[0].mxu0
      %v873 = vpop.f32.mrb[0].mxu0
      %v874 = vadd.f32 0.0, %v873
      %v875 = vpop.f32.mrb[0].mxu0
      %876 = vmatprep.mubr.bf16.mxu0 0
      %877 = vmatmul.mubr.bf16.gmra.mrb[0].mxu0 %v733
      %v878 = vpop.f32.mrb[0].mxu0
      %v879 = vadd.f32 0.0, %v878
      %v880 = vpop.f32.mrb[0].mxu0
      %v881 = vpop.f32.mrb[0].mxu0
      %v882 = vadd.f32 0.0, %v881
      %v883 = vpop.f32.mrb[0].mxu0
      %884 = vmatprep.mubr.bf16.mxu0 0
      %885 = vmatmul.mubr.bf16.gmra.mrb[0].mxu0 %v736
      %v886 = vpop.f32.mrb[0].mxu0
      %v887 = vadd.f32 0.0, %v886
      %v888 = vpop.f32.mrb[0].mxu0
      %v889 = vpop.f32.mrb[0].mxu0
      %v890 = vadd.f32 0.0, %v889
      %v891 = vpop.f32.mrb[0].mxu0
      %892 = vmatprep.mubr.bf16.mxu0 0
      %893 = vmatmul.mubr.bf16.gmra.mrb[0].mxu0 %v739
      %v894 = vpop.f32.mrb[0].mxu0
      %v895 = vadd.f32 0.0, %v894
      %v896 = vpop.f32.mrb[0].mxu0
      %v897 = vpop.f32.mrb[0].mxu0
      %v898 = vadd.f32 0.0, %v897
      %v899 = vpop.f32.mrb[0].mxu0
      %900 = vmatprep.mubr.bf16.mxu0 0
      %901 = vmatmul.mubr.bf16.gmra.mrb[0].mxu0 %v742
      %v902 = vpop.f32.mrb[0].mxu0
      %v903 = vadd.f32 0.0, %v902
      %v904 = vpop.f32.mrb[0].mxu0
      %v905 = vpop.f32.mrb[0].mxu0
      %v906 = vadd.f32 0.0, %v905
      %v907 = vpop.f32.mrb[0].mxu0
      %908 = vdwg.mxu0
      %v910 = vsel %vm695, %v674, 0
      %v913 = vsel %vm744, %v692, 0
      %915 = vmatprep.subr.bf16.mxu0 0
      %916 = vmatpush1.bf16.msra.mxu0 %v913
      %917 = vmatprep.subr.bf16.mxu0 0
      %918 = vmatpush1.bf16.msra.mxu0 0
      %919 = vmatprep.subr.bf16.mxu0 0
      %920 = vmatpush1.bf16.msra.mxu0 0
      %921 = vmatprep.subr.bf16.mxu0 0
      %922 = vmatpush1.bf16.msra.mxu0 0
      %923 = vmatprep.subr.bf16.mxu0 0
      %924 = vmatpush1.bf16.msra.mxu0 0
      %925 = vmatprep.subr.bf16.mxu0 0
      %926 = vmatpush1.bf16.msra.mxu0 0
      %927 = vmatprep.subr.bf16.mxu0 0
      %928 = vmatpush1.bf16.msra.mxu0 0
      %929 = vmatprep.subr.bf16.mxu0 0
      %930 = vmatpush1.bf16.msra.mxu0 0
      %931 = vmatprep.subr.bf16.mxu0 0
      %932 = vmatpush1.bf16.msra.mxu0 0
      %933 = vmatprep.subr.bf16.mxu0 0
      %934 = vmatpush1.bf16.msra.mxu0 0
      %935 = vmatprep.subr.bf16.mxu0 0
      %936 = vmatpush1.bf16.msra.mxu0 0
      %937 = vmatprep.subr.bf16.mxu0 0
      %938 = vmatpush1.bf16.msra.mxu0 0
      %939 = vmatprep.subr.bf16.mxu0 0
      %940 = vmatpush1.bf16.msra.mxu0 0
      %941 = vmatprep.subr.bf16.mxu0 0
      %942 = vmatpush1.bf16.msra.mxu0 0
      %943 = vmatprep.subr.bf16.mxu0 0
      %944 = vmatpush1.bf16.msra.mxu0 0
      %945 = vmatprep.subr.bf16.mxu0 0
      %946 = vmatpush1.bf16.msra.mxu0 0
      %947 = vmatprep.mubr.bf16.mxu0 0
      %948 = vmatmul.mubr.bf16.gmra.mrb[0].mxu0 %v910
      %v949 = vpop.f32.mrb[0].mxu0
      %v950 = vadd.f32 %v783, %v949
      %v951 = vpop.f32.mrb[0].mxu0
      %v952 = vpop.f32.mrb[0].mxu0
      %v953 = vadd.f32 %v786, %v952
      %v954 = vpop.f32.mrb[0].mxu0
      %955 = vmatprep.mubr.bf16.mxu0 0
      %956 = vmatmul.mubr.bf16.gmra.mrb[0].mxu0 %v697
      %v957 = vpop.f32.mrb[0].mxu0
      %v958 = vadd.f32 %v791, %v957
      %v959 = vpop.f32.mrb[0].mxu0
      %v960 = vpop.f32.mrb[0].mxu0
      %v961 = vadd.f32 %v794, %v960
      %v962 = vpop.f32.mrb[0].mxu0
      %963 = vmatprep.mubr.bf16.mxu0 0
      %964 = vmatmul.mubr.bf16.gmra.mrb[0].mxu0 %v700
      %v965 = vpop.f32.mrb[0].mxu0
      %v966 = vadd.f32 %v799, %v965
      %v967 = vpop.f32.mrb[0].mxu0
      %v968 = vpop.f32.mrb[0].mxu0
      %v969 = vadd.f32 %v802, %v968
      %v970 = vpop.f32.mrb[0].mxu0
      %971 = vmatprep.mubr.bf16.mxu0 0
      %972 = vmatmul.mubr.bf16.gmra.mrb[0].mxu0 %v703
      %v973 = vpop.f32.mrb[0].mxu0
      %v974 = vadd.f32 %v807, %v973
      %v975 = vpop.f32.mrb[0].mxu0
      %v976 = vpop.f32.mrb[0].mxu0
      %v977 = vadd.f32 %v810, %v976
      %v978 = vpop.f32.mrb[0].mxu0
      %979 = vmatprep.mubr.bf16.mxu0 0
      %980 = vmatmul.mubr.bf16.gmra.mrb[0].mxu0 %v706
      %v981 = vpop.f32.mrb[0].mxu0
      %v982 = vadd.f32 %v815, %v981
      %v983 = vpop.f32.mrb[0].mxu0
      %v984 = vpop.f32.mrb[0].mxu0
      %v985 = vadd.f32 %v818, %v984
      %v986 = vpop.f32.mrb[0].mxu0
      %987 = vmatprep.mubr.bf16.mxu0 0
      %988 = vmatmul.mubr.bf16.gmra.mrb[0].mxu0 %v709
      %v989 = vpop.f32.mrb[0].mxu0
      %v990 = vadd.f32 %v823, %v989
      %v991 = vpop.f32.mrb[0].mxu0
      %v992 = vpop.f32.mrb[0].mxu0
      %v993 = vadd.f32 %v826, %v992
      %v994 = vpop.f32.mrb[0].mxu0
      %995 = vmatprep.mubr.bf16.mxu0 0
      %996 = vmatmul.mubr.bf16.gmra.mrb[0].mxu0 %v712
      %v997 = vpop.f32.mrb[0].mxu0
      %v998 = vadd.f32 %v831, %v997
      %v999 = vpop.f32.mrb[0].mxu0
      %v1000 = vpop.f32.mrb[0].mxu0
      %v1001 = vadd.f32 %v834, %v1000
      %v1002 = vpop.f32.mrb[0].mxu0
      %1003 = vmatprep.mubr.bf16.mxu0 0
      %1004 = vmatmul.mubr.bf16.gmra.mrb[0].mxu0 %v715
      %v1005 = vpop.f32.mrb[0].mxu0
      %v1006 = vadd.f32 %v839, %v1005
      %v1007 = vpop.f32.mrb[0].mxu0
      %v1008 = vpop.f32.mrb[0].mxu0
      %v1009 = vadd.f32 %v842, %v1008
      %v1010 = vpop.f32.mrb[0].mxu0
      %1011 = vmatprep.mubr.bf16.mxu0 0
      %1012 = vmatmul.mubr.bf16.gmra.mrb[0].mxu0 %v718
      %v1013 = vpop.f32.mrb[0].mxu0
      %v1014 = vadd.f32 %v847, %v1013
      %v1015 = vpop.f32.mrb[0].mxu0
      %v1016 = vpop.f32.mrb[0].mxu0
      %v1017 = vadd.f32 %v850, %v1016
      %v1018 = vpop.f32.mrb[0].mxu0
      %1019 = vmatprep.mubr.bf16.mxu0 0
      %1020 = vmatmul.mubr.bf16.gmra.mrb[0].mxu0 %v721
      %v1021 = vpop.f32.mrb[0].mxu0
      %v1022 = vadd.f32 %v855, %v1021
      %v1023 = vpop.f32.mrb[0].mxu0
      %v1024 = vpop.f32.mrb[0].mxu0
      %v1025 = vadd.f32 %v858, %v1024
      %v1026 = vpop.f32.mrb[0].mxu0
      %1027 = vmatprep.mubr.bf16.mxu0 0
      %1028 = vmatmul.mubr.bf16.gmra.mrb[0].mxu0 %v724
      %v1029 = vpop.f32.mrb[0].mxu0
      %v1030 = vadd.f32 %v863, %v1029
      %v1031 = vpop.f32.mrb[0].mxu0
      %v1032 = vpop.f32.mrb[0].mxu0
      %v1033 = vadd.f32 %v866, %v1032
      %v1034 = vpop.f32.mrb[0].mxu0
      %1035 = vmatprep.mubr.bf16.mxu0 0
      %1036 = vmatmul.mubr.bf16.gmra.mrb[0].mxu0 %v727
      %v1037 = vpop.f32.mrb[0].mxu0
      %v1038 = vadd.f32 %v871, %v1037
      %v1039 = vpop.f32.mrb[0].mxu0
      %v1040 = vpop.f32.mrb[0].mxu0
      %v1041 = vadd.f32 %v874, %v1040
      %v1042 = vpop.f32.mrb[0].mxu0
      %1043 = vmatprep.mubr.bf16.mxu0 0
      %1044 = vmatmul.mubr.bf16.gmra.mrb[0].mxu0 %v730
      %v1045 = vpop.f32.mrb[0].mxu0
      %v1046 = vadd.f32 %v879, %v1045
      %v1047 = vpop.f32.mrb[0].mxu0
      %v1048 = vpop.f32.mrb[0].mxu0
      %v1049 = vadd.f32 %v882, %v1048
      %v1050 = vpop.f32.mrb[0].mxu0
      %1051 = vmatprep.mubr.bf16.mxu0 0
      %1052 = vmatmul.mubr.bf16.gmra.mrb[0].mxu0 %v733
      %v1053 = vpop.f32.mrb[0].mxu0
      %v1054 = vadd.f32 %v887, %v1053
      %v1055 = vpop.f32.mrb[0].mxu0
      %v1056 = vpop.f32.mrb[0].mxu0
      %v1057 = vadd.f32 %v890, %v1056
      %v1058 = vpop.f32.mrb[0].mxu0
      %1059 = vmatprep.mubr.bf16.mxu0 0
      %1060 = vmatmul.mubr.bf16.gmra.mrb[0].mxu0 %v736
      %v1061 = vpop.f32.mrb[0].mxu0
      %v1062 = vadd.f32 %v895, %v1061
      %v1063 = vpop.f32.mrb[0].mxu0
      %v1064 = vpop.f32.mrb[0].mxu0
      %v1065 = vadd.f32 %v898, %v1064
      %v1066 = vpop.f32.mrb[0].mxu0
      %1067 = vmatprep.mubr.bf16.mxu0 0
      %1068 = vmatmul.mubr.bf16.gmra.mrb[0].mxu0 %v739
      %v1069 = vpop.f32.mrb[0].mxu0
      %v1070 = vadd.f32 %v903, %v1069
      %v1071 = vpop.f32.mrb[0].mxu0
      %v1072 = vpop.f32.mrb[0].mxu0
      %v1073 = vadd.f32 %v906, %v1072
      %v1074 = vpop.f32.mrb[0].mxu0
      %1075 = vdwg.mxu0
      %s1076 = scalar_lea.vmem %s443, 4
      %v1077 = vld [vmem:[%s1076] sm:$0x3]
      %v1079 = vsel %vm695, %v691, 0
      %v1082 = vsel %vm744, %v1077, 0
      %1084 = vmatprep.subr.bf16.mxu0 0
      %1085 = vmatpush1.bf16.msra.mxu0 %v1082
      %1086 = vmatprep.subr.bf16.mxu0 0
      %1087 = vmatpush1.bf16.msra.mxu0 0
      %1088 = vmatprep.subr.bf16.mxu0 0
      %1089 = vmatpush1.bf16.msra.mxu0 0
      %1090 = vmatprep.subr.bf16.mxu0 0
      %1091 = vmatpush1.bf16.msra.mxu0 0
      %1092 = vmatprep.subr.bf16.mxu0 0
      %1093 = vmatpush1.bf16.msra.mxu0 0
      %1094 = vmatprep.subr.bf16.mxu0 0
      %1095 = vmatpush1.bf16.msra.mxu0 0
      %1096 = vmatprep.subr.bf16.mxu0 0
      %1097 = vmatpush1.bf16.msra.mxu0 0
      %1098 = vmatprep.subr.bf16.mxu0 0
      %1099 = vmatpush1.bf16.msra.mxu0 0
      %1100 = vmatprep.subr.bf16.mxu0 0
      %1101 = vmatpush1.bf16.msra.mxu0 0
      %1102 = vmatprep.subr.bf16.mxu0 0
      %1103 = vmatpush1.bf16.msra.mxu0 0
      %1104 = vmatprep.subr.bf16.mxu0 0
      %1105 = vmatpush1.bf16.msra.mxu0 0
      %1106 = vmatprep.subr.bf16.mxu0 0
      %1107 = vmatpush1.bf16.msra.mxu0 0
      %1108 = vmatprep.subr.bf16.mxu0 0
      %1109 = vmatpush1.bf16.msra.mxu0 0
      %1110 = vmatprep.subr.bf16.mxu0 0
      %1111 = vmatpush1.bf16.msra.mxu0 0
      %1112 = vmatprep.subr.bf16.mxu0 0
      %1113 = vmatpush1.bf16.msra.mxu0 0
      %1114 = vmatprep.subr.bf16.mxu0 0
      %1115 = vmatpush1.bf16.msra.mxu0 0
      %1116 = vmatprep.mubr.bf16.mxu0 0
      %1117 = vmatmul.mubr.bf16.gmra.mrb[0].mxu0 %v700
      %v1118 = vpop.f32.mrb[0].mxu0
      %v1119 = vadd.f32 0.0, %v1118
      %v1120 = vpop.f32.mrb[0].mxu0
      %v1121 = vpop.f32.mrb[0].mxu0
      %v1122 = vadd.f32 0.0, %v1121
      %v1123 = vpop.f32.mrb[0].mxu0
      %1124 = vmatprep.mubr.bf16.mxu0 0
      %1125 = vmatmul.mubr.bf16.gmra.mrb[0].mxu0 %v703
      %v1126 = vpop.f32.mrb[0].mxu0
      %v1127 = vadd.f32 0.0, %v1126
      %v1128 = vpop.f32.mrb[0].mxu0
      %v1129 = vpop.f32.mrb[0].mxu0
      %v1130 = vadd.f32 0.0, %v1129
      %v1131 = vpop.f32.mrb[0].mxu0
      %1132 = vmatprep.mubr.bf16.mxu0 0
      %1133 = vmatmul.mubr.bf16.gmra.mrb[0].mxu0 %v706
      %v1134 = vpop.f32.mrb[0].mxu0
      %v1135 = vadd.f32 0.0, %v1134
      %v1136 = vpop.f32.mrb[0].mxu0
      %v1137 = vpop.f32.mrb[0].mxu0
      %v1138 = vadd.f32 0.0, %v1137
      %v1139 = vpop.f32.mrb[0].mxu0
      %1140 = vmatprep.mubr.bf16.mxu0 0
      %1141 = vmatmul.mubr.bf16.gmra.mrb[0].mxu0 %v709
      %v1142 = vpop.f32.mrb[0].mxu0
      %v1143 = vadd.f32 0.0, %v1142
      %v1144 = vpop.f32.mrb[0].mxu0
      %v1145 = vpop.f32.mrb[0].mxu0
      %v1146 = vadd.f32 0.0, %v1145
      %v1147 = vpop.f32.mrb[0].mxu0
      %1148 = vmatprep.mubr.bf16.mxu0 0
      %1149 = vmatmul.mubr.bf16.gmra.mrb[0].mxu0 %v712
      %v1150 = vpop.f32.mrb[0].mxu0
      %v1151 = vadd.f32 0.0, %v1150
      %v1152 = vpop.f32.mrb[0].mxu0
      %v1153 = vpop.f32.mrb[0].mxu0
      %v1154 = vadd.f32 0.0, %v1153
      %v1155 = vpop.f32.mrb[0].mxu0
      %1156 = vmatprep.mubr.bf16.mxu0 0
      %1157 = vmatmul.mubr.bf16.gmra.mrb[0].mxu0 %v715
      %v1158 = vpop.f32.mrb[0].mxu0
      %v1159 = vadd.f32 0.0, %v1158
      %v1160 = vpop.f32.mrb[0].mxu0
      %v1161 = vpop.f32.mrb[0].mxu0
      %v1162 = vadd.f32 0.0, %v1161
      %v1163 = vpop.f32.mrb[0].mxu0
      %1164 = vmatprep.mubr.bf16.mxu0 0
      %1165 = vmatmul.mubr.bf16.gmra.mrb[0].mxu0 %v718
      %v1166 = vpop.f32.mrb[0].mxu0
      %v1167 = vadd.f32 0.0, %v1166
      %v1168 = vpop.f32.mrb[0].mxu0
      %v1169 = vpop.f32.mrb[0].mxu0
      %v1170 = vadd.f32 0.0, %v1169
      %v1171 = vpop.f32.mrb[0].mxu0
      %1172 = vmatprep.mubr.bf16.mxu0 0
      %1173 = vmatmul.mubr.bf16.gmra.mrb[0].mxu0 %v721
      %v1174 = vpop.f32.mrb[0].mxu0
      %v1175 = vadd.f32 0.0, %v1174
      %v1176 = vpop.f32.mrb[0].mxu0
      %v1177 = vpop.f32.mrb[0].mxu0
      %v1178 = vadd.f32 0.0, %v1177
      %v1179 = vpop.f32.mrb[0].mxu0
      %1180 = vmatprep.mubr.bf16.mxu0 0
      %1181 = vmatmul.mubr.bf16.gmra.mrb[0].mxu0 %v724
      %v1182 = vpop.f32.mrb[0].mxu0
      %v1183 = vadd.f32 0.0, %v1182
      %v1184 = vpop.f32.mrb[0].mxu0
      %v1185 = vpop.f32.mrb[0].mxu0
      %v1186 = vadd.f32 0.0, %v1185
      %v1187 = vpop.f32.mrb[0].mxu0
      %1188 = vmatprep.mubr.bf16.mxu0 0
      %1189 = vmatmul.mubr.bf16.gmra.mrb[0].mxu0 %v727
      %v1190 = vpop.f32.mrb[0].mxu0
      %v1191 = vadd.f32 0.0, %v1190
      %v1192 = vpop.f32.mrb[0].mxu0
      %v1193 = vpop.f32.mrb[0].mxu0
      %v1194 = vadd.f32 0.0, %v1193
      %v1195 = vpop.f32.mrb[0].mxu0
      %1196 = vmatprep.mubr.bf16.mxu0 0
      %1197 = vmatmul.mubr.bf16.gmra.mrb[0].mxu0 %v730
      %v1198 = vpop.f32.mrb[0].mxu0
      %v1199 = vadd.f32 0.0, %v1198
      %v1200 = vpop.f32.mrb[0].mxu0
      %v1201 = vpop.f32.mrb[0].mxu0
      %v1202 = vadd.f32 0.0, %v1201
      %v1203 = vpop.f32.mrb[0].mxu0
      %1204 = vmatprep.mubr.bf16.mxu0 0
      %1205 = vmatmul.mubr.bf16.gmra.mrb[0].mxu0 %v733
      %v1206 = vpop.f32.mrb[0].mxu0
      %v1207 = vadd.f32 0.0, %v1206
      %v1208 = vpop.f32.mrb[0].mxu0
      %v1209 = vpop.f32.mrb[0].mxu0
      %v1210 = vadd.f32 0.0, %v1209
      %v1211 = vpop.f32.mrb[0].mxu0
      %1212 = vmatprep.mubr.bf16.mxu0 0
      %1213 = vmatmul.mubr.bf16.gmra.mrb[0].mxu0 %v736
      %v1214 = vpop.f32.mrb[0].mxu0
      %v1215 = vadd.f32 0.0, %v1214
      %v1216 = vpop.f32.mrb[0].mxu0
      %v1217 = vpop.f32.mrb[0].mxu0
      %v1218 = vadd.f32 0.0, %v1217
      %v1219 = vpop.f32.mrb[0].mxu0
      %1220 = vmatprep.mubr.bf16.mxu0 0
      %1221 = vmatmul.mubr.bf16.gmra.mrb[0].mxu0 %v739
      %v1222 = vpop.f32.mrb[0].mxu0
      %v1223 = vadd.f32 0.0, %v1222
      %v1224 = vpop.f32.mrb[0].mxu0
      %v1225 = vpop.f32.mrb[0].mxu0
      %v1226 = vadd.f32 0.0, %v1225
      %v1227 = vpop.f32.mrb[0].mxu0
      %1228 = vmatprep.mubr.bf16.mxu0 0
      %1229 = vmatmul.mubr.bf16.gmra.mrb[0].mxu0 %v742
      %v1230 = vpop.f32.mrb[0].mxu0
      %v1231 = vadd.f32 0.0, %v1230
      %v1232 = vpop.f32.mrb[0].mxu0
      %v1233 = vpop.f32.mrb[0].mxu0
      %v1234 = vadd.f32 0.0, %v1233
      %v1235 = vpop.f32.mrb[0].mxu0
      %1236 = vmatprep.mubr.bf16.mxu0 0
      %1237 = vmatmul.mubr.bf16.gmra.mrb[0].mxu0 %v1079
      %v1238 = vpop.f32.mrb[0].mxu0
      %v1239 = vadd.f32 0.0, %v1238
      %v1240 = vpop.f32.mrb[0].mxu0
      %v1241 = vpop.f32.mrb[0].mxu0
      %v1242 = vadd.f32 0.0, %v1241
      %v1243 = vpop.f32.mrb[0].mxu0
      %1244 = vdwg.mxu0
      %v1245 = vadd.f32 %v950, %v1119
      %v1246 = vadd.f32 %v953, %v1122
      %v1247 = vadd.f32 %v958, %v1127
      %v1248 = vadd.f32 %v961, %v1130
      %v1249 = vadd.f32 %v966, %v1135
      %v1250 = vadd.f32 %v969, %v1138
      %v1251 = vadd.f32 %v974, %v1143
      %v1252 = vadd.f32 %v977, %v1146
      %v1253 = vadd.f32 %v982, %v1151
      %v1254 = vadd.f32 %v985, %v1154
      %v1255 = vadd.f32 %v990, %v1159
      %v1256 = vadd.f32 %v993, %v1162
      %v1257 = vadd.f32 %v998, %v1167
      %v1258 = vadd.f32 %v1001, %v1170
      %v1259 = vadd.f32 %v1006, %v1175
      %v1260 = vadd.f32 %v1009, %v1178
      %v1261 = vadd.f32 %v1014, %v1183
      %v1262 = vadd.f32 %v1017, %v1186
      %v1263 = vadd.f32 %v1022, %v1191
      %v1264 = vadd.f32 %v1025, %v1194
      %v1265 = vadd.f32 %v1030, %v1199
      %v1266 = vadd.f32 %v1033, %v1202
      %v1267 = vadd.f32 %v1038, %v1207
      %v1268 = vadd.f32 %v1041, %v1210
      %v1269 = vadd.f32 %v1046, %v1215
      %v1270 = vadd.f32 %v1049, %v1218
      %v1271 = vadd.f32 %v1054, %v1223
      %v1272 = vadd.f32 %v1057, %v1226
      %v1273 = vadd.f32 %v1062, %v1231
      %v1274 = vadd.f32 %v1065, %v1234
      %v1275 = vadd.f32 %v1070, %v1239
      %v1276 = vadd.f32 %v1073, %v1242
      %v1293 = vrot.slane %v1245, 1
      %v1294 = vrot.slane %v1247, 1
      %v1295 = vrot.slane %v1249, 1
      %v1296 = vrot.slane %v1251, 1
      %v1297 = vrot.slane %v1253, 1
      %v1298 = vrot.slane %v1255, 1
      %v1299 = vrot.slane %v1257, 1
      %v1300 = vrot.slane %v1259, 1
      %v1301 = vrot.slane %v1261, 1
      %v1302 = vrot.slane %v1263, 1
      %v1303 = vrot.slane %v1265, 1
      %v1304 = vrot.slane %v1267, 1
      %v1305 = vrot.slane %v1269, 1
      %v1306 = vrot.slane %v1271, 1
      %v1307 = vrot.slane %v1273, 1
      %v1308 = vrot.slane %v1275, 1
      %vm1341 = vcmask 1040384
      %v1342 = vrot.slane %v1245, 7
      %v1343 = vrot.slane %v1246, 7
      %v1344 = vsel %vm1341, %v1342, %v1343
      %v1345 = vrot.slane %v1247, 7
      %v1346 = vrot.slane %v1248, 7
      %v1347 = vsel %vm1341, %v1345, %v1346
      %v1348 = vrot.slane %v1249, 7
      %v1349 = vrot.slane %v1250, 7
      %v1350 = vsel %vm1341, %v1348, %v1349
      %v1351 = vrot.slane %v1251, 7
      %v1352 = vrot.slane %v1252, 7
      %v1353 = vsel %vm1341, %v1351, %v1352
      %v1354 = vrot.slane %v1253, 7
      %v1355 = vrot.slane %v1254, 7
      %v1356 = vsel %vm1341, %v1354, %v1355
      %v1357 = vrot.slane %v1255, 7
      %v1358 = vrot.slane %v1256, 7
      %v1359 = vsel %vm1341, %v1357, %v1358
      %v1360 = vrot.slane %v1257, 7
      %v1361 = vrot.slane %v1258, 7
      %v1362 = vsel %vm1341, %v1360, %v1361
      %v1363 = vrot.slane %v1259, 7
      %v1364 = vrot.slane %v1260, 7
      %v1365 = vsel %vm1341, %v1363, %v1364
      %v1366 = vrot.slane %v1261, 7
      %v1367 = vrot.slane %v1262, 7
      %v1368 = vsel %vm1341, %v1366, %v1367
      %v1369 = vrot.slane %v1263, 7
      %v1370 = vrot.slane %v1264, 7
      %v1371 = vsel %vm1341, %v1369, %v1370
      %v1372 = vrot.slane %v1265, 7
      %v1373 = vrot.slane %v1266, 7
      %v1374 = vsel %vm1341, %v1372, %v1373
      %v1375 = vrot.slane %v1267, 7
      %v1376 = vrot.slane %v1268, 7
      %v1377 = vsel %vm1341, %v1375, %v1376
      %v1378 = vrot.slane %v1269, 7
      %v1379 = vrot.slane %v1270, 7
      %v1380 = vsel %vm1341, %v1378, %v1379
      %v1381 = vrot.slane %v1271, 7
      %v1382 = vrot.slane %v1272, 7
      %v1383 = vsel %vm1341, %v1381, %v1382
      %v1384 = vrot.slane %v1273, 7
      %v1385 = vrot.slane %v1274, 7
      %v1386 = vsel %vm1341, %v1384, %v1385
      %v1387 = vrot.slane %v1275, 7
      %v1388 = vrot.slane %v1276, 7
      %v1389 = vsel %vm1341, %v1387, %v1388
      %v1406 = vsel %vm1341, %v1293, %v1342
      %v1407 = vsel %vm1341, %v1294, %v1345
      %v1408 = vsel %vm1341, %v1295, %v1348
      %v1409 = vsel %vm1341, %v1296, %v1351
      %v1410 = vsel %vm1341, %v1297, %v1354
      %v1411 = vsel %vm1341, %v1298, %v1357
      %v1412 = vsel %vm1341, %v1299, %v1360
      %v1413 = vsel %vm1341, %v1300, %v1363
      %v1414 = vsel %vm1341, %v1301, %v1366
      %v1415 = vsel %vm1341, %v1302, %v1369
      %v1416 = vsel %vm1341, %v1303, %v1372
      %v1417 = vsel %vm1341, %v1304, %v1375
      %v1418 = vsel %vm1341, %v1305, %v1378
      %v1419 = vsel %vm1341, %v1306, %v1381
      %v1420 = vsel %vm1341, %v1307, %v1384
      %v1421 = vsel %vm1341, %v1308, %v1387
      %vm1422 = vcmask 1046528
      %v1423 = vrot.slane %v1246, 1
      %v1424 = vsel %vm1422, %v1293, %v1423
      %v1425 = vrot.slane %v1248, 1
      %v1426 = vsel %vm1422, %v1294, %v1425
      %v1427 = vrot.slane %v1250, 1
      %v1428 = vsel %vm1422, %v1295, %v1427
      %v1429 = vrot.slane %v1252, 1
      %v1430 = vsel %vm1422, %v1296, %v1429
      %v1431 = vrot.slane %v1254, 1
      %v1432 = vsel %vm1422, %v1297, %v1431
      %v1433 = vrot.slane %v1256, 1
      %v1434 = vsel %vm1422, %v1298, %v1433
      %v1435 = vrot.slane %v1258, 1
      %v1436 = vsel %vm1422, %v1299, %v1435
      %v1437 = vrot.slane %v1260, 1
      %v1438 = vsel %vm1422, %v1300, %v1437
      %v1439 = vrot.slane %v1262, 1
      %v1440 = vsel %vm1422, %v1301, %v1439
      %v1441 = vrot.slane %v1264, 1
      %v1442 = vsel %vm1422, %v1302, %v1441
      %v1443 = vrot.slane %v1266, 1
      %v1444 = vsel %vm1422, %v1303, %v1443
      %v1445 = vrot.slane %v1268, 1
      %v1446 = vsel %vm1422, %v1304, %v1445
      %v1447 = vrot.slane %v1270, 1
      %v1448 = vsel %vm1422, %v1305, %v1447
      %v1449 = vrot.slane %v1272, 1
      %v1450 = vsel %vm1422, %v1306, %v1449
      %v1451 = vrot.slane %v1274, 1
      %v1452 = vsel %vm1422, %v1307, %v1451
      %v1453 = vrot.slane %v1276, 1
      %v1454 = vsel %vm1422, %v1308, %v1453
      %v1487 = vsel %vm1422, %v1423, %v1343
      %v1488 = vsel %vm1422, %v1425, %v1346
      %v1489 = vsel %vm1422, %v1427, %v1349
      %v1490 = vsel %vm1422, %v1429, %v1352
      %v1491 = vsel %vm1422, %v1431, %v1355
      %v1492 = vsel %vm1422, %v1433, %v1358
      %v1493 = vsel %vm1422, %v1435, %v1361
      %v1494 = vsel %vm1422, %v1437, %v1364
      %v1495 = vsel %vm1422, %v1439, %v1367
      %v1496 = vsel %vm1422, %v1441, %v1370
      %v1497 = vsel %vm1422, %v1443, %v1373
      %v1498 = vsel %vm1422, %v1445, %v1376
      %v1499 = vsel %vm1422, %v1447, %v1379
      %v1500 = vsel %vm1422, %v1449, %v1382
      %v1501 = vsel %vm1422, %v1451, %v1385
      %v1502 = vsel %vm1422, %v1453, %v1388
      %1519 = vrot.lane.b32.xlu0 %v1406, 4
      %v1520 = vpop.permute.xlu0 %1519
      %1521 = vrot.lane.b32.xlu0 %v1344, 4
      %v1522 = vpop.permute.xlu0 %1521
      %1523 = vrot.lane.b32.xlu0 %v1407, 4
      %v1524 = vpop.permute.xlu0 %1523
      %1525 = vrot.lane.b32.xlu0 %v1347, 4
      %v1526 = vpop.permute.xlu0 %1525
      %1527 = vrot.lane.b32.xlu0 %v1408, 4
      %v1528 = vpop.permute.xlu0 %1527
      %1529 = vrot.lane.b32.xlu0 %v1350, 4
      %v1530 = vpop.permute.xlu0 %1529
      %1531 = vrot.lane.b32.xlu0 %v1409, 4
      %v1532 = vpop.permute.xlu0 %1531
      %1533 = vrot.lane.b32.xlu0 %v1353, 4
      %v1534 = vpop.permute.xlu0 %1533
      %1535 = vrot.lane.b32.xlu0 %v1410, 4
      %v1536 = vpop.permute.xlu0 %1535
      %1537 = vrot.lane.b32.xlu0 %v1356, 4
      %v1538 = vpop.permute.xlu0 %1537
      %1539 = vrot.lane.b32.xlu0 %v1411, 4
      %v1540 = vpop.permute.xlu0 %1539
      %1541 = vrot.lane.b32.xlu0 %v1359, 4
      %v1542 = vpop.permute.xlu0 %1541
      %1543 = vrot.lane.b32.xlu0 %v1412, 4
      %v1544 = vpop.permute.xlu0 %1543
      %1545 = vrot.lane.b32.xlu0 %v1362, 4
      %v1546 = vpop.permute.xlu0 %1545
      %1547 = vrot.lane.b32.xlu0 %v1413, 4
      %v1548 = vpop.permute.xlu0 %1547
      %1549 = vrot.lane.b32.xlu0 %v1365, 4
      %v1550 = vpop.permute.xlu0 %1549
      %1551 = vrot.lane.b32.xlu0 %v1414, 4
      %v1552 = vpop.permute.xlu0 %1551
      %1553 = vrot.lane.b32.xlu0 %v1368, 4
      %v1554 = vpop.permute.xlu0 %1553
      %1555 = vrot.lane.b32.xlu0 %v1415, 4
      %v1556 = vpop.permute.xlu0 %1555
      %1557 = vrot.lane.b32.xlu0 %v1371, 4
      %v1558 = vpop.permute.xlu0 %1557
      %1559 = vrot.lane.b32.xlu0 %v1416, 4
      %v1560 = vpop.permute.xlu0 %1559
      %1561 = vrot.lane.b32.xlu0 %v1374, 4
      %v1562 = vpop.permute.xlu0 %1561
      %1563 = vrot.lane.b32.xlu0 %v1417, 4
      %v1564 = vpop.permute.xlu0 %1563
      %1565 = vrot.lane.b32.xlu0 %v1377, 4
      %v1566 = vpop.permute.xlu0 %1565
      %1567 = vrot.lane.b32.xlu0 %v1418, 4
      %v1568 = vpop.permute.xlu0 %1567
      %1569 = vrot.lane.b32.xlu0 %v1380, 4
      %v1570 = vpop.permute.xlu0 %1569
      %1571 = vrot.lane.b32.xlu0 %v1419, 4
      %v1572 = vpop.permute.xlu0 %1571
      %1573 = vrot.lane.b32.xlu0 %v1383, 4
      %v1574 = vpop.permute.xlu0 %1573
      %1575 = vrot.lane.b32.xlu0 %v1420, 4
      %v1576 = vpop.permute.xlu0 %1575
      %1577 = vrot.lane.b32.xlu0 %v1386, 4
      %v1578 = vpop.permute.xlu0 %1577
      %1579 = vrot.lane.b32.xlu0 %v1421, 4
      %v1580 = vpop.permute.xlu0 %1579
      %1581 = vrot.lane.b32.xlu0 %v1389, 4
      %v1582 = vpop.permute.xlu0 %1581
      %v1615 = vadd.f32 %v1245, %v1520
      %v1616 = vadd.f32 %v1246, %v1522
      %v1617 = vadd.f32 %v1247, %v1524
      %v1618 = vadd.f32 %v1248, %v1526
      %v1619 = vadd.f32 %v1249, %v1528
      %v1620 = vadd.f32 %v1250, %v1530
      %v1621 = vadd.f32 %v1251, %v1532
      %v1622 = vadd.f32 %v1252, %v1534
      %v1623 = vadd.f32 %v1253, %v1536
      %v1624 = vadd.f32 %v1254, %v1538
      %v1625 = vadd.f32 %v1255, %v1540
      %v1626 = vadd.f32 %v1256, %v1542
      %v1627 = vadd.f32 %v1257, %v1544
      %v1628 = vadd.f32 %v1258, %v1546
      %v1629 = vadd.f32 %v1259, %v1548
      %v1630 = vadd.f32 %v1260, %v1550
      %v1631 = vadd.f32 %v1261, %v1552
      %v1632 = vadd.f32 %v1262, %v1554
      %v1633 = vadd.f32 %v1263, %v1556
      %v1634 = vadd.f32 %v1264, %v1558
      %v1635 = vadd.f32 %v1265, %v1560
      %v1636 = vadd.f32 %v1266, %v1562
      %v1637 = vadd.f32 %v1267, %v1564
      %v1638 = vadd.f32 %v1268, %v1566
      %v1639 = vadd.f32 %v1269, %v1568
      %v1640 = vadd.f32 %v1270, %v1570
      %v1641 = vadd.f32 %v1271, %v1572
      %v1642 = vadd.f32 %v1272, %v1574
      %v1643 = vadd.f32 %v1273, %v1576
      %v1644 = vadd.f32 %v1274, %v1578
      %v1645 = vadd.f32 %v1275, %v1580
      %v1646 = vadd.f32 %v1276, %v1582
      %1663 = vrot.lane.b32.xlu0 %v1424, 124
      %v1664 = vpop.permute.xlu0 %1663
      %1665 = vrot.lane.b32.xlu0 %v1487, 124
      %v1666 = vpop.permute.xlu0 %1665
      %1667 = vrot.lane.b32.xlu0 %v1426, 124
      %v1668 = vpop.permute.xlu0 %1667
      %1669 = vrot.lane.b32.xlu0 %v1488, 124
      %v1670 = vpop.permute.xlu0 %1669
      %1671 = vrot.lane.b32.xlu0 %v1428, 124
      %v1672 = vpop.permute.xlu0 %1671
      %1673 = vrot.lane.b32.xlu0 %v1489, 124
      %v1674 = vpop.permute.xlu0 %1673
      %1675 = vrot.lane.b32.xlu0 %v1430, 124
      %v1676 = vpop.permute.xlu0 %1675
      %1677 = vrot.lane.b32.xlu0 %v1490, 124
      %v1678 = vpop.permute.xlu0 %1677
      %1679 = vrot.lane.b32.xlu0 %v1432, 124
      %v1680 = vpop.permute.xlu0 %1679
      %1681 = vrot.lane.b32.xlu0 %v1491, 124
      %v1682 = vpop.permute.xlu0 %1681
      %1683 = vrot.lane.b32.xlu0 %v1434, 124
      %v1684 = vpop.permute.xlu0 %1683
      %1685 = vrot.lane.b32.xlu0 %v1492, 124
      %v1686 = vpop.permute.xlu0 %1685
      %1687 = vrot.lane.b32.xlu0 %v1436, 124
      %v1688 = vpop.permute.xlu0 %1687
      %1689 = vrot.lane.b32.xlu0 %v1493, 124
      %v1690 = vpop.permute.xlu0 %1689
      %1691 = vrot.lane.b32.xlu0 %v1438, 124
      %v1692 = vpop.permute.xlu0 %1691
      %1693 = vrot.lane.b32.xlu0 %v1494, 124
      %v1694 = vpop.permute.xlu0 %1693
      %1695 = vrot.lane.b32.xlu0 %v1440, 124
      %v1696 = vpop.permute.xlu0 %1695
      %1697 = vrot.lane.b32.xlu0 %v1495, 124
      %v1698 = vpop.permute.xlu0 %1697
      %1699 = vrot.lane.b32.xlu0 %v1442, 124
      %v1700 = vpop.permute.xlu0 %1699
      %1701 = vrot.lane.b32.xlu0 %v1496, 124
      %v1702 = vpop.permute.xlu0 %1701
      %1703 = vrot.lane.b32.xlu0 %v1444, 124
      %v1704 = vpop.permute.xlu0 %1703
      %1705 = vrot.lane.b32.xlu0 %v1497, 124
      %v1706 = vpop.permute.xlu0 %1705
      %1707 = vrot.lane.b32.xlu0 %v1446, 124
      %v1708 = vpop.permute.xlu0 %1707
      %1709 = vrot.lane.b32.xlu0 %v1498, 124
      %v1710 = vpop.permute.xlu0 %1709
      %1711 = vrot.lane.b32.xlu0 %v1448, 124
      %v1712 = vpop.permute.xlu0 %1711
      %1713 = vrot.lane.b32.xlu0 %v1499, 124
      %v1714 = vpop.permute.xlu0 %1713
      %1715 = vrot.lane.b32.xlu0 %v1450, 124
      %v1716 = vpop.permute.xlu0 %1715
      %1717 = vrot.lane.b32.xlu0 %v1500, 124
      %v1718 = vpop.permute.xlu0 %1717
      %1719 = vrot.lane.b32.xlu0 %v1452, 124
      %v1720 = vpop.permute.xlu0 %1719
      %1721 = vrot.lane.b32.xlu0 %v1501, 124
      %v1722 = vpop.permute.xlu0 %1721
      %1723 = vrot.lane.b32.xlu0 %v1454, 124
      %v1724 = vpop.permute.xlu0 %1723
      %1725 = vrot.lane.b32.xlu0 %v1502, 124
      %v1726 = vpop.permute.xlu0 %1725
      %v1759 = vadd.f32 %v1615, %v1664
      %v1760 = vadd.f32 %v1616, %v1666
      %v1761 = vadd.f32 %v1617, %v1668
      %v1762 = vadd.f32 %v1618, %v1670
      %v1763 = vadd.f32 %v1619, %v1672
      %v1764 = vadd.f32 %v1620, %v1674
      %v1765 = vadd.f32 %v1621, %v1676
      %v1766 = vadd.f32 %v1622, %v1678
      %v1767 = vadd.f32 %v1623, %v1680
      %v1768 = vadd.f32 %v1624, %v1682
      %v1769 = vadd.f32 %v1625, %v1684
      %v1770 = vadd.f32 %v1626, %v1686
      %v1771 = vadd.f32 %v1627, %v1688
      %v1772 = vadd.f32 %v1628, %v1690
      %v1773 = vadd.f32 %v1629, %v1692
      %v1774 = vadd.f32 %v1630, %v1694
      %v1775 = vadd.f32 %v1631, %v1696
      %v1776 = vadd.f32 %v1632, %v1698
      %v1777 = vadd.f32 %v1633, %v1700
      %v1778 = vadd.f32 %v1634, %v1702
      %v1779 = vadd.f32 %v1635, %v1704
      %v1780 = vadd.f32 %v1636, %v1706
      %v1781 = vadd.f32 %v1637, %v1708
      %v1782 = vadd.f32 %v1638, %v1710
      %v1783 = vadd.f32 %v1639, %v1712
      %v1784 = vadd.f32 %v1640, %v1714
      %v1785 = vadd.f32 %v1641, %v1716
      %v1786 = vadd.f32 %v1642, %v1718
      %v1787 = vadd.f32 %v1643, %v1720
      %v1788 = vadd.f32 %v1644, %v1722
      %v1789 = vadd.f32 %v1645, %v1724
      %v1790 = vadd.f32 %v1646, %v1726
      %v1791 = vld [vmem:[%s446] sm:$0x1]
      %v1793 = vlaneseq
      %v1794 = vshrl.u32 %v1793, 7
      %v1795 = vsub.s32 0, %v1794
      %v1796 = vrot.slane %v1791, %v1795
      %1797 = vrot.lane.b32.xlu0 %v1796, 4
      %v1798 = vpop.permute.xlu0 %1797
      %v1800 = vadd.f32 %v1759, %v1798
      %v1801 = vadd.f32 %v1760, %v1798
      %v1802 = vadd.f32 %v1761, %v1798
      %v1803 = vadd.f32 %v1762, %v1798
      %v1804 = vadd.f32 %v1763, %v1798
      %v1805 = vadd.f32 %v1764, %v1798
      %v1806 = vadd.f32 %v1765, %v1798
      %v1807 = vadd.f32 %v1766, %v1798
      %v1808 = vadd.f32 %v1767, %v1798
      %v1809 = vadd.f32 %v1768, %v1798
      %v1810 = vadd.f32 %v1769, %v1798
      %v1811 = vadd.f32 %v1770, %v1798
      %v1812 = vadd.f32 %v1771, %v1798
      %v1813 = vadd.f32 %v1772, %v1798
      %v1814 = vadd.f32 %v1773, %v1798
      %v1815 = vadd.f32 %v1774, %v1798
      %v1816 = vadd.f32 %v1775, %v1798
      %v1817 = vadd.f32 %v1776, %v1798
      %v1818 = vadd.f32 %v1777, %v1798
      %v1819 = vadd.f32 %v1778, %v1798
      %v1820 = vadd.f32 %v1779, %v1798
      %v1821 = vadd.f32 %v1780, %v1798
      %v1822 = vadd.f32 %v1781, %v1798
      %v1823 = vadd.f32 %v1782, %v1798
      %v1824 = vadd.f32 %v1783, %v1798
      %v1825 = vadd.f32 %v1784, %v1798
      %v1826 = vadd.f32 %v1785, %v1798
      %v1827 = vadd.f32 %v1786, %v1798
      %v1828 = vadd.f32 %v1787, %v1798
      %v1829 = vadd.f32 %v1788, %v1798
      %v1830 = vadd.f32 %v1789, %v1798
      %v1831 = vadd.f32 %v1790, %v1798
      %vm1832 = vcmask 64544
      %v1833 = vsel %vm1832, %v1800, 0.0
      %v1834 = vsel %vm1832, %v1801, 0.0
      %v1835 = vadd.f32 %v1833, %v1834
      %v1836 = vsel %vm1832, %v1802, 0.0
      %v1837 = vadd.f32 %v1835, %v1836
      %v1838 = vsel %vm1832, %v1803, 0.0
      %v1839 = vadd.f32 %v1837, %v1838
      %v1840 = vsel %vm1832, %v1804, 0.0
      %v1841 = vadd.f32 %v1839, %v1840
      %v1842 = vsel %vm1832, %v1805, 0.0
      %v1843 = vadd.f32 %v1841, %v1842
      %v1844 = vsel %vm1832, %v1806, 0.0
      %v1845 = vadd.f32 %v1843, %v1844
      %v1846 = vsel %vm1832, %v1807, 0.0
      %v1847 = vadd.f32 %v1845, %v1846
      %v1848 = vsel %vm1832, %v1808, 0.0
      %v1849 = vadd.f32 %v1847, %v1848
      %v1850 = vsel %vm1832, %v1809, 0.0
      %v1851 = vadd.f32 %v1849, %v1850
      %v1852 = vsel %vm1832, %v1810, 0.0
      %v1853 = vadd.f32 %v1851, %v1852
      %v1854 = vsel %vm1832, %v1811, 0.0
      %v1855 = vadd.f32 %v1853, %v1854
      %v1856 = vsel %vm1832, %v1812, 0.0
      %v1857 = vadd.f32 %v1855, %v1856
      %v1858 = vsel %vm1832, %v1813, 0.0
      %v1859 = vadd.f32 %v1857, %v1858
      %v1860 = vsel %vm1832, %v1814, 0.0
      %v1861 = vadd.f32 %v1859, %v1860
      %v1862 = vsel %vm1832, %v1815, 0.0
      %v1863 = vadd.f32 %v1861, %v1862
      %v1864 = vsel %vm1832, %v1816, 0.0
      %v1865 = vadd.f32 %v1863, %v1864
      %v1866 = vsel %vm1832, %v1817, 0.0
      %v1867 = vadd.f32 %v1865, %v1866
      %v1868 = vsel %vm1832, %v1818, 0.0
      %v1869 = vadd.f32 %v1867, %v1868
      %v1870 = vsel %vm1832, %v1819, 0.0
      %v1871 = vadd.f32 %v1869, %v1870
      %v1872 = vsel %vm1832, %v1820, 0.0
      %v1873 = vadd.f32 %v1871, %v1872
      %v1874 = vsel %vm1832, %v1821, 0.0
      %v1875 = vadd.f32 %v1873, %v1874
      %v1876 = vsel %vm1832, %v1822, 0.0
      %v1877 = vadd.f32 %v1875, %v1876
      %v1878 = vsel %vm1832, %v1823, 0.0
      %v1879 = vadd.f32 %v1877, %v1878
      %v1880 = vsel %vm1832, %v1824, 0.0
      %v1881 = vadd.f32 %v1879, %v1880
      %v1882 = vsel %vm1832, %v1825, 0.0
      %v1883 = vadd.f32 %v1881, %v1882
      %v1884 = vsel %vm1832, %v1826, 0.0
      %v1885 = vadd.f32 %v1883, %v1884
      %v1886 = vsel %vm1832, %v1827, 0.0
      %v1887 = vadd.f32 %v1885, %v1886
      %v1888 = vsel %vm1832, %v1828, 0.0
      %v1889 = vadd.f32 %v1887, %v1888
      %v1890 = vsel %vm1832, %v1829, 0.0
      %v1891 = vadd.f32 %v1889, %v1890
      %v1892 = vsel %vm1832, %v1830, 0.0
      %v1893 = vadd.f32 %v1891, %v1892
      %v1894 = vsel %vm1832, %v1831, 0.0
      %v1895 = vadd.f32 %v1893, %v1894
      %v1896 = vrot.slane %v1895, 4
      %v1897 = vadd.f32 %v1895, %v1896
      %v1898 = vrot.slane %v1897, 2
      %v1899 = vadd.f32 %v1897, %v1898
      %v1900 = vrot.slane %v1899, 1
      %v1901 = vadd.f32 %v1899, %v1900
      %1903 = vrot.lane.b32.xlu0 %v1901, 124
      %v1904 = vpop.permute.xlu0 %1903
      %vm1906 = vcmask 24576
      %1907 = vst.msk [vmem:[%s469] sm:$0x1] %vm1906, %v1904
      %v1908 = vmul.f32 %v1800, %v1800
      %v1909 = vmul.f32 %v1801, %v1801
      %v1910 = vmul.f32 %v1802, %v1802
      %v1911 = vmul.f32 %v1803, %v1803
      %v1912 = vmul.f32 %v1804, %v1804
      %v1913 = vmul.f32 %v1805, %v1805
      %v1914 = vmul.f32 %v1806, %v1806
      %v1915 = vmul.f32 %v1807, %v1807
      %v1916 = vmul.f32 %v1808, %v1808
      %v1917 = vmul.f32 %v1809, %v1809
      %v1918 = vmul.f32 %v1810, %v1810
      %v1919 = vmul.f32 %v1811, %v1811
      %v1920 = vmul.f32 %v1812, %v1812
      %v1921 = vmul.f32 %v1813, %v1813
      %v1922 = vmul.f32 %v1814, %v1814
      %v1923 = vmul.f32 %v1815, %v1815
      %v1924 = vmul.f32 %v1816, %v1816
      %v1925 = vmul.f32 %v1817, %v1817
      %v1926 = vmul.f32 %v1818, %v1818
      %v1927 = vmul.f32 %v1819, %v1819
      %v1928 = vmul.f32 %v1820, %v1820
      %v1929 = vmul.f32 %v1821, %v1821
      %v1930 = vmul.f32 %v1822, %v1822
      %v1931 = vmul.f32 %v1823, %v1823
      %v1932 = vmul.f32 %v1824, %v1824
      %v1933 = vmul.f32 %v1825, %v1825
      %v1934 = vmul.f32 %v1826, %v1826
      %v1935 = vmul.f32 %v1827, %v1827
      %v1936 = vmul.f32 %v1828, %v1828
      %v1937 = vmul.f32 %v1829, %v1829
      %v1938 = vmul.f32 %v1830, %v1830
      %v1939 = vmul.f32 %v1831, %v1831
      %v1940 = vsel %vm1832, %v1908, 0.0
      %v1941 = vsel %vm1832, %v1909, 0.0
      %v1942 = vadd.f32 %v1940, %v1941
      %v1943 = vsel %vm1832, %v1910, 0.0
      %v1944 = vadd.f32 %v1942, %v1943
      %v1945 = vsel %vm1832, %v1911, 0.0
      %v1946 = vadd.f32 %v1944, %v1945
      %v1947 = vsel %vm1832, %v1912, 0.0
      %v1948 = vadd.f32 %v1946, %v1947
      %v1949 = vsel %vm1832, %v1913, 0.0
      %v1950 = vadd.f32 %v1948, %v1949
      %v1951 = vsel %vm1832, %v1914, 0.0
      %v1952 = vadd.f32 %v1950, %v1951
      %v1953 = vsel %vm1832, %v1915, 0.0
      %v1954 = vadd.f32 %v1952, %v1953
      %v1955 = vsel %vm1832, %v1916, 0.0
      %v1956 = vadd.f32 %v1954, %v1955
      %v1957 = vsel %vm1832, %v1917, 0.0
      %v1958 = vadd.f32 %v1956, %v1957
      %v1959 = vsel %vm1832, %v1918, 0.0
      %v1960 = vadd.f32 %v1958, %v1959
      %v1961 = vsel %vm1832, %v1919, 0.0
      %v1962 = vadd.f32 %v1960, %v1961
      %v1963 = vsel %vm1832, %v1920, 0.0
      %v1964 = vadd.f32 %v1962, %v1963
      %v1965 = vsel %vm1832, %v1921, 0.0
      %v1966 = vadd.f32 %v1964, %v1965
      %v1967 = vsel %vm1832, %v1922, 0.0
      %v1968 = vadd.f32 %v1966, %v1967
      %v1969 = vsel %vm1832, %v1923, 0.0
      %v1970 = vadd.f32 %v1968, %v1969
      %v1971 = vsel %vm1832, %v1924, 0.0
      %v1972 = vadd.f32 %v1970, %v1971
      %v1973 = vsel %vm1832, %v1925, 0.0
      %v1974 = vadd.f32 %v1972, %v1973
      %v1975 = vsel %vm1832, %v1926, 0.0
      %v1976 = vadd.f32 %v1974, %v1975
      %v1977 = vsel %vm1832, %v1927, 0.0
      %v1978 = vadd.f32 %v1976, %v1977
      %v1979 = vsel %vm1832, %v1928, 0.0
      %v1980 = vadd.f32 %v1978, %v1979
      %v1981 = vsel %vm1832, %v1929, 0.0
      %v1982 = vadd.f32 %v1980, %v1981
      %v1983 = vsel %vm1832, %v1930, 0.0
      %v1984 = vadd.f32 %v1982, %v1983
      %v1985 = vsel %vm1832, %v1931, 0.0
      %v1986 = vadd.f32 %v1984, %v1985
      %v1987 = vsel %vm1832, %v1932, 0.0
      %v1988 = vadd.f32 %v1986, %v1987
      %v1989 = vsel %vm1832, %v1933, 0.0
      %v1990 = vadd.f32 %v1988, %v1989
      %v1991 = vsel %vm1832, %v1934, 0.0
      %v1992 = vadd.f32 %v1990, %v1991
      %v1993 = vsel %vm1832, %v1935, 0.0
      %v1994 = vadd.f32 %v1992, %v1993
      %v1995 = vsel %vm1832, %v1936, 0.0
      %v1996 = vadd.f32 %v1994, %v1995
      %v1997 = vsel %vm1832, %v1937, 0.0
      %v1998 = vadd.f32 %v1996, %v1997
      %v1999 = vsel %vm1832, %v1938, 0.0
      %v2000 = vadd.f32 %v1998, %v1999
      %v2001 = vsel %vm1832, %v1939, 0.0
      %v2002 = vadd.f32 %v2000, %v2001
      %v2003 = vrot.slane %v2002, 4
      %v2004 = vadd.f32 %v2002, %v2003
      %v2005 = vrot.slane %v2004, 2
      %v2006 = vadd.f32 %v2004, %v2005
      %v2007 = vrot.slane %v2006, 1
      %v2008 = vadd.f32 %v2006, %v2007
      %2010 = vrot.lane.b32.xlu0 %v2008, 124
      %v2011 = vpop.permute.xlu0 %2010
      %2013 = vst.msk [vmem:[%s478] sm:$0x1] %vm1906, %v2011
      %v2014 = vpack.c.bf16 %v1801, %v1800
      %v2015 = vpack.c.bf16 %v1803, %v1802
      %v2016 = vpack.c.bf16 %v1805, %v1804
      %v2017 = vpack.c.bf16 %v1807, %v1806
      %v2018 = vpack.c.bf16 %v1809, %v1808
      %v2019 = vpack.c.bf16 %v1811, %v1810
      %v2020 = vpack.c.bf16 %v1813, %v1812
      %v2021 = vpack.c.bf16 %v1815, %v1814
      %v2022 = vpack.c.bf16 %v1817, %v1816
      %v2023 = vpack.c.bf16 %v1819, %v1818
      %v2024 = vpack.c.bf16 %v1821, %v1820
      %v2025 = vpack.c.bf16 %v1823, %v1822
      %v2026 = vpack.c.bf16 %v1825, %v1824
      %v2027 = vpack.c.bf16 %v1827, %v1826
      %v2028 = vpack.c.bf16 %v1829, %v1828
      %v2029 = vpack.c.bf16 %v1831, %v1830
      %v2046 = vunpack.c.l.b16 %v2014
      %v2047 = vunpack.c.h.b16 %v2014
      %v2048 = vunpack.c.l.b16 %v2015
      %v2049 = vunpack.c.h.b16 %v2015
      %v2050 = vunpack.c.l.b16 %v2016
      %v2051 = vunpack.c.h.b16 %v2016
      %v2052 = vunpack.c.l.b16 %v2017
      %v2053 = vunpack.c.h.b16 %v2017
      %v2054 = vunpack.c.l.b16 %v2018
      %v2055 = vunpack.c.h.b16 %v2018
      %v2056 = vunpack.c.l.b16 %v2019
      %v2057 = vunpack.c.h.b16 %v2019
      %v2058 = vunpack.c.l.b16 %v2020
      %v2059 = vunpack.c.h.b16 %v2020
      %v2060 = vunpack.c.l.b16 %v2021
      %v2061 = vunpack.c.h.b16 %v2021
      %v2062 = vunpack.c.l.b16 %v2022
      %v2063 = vunpack.c.h.b16 %v2022
      %v2064 = vunpack.c.l.b16 %v2023
      %v2065 = vunpack.c.h.b16 %v2023
      %v2066 = vunpack.c.l.b16 %v2024
      %v2067 = vunpack.c.h.b16 %v2024
      %v2068 = vunpack.c.l.b16 %v2025
      %v2069 = vunpack.c.h.b16 %v2025
      %v2070 = vunpack.c.l.b16 %v2026
      %v2071 = vunpack.c.h.b16 %v2026
      %v2072 = vunpack.c.l.b16 %v2027
      %v2073 = vunpack.c.h.b16 %v2027
      %v2074 = vunpack.c.l.b16 %v2028
      %v2075 = vunpack.c.h.b16 %v2028
      %v2076 = vunpack.c.l.b16 %v2029
      %v2077 = vunpack.c.h.b16 %v2029
      %v2078 = vpack.c.b16 %v2046, %v2046
      %v2079 = vpack.c.b16 %v2047, %v2047
      %v2080 = vpack.c.b16 %v2048, %v2048
      %v2081 = vpack.c.b16 %v2049, %v2049
      %v2082 = vpack.c.b16 %v2050, %v2050
      %v2083 = vpack.c.b16 %v2051, %v2051
      %v2084 = vpack.c.b16 %v2052, %v2052
      %v2085 = vpack.c.b16 %v2053, %v2053
      %v2086 = vpack.c.b16 %v2054, %v2054
      %v2087 = vpack.c.b16 %v2055, %v2055
      %v2088 = vpack.c.b16 %v2056, %v2056
      %v2089 = vpack.c.b16 %v2057, %v2057
      %v2090 = vpack.c.b16 %v2058, %v2058
      %v2091 = vpack.c.b16 %v2059, %v2059
      %v2092 = vpack.c.b16 %v2060, %v2060
      %v2093 = vpack.c.b16 %v2061, %v2061
      %v2094 = vpack.c.b16 %v2062, %v2062
      %v2095 = vpack.c.b16 %v2063, %v2063
      %v2096 = vpack.c.b16 %v2064, %v2064
      %v2097 = vpack.c.b16 %v2065, %v2065
      %v2098 = vpack.c.b16 %v2066, %v2066
      %v2099 = vpack.c.b16 %v2067, %v2067
      %v2100 = vpack.c.b16 %v2068, %v2068
      %v2101 = vpack.c.b16 %v2069, %v2069
      %v2102 = vpack.c.b16 %v2070, %v2070
      %v2103 = vpack.c.b16 %v2071, %v2071
      %v2104 = vpack.c.b16 %v2072, %v2072
      %v2105 = vpack.c.b16 %v2073, %v2073
      %v2106 = vpack.c.b16 %v2074, %v2074
      %v2107 = vpack.c.b16 %v2075, %v2075
      %v2108 = vpack.c.b16 %v2076, %v2076
      %v2109 = vpack.c.b16 %v2077, %v2077
      %2110 = vrot.lane.b32.xlu0 %v2078, 124
      %v2111 = vpop.permute.xlu0 %2110
      %2112 = vrot.lane.b32.xlu0 %v2079, 124
      %v2113 = vpop.permute.xlu0 %2112
      %2114 = vrot.lane.b32.xlu0 %v2080, 124
      %v2115 = vpop.permute.xlu0 %2114
      %2116 = vrot.lane.b32.xlu0 %v2081, 124
      %v2117 = vpop.permute.xlu0 %2116
      %2118 = vrot.lane.b32.xlu0 %v2082, 124
      %v2119 = vpop.permute.xlu0 %2118
      %2120 = vrot.lane.b32.xlu0 %v2083, 124
      %v2121 = vpop.permute.xlu0 %2120
      %2122 = vrot.lane.b32.xlu0 %v2084, 124
      %v2123 = vpop.permute.xlu0 %2122
      %2124 = vrot.lane.b32.xlu0 %v2085, 124
      %v2125 = vpop.permute.xlu0 %2124
      %2126 = vrot.lane.b32.xlu0 %v2086, 124
      %v2127 = vpop.permute.xlu0 %2126
      %2128 = vrot.lane.b32.xlu0 %v2087, 124
      %v2129 = vpop.permute.xlu0 %2128
      %2130 = vrot.lane.b32.xlu0 %v2088, 124
      %v2131 = vpop.permute.xlu0 %2130
      %2132 = vrot.lane.b32.xlu0 %v2089, 124
      %v2133 = vpop.permute.xlu0 %2132
      %2134 = vrot.lane.b32.xlu0 %v2090, 124
      %v2135 = vpop.permute.xlu0 %2134
      %2136 = vrot.lane.b32.xlu0 %v2091, 124
      %v2137 = vpop.permute.xlu0 %2136
      %2138 = vrot.lane.b32.xlu0 %v2092, 124
      %v2139 = vpop.permute.xlu0 %2138
      %2140 = vrot.lane.b32.xlu0 %v2093, 124
      %v2141 = vpop.permute.xlu0 %2140
      %2142 = vrot.lane.b32.xlu0 %v2094, 124
      %v2143 = vpop.permute.xlu0 %2142
      %2144 = vrot.lane.b32.xlu0 %v2095, 124
      %v2145 = vpop.permute.xlu0 %2144
      %2146 = vrot.lane.b32.xlu0 %v2096, 124
      %v2147 = vpop.permute.xlu0 %2146
      %2148 = vrot.lane.b32.xlu0 %v2097, 124
      %v2149 = vpop.permute.xlu0 %2148
      %2150 = vrot.lane.b32.xlu0 %v2098, 124
      %v2151 = vpop.permute.xlu0 %2150
      %2152 = vrot.lane.b32.xlu0 %v2099, 124
      %v2153 = vpop.permute.xlu0 %2152
      %2154 = vrot.lane.b32.xlu0 %v2100, 124
      %v2155 = vpop.permute.xlu0 %2154
      %2156 = vrot.lane.b32.xlu0 %v2101, 124
      %v2157 = vpop.permute.xlu0 %2156
      %2158 = vrot.lane.b32.xlu0 %v2102, 124
      %v2159 = vpop.permute.xlu0 %2158
      %2160 = vrot.lane.b32.xlu0 %v2103, 124
      %v2161 = vpop.permute.xlu0 %2160
      %2162 = vrot.lane.b32.xlu0 %v2104, 124
      %v2163 = vpop.permute.xlu0 %2162
      %2164 = vrot.lane.b32.xlu0 %v2105, 124
      %v2165 = vpop.permute.xlu0 %2164
      %2166 = vrot.lane.b32.xlu0 %v2106, 124
      %v2167 = vpop.permute.xlu0 %2166
      %2168 = vrot.lane.b32.xlu0 %v2107, 124
      %v2169 = vpop.permute.xlu0 %2168
      %2170 = vrot.lane.b32.xlu0 %v2108, 124
      %v2171 = vpop.permute.xlu0 %2170
      %2172 = vrot.lane.b32.xlu0 %v2109, 124
      %v2173 = vpop.permute.xlu0 %2172
      %vm2206 = vcmask 27648
      %2207 = vst.msk [vmem:[%s459] sm:$0xf] %vm2206, %v2111
      %2208 = vst.msk [vmem:[%s459 + $0x4] sm:$0xf] %vm2206, %v2113
      %2209 = vst.msk [vmem:[%s459 + $0x8] sm:$0xf] %vm2206, %v2115
      %2210 = vst.msk [vmem:[%s459 + $0xc] sm:$0xf] %vm2206, %v2117
      %2211 = vst.msk [vmem:[%s459 + $0x10] sm:$0xf] %vm2206, %v2119
      %2212 = vst.msk [vmem:[%s459 + $0x14] sm:$0xf] %vm2206, %v2121
      %2213 = vst.msk [vmem:[%s459 + $0x18] sm:$0xf] %vm2206, %v2123
      %2214 = vst.msk [vmem:[%s459 + $0x1c] sm:$0xf] %vm2206, %v2125
      %2215 = vst.msk [vmem:[%s459 + $0x20] sm:$0xf] %vm2206, %v2127
      %2216 = vst.msk [vmem:[%s459 + $0x24] sm:$0xf] %vm2206, %v2129
      %2217 = vst.msk [vmem:[%s459 + $0x28] sm:$0xf] %vm2206, %v2131
      %2218 = vst.msk [vmem:[%s459 + $0x2c] sm:$0xf] %vm2206, %v2133
      %2219 = vst.msk [vmem:[%s459 + $0x30] sm:$0xf] %vm2206, %v2135
      %2220 = vst.msk [vmem:[%s459 + $0x34] sm:$0xf] %vm2206, %v2137
      %2221 = vst.msk [vmem:[%s459 + $0x38] sm:$0xf] %vm2206, %v2139
      %2222 = vst.msk [vmem:[%s459 + $0x3c] sm:$0xf] %vm2206, %v2141
      %2223 = vst.msk [vmem:[%s459 + $0x40] sm:$0xf] %vm2206, %v2143
      %2224 = vst.msk [vmem:[%s459 + $0x44] sm:$0xf] %vm2206, %v2145
      %2225 = vst.msk [vmem:[%s459 + $0x48] sm:$0xf] %vm2206, %v2147
      %2226 = vst.msk [vmem:[%s459 + $0x4c] sm:$0xf] %vm2206, %v2149
      %2227 = vst.msk [vmem:[%s459 + $0x50] sm:$0xf] %vm2206, %v2151
      %2228 = vst.msk [vmem:[%s459 + $0x54] sm:$0xf] %vm2206, %v2153
      %2229 = vst.msk [vmem:[%s459 + $0x58] sm:$0xf] %vm2206, %v2155
      %2230 = vst.msk [vmem:[%s459 + $0x5c] sm:$0xf] %vm2206, %v2157
      %2231 = vst.msk [vmem:[%s459 + $0x60] sm:$0xf] %vm2206, %v2159
      %2232 = vst.msk [vmem:[%s459 + $0x64] sm:$0xf] %vm2206, %v2161
      %2233 = vst.msk [vmem:[%s459 + $0x68] sm:$0xf] %vm2206, %v2163
      %2234 = vst.msk [vmem:[%s459 + $0x6c] sm:$0xf] %vm2206, %v2165
      %2235 = vst.msk [vmem:[%s459 + $0x70] sm:$0xf] %vm2206, %v2167
      %2236 = vst.msk [vmem:[%s459 + $0x74] sm:$0xf] %vm2206, %v2169
      %2237 = vst.msk [vmem:[%s459 + $0x78] sm:$0xf] %vm2206, %v2171
      %2238 = vst.msk [vmem:[%s459 + $0x7c] sm:$0xf] %vm2206, %v2173
      %s2239 = smul.u32 16, %s27
      %p2240 = scmp.lt.s32.totalorder %s25, 1
      %s2241 = scalar_select %p2240, %s25, 1
      %p2242 = scmp.lt.s32.totalorder %s2239, 15
      %s2243 = scalar_select %p2242, %s2239, 15
      %p2244 = scmp.lt.s32.totalorder %s26, 0
      %s2245 = scalar_select %p2244, %s26, 0
      %s2246 = smul.addr %s2243, 2
      %s2247 = sadd.s32 %s2245, %s2246
      %s2248 = smul.addr %s2241, 32
      %s2249 = sadd.s32 %s2247, %s2248
      %s2250 = smul.addr %s2249, 4
      %s2251 = scalar_lea.vmem %s6, %s2250
      %p2252 = scmp.lt.s32.totalorder %s25, 1
      %s2253 = scalar_select %p2252, %s25, 1
      %p2254 = scmp.lt.s32.totalorder %s27, 0
      %s2255 = scalar_select %p2254, %s27, 0
      %p2256 = scmp.lt.s32.totalorder %s26, 0
      %s2257 = scalar_select %p2256, %s26, 0
      %s2258 = sadd.s32 %s2257, %s2255
      %s2259 = sadd.s32 %s2258, %s2253
      %s2260 = scalar_lea.vmem %s7, %s2259
      %p2261 = scmp.lt.s32.totalorder %s25, 1
      %s2262 = scalar_select %p2261, %s25, 1
      %p2263 = scmp.lt.s32.totalorder %s27, 0
      %s2264 = scalar_select %p2263, %s27, 0
      %p2265 = scmp.lt.s32.totalorder %s26, 0
      %s2266 = scalar_select %p2265, %s26, 0
      %s2267 = sadd.s32 %s2266, %s2264
      %s2268 = sadd.s32 %s2267, %s2262
      %s2269 = scalar_lea.vmem %s8, %s2268
      // Predicated region
      $region45: #{decoder_block_forward.6} parent=43 // pred_check
        %p2270 = pneg %p211
      $region46: #{decoder_block_forward.6} parent=43 // pred_check_branch
        %2272 = sbr.rel (%p2270) target = $region48
      $region47: #{decoder_block_forward.6} parent=43 // pred_region
        %s2273 = smul.u32 16, %s27
      $region48: #{decoder_block_forward.6} parent=43 // pred_fallthru
        _
      // Predicated region
      $region49: #{decoder_block_forward.6} parent=43 // pred_check
        %p2274 = pneg %p241
      $region50: #{decoder_block_forward.6} parent=43 // pred_check_branch
        %2276 = sbr.rel (%p2274) target = $region52
      $region51: #{decoder_block_forward.6} parent=43 // pred_region
        _
      $region52: #{decoder_block_forward.6} parent=43 // pred_fallthru
        _
      // Predicated region
      $region53: #{decoder_block_forward.6} parent=43 // pred_check
        %p2277 = pneg %p271
      $region54: #{decoder_block_forward.6} parent=43 // pred_check_branch
        %2279 = sbr.rel (%p2277) target = $region56
      $region55: #{decoder_block_forward.6} parent=43 // pred_region
        _
      $region56: #{decoder_block_forward.6} parent=43 // pred_fallthru
        _
    $region44: #{decoder_block_forward.6} parent=5 // pred_fallthru
      _
    %p2280 = scmp.le.s32.totalorder 2, %s15
    // Predicated region
    $region57: #{decoder_block_forward.6} parent=5 // pred_check
      %p2281 = pneg %p2280
    $region58: #{decoder_block_forward.6} parent=5 // pred_check_branch
      %2283 = sbr.rel (%p2281) target = $region60
    $region59: #{decoder_block_forward.6} parent=5 // pred_region
      %s2284 = ssub.s32 %s15, 2
      // Predicated region
      $region61: #{decoder_block_forward.6} parent=59 // pred_check
        %p2285 = pneg %p217
      $region62: #{decoder_block_forward.6} parent=59 // pred_check_branch
        %2287 = sbr.rel (%p2285) target = $region64
      $region63: #{decoder_block_forward.6} parent=59 // pred_region
        %s2288 = smul.u32 16, %s30
        %p2289 = scmp.lt.s32.totalorder %s28, 1
        %s2290 = scalar_select %p2289, %s28, 1
        %p2291 = scmp.lt.s32.totalorder %s2288, 15
        %s2292 = scalar_select %p2291, %s2288, 15
        %p2293 = scmp.lt.s32.totalorder %s29, 0
        %s2294 = scalar_select %p2293, %s29, 0
        %s2295 = smul.addr %s2292, 2
        %s2296 = sadd.s32 %s2294, %s2295
        %s2297 = smul.addr %s2290, 32
        %s2298 = sadd.s32 %s2296, %s2297
        %s2299 = smul.addr %s2298, 4
        %s2300 = scalar_lea.vmem %s6, %s2299
      $region64: #{decoder_block_forward.6} parent=59 // pred_fallthru
        _
      // Predicated region
      $region65: #{decoder_block_forward.6} parent=59 // pred_check
        %p2301 = pneg %p247
      $region66: #{decoder_block_forward.6} parent=59 // pred_check_branch
        %2303 = sbr.rel (%p2301) target = $region68
      $region67: #{decoder_block_forward.6} parent=59 // pred_region
        %p2304 = scmp.lt.s32.totalorder %s28, 1
        %s2305 = scalar_select %p2304, %s28, 1
        %p2306 = scmp.lt.s32.totalorder %s30, 0
        %s2307 = scalar_select %p2306, %s30, 0
        %p2308 = scmp.lt.s32.totalorder %s29, 0
        %s2309 = scalar_select %p2308, %s29, 0
        %s2310 = sadd.s32 %s2309, %s2307
        %s2311 = sadd.s32 %s2310, %s2305
        %s2312 = scalar_lea.vmem %s7, %s2311
      $region68: #{decoder_block_forward.6} parent=59 // pred_fallthru
        _
      // Predicated region
      $region69: #{decoder_block_forward.6} parent=59 // pred_check
        %p2313 = pneg %p277
      $region70: #{decoder_block_forward.6} parent=59 // pred_check_branch
        %2315 = sbr.rel (%p2313) target = $region72
      $region71: #{decoder_block_forward.6} parent=59 // pred_region
        %p2316 = scmp.lt.s32.totalorder %s28, 1
        %s2317 = scalar_select %p2316, %s28, 1
        %p2318 = scmp.lt.s32.totalorder %s30, 0
        %s2319 = scalar_select %p2318, %s30, 0
        %p2320 = scmp.lt.s32.totalorder %s29, 0
        %s2321 = scalar_select %p2320, %s29, 0
        %s2322 = sadd.s32 %s2321, %s2319
        %s2323 = sadd.s32 %s2322, %s2317
        %s2324 = scalar_lea.vmem %s8, %s2323
      $region72: #{decoder_block_forward.6} parent=59 // pred_fallthru
        _
    $region60: #{decoder_block_forward.6} parent=5 // pred_fallthru
      _
  $region6: #{decoder_block_forward.6} parent=0 // loop_footer
    %s19 = sadd.s32 1, %s15
  $region7: #{decoder_block_forward.6} parent=0 // loop_footer_branch
    %14 = sbr.rel target = $region3
  $region8: #{decoder_block_forward.6} parent=0 // loop_exit
    _

// kernel: decoder_block_forward.5
$region0: #{decoder_block_forward.5}
  #allocation0 [shape = 'u32[]', space=smem, size = 0x4, offset = 0x4, fixed_abs, tag = 'smem constant byte address 0x4 - core index']
  #allocation1 [shape = 'u32[144,128]{1,0:T(1,128)}', space=vmem, size = 0x12000, scoped, tag = 'internal scratch']
  %s0 = inlined_call_operand.vmem [shape: bf16[2,16,16,4], index: 0, kind: input, shape index: {}]
  %s1 = inlined_call_operand.vmem [shape: bf16[2,1,2,16,4], index: 1, kind: input, shape index: {}]
  %s2 = inlined_call_operand.vmem [shape: bf16[2,16,16,8], index: 2, kind: input, shape index: {}]
  %s3 = inlined_call_operand.vmem [shape: bf16[2,1,2,16,8], index: 3, kind: input, shape index: {}]
  %s4 = inlined_call_operand.vmem [shape: bf16[3,4,12], index: 4, kind: input, shape index: {}]
  %s5 = inlined_call_operand.vmem [shape: bf16[3,8,12], index: 5, kind: input, shape index: {}]
  %s6 = inlined_call_operand.vmem [shape: f32[1,4], index: 6, kind: input, shape index: {}]
  %s7 = inlined_call_operand.vmem [shape: bf16[2,16,16,4], index: 7, kind: output, shape index: {0}]
  %s8 = inlined_call_operand.vmem [shape: f32[2,1,1,4], index: 8, kind: output, shape index: {1}]
  %s9 = inlined_call_operand.vmem [shape: f32[2,1,1,4], index: 9, kind: output, shape index: {2}]
  %10 = xla_tuple %s7, %s8, %s9
  %s11 = sld [smem:[#allocation0]]
  $region77: #{decoder_block_forward.5} parent=0
    _
  %s13 = ssub.s32 1, %s11
  %s14 = scalar_select 0, %s13, %s11
  loop: start=0, step=1, limit=4
  $region2: #{decoder_block_forward.5} parent=0 // loop_pre_header
    _
  $region3: #{decoder_block_forward.5} parent=0 // loop_header
    %s16 = sphi 0, %s20
    %p17 = scmp.ge.s32.totalorder %s16, 4
    %s23 = sphi 0, %s42
    %s24 = sphi 0, %s38
    %s25 = sphi 0, %s34
    %s26 = sphi 0, %s23
    %s27 = sphi 0, %s24
    %s28 = sphi 0, %s25
    %s29 = sphi 0, %s26
    %s30 = sphi 0, %s27
    %s31 = sphi 0, %s28
    %s47 = sphi 0, %s49
    %s50 = sphi 0, %s47
    %s51 = sphi 0, %s50
    %s67 = sphi 0, %s51
    %s75 = sphi 0, %s77
    %s78 = sphi 0, %s75
    %s79 = sphi 0, %s78
    %s95 = sphi 0, %s79
    %s103 = sphi 0, %s105
    %s106 = sphi 0, %s103
    %s107 = sphi 0, %s106
    %s123 = sphi 0, %s107
    %s131 = sphi 0, %s133
    %s134 = sphi 0, %s131
    %s135 = sphi 0, %s134
    %s151 = sphi 0, %s135
    %s157 = sphi 0, %s159
    %s160 = sphi 0, %s157
    %s161 = sphi 0, %s160
    %s177 = sphi 0, %s161
    %s183 = sphi 0, %s185
    %s186 = sphi 0, %s183
    %s187 = sphi 0, %s186
    %s203 = sphi 0, %s187
    %s209 = sphi 0, %s211
    %s212 = sphi 0, %s209
    %s213 = sphi 0, %s212
    %s229 = sphi 0, %s213
    %s239 = sphi 0, %s241
    %s242 = sphi 0, %s239
    %s243 = sphi 0, %s242
    %s259 = sphi 0, %s243
    %s269 = sphi 0, %s271
    %s272 = sphi 0, %s269
    %s273 = sphi 0, %s272
    %s289 = sphi 0, %s273
    %s299 = sphi 0, %s301
    %s302 = sphi 0, %s299
    %s303 = sphi 0, %s302
    %s319 = sphi 0, %s303
  $region4: #{decoder_block_forward.5} parent=0 // loop_header_branch
    %19 = sbr.rel (%p17) target = $region8
  $region5: #{decoder_block_forward.5} parent=0 // loop_body
    %s21 = ssub.s32 %s16, 1
    %s22 = ssub.s32 %s16, 2
    %s32 = sadd.s32 1, %s25
    %p33 = scmp.ge.s32.totalorder %s32, 1
    %s34 = scalar_select %p33, 0, %s32
    %s35 = sadd.s32 1, %s24
    %s36 = scalar_select %p33, %s35, %s24
    %p37 = scmp.ge.s32.totalorder %s36, 1
    %s38 = scalar_select %p37, 0, %s36
    %s39 = sadd.s32 1, %s23
    %s40 = scalar_select %p37, %s39, %s23
    %p41 = scmp.ge.s32.totalorder %s40, 2
    %s42 = scalar_select %p41, 0, %s40
    %s43 = ssub.s32 %s23, %s42
    %s44 = ssub.s32 %s25, %s34
    %s45 = sor.u32 %s43, %s44
    %p46 = scmp.eq.s32.totalorder %s45, 0
    %s48 = sadd.s32 %s47, 1
    %s49 = scalar_select %p46, %s47, %s48
    %p52 = pneg %p46
    %p53 = scmp.eq.s32.totalorder %s16, 1
    %p54 = por %p52, %p53
    %p55 = scmp.ne.s32.totalorder %s47, %s50
    %p56 = scmp.eq.s32.totalorder %s16, 0
    %p57 = por %p55, %p56
    %p58 = scmp.ne.s32.totalorder %s47, %s50
    %p59 = scmp.eq.s32.totalorder %s21, 1
    %p60 = por %p58, %p59
    %p61 = scmp.ne.s32.totalorder %s50, %s51
    %p62 = scmp.eq.s32.totalorder %s21, 0
    %p63 = por %p61, %p62
    %p64 = scmp.ne.s32.totalorder %s50, %s51
    %p65 = scmp.eq.s32.totalorder %s22, 1
    %p66 = por %p64, %p65
    %p68 = scmp.ne.s32.totalorder %s51, %s67
    %p69 = scmp.eq.s32.totalorder %s22, 0
    %p70 = por %p68, %p69
    %s71 = ssub.s32 %s23, %s42
    %s72 = ssub.s32 %s25, %s34
    %s73 = sor.u32 %s71, %s72
    %p74 = scmp.eq.s32.totalorder %s73, 0
    %s76 = sadd.s32 %s75, 1
    %s77 = scalar_select %p74, %s75, %s76
    %p80 = pneg %p74
    %p81 = scmp.eq.s32.totalorder %s16, 1
    %p82 = por %p80, %p81
    %p83 = scmp.ne.s32.totalorder %s75, %s78
    %p84 = scmp.eq.s32.totalorder %s16, 0
    %p85 = por %p83, %p84
    %p86 = scmp.ne.s32.totalorder %s75, %s78
    %p87 = scmp.eq.s32.totalorder %s21, 1
    %p88 = por %p86, %p87
    %p89 = scmp.ne.s32.totalorder %s78, %s79
    %p90 = scmp.eq.s32.totalorder %s21, 0
    %p91 = por %p89, %p90
    %p92 = scmp.ne.s32.totalorder %s78, %s79
    %p93 = scmp.eq.s32.totalorder %s22, 1
    %p94 = por %p92, %p93
    %p96 = scmp.ne.s32.totalorder %s79, %s95
    %p97 = scmp.eq.s32.totalorder %s22, 0
    %p98 = por %p96, %p97
    %s99 = ssub.s32 %s23, %s42
    %s100 = ssub.s32 %s25, %s34
    %s101 = sor.u32 %s99, %s100
    %p102 = scmp.eq.s32.totalorder %s101, 0
    %s104 = sadd.s32 %s103, 1
    %s105 = scalar_select %p102, %s103, %s104
    %p108 = pneg %p102
    %p109 = scmp.eq.s32.totalorder %s16, 1
    %p110 = por %p108, %p109
    %p111 = scmp.ne.s32.totalorder %s103, %s106
    %p112 = scmp.eq.s32.totalorder %s16, 0
    %p113 = por %p111, %p112
    %p114 = scmp.ne.s32.totalorder %s103, %s106
    %p115 = scmp.eq.s32.totalorder %s21, 1
    %p116 = por %p114, %p115
    %p117 = scmp.ne.s32.totalorder %s106, %s107
    %p118 = scmp.eq.s32.totalorder %s21, 0
    %p119 = por %p117, %p118
    %p120 = scmp.ne.s32.totalorder %s106, %s107
    %p121 = scmp.eq.s32.totalorder %s22, 1
    %p122 = por %p120, %p121
    %p124 = scmp.ne.s32.totalorder %s107, %s123
    %p125 = scmp.eq.s32.totalorder %s22, 0
    %p126 = por %p124, %p125
    %s127 = ssub.s32 %s23, %s42
    %s128 = ssub.s32 %s25, %s34
    %s129 = sor.u32 %s127, %s128
    %p130 = scmp.eq.s32.totalorder %s129, 0
    %s132 = sadd.s32 %s131, 1
    %s133 = scalar_select %p130, %s131, %s132
    %p136 = pneg %p130
    %p137 = scmp.eq.s32.totalorder %s16, 1
    %p138 = por %p136, %p137
    %p139 = scmp.ne.s32.totalorder %s131, %s134
    %p140 = scmp.eq.s32.totalorder %s16, 0
    %p141 = por %p139, %p140
    %p142 = scmp.ne.s32.totalorder %s131, %s134
    %p143 = scmp.eq.s32.totalorder %s21, 1
    %p144 = por %p142, %p143
    %p145 = scmp.ne.s32.totalorder %s134, %s135
    %p146 = scmp.eq.s32.totalorder %s21, 0
    %p147 = por %p145, %p146
    %p148 = scmp.ne.s32.totalorder %s134, %s135
    %p149 = scmp.eq.s32.totalorder %s22, 1
    %p150 = por %p148, %p149
    %p152 = scmp.ne.s32.totalorder %s135, %s151
    %p153 = scmp.eq.s32.totalorder %s22, 0
    %p154 = por %p152, %p153
    %s155 = ssub.s32 %s24, %s38
    %p156 = scmp.eq.s32.totalorder %s155, 0
    %s158 = sadd.s32 %s157, 1
    %s159 = scalar_select %p156, %s157, %s158
    %p162 = pneg %p156
    %p163 = scmp.eq.s32.totalorder %s16, 1
    %p164 = por %p162, %p163
    %p165 = scmp.ne.s32.totalorder %s157, %s160
    %p166 = scmp.eq.s32.totalorder %s16, 0
    %p167 = por %p165, %p166
    %p168 = scmp.ne.s32.totalorder %s157, %s160
    %p169 = scmp.eq.s32.totalorder %s21, 1
    %p170 = por %p168, %p169
    %p171 = scmp.ne.s32.totalorder %s160, %s161
    %p172 = scmp.eq.s32.totalorder %s21, 0
    %p173 = por %p171, %p172
    %p174 = scmp.ne.s32.totalorder %s160, %s161
    %p175 = scmp.eq.s32.totalorder %s22, 1
    %p176 = por %p174, %p175
    %p178 = scmp.ne.s32.totalorder %s161, %s177
    %p179 = scmp.eq.s32.totalorder %s22, 0
    %p180 = por %p178, %p179
    %s181 = ssub.s32 %s24, %s38
    %p182 = scmp.eq.s32.totalorder %s181, 0
    %s184 = sadd.s32 %s183, 1
    %s185 = scalar_select %p182, %s183, %s184
    %p188 = pneg %p182
    %p189 = scmp.eq.s32.totalorder %s16, 1
    %p190 = por %p188, %p189
    %p191 = scmp.ne.s32.totalorder %s183, %s186
    %p192 = scmp.eq.s32.totalorder %s16, 0
    %p193 = por %p191, %p192
    %p194 = scmp.ne.s32.totalorder %s183, %s186
    %p195 = scmp.eq.s32.totalorder %s21, 1
    %p196 = por %p194, %p195
    %p197 = scmp.ne.s32.totalorder %s186, %s187
    %p198 = scmp.eq.s32.totalorder %s21, 0
    %p199 = por %p197, %p198
    %p200 = scmp.ne.s32.totalorder %s186, %s187
    %p201 = scmp.eq.s32.totalorder %s22, 1
    %p202 = por %p200, %p201
    %p204 = scmp.ne.s32.totalorder %s187, %s203
    %p205 = scmp.eq.s32.totalorder %s22, 0
    %p206 = por %p204, %p205
    %s207 = ssub.s32 %s24, %s38
    %p208 = scmp.eq.s32.totalorder %s207, 0
    %s210 = sadd.s32 %s209, 1
    %s211 = scalar_select %p208, %s209, %s210
    %p214 = pneg %p208
    %p215 = scmp.eq.s32.totalorder %s16, 1
    %p216 = por %p214, %p215
    %p217 = scmp.ne.s32.totalorder %s209, %s212
    %p218 = scmp.eq.s32.totalorder %s16, 0
    %p219 = por %p217, %p218
    %p220 = scmp.ne.s32.totalorder %s209, %s212
    %p221 = scmp.eq.s32.totalorder %s21, 1
    %p222 = por %p220, %p221
    %p223 = scmp.ne.s32.totalorder %s212, %s213
    %p224 = scmp.eq.s32.totalorder %s21, 0
    %p225 = por %p223, %p224
    %p226 = scmp.ne.s32.totalorder %s212, %s213
    %p227 = scmp.eq.s32.totalorder %s22, 1
    %p228 = por %p226, %p227
    %p230 = scmp.ne.s32.totalorder %s213, %s229
    %p231 = scmp.eq.s32.totalorder %s22, 0
    %p232 = por %p230, %p231
    %s233 = ssub.s32 %s23, %s42
    %s234 = ssub.s32 %s25, %s34
    %s235 = sor.u32 %s233, %s234
    %s236 = ssub.s32 %s24, %s38
    %s237 = sor.u32 %s235, %s236
    %p238 = scmp.eq.s32.totalorder %s237, 0
    %s240 = sadd.s32 %s239, 1
    %s241 = scalar_select %p238, %s239, %s240
    %p244 = pneg %p238
    %p245 = scmp.eq.s32.totalorder %s16, 1
    %p246 = por %p244, %p245
    %p247 = scmp.ne.s32.totalorder %s239, %s242
    %p248 = scmp.eq.s32.totalorder %s16, 0
    %p249 = por %p247, %p248
    %p250 = scmp.ne.s32.totalorder %s239, %s242
    %p251 = scmp.eq.s32.totalorder %s21, 1
    %p252 = por %p250, %p251
    %p253 = scmp.ne.s32.totalorder %s242, %s243
    %p254 = scmp.eq.s32.totalorder %s21, 0
    %p255 = por %p253, %p254
    %p256 = scmp.ne.s32.totalorder %s242, %s243
    %p257 = scmp.eq.s32.totalorder %s22, 1
    %p258 = por %p256, %p257
    %p260 = scmp.ne.s32.totalorder %s243, %s259
    %p261 = scmp.eq.s32.totalorder %s22, 0
    %p262 = por %p260, %p261
    %s263 = ssub.s32 %s23, %s42
    %s264 = ssub.s32 %s25, %s34
    %s265 = sor.u32 %s263, %s264
    %s266 = ssub.s32 %s24, %s38
    %s267 = sor.u32 %s265, %s266
    %p268 = scmp.eq.s32.totalorder %s267, 0
    %s270 = sadd.s32 %s269, 1
    %s271 = scalar_select %p268, %s269, %s270
    %p274 = pneg %p268
    %p275 = scmp.eq.s32.totalorder %s16, 1
    %p276 = por %p274, %p275
    %p277 = scmp.ne.s32.totalorder %s269, %s272
    %p278 = scmp.eq.s32.totalorder %s16, 0
    %p279 = por %p277, %p278
    %p280 = scmp.ne.s32.totalorder %s269, %s272
    %p281 = scmp.eq.s32.totalorder %s21, 1
    %p282 = por %p280, %p281
    %p283 = scmp.ne.s32.totalorder %s272, %s273
    %p284 = scmp.eq.s32.totalorder %s21, 0
    %p285 = por %p283, %p284
    %p286 = scmp.ne.s32.totalorder %s272, %s273
    %p287 = scmp.eq.s32.totalorder %s22, 1
    %p288 = por %p286, %p287
    %p290 = scmp.ne.s32.totalorder %s273, %s289
    %p291 = scmp.eq.s32.totalorder %s22, 0
    %p292 = por %p290, %p291
    %s293 = ssub.s32 %s23, %s42
    %s294 = ssub.s32 %s25, %s34
    %s295 = sor.u32 %s293, %s294
    %s296 = ssub.s32 %s24, %s38
    %s297 = sor.u32 %s295, %s296
    %p298 = scmp.eq.s32.totalorder %s297, 0
    %s300 = sadd.s32 %s299, 1
    %s301 = scalar_select %p298, %s299, %s300
    %p304 = pneg %p298
    %p305 = scmp.eq.s32.totalorder %s16, 1
    %p306 = por %p304, %p305
    %p307 = scmp.ne.s32.totalorder %s299, %s302
    %p308 = scmp.eq.s32.totalorder %s16, 0
    %p309 = por %p307, %p308
    %p310 = scmp.ne.s32.totalorder %s299, %s302
    %p311 = scmp.eq.s32.totalorder %s21, 1
    %p312 = por %p310, %p311
    %p313 = scmp.ne.s32.totalorder %s302, %s303
    %p314 = scmp.eq.s32.totalorder %s21, 0
    %p315 = por %p313, %p314
    %p316 = scmp.ne.s32.totalorder %s302, %s303
    %p317 = scmp.eq.s32.totalorder %s22, 1
    %p318 = por %p316, %p317
    %p320 = scmp.ne.s32.totalorder %s303, %s319
    %p321 = scmp.eq.s32.totalorder %s22, 0
    %p322 = por %p320, %p321
    %p323 = scmp.le.s32.totalorder 1, %s16
    %p324 = scmp.lt.s32.totalorder %s16, 3
    %p325 = pnand %p323, %p324
    %p326 = pneg %p325
    // Predicated region
    $region9: #{decoder_block_forward.5} parent=5 // pred_check
      _
    $region10: #{decoder_block_forward.5} parent=5 // pred_check_branch
      %328 = sbr.rel (%p325) target = $region12
    $region11: #{decoder_block_forward.5} parent=5 // pred_region
      %s329 = ssub.s32 %s16, 1
      // Predicated region
      $region13: #{decoder_block_forward.5} parent=11 // pred_check
        %p330 = pneg %p173
      $region14: #{decoder_block_forward.5} parent=11 // pred_check_branch
        %332 = sbr.rel (%p330) target = $region16
      $region15: #{decoder_block_forward.5} parent=11 // pred_region
        %p333 = scmp.lt.s32.totalorder %s27, 0
        %s334 = scalar_select %p333, %s27, 0
        %s335 = smul.addr %s334, 2
        %s336 = scalar_lea.vmem %s4, %s335
      $region16: #{decoder_block_forward.5} parent=11 // pred_fallthru
        _
      // Predicated region
      $region17: #{decoder_block_forward.5} parent=11 // pred_check
        %p337 = pneg %p199
      $region18: #{decoder_block_forward.5} parent=11 // pred_check_branch
        %339 = sbr.rel (%p337) target = $region20
      $region19: #{decoder_block_forward.5} parent=11 // pred_region
        %p340 = scmp.lt.s32.totalorder %s27, 0
        %s341 = scalar_select %p340, %s27, 0
        %s342 = smul.addr %s341, 4
        %s343 = scalar_lea.vmem %s5, %s342
      $region20: #{decoder_block_forward.5} parent=11 // pred_fallthru
        _
      // Predicated region
      $region21: #{decoder_block_forward.5} parent=11 // pred_check
        %p344 = pneg %p225
      $region22: #{decoder_block_forward.5} parent=11 // pred_check_branch
        %346 = sbr.rel (%p344) target = $region24
      $region23: #{decoder_block_forward.5} parent=11 // pred_region
        %p347 = scmp.lt.s32.totalorder %s27, 0
        %s348 = scalar_select %p347, %s27, 0
        %s349 = scalar_lea.vmem %s6, %s348
      $region24: #{decoder_block_forward.5} parent=11 // pred_fallthru
        _
    $region12: #{decoder_block_forward.5} parent=5 // pred_fallthru
      _
    %p350 = scmp.lt.s32.totalorder %s16, 2
    // Predicated region
    $region25: #{decoder_block_forward.5} parent=5 // pred_check
      %p351 = pneg %p350
    $region26: #{decoder_block_forward.5} parent=5 // pred_check_branch
      %353 = sbr.rel (%p351) target = $region28
    $region27: #{decoder_block_forward.5} parent=5 // pred_region
      // Predicated region
      $region29: #{decoder_block_forward.5} parent=27 // pred_check
        %p354 = pneg %p57
      $region30: #{decoder_block_forward.5} parent=27 // pred_check_branch
        %356 = sbr.rel (%p354) target = $region32
      $region31: #{decoder_block_forward.5} parent=27 // pred_region
        %s357 = smul.u32 16, %s25
        %p358 = scmp.lt.s32.totalorder %s23, 1
        %s359 = scalar_select %p358, %s23, 1
        %p360 = scmp.lt.s32.totalorder %s357, 15
        %s361 = scalar_select %p360, %s357, 15
        %s362 = smul.addr %s361, 2
        %s363 = smul.addr %s359, 32
        %s364 = sadd.s32 %s362, %s363
        %s365 = smul.addr %s364, 4
        %s366 = scalar_lea.vmem %s0, %s365
        %s367 = smul.u32 16, %s25
      $region32: #{decoder_block_forward.5} parent=27 // pred_fallthru
        _
      // Predicated region
      $region33: #{decoder_block_forward.5} parent=27 // pred_check
        %p368 = pneg %p85
      $region34: #{decoder_block_forward.5} parent=27 // pred_check_branch
        %370 = sbr.rel (%p368) target = $region36
      $region35: #{decoder_block_forward.5} parent=27 // pred_region
        %p371 = scmp.lt.s32.totalorder %s23, 1
        %s372 = scalar_select %p371, %s23, 1
        %p373 = scmp.lt.s32.totalorder %s25, 0
        %s374 = scalar_select %p373, %s25, 0
        %s375 = smul.addr %s374, 4
        %s376 = smul.addr %s372, 4
        %s377 = sadd.s32 %s375, %s376
        %s378 = smul.addr %s377, 4
        %s379 = scalar_lea.vmem %s1, %s378
      $region36: #{decoder_block_forward.5} parent=27 // pred_fallthru
        _
      // Predicated region
      $region37: #{decoder_block_forward.5} parent=27 // pred_check
        %p380 = pneg %p113
      $region38: #{decoder_block_forward.5} parent=27 // pred_check_branch
        %382 = sbr.rel (%p380) target = $region40
      $region39: #{decoder_block_forward.5} parent=27 // pred_region
        %s383 = smul.u32 16, %s25
        %p384 = scmp.lt.s32.totalorder %s23, 1
        %s385 = scalar_select %p384, %s23, 1
        %p386 = scmp.lt.s32.totalorder %s383, 15
        %s387 = scalar_select %p386, %s383, 15
        %s388 = smul.addr %s387, 2
        %s389 = smul.addr %s385, 32
        %s390 = sadd.s32 %s388, %s389
        %s391 = smul.addr %s390, 4
        %s392 = scalar_lea.vmem %s2, %s391
        %s393 = smul.u32 16, %s25
      $region40: #{decoder_block_forward.5} parent=27 // pred_fallthru
        _
      // Predicated region
      $region41: #{decoder_block_forward.5} parent=27 // pred_check
        %p394 = pneg %p141
      $region42: #{decoder_block_forward.5} parent=27 // pred_check_branch
        %396 = sbr.rel (%p394) target = $region44
      $region43: #{decoder_block_forward.5} parent=27 // pred_region
        %p397 = scmp.lt.s32.totalorder %s23, 1
        %s398 = scalar_select %p397, %s23, 1
        %p399 = scmp.lt.s32.totalorder %s25, 0
        %s400 = scalar_select %p399, %s25, 0
        %s401 = smul.addr %s400, 4
        %s402 = smul.addr %s398, 4
        %s403 = sadd.s32 %s401, %s402
        %s404 = smul.addr %s403, 4
        %s405 = scalar_lea.vmem %s3, %s404
      $region44: #{decoder_block_forward.5} parent=27 // pred_fallthru
        _
    $region28: #{decoder_block_forward.5} parent=5 // pred_fallthru
      _
    %p406 = scmp.le.s32.totalorder 1, %s16
    %p407 = scmp.lt.s32.totalorder %s16, 3
    %p408 = pnand %p406, %p407
    %p409 = pneg %p408
    // Predicated region
    $region45: #{decoder_block_forward.5} parent=5 // pred_check
      _
    $region46: #{decoder_block_forward.5} parent=5 // pred_check_branch
      %411 = sbr.rel (%p408) target = $region48
    $region47: #{decoder_block_forward.5} parent=5 // pred_region
      %s412 = ssub.s32 %s16, 1
      %s413 = smul.u32 16, %s28
      %p414 = scmp.lt.s32.totalorder %s26, 1
      %s415 = scalar_select %p414, %s26, 1
      %p416 = scmp.lt.s32.totalorder %s413, 15
      %s417 = scalar_select %p416, %s413, 15
      %s418 = smul.addr %s417, 2
      %s419 = smul.addr %s415, 32
      %s420 = sadd.s32 %s418, %s419
      %s421 = smul.addr %s420, 4
      %s422 = scalar_lea.vmem %s0, %s421
      %p423 = pneg %p63
      %p424 = pneg %p60
      %p425 = scmp.lt.s32.totalorder %s26, 1
      %s426 = scalar_select %p425, %s26, 1
      %p427 = scmp.lt.s32.totalorder %s28, 0
      %s428 = scalar_select %p427, %s28, 0
      %s429 = smul.addr %s428, 4
      %s430 = smul.addr %s426, 4
      %s431 = sadd.s32 %s429, %s430
      %s432 = smul.addr %s431, 4
      %s433 = scalar_lea.vmem %s1, %s432
      %p434 = pneg %p91
      %p435 = pneg %p88
      %s436 = smul.u32 16, %s28
      %p437 = scmp.lt.s32.totalorder %s26, 1
      %s438 = scalar_select %p437, %s26, 1
      %p439 = scmp.lt.s32.totalorder %s436, 15
      %s440 = scalar_select %p439, %s436, 15
      %s441 = smul.addr %s440, 2
      %s442 = smul.addr %s438, 32
      %s443 = sadd.s32 %s441, %s442
      %s444 = smul.addr %s443, 4
      %s445 = scalar_lea.vmem %s2, %s444
      %p446 = pneg %p119
      %p447 = pneg %p116
      %p448 = scmp.lt.s32.totalorder %s26, 1
      %s449 = scalar_select %p448, %s26, 1
      %p450 = scmp.lt.s32.totalorder %s28, 0
      %s451 = scalar_select %p450, %s28, 0
      %s452 = smul.addr %s451, 4
      %s453 = smul.addr %s449, 4
      %s454 = sadd.s32 %s452, %s453
      %s455 = smul.addr %s454, 4
      %s456 = scalar_lea.vmem %s3, %s455
      %p457 = pneg %p147
      %p458 = pneg %p144
      %p459 = scmp.lt.s32.totalorder %s27, 0
      %s460 = scalar_select %p459, %s27, 0
      %s461 = smul.addr %s460, 2
      %s462 = scalar_lea.vmem %s4, %s461
      %p463 = pneg %p173
      %p464 = pneg %p170
      %p465 = scmp.lt.s32.totalorder %s27, 0
      %s466 = scalar_select %p465, %s27, 0
      %s467 = smul.addr %s466, 4
      %s468 = scalar_lea.vmem %s5, %s467
      %p469 = pneg %p199
      %p470 = pneg %p196
      %p471 = scmp.lt.s32.totalorder %s27, 0
      %s472 = scalar_select %p471, %s27, 0
      %s473 = scalar_lea.vmem %s6, %s472
      %p474 = pneg %p225
      %p475 = pneg %p222
      %p476 = pneg %p255
      %p477 = pneg %p252
      %s478 = smul.u32 16, %s28
      %p479 = scmp.lt.s32.totalorder %s26, 1
      %s480 = scalar_select %p479, %s26, 1
      %p481 = scmp.lt.s32.totalorder %s478, 15
      %s482 = scalar_select %p481, %s478, 15
      %p483 = scmp.lt.s32.totalorder %s27, 0
      %s484 = scalar_select %p483, %s27, 0
      %s485 = smul.addr %s482, 2
      %s486 = sadd.s32 %s484, %s485
      %s487 = smul.addr %s480, 32
      %s488 = sadd.s32 %s486, %s487
      %s489 = smul.addr %s488, 4
      %s490 = scalar_lea.vmem %s7, %s489
      %p491 = pneg %p285
      %p492 = pneg %p282
      %p493 = scmp.lt.s32.totalorder %s26, 1
      %s494 = scalar_select %p493, %s26, 1
      %p495 = scmp.lt.s32.totalorder %s28, 0
      %s496 = scalar_select %p495, %s28, 0
      %p497 = scmp.lt.s32.totalorder %s27, 0
      %s498 = scalar_select %p497, %s27, 0
      %s499 = sadd.s32 %s498, %s496
      %s500 = sadd.s32 %s499, %s494
      %s501 = scalar_lea.vmem %s8, %s500
      %p502 = pneg %p315
      %p503 = pneg %p312
      %p504 = scmp.lt.s32.totalorder %s26, 1
      %s505 = scalar_select %p504, %s26, 1
      %p506 = scmp.lt.s32.totalorder %s28, 0
      %s507 = scalar_select %p506, %s28, 0
      %p508 = scmp.lt.s32.totalorder %s27, 0
      %s509 = scalar_select %p508, %s27, 0
      %s510 = sadd.s32 %s509, %s507
      %s511 = sadd.s32 %s510, %s505
      %s512 = scalar_lea.vmem %s9, %s511
      %s513 = smul.u32 16, %s28
      %p514 = scmp.lt.s32.totalorder %s26, 1
      %s515 = scalar_select %p514, %s26, 1
      %p516 = scmp.lt.s32.totalorder %s513, 15
      %s517 = scalar_select %p516, %s513, 15
      %s518 = smul.addr %s517, 2
      %s519 = smul.addr %s515, 32
      %s520 = sadd.s32 %s518, %s519
      %s521 = smul.addr %s520, 4
      %s522 = scalar_lea.vmem %s0, %s521
      %s523 = smul.u32 16, %s28
      %p524 = scmp.lt.s32.totalorder %s26, 1
      %s525 = scalar_select %p524, %s26, 1
      %p526 = scmp.lt.s32.totalorder %s28, 0
      %s527 = scalar_select %p526, %s28, 0
      %s528 = smul.addr %s527, 4
      %s529 = smul.addr %s525, 4
      %s530 = sadd.s32 %s528, %s529
      %s531 = smul.addr %s530, 4
      %s532 = scalar_lea.vmem %s1, %s531
      %s533 = smul.u32 16, %s28
      %p534 = scmp.lt.s32.totalorder %s26, 1
      %s535 = scalar_select %p534, %s26, 1
      %p536 = scmp.lt.s32.totalorder %s533, 15
      %s537 = scalar_select %p536, %s533, 15
      %s538 = smul.addr %s537, 2
      %s539 = smul.addr %s535, 32
      %s540 = sadd.s32 %s538, %s539
      %s541 = smul.addr %s540, 4
      %s542 = scalar_lea.vmem %s2, %s541
      %s543 = smul.u32 16, %s28
      %p544 = scmp.lt.s32.totalorder %s26, 1
      %s545 = scalar_select %p544, %s26, 1
      %p546 = scmp.lt.s32.totalorder %s28, 0
      %s547 = scalar_select %p546, %s28, 0
      %s548 = smul.addr %s547, 4
      %s549 = smul.addr %s545, 4
      %s550 = sadd.s32 %s548, %s549
      %s551 = smul.addr %s550, 4
      %s552 = scalar_lea.vmem %s3, %s551
      %p553 = scmp.lt.s32.totalorder %s27, 0
      %s554 = scalar_select %p553, %s27, 0
      %s555 = smul.addr %s554, 2
      %s556 = scalar_lea.vmem %s4, %s555
      %p557 = scmp.lt.s32.totalorder %s27, 0
      %s558 = scalar_select %p557, %s27, 0
      %s559 = smul.addr %s558, 4
      %s560 = scalar_lea.vmem %s5, %s559
      %p561 = scmp.lt.s32.totalorder %s27, 0
      %s562 = scalar_select %p561, %s27, 0
      %s563 = scalar_lea.vmem %s6, %s562
      %s564 = smul.u32 16, %s28
      %p565 = scmp.lt.s32.totalorder %s26, 1
      %s566 = scalar_select %p565, %s26, 1
      %p567 = scmp.lt.s32.totalorder %s564, 15
      %s568 = scalar_select %p567, %s564, 15
      %p569 = scmp.lt.s32.totalorder %s27, 0
      %s570 = scalar_select %p569, %s27, 0
      %s571 = smul.addr %s568, 2
      %s572 = sadd.s32 %s570, %s571
      %s573 = smul.addr %s566, 32
      %s574 = sadd.s32 %s572, %s573
      %s575 = smul.addr %s574, 4
      %s576 = scalar_lea.vmem %s7, %s575
      %s577 = smul.u32 16, %s28
      %p578 = scmp.lt.s32.totalorder %s26, 1
      %s579 = scalar_select %p578, %s26, 1
      %p580 = scmp.lt.s32.totalorder %s28, 0
      %s581 = scalar_select %p580, %s28, 0
      %p582 = scmp.lt.s32.totalorder %s27, 0
      %s583 = scalar_select %p582, %s27, 0
      %s584 = sadd.s32 %s583, %s581
      %s585 = sadd.s32 %s584, %s579
      %s586 = scalar_lea.vmem %s8, %s585
      %p587 = scmp.lt.s32.totalorder %s26, 1
      %s588 = scalar_select %p587, %s26, 1
      %p589 = scmp.lt.s32.totalorder %s28, 0
      %s590 = scalar_select %p589, %s28, 0
      %p591 = scmp.lt.s32.totalorder %s27, 0
      %s592 = scalar_select %p591, %s27, 0
      %s593 = sadd.s32 %s592, %s590
      %s594 = sadd.s32 %s593, %s588
      %s595 = scalar_lea.vmem %s9, %s594
      %v597 = vld [vmem:[%s532] sm:$0xf]
      %v598 = vld [vmem:[%s532 + $0x4] sm:$0xf]
      %v599 = vld [vmem:[%s532 + $0x8] sm:$0xf]
      %v600 = vld [vmem:[%s532 + $0xc] sm:$0xf]
      %v601 = vld [vmem:[%s552] sm:$0xf]
      %v602 = vld [vmem:[%s552 + $0x4] sm:$0xf]
      %v603 = vld [vmem:[%s552 + $0x8] sm:$0xf]
      %v604 = vld [vmem:[%s552 + $0xc] sm:$0xf]
      %v605 = vld [vmem:[%s522] sm:$0xf]
      %v606 = vld [vmem:[%s522 + $0x4] sm:$0xf]
      %v607 = vld [vmem:[%s522 + $0x8] sm:$0xf]
      %v608 = vld [vmem:[%s522 + $0xc] sm:$0xf]
      %v609 = vld [vmem:[%s522 + $0x10] sm:$0xf]
      %v610 = vld [vmem:[%s522 + $0x14] sm:$0xf]
      %v611 = vld [vmem:[%s522 + $0x18] sm:$0xf]
      %v612 = vld [vmem:[%s522 + $0x1c] sm:$0xf]
      %v613 = vld [vmem:[%s522 + $0x20] sm:$0xf]
      %v614 = vld [vmem:[%s522 + $0x24] sm:$0xf]
      %v615 = vld [vmem:[%s522 + $0x28] sm:$0xf]
      %v616 = vld [vmem:[%s522 + $0x2c] sm:$0xf]
      %v617 = vld [vmem:[%s522 + $0x30] sm:$0xf]
      %v618 = vld [vmem:[%s522 + $0x34] sm:$0xf]
      %v619 = vld [vmem:[%s522 + $0x38] sm:$0xf]
      %v620 = vld [vmem:[%s522 + $0x3c] sm:$0xf]
      %v621 = vld [vmem:[%s522 + $0x40] sm:$0xf]
      %v622 = vld [vmem:[%s522 + $0x44] sm:$0xf]
      %v623 = vld [vmem:[%s522 + $0x48] sm:$0xf]
      %v624 = vld [vmem:[%s522 + $0x4c] sm:$0xf]
      %v625 = vld [vmem:[%s522 + $0x50] sm:$0xf]
      %v626 = vld [vmem:[%s522 + $0x54] sm:$0xf]
      %v627 = vld [vmem:[%s522 + $0x58] sm:$0xf]
      %v628 = vld [vmem:[%s522 + $0x5c] sm:$0xf]
      %v629 = vld [vmem:[%s522 + $0x60] sm:$0xf]
      %v630 = vld [vmem:[%s522 + $0x64] sm:$0xf]
      %v631 = vld [vmem:[%s522 + $0x68] sm:$0xf]
      %v632 = vld [vmem:[%s522 + $0x6c] sm:$0xf]
      %v633 = vld [vmem:[%s522 + $0x70] sm:$0xf]
      %v634 = vld [vmem:[%s522 + $0x74] sm:$0xf]
      %v635 = vld [vmem:[%s522 + $0x78] sm:$0xf]
      %v636 = vld [vmem:[%s522 + $0x7c] sm:$0xf]
      %v637 = vld [vmem:[%s542] sm:$0xf]
      %v638 = vld [vmem:[%s542 + $0x4] sm:$0xf]
      %v639 = vld [vmem:[%s542 + $0x8] sm:$0xf]
      %v640 = vld [vmem:[%s542 + $0xc] sm:$0xf]
      %v641 = vld [vmem:[%s542 + $0x10] sm:$0xf]
      %v642 = vld [vmem:[%s542 + $0x14] sm:$0xf]
      %v643 = vld [vmem:[%s542 + $0x18] sm:$0xf]
      %v644 = vld [vmem:[%s542 + $0x1c] sm:$0xf]
      %v645 = vld [vmem:[%s542 + $0x20] sm:$0xf]
      %v646 = vld [vmem:[%s542 + $0x24] sm:$0xf]
      %v647 = vld [vmem:[%s542 + $0x28] sm:$0xf]
      %v648 = vld [vmem:[%s542 + $0x2c] sm:$0xf]
      %v649 = vld [vmem:[%s542 + $0x30] sm:$0xf]
      %v650 = vld [vmem:[%s542 + $0x34] sm:$0xf]
      %v651 = vld [vmem:[%s542 + $0x38] sm:$0xf]
      %v652 = vld [vmem:[%s542 + $0x3c] sm:$0xf]
      %v653 = vld [vmem:[%s542 + $0x40] sm:$0xf]
      %v654 = vld [vmem:[%s542 + $0x44] sm:$0xf]
      %v655 = vld [vmem:[%s542 + $0x48] sm:$0xf]
      %v656 = vld [vmem:[%s542 + $0x4c] sm:$0xf]
      %v657 = vld [vmem:[%s542 + $0x50] sm:$0xf]
      %v658 = vld [vmem:[%s542 + $0x54] sm:$0xf]
      %v659 = vld [vmem:[%s542 + $0x58] sm:$0xf]
      %v660 = vld [vmem:[%s542 + $0x5c] sm:$0xf]
      %v661 = vld [vmem:[%s542 + $0x60] sm:$0xf]
      %v662 = vld [vmem:[%s542 + $0x64] sm:$0xf]
      %v663 = vld [vmem:[%s542 + $0x68] sm:$0xf]
      %v664 = vld [vmem:[%s542 + $0x6c] sm:$0xf]
      %v665 = vld [vmem:[%s542 + $0x70] sm:$0xf]
      %v666 = vld [vmem:[%s542 + $0x74] sm:$0xf]
      %v667 = vld [vmem:[%s542 + $0x78] sm:$0xf]
      %v668 = vld [vmem:[%s542 + $0x7c] sm:$0xf]
      %v669 = vld [vmem:[%s556] sm:$0x3]
      %v670 = vld [vmem:[%s560] sm:$0xf]
      %v703 = vunpack.c.l.b16 %v601
      %v704 = vunpack.c.l.b16 %v602
      %v705 = vunpack.c.l.b16 %v637
      %v706 = vunpack.c.l.b16 %v638
      %v707 = vunpack.c.l.b16 %v639
      %v708 = vunpack.c.l.b16 %v640
      %v709 = vunpack.c.l.b16 %v641
      %v710 = vunpack.c.l.b16 %v642
      %v711 = vunpack.c.l.b16 %v643
      %v712 = vunpack.c.l.b16 %v644
      %v713 = vunpack.c.l.b16 %v645
      %v714 = vunpack.c.l.b16 %v646
      %v715 = vunpack.c.l.b16 %v647
      %v716 = vunpack.c.l.b16 %v648
      %v717 = vunpack.c.l.b16 %v649
      %v718 = vunpack.c.l.b16 %v650
      %v719 = vunpack.c.l.b16 %v651
      %v720 = vunpack.c.l.b16 %v652
      %v721 = vunpack.c.l.b16 %v653
      %v722 = vunpack.c.l.b16 %v654
      %v723 = vunpack.c.l.b16 %v655
      %v724 = vunpack.c.l.b16 %v656
      %v725 = vunpack.c.l.b16 %v657
      %v726 = vunpack.c.l.b16 %v658
      %v727 = vunpack.c.l.b16 %v659
      %v728 = vunpack.c.l.b16 %v660
      %v729 = vunpack.c.l.b16 %v661
      %v730 = vunpack.c.l.b16 %v662
      %v731 = vunpack.c.l.b16 %v663
      %v732 = vunpack.c.l.b16 %v664
      %v733 = vunpack.c.l.b16 %v665
      %v734 = vunpack.c.l.b16 %v666
      %v735 = vpack.c.b16 %v704, %v703
      %v736 = vpack.c.b16 %v706, %v705
      %v737 = vpack.c.b16 %v708, %v707
      %v738 = vpack.c.b16 %v710, %v709
      %v739 = vpack.c.b16 %v712, %v711
      %v740 = vpack.c.b16 %v714, %v713
      %v741 = vpack.c.b16 %v716, %v715
      %v742 = vpack.c.b16 %v718, %v717
      %v743 = vpack.c.b16 %v720, %v719
      %v744 = vpack.c.b16 %v722, %v721
      %v745 = vpack.c.b16 %v724, %v723
      %v746 = vpack.c.b16 %v726, %v725
      %v747 = vpack.c.b16 %v728, %v727
      %v748 = vpack.c.b16 %v730, %v729
      %v749 = vpack.c.b16 %v732, %v731
      %v750 = vpack.c.b16 %v734, %v733
      %vm751 = vcmask 64512
      %v753 = vsel %vm751, %v735, 0
      %v756 = vsel %vm751, %v736, 0
      %v759 = vsel %vm751, %v737, 0
      %v762 = vsel %vm751, %v738, 0
      %v765 = vsel %vm751, %v739, 0
      %v768 = vsel %vm751, %v740, 0
      %v771 = vsel %vm751, %v741, 0
      %v774 = vsel %vm751, %v742, 0
      %v777 = vsel %vm751, %v743, 0
      %v780 = vsel %vm751, %v744, 0
      %v783 = vsel %vm751, %v745, 0
      %v786 = vsel %vm751, %v746, 0
      %v789 = vsel %vm751, %v747, 0
      %v792 = vsel %vm751, %v748, 0
      %v795 = vsel %vm751, %v749, 0
      %v798 = vsel %vm751, %v750, 0
      %vm800 = vcmask 1043456
      %v802 = vsel %vm800, %v670, 0
      %804 = vmatprep.subr.bf16.mxu0 0
      %805 = vmatpush1.bf16.msra.mxu0 %v802
      %806 = vmatprep.subr.bf16.mxu0 0
      %807 = vmatpush1.bf16.msra.mxu0 0
      %808 = vmatprep.subr.bf16.mxu0 0
      %809 = vmatpush1.bf16.msra.mxu0 0
      %810 = vmatprep.subr.bf16.mxu0 0
      %811 = vmatpush1.bf16.msra.mxu0 0
      %812 = vmatprep.subr.bf16.mxu0 0
      %813 = vmatpush1.bf16.msra.mxu0 0
      %814 = vmatprep.subr.bf16.mxu0 0
      %815 = vmatpush1.bf16.msra.mxu0 0
      %816 = vmatprep.subr.bf16.mxu0 0
      %817 = vmatpush1.bf16.msra.mxu0 0
      %818 = vmatprep.subr.bf16.mxu0 0
      %819 = vmatpush1.bf16.msra.mxu0 0
      %820 = vmatprep.subr.bf16.mxu0 0
      %821 = vmatpush1.bf16.msra.mxu0 0
      %822 = vmatprep.subr.bf16.mxu0 0
      %823 = vmatpush1.bf16.msra.mxu0 0
      %824 = vmatprep.subr.bf16.mxu0 0
      %825 = vmatpush1.bf16.msra.mxu0 0
      %826 = vmatprep.subr.bf16.mxu0 0
      %827 = vmatpush1.bf16.msra.mxu0 0
      %828 = vmatprep.subr.bf16.mxu0 0
      %829 = vmatpush1.bf16.msra.mxu0 0
      %830 = vmatprep.subr.bf16.mxu0 0
      %831 = vmatpush1.bf16.msra.mxu0 0
      %832 = vmatprep.subr.bf16.mxu0 0
      %833 = vmatpush1.bf16.msra.mxu0 0
      %834 = vmatprep.subr.bf16.mxu0 0
      %835 = vmatpush1.bf16.msra.mxu0 0
      %836 = vmatprep.mubr.bf16.mxu0 0
      %837 = vmatmul.mubr.bf16.gmra.mrb[0].mxu0 %v753
      %v838 = vpop.f32.mrb[0].mxu0
      %v839 = vadd.f32 0.0, %v838
      %v840 = vpop.f32.mrb[0].mxu0
      %v841 = vpop.f32.mrb[0].mxu0
      %v842 = vadd.f32 0.0, %v841
      %v843 = vpop.f32.mrb[0].mxu0
      %844 = vmatprep.mubr.bf16.mxu0 0
      %845 = vmatmul.mubr.bf16.gmra.mrb[0].mxu0 %v756
      %v846 = vpop.f32.mrb[0].mxu0
      %v847 = vadd.f32 0.0, %v846
      %v848 = vpop.f32.mrb[0].mxu0
      %v849 = vpop.f32.mrb[0].mxu0
      %v850 = vadd.f32 0.0, %v849
      %v851 = vpop.f32.mrb[0].mxu0
      %852 = vmatprep.mubr.bf16.mxu0 0
      %853 = vmatmul.mubr.bf16.gmra.mrb[0].mxu0 %v759
      %v854 = vpop.f32.mrb[0].mxu0
      %v855 = vadd.f32 0.0, %v854
      %v856 = vpop.f32.mrb[0].mxu0
      %v857 = vpop.f32.mrb[0].mxu0
      %v858 = vadd.f32 0.0, %v857
      %v859 = vpop.f32.mrb[0].mxu0
      %860 = vmatprep.mubr.bf16.mxu0 0
      %861 = vmatmul.mubr.bf16.gmra.mrb[0].mxu0 %v762
      %v862 = vpop.f32.mrb[0].mxu0
      %v863 = vadd.f32 0.0, %v862
      %v864 = vpop.f32.mrb[0].mxu0
      %v865 = vpop.f32.mrb[0].mxu0
      %v866 = vadd.f32 0.0, %v865
      %v867 = vpop.f32.mrb[0].mxu0
      %868 = vmatprep.mubr.bf16.mxu0 0
      %869 = vmatmul.mubr.bf16.gmra.mrb[0].mxu0 %v765
      %v870 = vpop.f32.mrb[0].mxu0
      %v871 = vadd.f32 0.0, %v870
      %v872 = vpop.f32.mrb[0].mxu0
      %v873 = vpop.f32.mrb[0].mxu0
      %v874 = vadd.f32 0.0, %v873
      %v875 = vpop.f32.mrb[0].mxu0
      %876 = vmatprep.mubr.bf16.mxu0 0
      %877 = vmatmul.mubr.bf16.gmra.mrb[0].mxu0 %v768
      %v878 = vpop.f32.mrb[0].mxu0
      %v879 = vadd.f32 0.0, %v878
      %v880 = vpop.f32.mrb[0].mxu0
      %v881 = vpop.f32.mrb[0].mxu0
      %v882 = vadd.f32 0.0, %v881
      %v883 = vpop.f32.mrb[0].mxu0
      %884 = vmatprep.mubr.bf16.mxu0 0
      %885 = vmatmul.mubr.bf16.gmra.mrb[0].mxu0 %v771
      %v886 = vpop.f32.mrb[0].mxu0
      %v887 = vadd.f32 0.0, %v886
      %v888 = vpop.f32.mrb[0].mxu0
      %v889 = vpop.f32.mrb[0].mxu0
      %v890 = vadd.f32 0.0, %v889
      %v891 = vpop.f32.mrb[0].mxu0
      %892 = vmatprep.mubr.bf16.mxu0 0
      %893 = vmatmul.mubr.bf16.gmra.mrb[0].mxu0 %v774
      %v894 = vpop.f32.mrb[0].mxu0
      %v895 = vadd.f32 0.0, %v894
      %v896 = vpop.f32.mrb[0].mxu0
      %v897 = vpop.f32.mrb[0].mxu0
      %v898 = vadd.f32 0.0, %v897
      %v899 = vpop.f32.mrb[0].mxu0
      %900 = vmatprep.mubr.bf16.mxu0 0
      %901 = vmatmul.mubr.bf16.gmra.mrb[0].mxu0 %v777
      %v902 = vpop.f32.mrb[0].mxu0
      %v903 = vadd.f32 0.0, %v902
      %v904 = vpop.f32.mrb[0].mxu0
      %v905 = vpop.f32.mrb[0].mxu0
      %v906 = vadd.f32 0.0, %v905
      %v907 = vpop.f32.mrb[0].mxu0
      %908 = vmatprep.mubr.bf16.mxu0 0
      %909 = vmatmul.mubr.bf16.gmra.mrb[0].mxu0 %v780
      %v910 = vpop.f32.mrb[0].mxu0
      %v911 = vadd.f32 0.0, %v910
      %v912 = vpop.f32.mrb[0].mxu0
      %v913 = vpop.f32.mrb[0].mxu0
      %v914 = vadd.f32 0.0, %v913
      %v915 = vpop.f32.mrb[0].mxu0
      %916 = vmatprep.mubr.bf16.mxu0 0
      %917 = vmatmul.mubr.bf16.gmra.mrb[0].mxu0 %v783
      %v918 = vpop.f32.mrb[0].mxu0
      %v919 = vadd.f32 0.0, %v918
      %v920 = vpop.f32.mrb[0].mxu0
      %v921 = vpop.f32.mrb[0].mxu0
      %v922 = vadd.f32 0.0, %v921
      %v923 = vpop.f32.mrb[0].mxu0
      %924 = vmatprep.mubr.bf16.mxu0 0
      %925 = vmatmul.mubr.bf16.gmra.mrb[0].mxu0 %v786
      %v926 = vpop.f32.mrb[0].mxu0
      %v927 = vadd.f32 0.0, %v926
      %v928 = vpop.f32.mrb[0].mxu0
      %v929 = vpop.f32.mrb[0].mxu0
      %v930 = vadd.f32 0.0, %v929
      %v931 = vpop.f32.mrb[0].mxu0
      %932 = vmatprep.mubr.bf16.mxu0 0
      %933 = vmatmul.mubr.bf16.gmra.mrb[0].mxu0 %v789
      %v934 = vpop.f32.mrb[0].mxu0
      %v935 = vadd.f32 0.0, %v934
      %v936 = vpop.f32.mrb[0].mxu0
      %v937 = vpop.f32.mrb[0].mxu0
      %v938 = vadd.f32 0.0, %v937
      %v939 = vpop.f32.mrb[0].mxu0
      %940 = vmatprep.mubr.bf16.mxu0 0
      %941 = vmatmul.mubr.bf16.gmra.mrb[0].mxu0 %v792
      %v942 = vpop.f32.mrb[0].mxu0
      %v943 = vadd.f32 0.0, %v942
      %v944 = vpop.f32.mrb[0].mxu0
      %v945 = vpop.f32.mrb[0].mxu0
      %v946 = vadd.f32 0.0, %v945
      %v947 = vpop.f32.mrb[0].mxu0
      %948 = vmatprep.mubr.bf16.mxu0 0
      %949 = vmatmul.mubr.bf16.gmra.mrb[0].mxu0 %v795
      %v950 = vpop.f32.mrb[0].mxu0
      %v951 = vadd.f32 0.0, %v950
      %v952 = vpop.f32.mrb[0].mxu0
      %v953 = vpop.f32.mrb[0].mxu0
      %v954 = vadd.f32 0.0, %v953
      %v955 = vpop.f32.mrb[0].mxu0
      %956 = vmatprep.mubr.bf16.mxu0 0
      %957 = vmatmul.mubr.bf16.gmra.mrb[0].mxu0 %v798
      %v958 = vpop.f32.mrb[0].mxu0
      %v959 = vadd.f32 0.0, %v958
      %v960 = vpop.f32.mrb[0].mxu0
      %v961 = vpop.f32.mrb[0].mxu0
      %v962 = vadd.f32 0.0, %v961
      %v963 = vpop.f32.mrb[0].mxu0
      %964 = vdwg.mxu0
      %v997 = vunpack.c.l.b16 %v597
      %v998 = vunpack.c.l.b16 %v598
      %v999 = vunpack.c.l.b16 %v605
      %v1000 = vunpack.c.l.b16 %v606
      %v1001 = vunpack.c.l.b16 %v607
      %v1002 = vunpack.c.l.b16 %v608
      %v1003 = vunpack.c.l.b16 %v609
      %v1004 = vunpack.c.l.b16 %v610
      %v1005 = vunpack.c.l.b16 %v611
      %v1006 = vunpack.c.l.b16 %v612
      %v1007 = vunpack.c.l.b16 %v613
      %v1008 = vunpack.c.l.b16 %v614
      %v1009 = vunpack.c.l.b16 %v615
      %v1010 = vunpack.c.l.b16 %v616
      %v1011 = vunpack.c.l.b16 %v617
      %v1012 = vunpack.c.l.b16 %v618
      %v1013 = vunpack.c.l.b16 %v619
      %v1014 = vunpack.c.l.b16 %v620
      %v1015 = vunpack.c.l.b16 %v621
      %v1016 = vunpack.c.l.b16 %v622
      %v1017 = vunpack.c.l.b16 %v623
      %v1018 = vunpack.c.l.b16 %v624
      %v1019 = vunpack.c.l.b16 %v625
      %v1020 = vunpack.c.l.b16 %v626
      %v1021 = vunpack.c.l.b16 %v627
      %v1022 = vunpack.c.l.b16 %v628
      %v1023 = vunpack.c.l.b16 %v629
      %v1024 = vunpack.c.l.b16 %v630
      %v1025 = vunpack.c.l.b16 %v631
      %v1026 = vunpack.c.l.b16 %v632
      %v1027 = vunpack.c.l.b16 %v633
      %v1028 = vunpack.c.l.b16 %v634
      %v1029 = vpack.c.b16 %v998, %v997
      %v1030 = vpack.c.b16 %v1000, %v999
      %v1031 = vpack.c.b16 %v1002, %v1001
      %v1032 = vpack.c.b16 %v1004, %v1003
      %v1033 = vpack.c.b16 %v1006, %v1005
      %v1034 = vpack.c.b16 %v1008, %v1007
      %v1035 = vpack.c.b16 %v1010, %v1009
      %v1036 = vpack.c.b16 %v1012, %v1011
      %v1037 = vpack.c.b16 %v1014, %v1013
      %v1038 = vpack.c.b16 %v1016, %v1015
      %v1039 = vpack.c.b16 %v1018, %v1017
      %v1040 = vpack.c.b16 %v1020, %v1019
      %v1041 = vpack.c.b16 %v1022, %v1021
      %v1042 = vpack.c.b16 %v1024, %v1023
      %v1043 = vpack.c.b16 %v1026, %v1025
      %v1044 = vpack.c.b16 %v1028, %v1027
      %vm1045 = vcmask 31744
      %v1047 = vsel %vm1045, %v1029, 0
      %v1050 = vsel %vm1045, %v1030, 0
      %v1053 = vsel %vm1045, %v1031, 0
      %v1056 = vsel %vm1045, %v1032, 0
      %v1059 = vsel %vm1045, %v1033, 0
      %v1062 = vsel %vm1045, %v1034, 0
      %v1065 = vsel %vm1045, %v1035, 0
      %v1068 = vsel %vm1045, %v1036, 0
      %v1071 = vsel %vm1045, %v1037, 0
      %v1074 = vsel %vm1045, %v1038, 0
      %v1077 = vsel %vm1045, %v1039, 0
      %v1080 = vsel %vm1045, %v1040, 0
      %v1083 = vsel %vm1045, %v1041, 0
      %v1086 = vsel %vm1045, %v1042, 0
      %v1089 = vsel %vm1045, %v1043, 0
      %v1092 = vsel %vm1045, %v1044, 0
      %vm1094 = vcmask 1041408
      %v1096 = vsel %vm1094, %v669, 0
      %1098 = vmatprep.subr.bf16.mxu0 0
      %1099 = vmatpush1.bf16.msra.mxu0 %v1096
      %1100 = vmatprep.subr.bf16.mxu0 0
      %1101 = vmatpush1.bf16.msra.mxu0 0
      %1102 = vmatprep.subr.bf16.mxu0 0
      %1103 = vmatpush1.bf16.msra.mxu0 0
      %1104 = vmatprep.subr.bf16.mxu0 0
      %1105 = vmatpush1.bf16.msra.mxu0 0
      %1106 = vmatprep.subr.bf16.mxu0 0
      %1107 = vmatpush1.bf16.msra.mxu0 0
      %1108 = vmatprep.subr.bf16.mxu0 0
      %1109 = vmatpush1.bf16.msra.mxu0 0
      %1110 = vmatprep.subr.bf16.mxu0 0
      %1111 = vmatpush1.bf16.msra.mxu0 0
      %1112 = vmatprep.subr.bf16.mxu0 0
      %1113 = vmatpush1.bf16.msra.mxu0 0
      %1114 = vmatprep.subr.bf16.mxu0 0
      %1115 = vmatpush1.bf16.msra.mxu0 0
      %1116 = vmatprep.subr.bf16.mxu0 0
      %1117 = vmatpush1.bf16.msra.mxu0 0
      %1118 = vmatprep.subr.bf16.mxu0 0
      %1119 = vmatpush1.bf16.msra.mxu0 0
      %1120 = vmatprep.subr.bf16.mxu0 0
      %1121 = vmatpush1.bf16.msra.mxu0 0
      %1122 = vmatprep.subr.bf16.mxu0 0
      %1123 = vmatpush1.bf16.msra.mxu0 0
      %1124 = vmatprep.subr.bf16.mxu0 0
      %1125 = vmatpush1.bf16.msra.mxu0 0
      %1126 = vmatprep.subr.bf16.mxu0 0
      %1127 = vmatpush1.bf16.msra.mxu0 0
      %1128 = vmatprep.subr.bf16.mxu0 0
      %1129 = vmatpush1.bf16.msra.mxu0 0
      %1130 = vmatprep.mubr.bf16.mxu0 0
      %1131 = vmatmul.mubr.bf16.gmra.mrb[0].mxu0 %v1047
      %v1132 = vpop.f32.mrb[0].mxu0
      %v1133 = vadd.f32 %v839, %v1132
      %v1134 = vpop.f32.mrb[0].mxu0
      %v1135 = vpop.f32.mrb[0].mxu0
      %v1136 = vadd.f32 %v842, %v1135
      %v1137 = vpop.f32.mrb[0].mxu0
      %1138 = vmatprep.mubr.bf16.mxu0 0
      %1139 = vmatmul.mubr.bf16.gmra.mrb[0].mxu0 %v1050
      %v1140 = vpop.f32.mrb[0].mxu0
      %v1141 = vadd.f32 %v847, %v1140
      %v1142 = vpop.f32.mrb[0].mxu0
      %v1143 = vpop.f32.mrb[0].mxu0
      %v1144 = vadd.f32 %v850, %v1143
      %v1145 = vpop.f32.mrb[0].mxu0
      %1146 = vmatprep.mubr.bf16.mxu0 0
      %1147 = vmatmul.mubr.bf16.gmra.mrb[0].mxu0 %v1053
      %v1148 = vpop.f32.mrb[0].mxu0
      %v1149 = vadd.f32 %v855, %v1148
      %v1150 = vpop.f32.mrb[0].mxu0
      %v1151 = vpop.f32.mrb[0].mxu0
      %v1152 = vadd.f32 %v858, %v1151
      %v1153 = vpop.f32.mrb[0].mxu0
      %1154 = vmatprep.mubr.bf16.mxu0 0
      %1155 = vmatmul.mubr.bf16.gmra.mrb[0].mxu0 %v1056
      %v1156 = vpop.f32.mrb[0].mxu0
      %v1157 = vadd.f32 %v863, %v1156
      %v1158 = vpop.f32.mrb[0].mxu0
      %v1159 = vpop.f32.mrb[0].mxu0
      %v1160 = vadd.f32 %v866, %v1159
      %v1161 = vpop.f32.mrb[0].mxu0
      %1162 = vmatprep.mubr.bf16.mxu0 0
      %1163 = vmatmul.mubr.bf16.gmra.mrb[0].mxu0 %v1059
      %v1164 = vpop.f32.mrb[0].mxu0
      %v1165 = vadd.f32 %v871, %v1164
      %v1166 = vpop.f32.mrb[0].mxu0
      %v1167 = vpop.f32.mrb[0].mxu0
      %v1168 = vadd.f32 %v874, %v1167
      %v1169 = vpop.f32.mrb[0].mxu0
      %1170 = vmatprep.mubr.bf16.mxu0 0
      %1171 = vmatmul.mubr.bf16.gmra.mrb[0].mxu0 %v1062
      %v1172 = vpop.f32.mrb[0].mxu0
      %v1173 = vadd.f32 %v879, %v1172
      %v1174 = vpop.f32.mrb[0].mxu0
      %v1175 = vpop.f32.mrb[0].mxu0
      %v1176 = vadd.f32 %v882, %v1175
      %v1177 = vpop.f32.mrb[0].mxu0
      %1178 = vmatprep.mubr.bf16.mxu0 0
      %1179 = vmatmul.mubr.bf16.gmra.mrb[0].mxu0 %v1065
      %v1180 = vpop.f32.mrb[0].mxu0
      %v1181 = vadd.f32 %v887, %v1180
      %v1182 = vpop.f32.mrb[0].mxu0
      %v1183 = vpop.f32.mrb[0].mxu0
      %v1184 = vadd.f32 %v890, %v1183
      %v1185 = vpop.f32.mrb[0].mxu0
      %1186 = vmatprep.mubr.bf16.mxu0 0
      %1187 = vmatmul.mubr.bf16.gmra.mrb[0].mxu0 %v1068
      %v1188 = vpop.f32.mrb[0].mxu0
      %v1189 = vadd.f32 %v895, %v1188
      %v1190 = vpop.f32.mrb[0].mxu0
      %v1191 = vpop.f32.mrb[0].mxu0
      %v1192 = vadd.f32 %v898, %v1191
      %v1193 = vpop.f32.mrb[0].mxu0
      %1194 = vmatprep.mubr.bf16.mxu0 0
      %1195 = vmatmul.mubr.bf16.gmra.mrb[0].mxu0 %v1071
      %v1196 = vpop.f32.mrb[0].mxu0
      %v1197 = vadd.f32 %v903, %v1196
      %v1198 = vpop.f32.mrb[0].mxu0
      %v1199 = vpop.f32.mrb[0].mxu0
      %v1200 = vadd.f32 %v906, %v1199
      %v1201 = vpop.f32.mrb[0].mxu0
      %1202 = vmatprep.mubr.bf16.mxu0 0
      %1203 = vmatmul.mubr.bf16.gmra.mrb[0].mxu0 %v1074
      %v1204 = vpop.f32.mrb[0].mxu0
      %v1205 = vadd.f32 %v911, %v1204
      %v1206 = vpop.f32.mrb[0].mxu0
      %v1207 = vpop.f32.mrb[0].mxu0
      %v1208 = vadd.f32 %v914, %v1207
      %v1209 = vpop.f32.mrb[0].mxu0
      %1210 = vmatprep.mubr.bf16.mxu0 0
      %1211 = vmatmul.mubr.bf16.gmra.mrb[0].mxu0 %v1077
      %v1212 = vpop.f32.mrb[0].mxu0
      %v1213 = vadd.f32 %v919, %v1212
      %v1214 = vpop.f32.mrb[0].mxu0
      %v1215 = vpop.f32.mrb[0].mxu0
      %v1216 = vadd.f32 %v922, %v1215
      %v1217 = vpop.f32.mrb[0].mxu0
      %1218 = vmatprep.mubr.bf16.mxu0 0
      %1219 = vmatmul.mubr.bf16.gmra.mrb[0].mxu0 %v1080
      %v1220 = vpop.f32.mrb[0].mxu0
      %v1221 = vadd.f32 %v927, %v1220
      %v1222 = vpop.f32.mrb[0].mxu0
      %v1223 = vpop.f32.mrb[0].mxu0
      %v1224 = vadd.f32 %v930, %v1223
      %v1225 = vpop.f32.mrb[0].mxu0
      %1226 = vmatprep.mubr.bf16.mxu0 0
      %1227 = vmatmul.mubr.bf16.gmra.mrb[0].mxu0 %v1083
      %v1228 = vpop.f32.mrb[0].mxu0
      %v1229 = vadd.f32 %v935, %v1228
      %v1230 = vpop.f32.mrb[0].mxu0
      %v1231 = vpop.f32.mrb[0].mxu0
      %v1232 = vadd.f32 %v938, %v1231
      %v1233 = vpop.f32.mrb[0].mxu0
      %1234 = vmatprep.mubr.bf16.mxu0 0
      %1235 = vmatmul.mubr.bf16.gmra.mrb[0].mxu0 %v1086
      %v1236 = vpop.f32.mrb[0].mxu0
      %v1237 = vadd.f32 %v943, %v1236
      %v1238 = vpop.f32.mrb[0].mxu0
      %v1239 = vpop.f32.mrb[0].mxu0
      %v1240 = vadd.f32 %v946, %v1239
      %v1241 = vpop.f32.mrb[0].mxu0
      %1242 = vmatprep.mubr.bf16.mxu0 0
      %1243 = vmatmul.mubr.bf16.gmra.mrb[0].mxu0 %v1089
      %v1244 = vpop.f32.mrb[0].mxu0
      %v1245 = vadd.f32 %v951, %v1244
      %v1246 = vpop.f32.mrb[0].mxu0
      %v1247 = vpop.f32.mrb[0].mxu0
      %v1248 = vadd.f32 %v954, %v1247
      %v1249 = vpop.f32.mrb[0].mxu0
      %1250 = vmatprep.mubr.bf16.mxu0 0
      %1251 = vmatmul.mubr.bf16.gmra.mrb[0].mxu0 %v1092
      %v1252 = vpop.f32.mrb[0].mxu0
      %v1253 = vadd.f32 %v959, %v1252
      %v1254 = vpop.f32.mrb[0].mxu0
      %v1255 = vpop.f32.mrb[0].mxu0
      %v1256 = vadd.f32 %v962, %v1255
      %v1257 = vpop.f32.mrb[0].mxu0
      %1258 = vdwg.mxu0
      %s1259 = scalar_lea.vmem %s556, 2
      %v1260 = vld [vmem:[%s1259] sm:$0x3]
      %v1263 = vunpack.c.l.b16 %v635
      %v1264 = vunpack.c.l.b16 %v636
      %v1265 = vpack.c.b16 %v1264, %v1263
      %v1267 = vsel %vm1045, %v1265, 0
      %v1270 = vsel %vm1094, %v1260, 0
      %1272 = vmatprep.subr.bf16.mxu0 0
      %1273 = vmatpush1.bf16.msra.mxu0 %v1270
      %1274 = vmatprep.subr.bf16.mxu0 0
      %1275 = vmatpush1.bf16.msra.mxu0 0
      %1276 = vmatprep.subr.bf16.mxu0 0
      %1277 = vmatpush1.bf16.msra.mxu0 0
      %1278 = vmatprep.subr.bf16.mxu0 0
      %1279 = vmatpush1.bf16.msra.mxu0 0
      %1280 = vmatprep.subr.bf16.mxu0 0
      %1281 = vmatpush1.bf16.msra.mxu0 0
      %1282 = vmatprep.subr.bf16.mxu0 0
      %1283 = vmatpush1.bf16.msra.mxu0 0
      %1284 = vmatprep.subr.bf16.mxu0 0
      %1285 = vmatpush1.bf16.msra.mxu0 0
      %1286 = vmatprep.subr.bf16.mxu0 0
      %1287 = vmatpush1.bf16.msra.mxu0 0
      %1288 = vmatprep.subr.bf16.mxu0 0
      %1289 = vmatpush1.bf16.msra.mxu0 0
      %1290 = vmatprep.subr.bf16.mxu0 0
      %1291 = vmatpush1.bf16.msra.mxu0 0
      %1292 = vmatprep.subr.bf16.mxu0 0
      %1293 = vmatpush1.bf16.msra.mxu0 0
      %1294 = vmatprep.subr.bf16.mxu0 0
      %1295 = vmatpush1.bf16.msra.mxu0 0
      %1296 = vmatprep.subr.bf16.mxu0 0
      %1297 = vmatpush1.bf16.msra.mxu0 0
      %1298 = vmatprep.subr.bf16.mxu0 0
      %1299 = vmatpush1.bf16.msra.mxu0 0
      %1300 = vmatprep.subr.bf16.mxu0 0
      %1301 = vmatpush1.bf16.msra.mxu0 0
      %1302 = vmatprep.subr.bf16.mxu0 0
      %1303 = vmatpush1.bf16.msra.mxu0 0
      %1304 = vmatprep.mubr.bf16.mxu0 0
      %1305 = vmatmul.mubr.bf16.gmra.mrb[0].mxu0 %v1050
      %v1306 = vpop.f32.mrb[0].mxu0
      %v1307 = vadd.f32 0.0, %v1306
      %v1308 = vpop.f32.mrb[0].mxu0
      %v1309 = vpop.f32.mrb[0].mxu0
      %v1310 = vadd.f32 0.0, %v1309
      %v1311 = vpop.f32.mrb[0].mxu0
      %1312 = vmatprep.mubr.bf16.mxu0 0
      %1313 = vmatmul.mubr.bf16.gmra.mrb[0].mxu0 %v1053
      %v1314 = vpop.f32.mrb[0].mxu0
      %v1315 = vadd.f32 0.0, %v1314
      %v1316 = vpop.f32.mrb[0].mxu0
      %v1317 = vpop.f32.mrb[0].mxu0
      %v1318 = vadd.f32 0.0, %v1317
      %v1319 = vpop.f32.mrb[0].mxu0
      %1320 = vmatprep.mubr.bf16.mxu0 0
      %1321 = vmatmul.mubr.bf16.gmra.mrb[0].mxu0 %v1056
      %v1322 = vpop.f32.mrb[0].mxu0
      %v1323 = vadd.f32 0.0, %v1322
      %v1324 = vpop.f32.mrb[0].mxu0
      %v1325 = vpop.f32.mrb[0].mxu0
      %v1326 = vadd.f32 0.0, %v1325
      %v1327 = vpop.f32.mrb[0].mxu0
      %1328 = vmatprep.mubr.bf16.mxu0 0
      %1329 = vmatmul.mubr.bf16.gmra.mrb[0].mxu0 %v1059
      %v1330 = vpop.f32.mrb[0].mxu0
      %v1331 = vadd.f32 0.0, %v1330
      %v1332 = vpop.f32.mrb[0].mxu0
      %v1333 = vpop.f32.mrb[0].mxu0
      %v1334 = vadd.f32 0.0, %v1333
      %v1335 = vpop.f32.mrb[0].mxu0
      %1336 = vmatprep.mubr.bf16.mxu0 0
      %1337 = vmatmul.mubr.bf16.gmra.mrb[0].mxu0 %v1062
      %v1338 = vpop.f32.mrb[0].mxu0
      %v1339 = vadd.f32 0.0, %v1338
      %v1340 = vpop.f32.mrb[0].mxu0
      %v1341 = vpop.f32.mrb[0].mxu0
      %v1342 = vadd.f32 0.0, %v1341
      %v1343 = vpop.f32.mrb[0].mxu0
      %1344 = vmatprep.mubr.bf16.mxu0 0
      %1345 = vmatmul.mubr.bf16.gmra.mrb[0].mxu0 %v1065
      %v1346 = vpop.f32.mrb[0].mxu0
      %v1347 = vadd.f32 0.0, %v1346
      %v1348 = vpop.f32.mrb[0].mxu0
      %v1349 = vpop.f32.mrb[0].mxu0
      %v1350 = vadd.f32 0.0, %v1349
      %v1351 = vpop.f32.mrb[0].mxu0
      %1352 = vmatprep.mubr.bf16.mxu0 0
      %1353 = vmatmul.mubr.bf16.gmra.mrb[0].mxu0 %v1068
      %v1354 = vpop.f32.mrb[0].mxu0
      %v1355 = vadd.f32 0.0, %v1354
      %v1356 = vpop.f32.mrb[0].mxu0
      %v1357 = vpop.f32.mrb[0].mxu0
      %v1358 = vadd.f32 0.0, %v1357
      %v1359 = vpop.f32.mrb[0].mxu0
      %1360 = vmatprep.mubr.bf16.mxu0 0
      %1361 = vmatmul.mubr.bf16.gmra.mrb[0].mxu0 %v1071
      %v1362 = vpop.f32.mrb[0].mxu0
      %v1363 = vadd.f32 0.0, %v1362
      %v1364 = vpop.f32.mrb[0].mxu0
      %v1365 = vpop.f32.mrb[0].mxu0
      %v1366 = vadd.f32 0.0, %v1365
      %v1367 = vpop.f32.mrb[0].mxu0
      %1368 = vmatprep.mubr.bf16.mxu0 0
      %1369 = vmatmul.mubr.bf16.gmra.mrb[0].mxu0 %v1074
      %v1370 = vpop.f32.mrb[0].mxu0
      %v1371 = vadd.f32 0.0, %v1370
      %v1372 = vpop.f32.mrb[0].mxu0
      %v1373 = vpop.f32.mrb[0].mxu0
      %v1374 = vadd.f32 0.0, %v1373
      %v1375 = vpop.f32.mrb[0].mxu0
      %1376 = vmatprep.mubr.bf16.mxu0 0
      %1377 = vmatmul.mubr.bf16.gmra.mrb[0].mxu0 %v1077
      %v1378 = vpop.f32.mrb[0].mxu0
      %v1379 = vadd.f32 0.0, %v1378
      %v1380 = vpop.f32.mrb[0].mxu0
      %v1381 = vpop.f32.mrb[0].mxu0
      %v1382 = vadd.f32 0.0, %v1381
      %v1383 = vpop.f32.mrb[0].mxu0
      %1384 = vmatprep.mubr.bf16.mxu0 0
      %1385 = vmatmul.mubr.bf16.gmra.mrb[0].mxu0 %v1080
      %v1386 = vpop.f32.mrb[0].mxu0
      %v1387 = vadd.f32 0.0, %v1386
      %v1388 = vpop.f32.mrb[0].mxu0
      %v1389 = vpop.f32.mrb[0].mxu0
      %v1390 = vadd.f32 0.0, %v1389
      %v1391 = vpop.f32.mrb[0].mxu0
      %1392 = vmatprep.mubr.bf16.mxu0 0
      %1393 = vmatmul.mubr.bf16.gmra.mrb[0].mxu0 %v1083
      %v1394 = vpop.f32.mrb[0].mxu0
      %v1395 = vadd.f32 0.0, %v1394
      %v1396 = vpop.f32.mrb[0].mxu0
      %v1397 = vpop.f32.mrb[0].mxu0
      %v1398 = vadd.f32 0.0, %v1397
      %v1399 = vpop.f32.mrb[0].mxu0
      %1400 = vmatprep.mubr.bf16.mxu0 0
      %1401 = vmatmul.mubr.bf16.gmra.mrb[0].mxu0 %v1086
      %v1402 = vpop.f32.mrb[0].mxu0
      %v1403 = vadd.f32 0.0, %v1402
      %v1404 = vpop.f32.mrb[0].mxu0
      %v1405 = vpop.f32.mrb[0].mxu0
      %v1406 = vadd.f32 0.0, %v1405
      %v1407 = vpop.f32.mrb[0].mxu0
      %1408 = vmatprep.mubr.bf16.mxu0 0
      %1409 = vmatmul.mubr.bf16.gmra.mrb[0].mxu0 %v1089
      %v1410 = vpop.f32.mrb[0].mxu0
      %v1411 = vadd.f32 0.0, %v1410
      %v1412 = vpop.f32.mrb[0].mxu0
      %v1413 = vpop.f32.mrb[0].mxu0
      %v1414 = vadd.f32 0.0, %v1413
      %v1415 = vpop.f32.mrb[0].mxu0
      %1416 = vmatprep.mubr.bf16.mxu0 0
      %1417 = vmatmul.mubr.bf16.gmra.mrb[0].mxu0 %v1092
      %v1418 = vpop.f32.mrb[0].mxu0
      %v1419 = vadd.f32 0.0, %v1418
      %v1420 = vpop.f32.mrb[0].mxu0
      %v1421 = vpop.f32.mrb[0].mxu0
      %v1422 = vadd.f32 0.0, %v1421
      %v1423 = vpop.f32.mrb[0].mxu0
      %1424 = vmatprep.mubr.bf16.mxu0 0
      %1425 = vmatmul.mubr.bf16.gmra.mrb[0].mxu0 %v1267
      %v1426 = vpop.f32.mrb[0].mxu0
      %v1427 = vadd.f32 0.0, %v1426
      %v1428 = vpop.f32.mrb[0].mxu0
      %v1429 = vpop.f32.mrb[0].mxu0
      %v1430 = vadd.f32 0.0, %v1429
      %v1431 = vpop.f32.mrb[0].mxu0
      %1432 = vdwg.mxu0
      %v1433 = vadd.f32 %v1133, %v1307
      %v1434 = vadd.f32 %v1136, %v1310
      %v1435 = vadd.f32 %v1141, %v1315
      %v1436 = vadd.f32 %v1144, %v1318
      %v1437 = vadd.f32 %v1149, %v1323
      %v1438 = vadd.f32 %v1152, %v1326
      %v1439 = vadd.f32 %v1157, %v1331
      %v1440 = vadd.f32 %v1160, %v1334
      %v1441 = vadd.f32 %v1165, %v1339
      %v1442 = vadd.f32 %v1168, %v1342
      %v1443 = vadd.f32 %v1173, %v1347
      %v1444 = vadd.f32 %v1176, %v1350
      %v1445 = vadd.f32 %v1181, %v1355
      %v1446 = vadd.f32 %v1184, %v1358
      %v1447 = vadd.f32 %v1189, %v1363
      %v1448 = vadd.f32 %v1192, %v1366
      %v1449 = vadd.f32 %v1197, %v1371
      %v1450 = vadd.f32 %v1200, %v1374
      %v1451 = vadd.f32 %v1205, %v1379
      %v1452 = vadd.f32 %v1208, %v1382
      %v1453 = vadd.f32 %v1213, %v1387
      %v1454 = vadd.f32 %v1216, %v1390
      %v1455 = vadd.f32 %v1221, %v1395
      %v1456 = vadd.f32 %v1224, %v1398
      %v1457 = vadd.f32 %v1229, %v1403
      %v1458 = vadd.f32 %v1232, %v1406
      %v1459 = vadd.f32 %v1237, %v1411
      %v1460 = vadd.f32 %v1240, %v1414
      %v1461 = vadd.f32 %v1245, %v1419
      %v1462 = vadd.f32 %v1248, %v1422
      %v1463 = vadd.f32 %v1253, %v1427
      %v1464 = vadd.f32 %v1256, %v1430
      %s1465 = scalar_lea.vmem %s560, 4
      %v1466 = vld [vmem:[%s1465] sm:$0xf]
      %v1469 = vunpack.c.l.b16 %v667
      %v1470 = vunpack.c.l.b16 %v668
      %v1471 = vpack.c.b16 %v1470, %v1469
      %v1473 = vsel %vm751, %v1471, 0
      %v1476 = vsel %vm800, %v1466, 0
      %1478 = vmatprep.subr.bf16.mxu0 0
      %1479 = vmatpush1.bf16.msra.mxu0 %v1476
      %1480 = vmatprep.subr.bf16.mxu0 0
      %1481 = vmatpush1.bf16.msra.mxu0 0
      %1482 = vmatprep.subr.bf16.mxu0 0
      %1483 = vmatpush1.bf16.msra.mxu0 0
      %1484 = vmatprep.subr.bf16.mxu0 0
      %1485 = vmatpush1.bf16.msra.mxu0 0
      %1486 = vmatprep.subr.bf16.mxu0 0
      %1487 = vmatpush1.bf16.msra.mxu0 0
      %1488 = vmatprep.subr.bf16.mxu0 0
      %1489 = vmatpush1.bf16.msra.mxu0 0
      %1490 = vmatprep.subr.bf16.mxu0 0
      %1491 = vmatpush1.bf16.msra.mxu0 0
      %1492 = vmatprep.subr.bf16.mxu0 0
      %1493 = vmatpush1.bf16.msra.mxu0 0
      %1494 = vmatprep.subr.bf16.mxu0 0
      %1495 = vmatpush1.bf16.msra.mxu0 0
      %1496 = vmatprep.subr.bf16.mxu0 0
      %1497 = vmatpush1.bf16.msra.mxu0 0
      %1498 = vmatprep.subr.bf16.mxu0 0
      %1499 = vmatpush1.bf16.msra.mxu0 0
      %1500 = vmatprep.subr.bf16.mxu0 0
      %1501 = vmatpush1.bf16.msra.mxu0 0
      %1502 = vmatprep.subr.bf16.mxu0 0
      %1503 = vmatpush1.bf16.msra.mxu0 0
      %1504 = vmatprep.subr.bf16.mxu0 0
      %1505 = vmatpush1.bf16.msra.mxu0 0
      %1506 = vmatprep.subr.bf16.mxu0 0
      %1507 = vmatpush1.bf16.msra.mxu0 0
      %1508 = vmatprep.subr.bf16.mxu0 0
      %1509 = vmatpush1.bf16.msra.mxu0 0
      %1510 = vmatprep.mubr.bf16.mxu0 0
      %1511 = vmatmul.mubr.bf16.gmra.mrb[0].mxu0 %v756
      %v1512 = vpop.f32.mrb[0].mxu0
      %v1513 = vadd.f32 0.0, %v1512
      %v1514 = vpop.f32.mrb[0].mxu0
      %v1515 = vpop.f32.mrb[0].mxu0
      %v1516 = vadd.f32 0.0, %v1515
      %v1517 = vpop.f32.mrb[0].mxu0
      %1518 = vmatprep.mubr.bf16.mxu0 0
      %1519 = vmatmul.mubr.bf16.gmra.mrb[0].mxu0 %v759
      %v1520 = vpop.f32.mrb[0].mxu0
      %v1521 = vadd.f32 0.0, %v1520
      %v1522 = vpop.f32.mrb[0].mxu0
      %v1523 = vpop.f32.mrb[0].mxu0
      %v1524 = vadd.f32 0.0, %v1523
      %v1525 = vpop.f32.mrb[0].mxu0
      %1526 = vmatprep.mubr.bf16.mxu0 0
      %1527 = vmatmul.mubr.bf16.gmra.mrb[0].mxu0 %v762
      %v1528 = vpop.f32.mrb[0].mxu0
      %v1529 = vadd.f32 0.0, %v1528
      %v1530 = vpop.f32.mrb[0].mxu0
      %v1531 = vpop.f32.mrb[0].mxu0
      %v1532 = vadd.f32 0.0, %v1531
      %v1533 = vpop.f32.mrb[0].mxu0
      %1534 = vmatprep.mubr.bf16.mxu0 0
      %1535 = vmatmul.mubr.bf16.gmra.mrb[0].mxu0 %v765
      %v1536 = vpop.f32.mrb[0].mxu0
      %v1537 = vadd.f32 0.0, %v1536
      %v1538 = vpop.f32.mrb[0].mxu0
      %v1539 = vpop.f32.mrb[0].mxu0
      %v1540 = vadd.f32 0.0, %v1539
      %v1541 = vpop.f32.mrb[0].mxu0
      %1542 = vmatprep.mubr.bf16.mxu0 0
      %1543 = vmatmul.mubr.bf16.gmra.mrb[0].mxu0 %v768
      %v1544 = vpop.f32.mrb[0].mxu0
      %v1545 = vadd.f32 0.0, %v1544
      %v1546 = vpop.f32.mrb[0].mxu0
      %v1547 = vpop.f32.mrb[0].mxu0
      %v1548 = vadd.f32 0.0, %v1547
      %v1549 = vpop.f32.mrb[0].mxu0
      %1550 = vmatprep.mubr.bf16.mxu0 0
      %1551 = vmatmul.mubr.bf16.gmra.mrb[0].mxu0 %v771
      %v1552 = vpop.f32.mrb[0].mxu0
      %v1553 = vadd.f32 0.0, %v1552
      %v1554 = vpop.f32.mrb[0].mxu0
      %v1555 = vpop.f32.mrb[0].mxu0
      %v1556 = vadd.f32 0.0, %v1555
      %v1557 = vpop.f32.mrb[0].mxu0
      %1558 = vmatprep.mubr.bf16.mxu0 0
      %1559 = vmatmul.mubr.bf16.gmra.mrb[0].mxu0 %v774
      %v1560 = vpop.f32.mrb[0].mxu0
      %v1561 = vadd.f32 0.0, %v1560
      %v1562 = vpop.f32.mrb[0].mxu0
      %v1563 = vpop.f32.mrb[0].mxu0
      %v1564 = vadd.f32 0.0, %v1563
      %v1565 = vpop.f32.mrb[0].mxu0
      %1566 = vmatprep.mubr.bf16.mxu0 0
      %1567 = vmatmul.mubr.bf16.gmra.mrb[0].mxu0 %v777
      %v1568 = vpop.f32.mrb[0].mxu0
      %v1569 = vadd.f32 0.0, %v1568
      %v1570 = vpop.f32.mrb[0].mxu0
      %v1571 = vpop.f32.mrb[0].mxu0
      %v1572 = vadd.f32 0.0, %v1571
      %v1573 = vpop.f32.mrb[0].mxu0
      %1574 = vmatprep.mubr.bf16.mxu0 0
      %1575 = vmatmul.mubr.bf16.gmra.mrb[0].mxu0 %v780
      %v1576 = vpop.f32.mrb[0].mxu0
      %v1577 = vadd.f32 0.0, %v1576
      %v1578 = vpop.f32.mrb[0].mxu0
      %v1579 = vpop.f32.mrb[0].mxu0
      %v1580 = vadd.f32 0.0, %v1579
      %v1581 = vpop.f32.mrb[0].mxu0
      %1582 = vmatprep.mubr.bf16.mxu0 0
      %1583 = vmatmul.mubr.bf16.gmra.mrb[0].mxu0 %v783
      %v1584 = vpop.f32.mrb[0].mxu0
      %v1585 = vadd.f32 0.0, %v1584
      %v1586 = vpop.f32.mrb[0].mxu0
      %v1587 = vpop.f32.mrb[0].mxu0
      %v1588 = vadd.f32 0.0, %v1587
      %v1589 = vpop.f32.mrb[0].mxu0
      %1590 = vmatprep.mubr.bf16.mxu0 0
      %1591 = vmatmul.mubr.bf16.gmra.mrb[0].mxu0 %v786
      %v1592 = vpop.f32.mrb[0].mxu0
      %v1593 = vadd.f32 0.0, %v1592
      %v1594 = vpop.f32.mrb[0].mxu0
      %v1595 = vpop.f32.mrb[0].mxu0
      %v1596 = vadd.f32 0.0, %v1595
      %v1597 = vpop.f32.mrb[0].mxu0
      %1598 = vmatprep.mubr.bf16.mxu0 0
      %1599 = vmatmul.mubr.bf16.gmra.mrb[0].mxu0 %v789
      %v1600 = vpop.f32.mrb[0].mxu0
      %v1601 = vadd.f32 0.0, %v1600
      %v1602 = vpop.f32.mrb[0].mxu0
      %v1603 = vpop.f32.mrb[0].mxu0
      %v1604 = vadd.f32 0.0, %v1603
      %v1605 = vpop.f32.mrb[0].mxu0
      %1606 = vmatprep.mubr.bf16.mxu0 0
      %1607 = vmatmul.mubr.bf16.gmra.mrb[0].mxu0 %v792
      %v1608 = vpop.f32.mrb[0].mxu0
      %v1609 = vadd.f32 0.0, %v1608
      %v1610 = vpop.f32.mrb[0].mxu0
      %v1611 = vpop.f32.mrb[0].mxu0
      %v1612 = vadd.f32 0.0, %v1611
      %v1613 = vpop.f32.mrb[0].mxu0
      %1614 = vmatprep.mubr.bf16.mxu0 0
      %1615 = vmatmul.mubr.bf16.gmra.mrb[0].mxu0 %v795
      %v1616 = vpop.f32.mrb[0].mxu0
      %v1617 = vadd.f32 0.0, %v1616
      %v1618 = vpop.f32.mrb[0].mxu0
      %v1619 = vpop.f32.mrb[0].mxu0
      %v1620 = vadd.f32 0.0, %v1619
      %v1621 = vpop.f32.mrb[0].mxu0
      %1622 = vmatprep.mubr.bf16.mxu0 0
      %1623 = vmatmul.mubr.bf16.gmra.mrb[0].mxu0 %v798
      %v1624 = vpop.f32.mrb[0].mxu0
      %v1625 = vadd.f32 0.0, %v1624
      %v1626 = vpop.f32.mrb[0].mxu0
      %v1627 = vpop.f32.mrb[0].mxu0
      %v1628 = vadd.f32 0.0, %v1627
      %v1629 = vpop.f32.mrb[0].mxu0
      %1630 = vmatprep.mubr.bf16.mxu0 0
      %1631 = vmatmul.mubr.bf16.gmra.mrb[0].mxu0 %v1473
      %v1632 = vpop.f32.mrb[0].mxu0
      %v1633 = vadd.f32 0.0, %v1632
      %v1634 = vpop.f32.mrb[0].mxu0
      %v1635 = vpop.f32.mrb[0].mxu0
      %v1636 = vadd.f32 0.0, %v1635
      %v1637 = vpop.f32.mrb[0].mxu0
      %1638 = vdwg.mxu0
      %v1639 = vadd.f32 %v1433, %v1513
      %v1640 = vadd.f32 %v1434, %v1516
      %v1641 = vadd.f32 %v1435, %v1521
      %v1642 = vadd.f32 %v1436, %v1524
      %v1643 = vadd.f32 %v1437, %v1529
      %v1644 = vadd.f32 %v1438, %v1532
      %v1645 = vadd.f32 %v1439, %v1537
      %v1646 = vadd.f32 %v1440, %v1540
      %v1647 = vadd.f32 %v1441, %v1545
      %v1648 = vadd.f32 %v1442, %v1548
      %v1649 = vadd.f32 %v1443, %v1553
      %v1650 = vadd.f32 %v1444, %v1556
      %v1651 = vadd.f32 %v1445, %v1561
      %v1652 = vadd.f32 %v1446, %v1564
      %v1653 = vadd.f32 %v1447, %v1569
      %v1654 = vadd.f32 %v1448, %v1572
      %v1655 = vadd.f32 %v1449, %v1577
      %v1656 = vadd.f32 %v1450, %v1580
      %v1657 = vadd.f32 %v1451, %v1585
      %v1658 = vadd.f32 %v1452, %v1588
      %v1659 = vadd.f32 %v1453, %v1593
      %v1660 = vadd.f32 %v1454, %v1596
      %v1661 = vadd.f32 %v1455, %v1601
      %v1662 = vadd.f32 %v1456, %v1604
      %v1663 = vadd.f32 %v1457, %v1609
      %v1664 = vadd.f32 %v1458, %v1612
      %v1665 = vadd.f32 %v1459, %v1617
      %v1666 = vadd.f32 %v1460, %v1620
      %v1667 = vadd.f32 %v1461, %v1625
      %v1668 = vadd.f32 %v1462, %v1628
      %v1669 = vadd.f32 %v1463, %v1633
      %v1670 = vadd.f32 %v1464, %v1636
      %s1671 = scalar_lea.vmem %s556, 4
      %v1672 = vld [vmem:[%s1671] sm:$0x3]
      %v1675 = vunpack.c.l.b16 %v599
      %v1676 = vunpack.c.l.b16 %v600
      %v1677 = vpack.c.b16 %v1676, %v1675
      %v1679 = vsel %vm1045, %v1677, 0
      %v1682 = vsel %vm1094, %v1672, 0
      %1684 = vmatprep.subr.bf16.mxu0 0
      %1685 = vmatpush1.bf16.msra.mxu0 %v1682
      %1686 = vmatprep.subr.bf16.mxu0 0
      %1687 = vmatpush1.bf16.msra.mxu0 0
      %1688 = vmatprep.subr.bf16.mxu0 0
      %1689 = vmatpush1.bf16.msra.mxu0 0
      %1690 = vmatprep.subr.bf16.mxu0 0
      %1691 = vmatpush1.bf16.msra.mxu0 0
      %1692 = vmatprep.subr.bf16.mxu0 0
      %1693 = vmatpush1.bf16.msra.mxu0 0
      %1694 = vmatprep.subr.bf16.mxu0 0
      %1695 = vmatpush1.bf16.msra.mxu0 0
      %1696 = vmatprep.subr.bf16.mxu0 0
      %1697 = vmatpush1.bf16.msra.mxu0 0
      %1698 = vmatprep.subr.bf16.mxu0 0
      %1699 = vmatpush1.bf16.msra.mxu0 0
      %1700 = vmatprep.subr.bf16.mxu0 0
      %1701 = vmatpush1.bf16.msra.mxu0 0
      %1702 = vmatprep.subr.bf16.mxu0 0
      %1703 = vmatpush1.bf16.msra.mxu0 0
      %1704 = vmatprep.subr.bf16.mxu0 0
      %1705 = vmatpush1.bf16.msra.mxu0 0
      %1706 = vmatprep.subr.bf16.mxu0 0
      %1707 = vmatpush1.bf16.msra.mxu0 0
      %1708 = vmatprep.subr.bf16.mxu0 0
      %1709 = vmatpush1.bf16.msra.mxu0 0
      %1710 = vmatprep.subr.bf16.mxu0 0
      %1711 = vmatpush1.bf16.msra.mxu0 0
      %1712 = vmatprep.subr.bf16.mxu0 0
      %1713 = vmatpush1.bf16.msra.mxu0 0
      %1714 = vmatprep.subr.bf16.mxu0 0
      %1715 = vmatpush1.bf16.msra.mxu0 0
      %1716 = vmatprep.mubr.bf16.mxu0 0
      %1717 = vmatmul.mubr.bf16.gmra.mrb[0].mxu0 %v1053
      %v1718 = vpop.f32.mrb[0].mxu0
      %v1719 = vadd.f32 0.0, %v1718
      %v1720 = vpop.f32.mrb[0].mxu0
      %v1721 = vpop.f32.mrb[0].mxu0
      %v1722 = vadd.f32 0.0, %v1721
      %v1723 = vpop.f32.mrb[0].mxu0
      %1724 = vmatprep.mubr.bf16.mxu0 0
      %1725 = vmatmul.mubr.bf16.gmra.mrb[0].mxu0 %v1056
      %v1726 = vpop.f32.mrb[0].mxu0
      %v1727 = vadd.f32 0.0, %v1726
      %v1728 = vpop.f32.mrb[0].mxu0
      %v1729 = vpop.f32.mrb[0].mxu0
      %v1730 = vadd.f32 0.0, %v1729
      %v1731 = vpop.f32.mrb[0].mxu0
      %1732 = vmatprep.mubr.bf16.mxu0 0
      %1733 = vmatmul.mubr.bf16.gmra.mrb[0].mxu0 %v1059
      %v1734 = vpop.f32.mrb[0].mxu0
      %v1735 = vadd.f32 0.0, %v1734
      %v1736 = vpop.f32.mrb[0].mxu0
      %v1737 = vpop.f32.mrb[0].mxu0
      %v1738 = vadd.f32 0.0, %v1737
      %v1739 = vpop.f32.mrb[0].mxu0
      %1740 = vmatprep.mubr.bf16.mxu0 0
      %1741 = vmatmul.mubr.bf16.gmra.mrb[0].mxu0 %v1062
      %v1742 = vpop.f32.mrb[0].mxu0
      %v1743 = vadd.f32 0.0, %v1742
      %v1744 = vpop.f32.mrb[0].mxu0
      %v1745 = vpop.f32.mrb[0].mxu0
      %v1746 = vadd.f32 0.0, %v1745
      %v1747 = vpop.f32.mrb[0].mxu0
      %1748 = vmatprep.mubr.bf16.mxu0 0
      %1749 = vmatmul.mubr.bf16.gmra.mrb[0].mxu0 %v1065
      %v1750 = vpop.f32.mrb[0].mxu0
      %v1751 = vadd.f32 0.0, %v1750
      %v1752 = vpop.f32.mrb[0].mxu0
      %v1753 = vpop.f32.mrb[0].mxu0
      %v1754 = vadd.f32 0.0, %v1753
      %v1755 = vpop.f32.mrb[0].mxu0
      %1756 = vmatprep.mubr.bf16.mxu0 0
      %1757 = vmatmul.mubr.bf16.gmra.mrb[0].mxu0 %v1068
      %v1758 = vpop.f32.mrb[0].mxu0
      %v1759 = vadd.f32 0.0, %v1758
      %v1760 = vpop.f32.mrb[0].mxu0
      %v1761 = vpop.f32.mrb[0].mxu0
      %v1762 = vadd.f32 0.0, %v1761
      %v1763 = vpop.f32.mrb[0].mxu0
      %1764 = vmatprep.mubr.bf16.mxu0 0
      %1765 = vmatmul.mubr.bf16.gmra.mrb[0].mxu0 %v1071
      %v1766 = vpop.f32.mrb[0].mxu0
      %v1767 = vadd.f32 0.0, %v1766
      %v1768 = vpop.f32.mrb[0].mxu0
      %v1769 = vpop.f32.mrb[0].mxu0
      %v1770 = vadd.f32 0.0, %v1769
      %v1771 = vpop.f32.mrb[0].mxu0
      %1772 = vmatprep.mubr.bf16.mxu0 0
      %1773 = vmatmul.mubr.bf16.gmra.mrb[0].mxu0 %v1074
      %v1774 = vpop.f32.mrb[0].mxu0
      %v1775 = vadd.f32 0.0, %v1774
      %v1776 = vpop.f32.mrb[0].mxu0
      %v1777 = vpop.f32.mrb[0].mxu0
      %v1778 = vadd.f32 0.0, %v1777
      %v1779 = vpop.f32.mrb[0].mxu0
      %1780 = vmatprep.mubr.bf16.mxu0 0
      %1781 = vmatmul.mubr.bf16.gmra.mrb[0].mxu0 %v1077
      %v1782 = vpop.f32.mrb[0].mxu0
      %v1783 = vadd.f32 0.0, %v1782
      %v1784 = vpop.f32.mrb[0].mxu0
      %v1785 = vpop.f32.mrb[0].mxu0
      %v1786 = vadd.f32 0.0, %v1785
      %v1787 = vpop.f32.mrb[0].mxu0
      %1788 = vmatprep.mubr.bf16.mxu0 0
      %1789 = vmatmul.mubr.bf16.gmra.mrb[0].mxu0 %v1080
      %v1790 = vpop.f32.mrb[0].mxu0
      %v1791 = vadd.f32 0.0, %v1790
      %v1792 = vpop.f32.mrb[0].mxu0
      %v1793 = vpop.f32.mrb[0].mxu0
      %v1794 = vadd.f32 0.0, %v1793
      %v1795 = vpop.f32.mrb[0].mxu0
      %1796 = vmatprep.mubr.bf16.mxu0 0
      %1797 = vmatmul.mubr.bf16.gmra.mrb[0].mxu0 %v1083
      %v1798 = vpop.f32.mrb[0].mxu0
      %v1799 = vadd.f32 0.0, %v1798
      %v1800 = vpop.f32.mrb[0].mxu0
      %v1801 = vpop.f32.mrb[0].mxu0
      %v1802 = vadd.f32 0.0, %v1801
      %v1803 = vpop.f32.mrb[0].mxu0
      %1804 = vmatprep.mubr.bf16.mxu0 0
      %1805 = vmatmul.mubr.bf16.gmra.mrb[0].mxu0 %v1086
      %v1806 = vpop.f32.mrb[0].mxu0
      %v1807 = vadd.f32 0.0, %v1806
      %v1808 = vpop.f32.mrb[0].mxu0
      %v1809 = vpop.f32.mrb[0].mxu0
      %v1810 = vadd.f32 0.0, %v1809
      %v1811 = vpop.f32.mrb[0].mxu0
      %1812 = vmatprep.mubr.bf16.mxu0 0
      %1813 = vmatmul.mubr.bf16.gmra.mrb[0].mxu0 %v1089
      %v1814 = vpop.f32.mrb[0].mxu0
      %v1815 = vadd.f32 0.0, %v1814
      %v1816 = vpop.f32.mrb[0].mxu0
      %v1817 = vpop.f32.mrb[0].mxu0
      %v1818 = vadd.f32 0.0, %v1817
      %v1819 = vpop.f32.mrb[0].mxu0
      %1820 = vmatprep.mubr.bf16.mxu0 0
      %1821 = vmatmul.mubr.bf16.gmra.mrb[0].mxu0 %v1092
      %v1822 = vpop.f32.mrb[0].mxu0
      %v1823 = vadd.f32 0.0, %v1822
      %v1824 = vpop.f32.mrb[0].mxu0
      %v1825 = vpop.f32.mrb[0].mxu0
      %v1826 = vadd.f32 0.0, %v1825
      %v1827 = vpop.f32.mrb[0].mxu0
      %1828 = vmatprep.mubr.bf16.mxu0 0
      %1829 = vmatmul.mubr.bf16.gmra.mrb[0].mxu0 %v1267
      %v1830 = vpop.f32.mrb[0].mxu0
      %v1831 = vadd.f32 0.0, %v1830
      %v1832 = vpop.f32.mrb[0].mxu0
      %v1833 = vpop.f32.mrb[0].mxu0
      %v1834 = vadd.f32 0.0, %v1833
      %v1835 = vpop.f32.mrb[0].mxu0
      %1836 = vmatprep.mubr.bf16.mxu0 0
      %1837 = vmatmul.mubr.bf16.gmra.mrb[0].mxu0 %v1679
      %v1838 = vpop.f32.mrb[0].mxu0
      %v1839 = vadd.f32 0.0, %v1838
      %v1840 = vpop.f32.mrb[0].mxu0
      %v1841 = vpop.f32.mrb[0].mxu0
      %v1842 = vadd.f32 0.0, %v1841
      %v1843 = vpop.f32.mrb[0].mxu0
      %1844 = vdwg.mxu0
      %v1845 = vadd.f32 %v1639, %v1719
      %v1846 = vadd.f32 %v1640, %v1722
      %v1847 = vadd.f32 %v1641, %v1727
      %v1848 = vadd.f32 %v1642, %v1730
      %v1849 = vadd.f32 %v1643, %v1735
      %v1850 = vadd.f32 %v1644, %v1738
      %v1851 = vadd.f32 %v1645, %v1743
      %v1852 = vadd.f32 %v1646, %v1746
      %v1853 = vadd.f32 %v1647, %v1751
      %v1854 = vadd.f32 %v1648, %v1754
      %v1855 = vadd.f32 %v1649, %v1759
      %v1856 = vadd.f32 %v1650, %v1762
      %v1857 = vadd.f32 %v1651, %v1767
      %v1858 = vadd.f32 %v1652, %v1770
      %v1859 = vadd.f32 %v1653, %v1775
      %v1860 = vadd.f32 %v1654, %v1778
      %v1861 = vadd.f32 %v1655, %v1783
      %v1862 = vadd.f32 %v1656, %v1786
      %v1863 = vadd.f32 %v1657, %v1791
      %v1864 = vadd.f32 %v1658, %v1794
      %v1865 = vadd.f32 %v1659, %v1799
      %v1866 = vadd.f32 %v1660, %v1802
      %v1867 = vadd.f32 %v1661, %v1807
      %v1868 = vadd.f32 %v1662, %v1810
      %v1869 = vadd.f32 %v1663, %v1815
      %v1870 = vadd.f32 %v1664, %v1818
      %v1871 = vadd.f32 %v1665, %v1823
      %v1872 = vadd.f32 %v1666, %v1826
      %v1873 = vadd.f32 %v1667, %v1831
      %v1874 = vadd.f32 %v1668, %v1834
      %v1875 = vadd.f32 %v1669, %v1839
      %v1876 = vadd.f32 %v1670, %v1842
      %s1877 = scalar_lea.vmem %s560, 8
      %v1878 = vld [vmem:[%s1877] sm:$0xf]
      %v1881 = vunpack.c.l.b16 %v603
      %v1882 = vunpack.c.l.b16 %v604
      %v1883 = vpack.c.b16 %v1882, %v1881
      %v1885 = vsel %vm751, %v1883, 0
      %v1888 = vsel %vm800, %v1878, 0
      %1890 = vmatprep.subr.bf16.mxu0 0
      %1891 = vmatpush1.bf16.msra.mxu0 %v1888
      %1892 = vmatprep.subr.bf16.mxu0 0
      %1893 = vmatpush1.bf16.msra.mxu0 0
      %1894 = vmatprep.subr.bf16.mxu0 0
      %1895 = vmatpush1.bf16.msra.mxu0 0
      %1896 = vmatprep.subr.bf16.mxu0 0
      %1897 = vmatpush1.bf16.msra.mxu0 0
      %1898 = vmatprep.subr.bf16.mxu0 0
      %1899 = vmatpush1.bf16.msra.mxu0 0
      %1900 = vmatprep.subr.bf16.mxu0 0
      %1901 = vmatpush1.bf16.msra.mxu0 0
      %1902 = vmatprep.subr.bf16.mxu0 0
      %1903 = vmatpush1.bf16.msra.mxu0 0
      %1904 = vmatprep.subr.bf16.mxu0 0
      %1905 = vmatpush1.bf16.msra.mxu0 0
      %1906 = vmatprep.subr.bf16.mxu0 0
      %1907 = vmatpush1.bf16.msra.mxu0 0
      %1908 = vmatprep.subr.bf16.mxu0 0
      %1909 = vmatpush1.bf16.msra.mxu0 0
      %1910 = vmatprep.subr.bf16.mxu0 0
      %1911 = vmatpush1.bf16.msra.mxu0 0
      %1912 = vmatprep.subr.bf16.mxu0 0
      %1913 = vmatpush1.bf16.msra.mxu0 0
      %1914 = vmatprep.subr.bf16.mxu0 0
      %1915 = vmatpush1.bf16.msra.mxu0 0
      %1916 = vmatprep.subr.bf16.mxu0 0
      %1917 = vmatpush1.bf16.msra.mxu0 0
      %1918 = vmatprep.subr.bf16.mxu0 0
      %1919 = vmatpush1.bf16.msra.mxu0 0
      %1920 = vmatprep.subr.bf16.mxu0 0
      %1921 = vmatpush1.bf16.msra.mxu0 0
      %1922 = vmatprep.mubr.bf16.mxu0 0
      %1923 = vmatmul.mubr.bf16.gmra.mrb[0].mxu0 %v759
      %v1924 = vpop.f32.mrb[0].mxu0
      %v1925 = vadd.f32 0.0, %v1924
      %v1926 = vpop.f32.mrb[0].mxu0
      %v1927 = vpop.f32.mrb[0].mxu0
      %v1928 = vadd.f32 0.0, %v1927
      %v1929 = vpop.f32.mrb[0].mxu0
      %1930 = vmatprep.mubr.bf16.mxu0 0
      %1931 = vmatmul.mubr.bf16.gmra.mrb[0].mxu0 %v762
      %v1932 = vpop.f32.mrb[0].mxu0
      %v1933 = vadd.f32 0.0, %v1932
      %v1934 = vpop.f32.mrb[0].mxu0
      %v1935 = vpop.f32.mrb[0].mxu0
      %v1936 = vadd.f32 0.0, %v1935
      %v1937 = vpop.f32.mrb[0].mxu0
      %1938 = vmatprep.mubr.bf16.mxu0 0
      %1939 = vmatmul.mubr.bf16.gmra.mrb[0].mxu0 %v765
      %v1940 = vpop.f32.mrb[0].mxu0
      %v1941 = vadd.f32 0.0, %v1940
      %v1942 = vpop.f32.mrb[0].mxu0
      %v1943 = vpop.f32.mrb[0].mxu0
      %v1944 = vadd.f32 0.0, %v1943
      %v1945 = vpop.f32.mrb[0].mxu0
      %1946 = vmatprep.mubr.bf16.mxu0 0
      %1947 = vmatmul.mubr.bf16.gmra.mrb[0].mxu0 %v768
      %v1948 = vpop.f32.mrb[0].mxu0
      %v1949 = vadd.f32 0.0, %v1948
      %v1950 = vpop.f32.mrb[0].mxu0
      %v1951 = vpop.f32.mrb[0].mxu0
      %v1952 = vadd.f32 0.0, %v1951
      %v1953 = vpop.f32.mrb[0].mxu0
      %1954 = vmatprep.mubr.bf16.mxu0 0
      %1955 = vmatmul.mubr.bf16.gmra.mrb[0].mxu0 %v771
      %v1956 = vpop.f32.mrb[0].mxu0
      %v1957 = vadd.f32 0.0, %v1956
      %v1958 = vpop.f32.mrb[0].mxu0
      %v1959 = vpop.f32.mrb[0].mxu0
      %v1960 = vadd.f32 0.0, %v1959
      %v1961 = vpop.f32.mrb[0].mxu0
      %1962 = vmatprep.mubr.bf16.mxu0 0
      %1963 = vmatmul.mubr.bf16.gmra.mrb[0].mxu0 %v774
      %v1964 = vpop.f32.mrb[0].mxu0
      %v1965 = vadd.f32 0.0, %v1964
      %v1966 = vpop.f32.mrb[0].mxu0
      %v1967 = vpop.f32.mrb[0].mxu0
      %v1968 = vadd.f32 0.0, %v1967
      %v1969 = vpop.f32.mrb[0].mxu0
      %1970 = vmatprep.mubr.bf16.mxu0 0
      %1971 = vmatmul.mubr.bf16.gmra.mrb[0].mxu0 %v777
      %v1972 = vpop.f32.mrb[0].mxu0
      %v1973 = vadd.f32 0.0, %v1972
      %v1974 = vpop.f32.mrb[0].mxu0
      %v1975 = vpop.f32.mrb[0].mxu0
      %v1976 = vadd.f32 0.0, %v1975
      %v1977 = vpop.f32.mrb[0].mxu0
      %1978 = vmatprep.mubr.bf16.mxu0 0
      %1979 = vmatmul.mubr.bf16.gmra.mrb[0].mxu0 %v780
      %v1980 = vpop.f32.mrb[0].mxu0
      %v1981 = vadd.f32 0.0, %v1980
      %v1982 = vpop.f32.mrb[0].mxu0
      %v1983 = vpop.f32.mrb[0].mxu0
      %v1984 = vadd.f32 0.0, %v1983
      %v1985 = vpop.f32.mrb[0].mxu0
      %1986 = vmatprep.mubr.bf16.mxu0 0
      %1987 = vmatmul.mubr.bf16.gmra.mrb[0].mxu0 %v783
      %v1988 = vpop.f32.mrb[0].mxu0
      %v1989 = vadd.f32 0.0, %v1988
      %v1990 = vpop.f32.mrb[0].mxu0
      %v1991 = vpop.f32.mrb[0].mxu0
      %v1992 = vadd.f32 0.0, %v1991
      %v1993 = vpop.f32.mrb[0].mxu0
      %1994 = vmatprep.mubr.bf16.mxu0 0
      %1995 = vmatmul.mubr.bf16.gmra.mrb[0].mxu0 %v786
      %v1996 = vpop.f32.mrb[0].mxu0
      %v1997 = vadd.f32 0.0, %v1996
      %v1998 = vpop.f32.mrb[0].mxu0
      %v1999 = vpop.f32.mrb[0].mxu0
      %v2000 = vadd.f32 0.0, %v1999
      %v2001 = vpop.f32.mrb[0].mxu0
      %2002 = vmatprep.mubr.bf16.mxu0 0
      %2003 = vmatmul.mubr.bf16.gmra.mrb[0].mxu0 %v789
      %v2004 = vpop.f32.mrb[0].mxu0
      %v2005 = vadd.f32 0.0, %v2004
      %v2006 = vpop.f32.mrb[0].mxu0
      %v2007 = vpop.f32.mrb[0].mxu0
      %v2008 = vadd.f32 0.0, %v2007
      %v2009 = vpop.f32.mrb[0].mxu0
      %2010 = vmatprep.mubr.bf16.mxu0 0
      %2011 = vmatmul.mubr.bf16.gmra.mrb[0].mxu0 %v792
      %v2012 = vpop.f32.mrb[0].mxu0
      %v2013 = vadd.f32 0.0, %v2012
      %v2014 = vpop.f32.mrb[0].mxu0
      %v2015 = vpop.f32.mrb[0].mxu0
      %v2016 = vadd.f32 0.0, %v2015
      %v2017 = vpop.f32.mrb[0].mxu0
      %2018 = vmatprep.mubr.bf16.mxu0 0
      %2019 = vmatmul.mubr.bf16.gmra.mrb[0].mxu0 %v795
      %v2020 = vpop.f32.mrb[0].mxu0
      %v2021 = vadd.f32 0.0, %v2020
      %v2022 = vpop.f32.mrb[0].mxu0
      %v2023 = vpop.f32.mrb[0].mxu0
      %v2024 = vadd.f32 0.0, %v2023
      %v2025 = vpop.f32.mrb[0].mxu0
      %2026 = vmatprep.mubr.bf16.mxu0 0
      %2027 = vmatmul.mubr.bf16.gmra.mrb[0].mxu0 %v798
      %v2028 = vpop.f32.mrb[0].mxu0
      %v2029 = vadd.f32 0.0, %v2028
      %v2030 = vpop.f32.mrb[0].mxu0
      %v2031 = vpop.f32.mrb[0].mxu0
      %v2032 = vadd.f32 0.0, %v2031
      %v2033 = vpop.f32.mrb[0].mxu0
      %2034 = vmatprep.mubr.bf16.mxu0 0
      %2035 = vmatmul.mubr.bf16.gmra.mrb[0].mxu0 %v1473
      %v2036 = vpop.f32.mrb[0].mxu0
      %v2037 = vadd.f32 0.0, %v2036
      %v2038 = vpop.f32.mrb[0].mxu0
      %v2039 = vpop.f32.mrb[0].mxu0
      %v2040 = vadd.f32 0.0, %v2039
      %v2041 = vpop.f32.mrb[0].mxu0
      %2042 = vmatprep.mubr.bf16.mxu0 0
      %2043 = vmatmul.mubr.bf16.gmra.mrb[0].mxu0 %v1885
      %v2044 = vpop.f32.mrb[0].mxu0
      %v2045 = vadd.f32 0.0, %v2044
      %v2046 = vpop.f32.mrb[0].mxu0
      %v2047 = vpop.f32.mrb[0].mxu0
      %v2048 = vadd.f32 0.0, %v2047
      %v2049 = vpop.f32.mrb[0].mxu0
      %2050 = vdwg.mxu0
      %v2051 = vadd.f32 %v1845, %v1925
      %v2052 = vadd.f32 %v1846, %v1928
      %v2053 = vadd.f32 %v1847, %v1933
      %v2054 = vadd.f32 %v1848, %v1936
      %v2055 = vadd.f32 %v1849, %v1941
      %v2056 = vadd.f32 %v1850, %v1944
      %v2057 = vadd.f32 %v1851, %v1949
      %v2058 = vadd.f32 %v1852, %v1952
      %v2059 = vadd.f32 %v1853, %v1957
      %v2060 = vadd.f32 %v1854, %v1960
      %v2061 = vadd.f32 %v1855, %v1965
      %v2062 = vadd.f32 %v1856, %v1968
      %v2063 = vadd.f32 %v1857, %v1973
      %v2064 = vadd.f32 %v1858, %v1976
      %v2065 = vadd.f32 %v1859, %v1981
      %v2066 = vadd.f32 %v1860, %v1984
      %v2067 = vadd.f32 %v1861, %v1989
      %v2068 = vadd.f32 %v1862, %v1992
      %v2069 = vadd.f32 %v1863, %v1997
      %v2070 = vadd.f32 %v1864, %v2000
      %v2071 = vadd.f32 %v1865, %v2005
      %v2072 = vadd.f32 %v1866, %v2008
      %v2073 = vadd.f32 %v1867, %v2013
      %v2074 = vadd.f32 %v1868, %v2016
      %v2075 = vadd.f32 %v1869, %v2021
      %v2076 = vadd.f32 %v1870, %v2024
      %v2077 = vadd.f32 %v1871, %v2029
      %v2078 = vadd.f32 %v1872, %v2032
      %v2079 = vadd.f32 %v1873, %v2037
      %v2080 = vadd.f32 %v1874, %v2040
      %v2081 = vadd.f32 %v1875, %v2045
      %v2082 = vadd.f32 %v1876, %v2048
      %v2099 = vrot.slane %v2051, 1
      %v2100 = vrot.slane %v2053, 1
      %v2101 = vrot.slane %v2055, 1
      %v2102 = vrot.slane %v2057, 1
      %v2103 = vrot.slane %v2059, 1
      %v2104 = vrot.slane %v2061, 1
      %v2105 = vrot.slane %v2063, 1
      %v2106 = vrot.slane %v2065, 1
      %v2107 = vrot.slane %v2067, 1
      %v2108 = vrot.slane %v2069, 1
      %v2109 = vrot.slane %v2071, 1
      %v2110 = vrot.slane %v2073, 1
      %v2111 = vrot.slane %v2075, 1
      %v2112 = vrot.slane %v2077, 1
      %v2113 = vrot.slane %v2079, 1
      %v2114 = vrot.slane %v2081, 1
      %vm2147 = vcmask 1040384
      %v2148 = vrot.slane %v2051, 7
      %v2149 = vrot.slane %v2052, 7
      %v2150 = vsel %vm2147, %v2148, %v2149
      %v2151 = vrot.slane %v2053, 7
      %v2152 = vrot.slane %v2054, 7
      %v2153 = vsel %vm2147, %v2151, %v2152
      %v2154 = vrot.slane %v2055, 7
      %v2155 = vrot.slane %v2056, 7
      %v2156 = vsel %vm2147, %v2154, %v2155
      %v2157 = vrot.slane %v2057, 7
      %v2158 = vrot.slane %v2058, 7
      %v2159 = vsel %vm2147, %v2157, %v2158
      %v2160 = vrot.slane %v2059, 7
      %v2161 = vrot.slane %v2060, 7
      %v2162 = vsel %vm2147, %v2160, %v2161
      %v2163 = vrot.slane %v2061, 7
      %v2164 = vrot.slane %v2062, 7
      %v2165 = vsel %vm2147, %v2163, %v2164
      %v2166 = vrot.slane %v2063, 7
      %v2167 = vrot.slane %v2064, 7
      %v2168 = vsel %vm2147, %v2166, %v2167
      %v2169 = vrot.slane %v2065, 7
      %v2170 = vrot.slane %v2066, 7
      %v2171 = vsel %vm2147, %v2169, %v2170
      %v2172 = vrot.slane %v2067, 7
      %v2173 = vrot.slane %v2068, 7
      %v2174 = vsel %vm2147, %v2172, %v2173
      %v2175 = vrot.slane %v2069, 7
      %v2176 = vrot.slane %v2070, 7
      %v2177 = vsel %vm2147, %v2175, %v2176
      %v2178 = vrot.slane %v2071, 7
      %v2179 = vrot.slane %v2072, 7
      %v2180 = vsel %vm2147, %v2178, %v2179
      %v2181 = vrot.slane %v2073, 7
      %v2182 = vrot.slane %v2074, 7
      %v2183 = vsel %vm2147, %v2181, %v2182
      %v2184 = vrot.slane %v2075, 7
      %v2185 = vrot.slane %v2076, 7
      %v2186 = vsel %vm2147, %v2184, %v2185
      %v2187 = vrot.slane %v2077, 7
      %v2188 = vrot.slane %v2078, 7
      %v2189 = vsel %vm2147, %v2187, %v2188
      %v2190 = vrot.slane %v2079, 7
      %v2191 = vrot.slane %v2080, 7
      %v2192 = vsel %vm2147, %v2190, %v2191
      %v2193 = vrot.slane %v2081, 7
      %v2194 = vrot.slane %v2082, 7
      %v2195 = vsel %vm2147, %v2193, %v2194
      %v2212 = vsel %vm2147, %v2099, %v2148
      %v2213 = vsel %vm2147, %v2100, %v2151
      %v2214 = vsel %vm2147, %v2101, %v2154
      %v2215 = vsel %vm2147, %v2102, %v2157
      %v2216 = vsel %vm2147, %v2103, %v2160
      %v2217 = vsel %vm2147, %v2104, %v2163
      %v2218 = vsel %vm2147, %v2105, %v2166
      %v2219 = vsel %vm2147, %v2106, %v2169
      %v2220 = vsel %vm2147, %v2107, %v2172
      %v2221 = vsel %vm2147, %v2108, %v2175
      %v2222 = vsel %vm2147, %v2109, %v2178
      %v2223 = vsel %vm2147, %v2110, %v2181
      %v2224 = vsel %vm2147, %v2111, %v2184
      %v2225 = vsel %vm2147, %v2112, %v2187
      %v2226 = vsel %vm2147, %v2113, %v2190
      %v2227 = vsel %vm2147, %v2114, %v2193
      %vm2228 = vcmask 1046528
      %v2229 = vrot.slane %v2052, 1
      %v2230 = vsel %vm2228, %v2099, %v2229
      %v2231 = vrot.slane %v2054, 1
      %v2232 = vsel %vm2228, %v2100, %v2231
      %v2233 = vrot.slane %v2056, 1
      %v2234 = vsel %vm2228, %v2101, %v2233
      %v2235 = vrot.slane %v2058, 1
      %v2236 = vsel %vm2228, %v2102, %v2235
      %v2237 = vrot.slane %v2060, 1
      %v2238 = vsel %vm2228, %v2103, %v2237
      %v2239 = vrot.slane %v2062, 1
      %v2240 = vsel %vm2228, %v2104, %v2239
      %v2241 = vrot.slane %v2064, 1
      %v2242 = vsel %vm2228, %v2105, %v2241
      %v2243 = vrot.slane %v2066, 1
      %v2244 = vsel %vm2228, %v2106, %v2243
      %v2245 = vrot.slane %v2068, 1
      %v2246 = vsel %vm2228, %v2107, %v2245
      %v2247 = vrot.slane %v2070, 1
      %v2248 = vsel %vm2228, %v2108, %v2247
      %v2249 = vrot.slane %v2072, 1
      %v2250 = vsel %vm2228, %v2109, %v2249
      %v2251 = vrot.slane %v2074, 1
      %v2252 = vsel %vm2228, %v2110, %v2251
      %v2253 = vrot.slane %v2076, 1
      %v2254 = vsel %vm2228, %v2111, %v2253
      %v2255 = vrot.slane %v2078, 1
      %v2256 = vsel %vm2228, %v2112, %v2255
      %v2257 = vrot.slane %v2080, 1
      %v2258 = vsel %vm2228, %v2113, %v2257
      %v2259 = vrot.slane %v2082, 1
      %v2260 = vsel %vm2228, %v2114, %v2259
      %v2293 = vsel %vm2228, %v2229, %v2149
      %v2294 = vsel %vm2228, %v2231, %v2152
      %v2295 = vsel %vm2228, %v2233, %v2155
      %v2296 = vsel %vm2228, %v2235, %v2158
      %v2297 = vsel %vm2228, %v2237, %v2161
      %v2298 = vsel %vm2228, %v2239, %v2164
      %v2299 = vsel %vm2228, %v2241, %v2167
      %v2300 = vsel %vm2228, %v2243, %v2170
      %v2301 = vsel %vm2228, %v2245, %v2173
      %v2302 = vsel %vm2228, %v2247, %v2176
      %v2303 = vsel %vm2228, %v2249, %v2179
      %v2304 = vsel %vm2228, %v2251, %v2182
      %v2305 = vsel %vm2228, %v2253, %v2185
      %v2306 = vsel %vm2228, %v2255, %v2188
      %v2307 = vsel %vm2228, %v2257, %v2191
      %v2308 = vsel %vm2228, %v2259, %v2194
      %2325 = vrot.lane.b32.xlu0 %v2212, 4
      %v2326 = vpop.permute.xlu0 %2325
      %2327 = vrot.lane.b32.xlu0 %v2150, 4
      %v2328 = vpop.permute.xlu0 %2327
      %2329 = vrot.lane.b32.xlu0 %v2213, 4
      %v2330 = vpop.permute.xlu0 %2329
      %2331 = vrot.lane.b32.xlu0 %v2153, 4
      %v2332 = vpop.permute.xlu0 %2331
      %2333 = vrot.lane.b32.xlu0 %v2214, 4
      %v2334 = vpop.permute.xlu0 %2333
      %2335 = vrot.lane.b32.xlu0 %v2156, 4
      %v2336 = vpop.permute.xlu0 %2335
      %2337 = vrot.lane.b32.xlu0 %v2215, 4
      %v2338 = vpop.permute.xlu0 %2337
      %2339 = vrot.lane.b32.xlu0 %v2159, 4
      %v2340 = vpop.permute.xlu0 %2339
      %2341 = vrot.lane.b32.xlu0 %v2216, 4
      %v2342 = vpop.permute.xlu0 %2341
      %2343 = vrot.lane.b32.xlu0 %v2162, 4
      %v2344 = vpop.permute.xlu0 %2343
      %2345 = vrot.lane.b32.xlu0 %v2217, 4
      %v2346 = vpop.permute.xlu0 %2345
      %2347 = vrot.lane.b32.xlu0 %v2165, 4
      %v2348 = vpop.permute.xlu0 %2347
      %2349 = vrot.lane.b32.xlu0 %v2218, 4
      %v2350 = vpop.permute.xlu0 %2349
      %2351 = vrot.lane.b32.xlu0 %v2168, 4
      %v2352 = vpop.permute.xlu0 %2351
      %2353 = vrot.lane.b32.xlu0 %v2219, 4
      %v2354 = vpop.permute.xlu0 %2353
      %2355 = vrot.lane.b32.xlu0 %v2171, 4
      %v2356 = vpop.permute.xlu0 %2355
      %2357 = vrot.lane.b32.xlu0 %v2220, 4
      %v2358 = vpop.permute.xlu0 %2357
      %2359 = vrot.lane.b32.xlu0 %v2174, 4
      %v2360 = vpop.permute.xlu0 %2359
      %2361 = vrot.lane.b32.xlu0 %v2221, 4
      %v2362 = vpop.permute.xlu0 %2361
      %2363 = vrot.lane.b32.xlu0 %v2177, 4
      %v2364 = vpop.permute.xlu0 %2363
      %2365 = vrot.lane.b32.xlu0 %v2222, 4
      %v2366 = vpop.permute.xlu0 %2365
      %2367 = vrot.lane.b32.xlu0 %v2180, 4
      %v2368 = vpop.permute.xlu0 %2367
      %2369 = vrot.lane.b32.xlu0 %v2223, 4
      %v2370 = vpop.permute.xlu0 %2369
      %2371 = vrot.lane.b32.xlu0 %v2183, 4
      %v2372 = vpop.permute.xlu0 %2371
      %2373 = vrot.lane.b32.xlu0 %v2224, 4
      %v2374 = vpop.permute.xlu0 %2373
      %2375 = vrot.lane.b32.xlu0 %v2186, 4
      %v2376 = vpop.permute.xlu0 %2375
      %2377 = vrot.lane.b32.xlu0 %v2225, 4
      %v2378 = vpop.permute.xlu0 %2377
      %2379 = vrot.lane.b32.xlu0 %v2189, 4
      %v2380 = vpop.permute.xlu0 %2379
      %2381 = vrot.lane.b32.xlu0 %v2226, 4
      %v2382 = vpop.permute.xlu0 %2381
      %2383 = vrot.lane.b32.xlu0 %v2192, 4
      %v2384 = vpop.permute.xlu0 %2383
      %2385 = vrot.lane.b32.xlu0 %v2227, 4
      %v2386 = vpop.permute.xlu0 %2385
      %2387 = vrot.lane.b32.xlu0 %v2195, 4
      %v2388 = vpop.permute.xlu0 %2387
      %v2421 = vadd.f32 %v2051, %v2326
      %v2422 = vadd.f32 %v2052, %v2328
      %v2423 = vadd.f32 %v2053, %v2330
      %v2424 = vadd.f32 %v2054, %v2332
      %v2425 = vadd.f32 %v2055, %v2334
      %v2426 = vadd.f32 %v2056, %v2336
      %v2427 = vadd.f32 %v2057, %v2338
      %v2428 = vadd.f32 %v2058, %v2340
      %v2429 = vadd.f32 %v2059, %v2342
      %v2430 = vadd.f32 %v2060, %v2344
      %v2431 = vadd.f32 %v2061, %v2346
      %v2432 = vadd.f32 %v2062, %v2348
      %v2433 = vadd.f32 %v2063, %v2350
      %v2434 = vadd.f32 %v2064, %v2352
      %v2435 = vadd.f32 %v2065, %v2354
      %v2436 = vadd.f32 %v2066, %v2356
      %v2437 = vadd.f32 %v2067, %v2358
      %v2438 = vadd.f32 %v2068, %v2360
      %v2439 = vadd.f32 %v2069, %v2362
      %v2440 = vadd.f32 %v2070, %v2364
      %v2441 = vadd.f32 %v2071, %v2366
      %v2442 = vadd.f32 %v2072, %v2368
      %v2443 = vadd.f32 %v2073, %v2370
      %v2444 = vadd.f32 %v2074, %v2372
      %v2445 = vadd.f32 %v2075, %v2374
      %v2446 = vadd.f32 %v2076, %v2376
      %v2447 = vadd.f32 %v2077, %v2378
      %v2448 = vadd.f32 %v2078, %v2380
      %v2449 = vadd.f32 %v2079, %v2382
      %v2450 = vadd.f32 %v2080, %v2384
      %v2451 = vadd.f32 %v2081, %v2386
      %v2452 = vadd.f32 %v2082, %v2388
      %2469 = vrot.lane.b32.xlu0 %v2230, 124
      %v2470 = vpop.permute.xlu0 %2469
      %2471 = vrot.lane.b32.xlu0 %v2293, 124
      %v2472 = vpop.permute.xlu0 %2471
      %2473 = vrot.lane.b32.xlu0 %v2232, 124
      %v2474 = vpop.permute.xlu0 %2473
      %2475 = vrot.lane.b32.xlu0 %v2294, 124
      %v2476 = vpop.permute.xlu0 %2475
      %2477 = vrot.lane.b32.xlu0 %v2234, 124
      %v2478 = vpop.permute.xlu0 %2477
      %2479 = vrot.lane.b32.xlu0 %v2295, 124
      %v2480 = vpop.permute.xlu0 %2479
      %2481 = vrot.lane.b32.xlu0 %v2236, 124
      %v2482 = vpop.permute.xlu0 %2481
      %2483 = vrot.lane.b32.xlu0 %v2296, 124
      %v2484 = vpop.permute.xlu0 %2483
      %2485 = vrot.lane.b32.xlu0 %v2238, 124
      %v2486 = vpop.permute.xlu0 %2485
      %2487 = vrot.lane.b32.xlu0 %v2297, 124
      %v2488 = vpop.permute.xlu0 %2487
      %2489 = vrot.lane.b32.xlu0 %v2240, 124
      %v2490 = vpop.permute.xlu0 %2489
      %2491 = vrot.lane.b32.xlu0 %v2298, 124
      %v2492 = vpop.permute.xlu0 %2491
      %2493 = vrot.lane.b32.xlu0 %v2242, 124
      %v2494 = vpop.permute.xlu0 %2493
      %2495 = vrot.lane.b32.xlu0 %v2299, 124
      %v2496 = vpop.permute.xlu0 %2495
      %2497 = vrot.lane.b32.xlu0 %v2244, 124
      %v2498 = vpop.permute.xlu0 %2497
      %2499 = vrot.lane.b32.xlu0 %v2300, 124
      %v2500 = vpop.permute.xlu0 %2499
      %2501 = vrot.lane.b32.xlu0 %v2246, 124
      %v2502 = vpop.permute.xlu0 %2501
      %2503 = vrot.lane.b32.xlu0 %v2301, 124
      %v2504 = vpop.permute.xlu0 %2503
      %2505 = vrot.lane.b32.xlu0 %v2248, 124
      %v2506 = vpop.permute.xlu0 %2505
      %2507 = vrot.lane.b32.xlu0 %v2302, 124
      %v2508 = vpop.permute.xlu0 %2507
      %2509 = vrot.lane.b32.xlu0 %v2250, 124
      %v2510 = vpop.permute.xlu0 %2509
      %2511 = vrot.lane.b32.xlu0 %v2303, 124
      %v2512 = vpop.permute.xlu0 %2511
      %2513 = vrot.lane.b32.xlu0 %v2252, 124
      %v2514 = vpop.permute.xlu0 %2513
      %2515 = vrot.lane.b32.xlu0 %v2304, 124
      %v2516 = vpop.permute.xlu0 %2515
      %2517 = vrot.lane.b32.xlu0 %v2254, 124
      %v2518 = vpop.permute.xlu0 %2517
      %2519 = vrot.lane.b32.xlu0 %v2305, 124
      %v2520 = vpop.permute.xlu0 %2519
      %2521 = vrot.lane.b32.xlu0 %v2256, 124
      %v2522 = vpop.permute.xlu0 %2521
      %2523 = vrot.lane.b32.xlu0 %v2306, 124
      %v2524 = vpop.permute.xlu0 %2523
      %2525 = vrot.lane.b32.xlu0 %v2258, 124
      %v2526 = vpop.permute.xlu0 %2525
      %2527 = vrot.lane.b32.xlu0 %v2307, 124
      %v2528 = vpop.permute.xlu0 %2527
      %2529 = vrot.lane.b32.xlu0 %v2260, 124
      %v2530 = vpop.permute.xlu0 %2529
      %2531 = vrot.lane.b32.xlu0 %v2308, 124
      %v2532 = vpop.permute.xlu0 %2531
      %v2565 = vadd.f32 %v2421, %v2470
      %v2566 = vadd.f32 %v2422, %v2472
      %v2567 = vadd.f32 %v2423, %v2474
      %v2568 = vadd.f32 %v2424, %v2476
      %v2569 = vadd.f32 %v2425, %v2478
      %v2570 = vadd.f32 %v2426, %v2480
      %v2571 = vadd.f32 %v2427, %v2482
      %v2572 = vadd.f32 %v2428, %v2484
      %v2573 = vadd.f32 %v2429, %v2486
      %v2574 = vadd.f32 %v2430, %v2488
      %v2575 = vadd.f32 %v2431, %v2490
      %v2576 = vadd.f32 %v2432, %v2492
      %v2577 = vadd.f32 %v2433, %v2494
      %v2578 = vadd.f32 %v2434, %v2496
      %v2579 = vadd.f32 %v2435, %v2498
      %v2580 = vadd.f32 %v2436, %v2500
      %v2581 = vadd.f32 %v2437, %v2502
      %v2582 = vadd.f32 %v2438, %v2504
      %v2583 = vadd.f32 %v2439, %v2506
      %v2584 = vadd.f32 %v2440, %v2508
      %v2585 = vadd.f32 %v2441, %v2510
      %v2586 = vadd.f32 %v2442, %v2512
      %v2587 = vadd.f32 %v2443, %v2514
      %v2588 = vadd.f32 %v2444, %v2516
      %v2589 = vadd.f32 %v2445, %v2518
      %v2590 = vadd.f32 %v2446, %v2520
      %v2591 = vadd.f32 %v2447, %v2522
      %v2592 = vadd.f32 %v2448, %v2524
      %v2593 = vadd.f32 %v2449, %v2526
      %v2594 = vadd.f32 %v2450, %v2528
      %v2595 = vadd.f32 %v2451, %v2530
      %v2596 = vadd.f32 %v2452, %v2532
      %v2597 = vld [vmem:[%s563] sm:$0x1]
      %v2599 = vlaneseq
      %v2600 = vshrl.u32 %v2599, 7
      %v2601 = vsub.s32 0, %v2600
      %v2602 = vrot.slane %v2597, %v2601
      %2603 = vrot.lane.b32.xlu0 %v2602, 4
      %v2604 = vpop.permute.xlu0 %2603
      %v2606 = vadd.f32 %v2565, %v2604
      %v2607 = vadd.f32 %v2566, %v2604
      %v2608 = vadd.f32 %v2567, %v2604
      %v2609 = vadd.f32 %v2568, %v2604
      %v2610 = vadd.f32 %v2569, %v2604
      %v2611 = vadd.f32 %v2570, %v2604
      %v2612 = vadd.f32 %v2571, %v2604
      %v2613 = vadd.f32 %v2572, %v2604
      %v2614 = vadd.f32 %v2573, %v2604
      %v2615 = vadd.f32 %v2574, %v2604
      %v2616 = vadd.f32 %v2575, %v2604
      %v2617 = vadd.f32 %v2576, %v2604
      %v2618 = vadd.f32 %v2577, %v2604
      %v2619 = vadd.f32 %v2578, %v2604
      %v2620 = vadd.f32 %v2579, %v2604
      %v2621 = vadd.f32 %v2580, %v2604
      %v2622 = vadd.f32 %v2581, %v2604
      %v2623 = vadd.f32 %v2582, %v2604
      %v2624 = vadd.f32 %v2583, %v2604
      %v2625 = vadd.f32 %v2584, %v2604
      %v2626 = vadd.f32 %v2585, %v2604
      %v2627 = vadd.f32 %v2586, %v2604
      %v2628 = vadd.f32 %v2587, %v2604
      %v2629 = vadd.f32 %v2588, %v2604
      %v2630 = vadd.f32 %v2589, %v2604
      %v2631 = vadd.f32 %v2590, %v2604
      %v2632 = vadd.f32 %v2591, %v2604
      %v2633 = vadd.f32 %v2592, %v2604
      %v2634 = vadd.f32 %v2593, %v2604
      %v2635 = vadd.f32 %v2594, %v2604
      %v2636 = vadd.f32 %v2595, %v2604
      %v2637 = vadd.f32 %v2596, %v2604
      %vm2638 = vcmask 64544
      %v2639 = vsel %vm2638, %v2606, 0.0
      %v2640 = vsel %vm2638, %v2607, 0.0
      %v2641 = vadd.f32 %v2639, %v2640
      %v2642 = vsel %vm2638, %v2608, 0.0
      %v2643 = vadd.f32 %v2641, %v2642
      %v2644 = vsel %vm2638, %v2609, 0.0
      %v2645 = vadd.f32 %v2643, %v2644
      %v2646 = vsel %vm2638, %v2610, 0.0
      %v2647 = vadd.f32 %v2645, %v2646
      %v2648 = vsel %vm2638, %v2611, 0.0
      %v2649 = vadd.f32 %v2647, %v2648
      %v2650 = vsel %vm2638, %v2612, 0.0
      %v2651 = vadd.f32 %v2649, %v2650
      %v2652 = vsel %vm2638, %v2613, 0.0
      %v2653 = vadd.f32 %v2651, %v2652
      %v2654 = vsel %vm2638, %v2614, 0.0
      %v2655 = vadd.f32 %v2653, %v2654
      %v2656 = vsel %vm2638, %v2615, 0.0
      %v2657 = vadd.f32 %v2655, %v2656
      %v2658 = vsel %vm2638, %v2616, 0.0
      %v2659 = vadd.f32 %v2657, %v2658
      %v2660 = vsel %vm2638, %v2617, 0.0
      %v2661 = vadd.f32 %v2659, %v2660
      %v2662 = vsel %vm2638, %v2618, 0.0
      %v2663 = vadd.f32 %v2661, %v2662
      %v2664 = vsel %vm2638, %v2619, 0.0
      %v2665 = vadd.f32 %v2663, %v2664
      %v2666 = vsel %vm2638, %v2620, 0.0
      %v2667 = vadd.f32 %v2665, %v2666
      %v2668 = vsel %vm2638, %v2621, 0.0
      %v2669 = vadd.f32 %v2667, %v2668
      %v2670 = vsel %vm2638, %v2622, 0.0
      %v2671 = vadd.f32 %v2669, %v2670
      %v2672 = vsel %vm2638, %v2623, 0.0
      %v2673 = vadd.f32 %v2671, %v2672
      %v2674 = vsel %vm2638, %v2624, 0.0
      %v2675 = vadd.f32 %v2673, %v2674
      %v2676 = vsel %vm2638, %v2625, 0.0
      %v2677 = vadd.f32 %v2675, %v2676
      %v2678 = vsel %vm2638, %v2626, 0.0
      %v2679 = vadd.f32 %v2677, %v2678
      %v2680 = vsel %vm2638, %v2627, 0.0
      %v2681 = vadd.f32 %v2679, %v2680
      %v2682 = vsel %vm2638, %v2628, 0.0
      %v2683 = vadd.f32 %v2681, %v2682
      %v2684 = vsel %vm2638, %v2629, 0.0
      %v2685 = vadd.f32 %v2683, %v2684
      %v2686 = vsel %vm2638, %v2630, 0.0
      %v2687 = vadd.f32 %v2685, %v2686
      %v2688 = vsel %vm2638, %v2631, 0.0
      %v2689 = vadd.f32 %v2687, %v2688
      %v2690 = vsel %vm2638, %v2632, 0.0
      %v2691 = vadd.f32 %v2689, %v2690
      %v2692 = vsel %vm2638, %v2633, 0.0
      %v2693 = vadd.f32 %v2691, %v2692
      %v2694 = vsel %vm2638, %v2634, 0.0
      %v2695 = vadd.f32 %v2693, %v2694
      %v2696 = vsel %vm2638, %v2635, 0.0
      %v2697 = vadd.f32 %v2695, %v2696
      %v2698 = vsel %vm2638, %v2636, 0.0
      %v2699 = vadd.f32 %v2697, %v2698
      %v2700 = vsel %vm2638, %v2637, 0.0
      %v2701 = vadd.f32 %v2699, %v2700
      %v2702 = vrot.slane %v2701, 4
      %v2703 = vadd.f32 %v2701, %v2702
      %v2704 = vrot.slane %v2703, 2
      %v2705 = vadd.f32 %v2703, %v2704
      %v2706 = vrot.slane %v2705, 1
      %v2707 = vadd.f32 %v2705, %v2706
      %2709 = vrot.lane.b32.xlu0 %v2707, 124
      %v2710 = vpop.permute.xlu0 %2709
      %vm2712 = vcmask 24576
      %2713 = vst.msk [vmem:[%s586] sm:$0x1] %vm2712, %v2710
      %v2714 = vmul.f32 %v2606, %v2606
      %v2715 = vmul.f32 %v2607, %v2607
      %v2716 = vmul.f32 %v2608, %v2608
      %v2717 = vmul.f32 %v2609, %v2609
      %v2718 = vmul.f32 %v2610, %v2610
      %v2719 = vmul.f32 %v2611, %v2611
      %v2720 = vmul.f32 %v2612, %v2612
      %v2721 = vmul.f32 %v2613, %v2613
      %v2722 = vmul.f32 %v2614, %v2614
      %v2723 = vmul.f32 %v2615, %v2615
      %v2724 = vmul.f32 %v2616, %v2616
      %v2725 = vmul.f32 %v2617, %v2617
      %v2726 = vmul.f32 %v2618, %v2618
      %v2727 = vmul.f32 %v2619, %v2619
      %v2728 = vmul.f32 %v2620, %v2620
      %v2729 = vmul.f32 %v2621, %v2621
      %v2730 = vmul.f32 %v2622, %v2622
      %v2731 = vmul.f32 %v2623, %v2623
      %v2732 = vmul.f32 %v2624, %v2624
      %v2733 = vmul.f32 %v2625, %v2625
      %v2734 = vmul.f32 %v2626, %v2626
      %v2735 = vmul.f32 %v2627, %v2627
      %v2736 = vmul.f32 %v2628, %v2628
      %v2737 = vmul.f32 %v2629, %v2629
      %v2738 = vmul.f32 %v2630, %v2630
      %v2739 = vmul.f32 %v2631, %v2631
      %v2740 = vmul.f32 %v2632, %v2632
      %v2741 = vmul.f32 %v2633, %v2633
      %v2742 = vmul.f32 %v2634, %v2634
      %v2743 = vmul.f32 %v2635, %v2635
      %v2744 = vmul.f32 %v2636, %v2636
      %v2745 = vmul.f32 %v2637, %v2637
      %v2746 = vsel %vm2638, %v2714, 0.0
      %v2747 = vsel %vm2638, %v2715, 0.0
      %v2748 = vadd.f32 %v2746, %v2747
      %v2749 = vsel %vm2638, %v2716, 0.0
      %v2750 = vadd.f32 %v2748, %v2749
      %v2751 = vsel %vm2638, %v2717, 0.0
      %v2752 = vadd.f32 %v2750, %v2751
      %v2753 = vsel %vm2638, %v2718, 0.0
      %v2754 = vadd.f32 %v2752, %v2753
      %v2755 = vsel %vm2638, %v2719, 0.0
      %v2756 = vadd.f32 %v2754, %v2755
      %v2757 = vsel %vm2638, %v2720, 0.0
      %v2758 = vadd.f32 %v2756, %v2757
      %v2759 = vsel %vm2638, %v2721, 0.0
      %v2760 = vadd.f32 %v2758, %v2759
      %v2761 = vsel %vm2638, %v2722, 0.0
      %v2762 = vadd.f32 %v2760, %v2761
      %v2763 = vsel %vm2638, %v2723, 0.0
      %v2764 = vadd.f32 %v2762, %v2763
      %v2765 = vsel %vm2638, %v2724, 0.0
      %v2766 = vadd.f32 %v2764, %v2765
      %v2767 = vsel %vm2638, %v2725, 0.0
      %v2768 = vadd.f32 %v2766, %v2767
      %v2769 = vsel %vm2638, %v2726, 0.0
      %v2770 = vadd.f32 %v2768, %v2769
      %v2771 = vsel %vm2638, %v2727, 0.0
      %v2772 = vadd.f32 %v2770, %v2771
      %v2773 = vsel %vm2638, %v2728, 0.0
      %v2774 = vadd.f32 %v2772, %v2773
      %v2775 = vsel %vm2638, %v2729, 0.0
      %v2776 = vadd.f32 %v2774, %v2775
      %v2777 = vsel %vm2638, %v2730, 0.0
      %v2778 = vadd.f32 %v2776, %v2777
      %v2779 = vsel %vm2638, %v2731, 0.0
      %v2780 = vadd.f32 %v2778, %v2779
      %v2781 = vsel %vm2638, %v2732, 0.0
      %v2782 = vadd.f32 %v2780, %v2781
      %v2783 = vsel %vm2638, %v2733, 0.0
      %v2784 = vadd.f32 %v2782, %v2783
      %v2785 = vsel %vm2638, %v2734, 0.0
      %v2786 = vadd.f32 %v2784, %v2785
      %v2787 = vsel %vm2638, %v2735, 0.0
      %v2788 = vadd.f32 %v2786, %v2787
      %v2789 = vsel %vm2638, %v2736, 0.0
      %v2790 = vadd.f32 %v2788, %v2789
      %v2791 = vsel %vm2638, %v2737, 0.0
      %v2792 = vadd.f32 %v2790, %v2791
      %v2793 = vsel %vm2638, %v2738, 0.0
      %v2794 = vadd.f32 %v2792, %v2793
      %v2795 = vsel %vm2638, %v2739, 0.0
      %v2796 = vadd.f32 %v2794, %v2795
      %v2797 = vsel %vm2638, %v2740, 0.0
      %v2798 = vadd.f32 %v2796, %v2797
      %v2799 = vsel %vm2638, %v2741, 0.0
      %v2800 = vadd.f32 %v2798, %v2799
      %v2801 = vsel %vm2638, %v2742, 0.0
      %v2802 = vadd.f32 %v2800, %v2801
      %v2803 = vsel %vm2638, %v2743, 0.0
      %v2804 = vadd.f32 %v2802, %v2803
      %v2805 = vsel %vm2638, %v2744, 0.0
      %v2806 = vadd.f32 %v2804, %v2805
      %v2807 = vsel %vm2638, %v2745, 0.0
      %v2808 = vadd.f32 %v2806, %v2807
      %v2809 = vrot.slane %v2808, 4
      %v2810 = vadd.f32 %v2808, %v2809
      %v2811 = vrot.slane %v2810, 2
      %v2812 = vadd.f32 %v2810, %v2811
      %v2813 = vrot.slane %v2812, 1
      %v2814 = vadd.f32 %v2812, %v2813
      %2816 = vrot.lane.b32.xlu0 %v2814, 124
      %v2817 = vpop.permute.xlu0 %2816
      %2819 = vst.msk [vmem:[%s595] sm:$0x1] %vm2712, %v2817
      %v2820 = vpack.c.bf16 %v2607, %v2606
      %v2821 = vpack.c.bf16 %v2609, %v2608
      %v2822 = vpack.c.bf16 %v2611, %v2610
      %v2823 = vpack.c.bf16 %v2613, %v2612
      %v2824 = vpack.c.bf16 %v2615, %v2614
      %v2825 = vpack.c.bf16 %v2617, %v2616
      %v2826 = vpack.c.bf16 %v2619, %v2618
      %v2827 = vpack.c.bf16 %v2621, %v2620
      %v2828 = vpack.c.bf16 %v2623, %v2622
      %v2829 = vpack.c.bf16 %v2625, %v2624
      %v2830 = vpack.c.bf16 %v2627, %v2626
      %v2831 = vpack.c.bf16 %v2629, %v2628
      %v2832 = vpack.c.bf16 %v2631, %v2630
      %v2833 = vpack.c.bf16 %v2633, %v2632
      %v2834 = vpack.c.bf16 %v2635, %v2634
      %v2835 = vpack.c.bf16 %v2637, %v2636
      %v2852 = vunpack.c.l.b16 %v2820
      %v2853 = vunpack.c.h.b16 %v2820
      %v2854 = vunpack.c.l.b16 %v2821
      %v2855 = vunpack.c.h.b16 %v2821
      %v2856 = vunpack.c.l.b16 %v2822
      %v2857 = vunpack.c.h.b16 %v2822
      %v2858 = vunpack.c.l.b16 %v2823
      %v2859 = vunpack.c.h.b16 %v2823
      %v2860 = vunpack.c.l.b16 %v2824
      %v2861 = vunpack.c.h.b16 %v2824
      %v2862 = vunpack.c.l.b16 %v2825
      %v2863 = vunpack.c.h.b16 %v2825
      %v2864 = vunpack.c.l.b16 %v2826
      %v2865 = vunpack.c.h.b16 %v2826
      %v2866 = vunpack.c.l.b16 %v2827
      %v2867 = vunpack.c.h.b16 %v2827
      %v2868 = vunpack.c.l.b16 %v2828
      %v2869 = vunpack.c.h.b16 %v2828
      %v2870 = vunpack.c.l.b16 %v2829
      %v2871 = vunpack.c.h.b16 %v2829
      %v2872 = vunpack.c.l.b16 %v2830
      %v2873 = vunpack.c.h.b16 %v2830
      %v2874 = vunpack.c.l.b16 %v2831
      %v2875 = vunpack.c.h.b16 %v2831
      %v2876 = vunpack.c.l.b16 %v2832
      %v2877 = vunpack.c.h.b16 %v2832
      %v2878 = vunpack.c.l.b16 %v2833
      %v2879 = vunpack.c.h.b16 %v2833
      %v2880 = vunpack.c.l.b16 %v2834
      %v2881 = vunpack.c.h.b16 %v2834
      %v2882 = vunpack.c.l.b16 %v2835
      %v2883 = vunpack.c.h.b16 %v2835
      %v2884 = vpack.c.b16 %v2852, %v2852
      %v2885 = vpack.c.b16 %v2853, %v2853
      %v2886 = vpack.c.b16 %v2854, %v2854
      %v2887 = vpack.c.b16 %v2855, %v2855
      %v2888 = vpack.c.b16 %v2856, %v2856
      %v2889 = vpack.c.b16 %v2857, %v2857
      %v2890 = vpack.c.b16 %v2858, %v2858
      %v2891 = vpack.c.b16 %v2859, %v2859
      %v2892 = vpack.c.b16 %v2860, %v2860
      %v2893 = vpack.c.b16 %v2861, %v2861
      %v2894 = vpack.c.b16 %v2862, %v2862
      %v2895 = vpack.c.b16 %v2863, %v2863
      %v2896 = vpack.c.b16 %v2864, %v2864
      %v2897 = vpack.c.b16 %v2865, %v2865
      %v2898 = vpack.c.b16 %v2866, %v2866
      %v2899 = vpack.c.b16 %v2867, %v2867
      %v2900 = vpack.c.b16 %v2868, %v2868
      %v2901 = vpack.c.b16 %v2869, %v2869
      %v2902 = vpack.c.b16 %v2870, %v2870
      %v2903 = vpack.c.b16 %v2871, %v2871
      %v2904 = vpack.c.b16 %v2872, %v2872
      %v2905 = vpack.c.b16 %v2873, %v2873
      %v2906 = vpack.c.b16 %v2874, %v2874
      %v2907 = vpack.c.b16 %v2875, %v2875
      %v2908 = vpack.c.b16 %v2876, %v2876
      %v2909 = vpack.c.b16 %v2877, %v2877
      %v2910 = vpack.c.b16 %v2878, %v2878
      %v2911 = vpack.c.b16 %v2879, %v2879
      %v2912 = vpack.c.b16 %v2880, %v2880
      %v2913 = vpack.c.b16 %v2881, %v2881
      %v2914 = vpack.c.b16 %v2882, %v2882
      %v2915 = vpack.c.b16 %v2883, %v2883
      %2916 = vrot.lane.b32.xlu0 %v2884, 124
      %v2917 = vpop.permute.xlu0 %2916
      %2918 = vrot.lane.b32.xlu0 %v2885, 124
      %v2919 = vpop.permute.xlu0 %2918
      %2920 = vrot.lane.b32.xlu0 %v2886, 124
      %v2921 = vpop.permute.xlu0 %2920
      %2922 = vrot.lane.b32.xlu0 %v2887, 124
      %v2923 = vpop.permute.xlu0 %2922
      %2924 = vrot.lane.b32.xlu0 %v2888, 124
      %v2925 = vpop.permute.xlu0 %2924
      %2926 = vrot.lane.b32.xlu0 %v2889, 124
      %v2927 = vpop.permute.xlu0 %2926
      %2928 = vrot.lane.b32.xlu0 %v2890, 124
      %v2929 = vpop.permute.xlu0 %2928
      %2930 = vrot.lane.b32.xlu0 %v2891, 124
      %v2931 = vpop.permute.xlu0 %2930
      %2932 = vrot.lane.b32.xlu0 %v2892, 124
      %v2933 = vpop.permute.xlu0 %2932
      %2934 = vrot.lane.b32.xlu0 %v2893, 124
      %v2935 = vpop.permute.xlu0 %2934
      %2936 = vrot.lane.b32.xlu0 %v2894, 124
      %v2937 = vpop.permute.xlu0 %2936
      %2938 = vrot.lane.b32.xlu0 %v2895, 124
      %v2939 = vpop.permute.xlu0 %2938
      %2940 = vrot.lane.b32.xlu0 %v2896, 124
      %v2941 = vpop.permute.xlu0 %2940
      %2942 = vrot.lane.b32.xlu0 %v2897, 124
      %v2943 = vpop.permute.xlu0 %2942
      %2944 = vrot.lane.b32.xlu0 %v2898, 124
      %v2945 = vpop.permute.xlu0 %2944
      %2946 = vrot.lane.b32.xlu0 %v2899, 124
      %v2947 = vpop.permute.xlu0 %2946
      %2948 = vrot.lane.b32.xlu0 %v2900, 124
      %v2949 = vpop.permute.xlu0 %2948
      %2950 = vrot.lane.b32.xlu0 %v2901, 124
      %v2951 = vpop.permute.xlu0 %2950
      %2952 = vrot.lane.b32.xlu0 %v2902, 124
      %v2953 = vpop.permute.xlu0 %2952
      %2954 = vrot.lane.b32.xlu0 %v2903, 124
      %v2955 = vpop.permute.xlu0 %2954
      %2956 = vrot.lane.b32.xlu0 %v2904, 124
      %v2957 = vpop.permute.xlu0 %2956
      %2958 = vrot.lane.b32.xlu0 %v2905, 124
      %v2959 = vpop.permute.xlu0 %2958
      %2960 = vrot.lane.b32.xlu0 %v2906, 124
      %v2961 = vpop.permute.xlu0 %2960
      %2962 = vrot.lane.b32.xlu0 %v2907, 124
      %v2963 = vpop.permute.xlu0 %2962
      %2964 = vrot.lane.b32.xlu0 %v2908, 124
      %v2965 = vpop.permute.xlu0 %2964
      %2966 = vrot.lane.b32.xlu0 %v2909, 124
      %v2967 = vpop.permute.xlu0 %2966
      %2968 = vrot.lane.b32.xlu0 %v2910, 124
      %v2969 = vpop.permute.xlu0 %2968
      %2970 = vrot.lane.b32.xlu0 %v2911, 124
      %v2971 = vpop.permute.xlu0 %2970
      %2972 = vrot.lane.b32.xlu0 %v2912, 124
      %v2973 = vpop.permute.xlu0 %2972
      %2974 = vrot.lane.b32.xlu0 %v2913, 124
      %v2975 = vpop.permute.xlu0 %2974
      %2976 = vrot.lane.b32.xlu0 %v2914, 124
      %v2977 = vpop.permute.xlu0 %2976
      %2978 = vrot.lane.b32.xlu0 %v2915, 124
      %v2979 = vpop.permute.xlu0 %2978
      %vm3012 = vcmask 27648
      %3013 = vst.msk [vmem:[%s576] sm:$0xf] %vm3012, %v2917
      %3014 = vst.msk [vmem:[%s576 + $0x4] sm:$0xf] %vm3012, %v2919
      %3015 = vst.msk [vmem:[%s576 + $0x8] sm:$0xf] %vm3012, %v2921
      %3016 = vst.msk [vmem:[%s576 + $0xc] sm:$0xf] %vm3012, %v2923
      %3017 = vst.msk [vmem:[%s576 + $0x10] sm:$0xf] %vm3012, %v2925
      %3018 = vst.msk [vmem:[%s576 + $0x14] sm:$0xf] %vm3012, %v2927
      %3019 = vst.msk [vmem:[%s576 + $0x18] sm:$0xf] %vm3012, %v2929
      %3020 = vst.msk [vmem:[%s576 + $0x1c] sm:$0xf] %vm3012, %v2931
      %3021 = vst.msk [vmem:[%s576 + $0x20] sm:$0xf] %vm3012, %v2933
      %3022 = vst.msk [vmem:[%s576 + $0x24] sm:$0xf] %vm3012, %v2935
      %3023 = vst.msk [vmem:[%s576 + $0x28] sm:$0xf] %vm3012, %v2937
      %3024 = vst.msk [vmem:[%s576 + $0x2c] sm:$0xf] %vm3012, %v2939
      %3025 = vst.msk [vmem:[%s576 + $0x30] sm:$0xf] %vm3012, %v2941
      %3026 = vst.msk [vmem:[%s576 + $0x34] sm:$0xf] %vm3012, %v2943
      %3027 = vst.msk [vmem:[%s576 + $0x38] sm:$0xf] %vm3012, %v2945
      %3028 = vst.msk [vmem:[%s576 + $0x3c] sm:$0xf] %vm3012, %v2947
      %3029 = vst.msk [vmem:[%s576 + $0x40] sm:$0xf] %vm3012, %v2949
      %3030 = vst.msk [vmem:[%s576 + $0x44] sm:$0xf] %vm3012, %v2951
      %3031 = vst.msk [vmem:[%s576 + $0x48] sm:$0xf] %vm3012, %v2953
      %3032 = vst.msk [vmem:[%s576 + $0x4c] sm:$0xf] %vm3012, %v2955
      %3033 = vst.msk [vmem:[%s576 + $0x50] sm:$0xf] %vm3012, %v2957
      %3034 = vst.msk [vmem:[%s576 + $0x54] sm:$0xf] %vm3012, %v2959
      %3035 = vst.msk [vmem:[%s576 + $0x58] sm:$0xf] %vm3012, %v2961
      %3036 = vst.msk [vmem:[%s576 + $0x5c] sm:$0xf] %vm3012, %v2963
      %3037 = vst.msk [vmem:[%s576 + $0x60] sm:$0xf] %vm3012, %v2965
      %3038 = vst.msk [vmem:[%s576 + $0x64] sm:$0xf] %vm3012, %v2967
      %3039 = vst.msk [vmem:[%s576 + $0x68] sm:$0xf] %vm3012, %v2969
      %3040 = vst.msk [vmem:[%s576 + $0x6c] sm:$0xf] %vm3012, %v2971
      %3041 = vst.msk [vmem:[%s576 + $0x70] sm:$0xf] %vm3012, %v2973
      %3042 = vst.msk [vmem:[%s576 + $0x74] sm:$0xf] %vm3012, %v2975
      %3043 = vst.msk [vmem:[%s576 + $0x78] sm:$0xf] %vm3012, %v2977
      %3044 = vst.msk [vmem:[%s576 + $0x7c] sm:$0xf] %vm3012, %v2979
      %s3045 = smul.u32 16, %s28
      %p3046 = scmp.lt.s32.totalorder %s26, 1
      %s3047 = scalar_select %p3046, %s26, 1
      %p3048 = scmp.lt.s32.totalorder %s3045, 15
      %s3049 = scalar_select %p3048, %s3045, 15
      %p3050 = scmp.lt.s32.totalorder %s27, 0
      %s3051 = scalar_select %p3050, %s27, 0
      %s3052 = smul.addr %s3049, 2
      %s3053 = sadd.s32 %s3051, %s3052
      %s3054 = smul.addr %s3047, 32
      %s3055 = sadd.s32 %s3053, %s3054
      %s3056 = smul.addr %s3055, 4
      %s3057 = scalar_lea.vmem %s7, %s3056
      %p3058 = scmp.lt.s32.totalorder %s26, 1
      %s3059 = scalar_select %p3058, %s26, 1
      %p3060 = scmp.lt.s32.totalorder %s28, 0
      %s3061 = scalar_select %p3060, %s28, 0
      %p3062 = scmp.lt.s32.totalorder %s27, 0
      %s3063 = scalar_select %p3062, %s27, 0
      %s3064 = sadd.s32 %s3063, %s3061
      %s3065 = sadd.s32 %s3064, %s3059
      %s3066 = scalar_lea.vmem %s8, %s3065
      %p3067 = scmp.lt.s32.totalorder %s26, 1
      %s3068 = scalar_select %p3067, %s26, 1
      %p3069 = scmp.lt.s32.totalorder %s28, 0
      %s3070 = scalar_select %p3069, %s28, 0
      %p3071 = scmp.lt.s32.totalorder %s27, 0
      %s3072 = scalar_select %p3071, %s27, 0
      %s3073 = sadd.s32 %s3072, %s3070
      %s3074 = sadd.s32 %s3073, %s3068
      %s3075 = scalar_lea.vmem %s9, %s3074
      // Predicated region
      $region49: #{decoder_block_forward.5} parent=47 // pred_check
        %p3076 = pneg %p252
      $region50: #{decoder_block_forward.5} parent=47 // pred_check_branch
        %3078 = sbr.rel (%p3076) target = $region52
      $region51: #{decoder_block_forward.5} parent=47 // pred_region
        %s3079 = smul.u32 16, %s28
      $region52: #{decoder_block_forward.5} parent=47 // pred_fallthru
        _
      // Predicated region
      $region53: #{decoder_block_forward.5} parent=47 // pred_check
        %p3080 = pneg %p282
      $region54: #{decoder_block_forward.5} parent=47 // pred_check_branch
        %3082 = sbr.rel (%p3080) target = $region56
      $region55: #{decoder_block_forward.5} parent=47 // pred_region
        _
      $region56: #{decoder_block_forward.5} parent=47 // pred_fallthru
        _
      // Predicated region
      $region57: #{decoder_block_forward.5} parent=47 // pred_check
        %p3083 = pneg %p312
      $region58: #{decoder_block_forward.5} parent=47 // pred_check_branch
        %3085 = sbr.rel (%p3083) target = $region60
      $region59: #{decoder_block_forward.5} parent=47 // pred_region
        _
      $region60: #{decoder_block_forward.5} parent=47 // pred_fallthru
        _
    $region48: #{decoder_block_forward.5} parent=5 // pred_fallthru
      _
    %p3086 = scmp.le.s32.totalorder 2, %s16
    // Predicated region
    $region61: #{decoder_block_forward.5} parent=5 // pred_check
      %p3087 = pneg %p3086
    $region62: #{decoder_block_forward.5} parent=5 // pred_check_branch
      %3089 = sbr.rel (%p3087) target = $region64
    $region63: #{decoder_block_forward.5} parent=5 // pred_region
      %s3090 = ssub.s32 %s16, 2
      // Predicated region
      $region65: #{decoder_block_forward.5} parent=63 // pred_check
        %p3091 = pneg %p258
      $region66: #{decoder_block_forward.5} parent=63 // pred_check_branch
        %3093 = sbr.rel (%p3091) target = $region68
      $region67: #{decoder_block_forward.5} parent=63 // pred_region
        %s3094 = smul.u32 16, %s31
        %p3095 = scmp.lt.s32.totalorder %s29, 1
        %s3096 = scalar_select %p3095, %s29, 1
        %p3097 = scmp.lt.s32.totalorder %s3094, 15
        %s3098 = scalar_select %p3097, %s3094, 15
        %p3099 = scmp.lt.s32.totalorder %s30, 0
        %s3100 = scalar_select %p3099, %s30, 0
        %s3101 = smul.addr %s3098, 2
        %s3102 = sadd.s32 %s3100, %s3101
        %s3103 = smul.addr %s3096, 32
        %s3104 = sadd.s32 %s3102, %s3103
        %s3105 = smul.addr %s3104, 4
        %s3106 = scalar_lea.vmem %s7, %s3105
      $region68: #{decoder_block_forward.5} parent=63 // pred_fallthru
        _
      // Predicated region
      $region69: #{decoder_block_forward.5} parent=63 // pred_check
        %p3107 = pneg %p288
      $region70: #{decoder_block_forward.5} parent=63 // pred_check_branch
        %3109 = sbr.rel (%p3107) target = $region72
      $region71: #{decoder_block_forward.5} parent=63 // pred_region
        %p3110 = scmp.lt.s32.totalorder %s29, 1
        %s3111 = scalar_select %p3110, %s29, 1
        %p3112 = scmp.lt.s32.totalorder %s31, 0
        %s3113 = scalar_select %p3112, %s31, 0
        %p3114 = scmp.lt.s32.totalorder %s30, 0
        %s3115 = scalar_select %p3114, %s30, 0
        %s3116 = sadd.s32 %s3115, %s3113
        %s3117 = sadd.s32 %s3116, %s3111
        %s3118 = scalar_lea.vmem %s8, %s3117
      $region72: #{decoder_block_forward.5} parent=63 // pred_fallthru
        _
      // Predicated region
      $region73: #{decoder_block_forward.5} parent=63 // pred_check
        %p3119 = pneg %p318
      $region74: #{decoder_block_forward.5} parent=63 // pred_check_branch
        %3121 = sbr.rel (%p3119) target = $region76
      $region75: #{decoder_block_forward.5} parent=63 // pred_region
        %p3122 = scmp.lt.s32.totalorder %s29, 1
        %s3123 = scalar_select %p3122, %s29, 1
        %p3124 = scmp.lt.s32.totalorder %s31, 0
        %s3125 = scalar_select %p3124, %s31, 0
        %p3126 = scmp.lt.s32.totalorder %s30, 0
        %s3127 = scalar_select %p3126, %s30, 0
        %s3128 = sadd.s32 %s3127, %s3125
        %s3129 = sadd.s32 %s3128, %s3123
        %s3130 = scalar_lea.vmem %s9, %s3129
      $region76: #{decoder_block_forward.5} parent=63 // pred_fallthru
        _
    $region64: #{decoder_block_forward.5} parent=5 // pred_fallthru
      _
  $region6: #{decoder_block_forward.5} parent=0 // loop_footer
    %s20 = sadd.s32 1, %s16
  $region7: #{decoder_block_forward.5} parent=0 // loop_footer_branch
    %15 = sbr.rel target = $region3
  $region8: #{decoder_block_forward.5} parent=0 // loop_exit
    _

</llo_original>
